<compile_context>
chip_gen: v7x
topology: tpu7x:2x2x1
jax: 0.10.0
libtpu: 0.0.40
codegen_flags: <defaults>
</compile_context>

<pallas_src>
import jax
import jax.numpy as jnp
from jax.experimental import pallas as pl
from jax.experimental.pallas import tpu as pltpu

N_EMBD = 384
HIDDEN = 4 * N_EMBD                         # 1536
HIDDEN_CHUNK = 512                          # multiple of 256 (v6e/v7x MXU) and 128 (v5e)
N_HIDDEN_CHUNKS = HIDDEN // HIDDEN_CHUNK    # 3
MAX_BLOCK_ROWS = 512                        # sweepable upper bound on the row tile


def ffn_kernel(x_ref, w1_ref, b1_ref, w2_ref, b2_ref, out_ref, acc_ref):
    """One (block_rows, N_EMBD) row tile of relu(x @ W1 + b1) @ W2 + b2."""
    x = x_ref[...]                                    # (rows, C) bf16
    acc_ref[...] = jnp.zeros_like(acc_ref)            # (rows, C) f32 accumulator

    # Chunk the hidden dim so the f32 intermediate is only (rows, 512) at a time
    # instead of a full (rows, 1536) slab that would spill / burn the vst slot.
    for c in range(N_HIDDEN_CHUNKS):
        lo = c * HIDDEN_CHUNK
        hi = lo + HIDDEN_CHUNK
        h = jnp.dot(x, w1_ref[:, lo:hi],
                    preferred_element_type=jnp.float32)       # MXU, f32 accumulate
        h = jnp.maximum(h + b1_ref[:, lo:hi], 0.0)            # bias + ReLU in f32
        acc_ref[...] += jnp.dot(h.astype(jnp.bfloat16), w2_ref[lo:hi, :],
                                preferred_element_type=jnp.float32)

    # TODO(synk): nn.Dropout(0.2) is identity in inference mode; training-mode
    # stochastic masking (pltpu.prng_seed/prng_random_bits + 1/0.8 scaling) is
    # not reproduced here.
    out_ref[...] = (acc_ref[...] + b2_ref[...]).astype(out_ref.dtype)


def _pick_block_rows(n_rows, max_block=MAX_BLOCK_ROWS):
    """Row tile: multiple of 128, <= max_block, and >= 2 grid steps when possible."""
    if n_rows <= 128:
        return 128
    half = ((n_rows // 2) // 128) * 128     # largest tile that still gives >= 2 steps
    return max(128, min(max_block, half))


def feedforward(x, params, *, block_rows=None):
    """Applies the FeedForward module to x of shape (..., N_EMBD). Returns bf16."""
    orig_shape = x.shape
    assert orig_shape[-1] == N_EMBD

    # bf16 activations end-to-end (ideally the caller already supplies bf16).
    xf = x.reshape(-1, N_EMBD).astype(jnp.bfloat16)
    n = xf.shape[0]
    if block_rows is None:
        block_rows = _pick_block_rows(n)
    grid = (pl.cdiv(n, block_rows),)        # ragged last block handled by Pallas

    w1, b1, w2, b2 = params["w1"], params["b1"], params["w2"], params["b2"]

    out = pl.pallas_call(
        ffn_kernel,
        out_shape=jax.ShapeDtypeStruct((n, N_EMBD), jnp.bfloat16),
        grid_spec=pltpu.PrefetchScalarGridSpec(
            num_scalar_prefetch=0,
            grid=grid,
            in_specs=[
                pl.BlockSpec((block_rows, N_EMBD), lambda i: (i, 0)),  # x  (bf16)
                pl.BlockSpec(w1.shape, lambda i: (0, 0)),              # W1 (C, 4C) bf16, resident
                pl.BlockSpec(b1.shape, lambda i: (0, 0)),              # b1 (1, 4C) f32
                pl.BlockSpec(w2.shape, lambda i: (0, 0)),              # W2 (4C, C) bf16, resident
                pl.BlockSpec(b2.shape, lambda i: (0, 0)),              # b2 (1, C) f32
            ],
            out_specs=pl.BlockSpec((block_rows, N_EMBD), lambda i: (i, 0)),
            scratch_shapes=[pltpu.VMEM((block_rows, N_EMBD), jnp.float32)],
        ),
        compiler_params=pltpu.CompilerParams(
            # Row tiles are independent -> shard across TensorCores on v7x.
            dimension_semantics=("parallel",),
        ),
    )(xf, w1, b1, w2, b2)

    return out.reshape(orig_shape)


def feedforward_ref_bf16(x, params):
    """Matched-precision reference: bf16 matmul operands, f32 accumulate, bf16 out."""
    xf = x.reshape(-1, N_EMBD).astype(jnp.bfloat16)
    h = jnp.dot(xf, params["w1"], preferred_element_type=jnp.float32) + params["b1"]
    h = jnp.maximum(h, 0.0)
    y = jnp.dot(h.astype(jnp.bfloat16), params["w2"],
                preferred_element_type=jnp.float32) + params["b2"]
    return y.astype(jnp.bfloat16).reshape(x.shape)


def feedforward_ref_f32(x, params):
    """Full-f32 reference (weights upcast from their bf16 storage)."""
    xf = x.reshape(-1, N_EMBD).astype(jnp.float32)
    h = jnp.maximum(xf @ params["w1"].astype(jnp.float32) + params["b1"], 0.0)
    y = h @ params["w2"].astype(jnp.float32) + params["b2"]
    return y.reshape(x.shape)


def init_params(key):
    k1, k2, k3 = jax.random.split(key, 3)
    s = 0.02
    return {
        # Weights stored pre-transposed as (in, out) and in bf16 (halves DMA bytes,
        # native MXU path).  TODO(synk): optional int8 (v5e/v6e) / fp8 (v7x) weight
        # storage is a generation-specific follow-up requiring re-validation.
        "w1": (s * jax.random.normal(k1, (N_EMBD, HIDDEN), jnp.float32)).astype(jnp.bfloat16),
        "b1": jnp.zeros((1, HIDDEN), jnp.float32),
        "w2": (s * jax.random.normal(k2, (HIDDEN, N_EMBD), jnp.float32)).astype(jnp.bfloat16),
        "b2": s * jax.random.normal(k3, (1, N_EMBD), jnp.float32),
    }


if __name__ == "__main__":
    key = jax.random.PRNGKey(0)
    kx, kp = jax.random.split(key)

    B, T = 4, 64                  # 256 rows -> block_rows=128 -> 2 parallel grid steps
    x = jax.random.normal(kx, (B, T, N_EMBD), jnp.float32)
    params = init_params(kp)

    out = jax.block_until_ready(feedforward(x, params))

    assert out.shape == (B, T, N_EMBD)
    assert out.dtype == jnp.bfloat16
    out_f32 = out.astype(jnp.float32)
    assert bool(jnp.all(jnp.isfinite(out_f32)))

    # Matched-precision check (tight).
    ref_b = feedforward_ref_bf16(x, params).astype(jnp.float32)
    err_b = float(jnp.max(jnp.abs(out_f32 - ref_b)))
    assert bool(jnp.allclose(out_f32, ref_b, atol=1e-2, rtol=1e-2)), err_b

    # True f32 reference (loose, bounds the bf16 numerics drift).
    ref_f = feedforward_ref_f32(x, params)
    err_f = float(jnp.max(jnp.abs(out_f32 - ref_f)))
    assert bool(jnp.allclose(out_f32, ref_f, atol=3e-2, rtol=3e-2)), err_f

    print("KERNEL_OK")
</pallas_src>

<mosaic_0001>
module attributes {stable_mosaic.version = 11 : i64} {
  func.func @ffn_kernel(%arg0: i32, %arg1: memref<128x384xbf16, #tpu.memory_space<vmem>>, %arg2: memref<384x1536xbf16, #tpu.memory_space<vmem>>, %arg3: memref<1x1536xf32, #tpu.memory_space<vmem>>, %arg4: memref<1536x384xbf16, #tpu.memory_space<vmem>>, %arg5: memref<1x384xf32, #tpu.memory_space<vmem>>, %arg6: memref<128x384xbf16, #tpu.memory_space<vmem>>, %arg7: memref<128x384xf32, #tpu.memory_space<vmem>>) attributes {dimension_semantics = [#tpu.dimension_semantics<parallel>], iteration_bounds = array<i64: 2>, scalar_prefetch = 0 : i64, scratch_operands = 1 : i64, tpu.core_type = #tpu.core_type<tc>, window_params = [{transform_indices = @transform_0, window_bounds = array<i64: 128, 384>}, {pipeline_mode = #tpu.pipeline_mode<synchronous>, transform_indices = @transform_1, window_bounds = array<i64: 384, 1536>}, {pipeline_mode = #tpu.pipeline_mode<synchronous>, transform_indices = @transform_2, window_bounds = array<i64: 1, 1536>}, {pipeline_mode = #tpu.pipeline_mode<synchronous>, transform_indices = @transform_3, window_bounds = array<i64: 1536, 384>}, {pipeline_mode = #tpu.pipeline_mode<synchronous>, transform_indices = @transform_4, window_bounds = array<i64: 1, 384>}, {transform_indices = @transform_5, window_bounds = array<i64: 128, 384>}]} {
    %c0 = arith.constant 0 : index
    %c0_0 = arith.constant 0 : index
    %0 = vector.load %arg1[%c0, %c0_0] : memref<128x384xbf16, #tpu.memory_space<vmem>>, vector<128x384xbf16>
    %cst = arith.constant 0.000000e+00 : f32
    %1 = vector.broadcast %cst : f32 to vector<128x384xf32>
    %c0_1 = arith.constant 0 : index
    %c0_2 = arith.constant 0 : index
    %2 = vector.load %arg7[%c0_1, %c0_2] : memref<128x384xf32, #tpu.memory_space<vmem>>, vector<128x384xf32>
    tpu.vector_store %arg7[%c0_1, %c0_2], %1 {strides = array<i32>} : memref<128x384xf32, #tpu.memory_space<vmem>>, vector<128x384xf32>,
    %c0_3 = arith.constant 0 : index
    %c0_4 = arith.constant 0 : index
    %3 = vector.load %arg2[%c0_3, %c0_4] : memref<384x1536xbf16, #tpu.memory_space<vmem>>, vector<384x512xbf16>
    %cst_5 = arith.constant dense<0.000000e+00> : vector<128x512xf32>
    %4 = tpu.matmul %0, %3, %cst_5 {dimension_numbers = #tpu.dot_dimension_numbers<[1], [0], [0], [1], [0, 0, 1, 1], [], []>} : vector<128x384xbf16>, vector<384x512xbf16>, vector<128x512xf32> -> vector<128x512xf32>
    %c0_6 = arith.constant 0 : index
    %c0_7 = arith.constant 0 : index
    %5 = vector.load %arg3[%c0_6, %c0_7] : memref<1x1536xf32, #tpu.memory_space<vmem>>, vector<1x512xf32>
    %6 = vector.broadcast %5 : vector<1x512xf32> to vector<128x512xf32>
    %7 = arith.addf %4, %6 : vector<128x512xf32>
    %cst_8 = arith.constant 0.000000e+00 : f32
    %8 = vector.broadcast %cst_8 : f32 to vector<128x512xf32>
    %9 = arith.maximumf %7, %8 : vector<128x512xf32>
    %c0_9 = arith.constant 0 : index
    %c0_10 = arith.constant 0 : index
    %10 = vector.load %arg7[%c0_9, %c0_10] : memref<128x384xf32, #tpu.memory_space<vmem>>, vector<128x384xf32>
    %11 = arith.truncf %9 : vector<128x512xf32> to vector<128x512xbf16>
    %c0_11 = arith.constant 0 : index
    %c0_12 = arith.constant 0 : index
    %12 = vector.load %arg4[%c0_11, %c0_12] : memref<1536x384xbf16, #tpu.memory_space<vmem>>, vector<512x384xbf16>
    %cst_13 = arith.constant dense<0.000000e+00> : vector<128x384xf32>
    %13 = tpu.matmul %11, %12, %cst_13 {dimension_numbers = #tpu.dot_dimension_numbers<[1], [0], [0], [1], [0, 0, 1, 1], [], []>} : vector<128x512xbf16>, vector<512x384xbf16>, vector<128x384xf32> -> vector<128x384xf32>
    %14 = arith.addf %10, %13 : vector<128x384xf32>
    %c0_14 = arith.constant 0 : index
    %c0_15 = arith.constant 0 : index
    %15 = vector.load %arg7[%c0_14, %c0_15] : memref<128x384xf32, #tpu.memory_space<vmem>>, vector<128x384xf32>
    tpu.vector_store %arg7[%c0_14, %c0_15], %14 {strides = array<i32>} : memref<128x384xf32, #tpu.memory_space<vmem>>, vector<128x384xf32>,
    %c0_16 = arith.constant 0 : index
    %c512 = arith.constant 512 : index
    %16 = vector.load %arg2[%c0_16, %c512] : memref<384x1536xbf16, #tpu.memory_space<vmem>>, vector<384x512xbf16>
    %cst_17 = arith.constant dense<0.000000e+00> : vector<128x512xf32>
    %17 = tpu.matmul %0, %16, %cst_17 {dimension_numbers = #tpu.dot_dimension_numbers<[1], [0], [0], [1], [0, 0, 1, 1], [], []>} : vector<128x384xbf16>, vector<384x512xbf16>, vector<128x512xf32> -> vector<128x512xf32>
    %c0_18 = arith.constant 0 : index
    %c512_19 = arith.constant 512 : index
    %18 = vector.load %arg3[%c0_18, %c512_19] : memref<1x1536xf32, #tpu.memory_space<vmem>>, vector<1x512xf32>
    %19 = vector.broadcast %18 : vector<1x512xf32> to vector<128x512xf32>
    %20 = arith.addf %17, %19 : vector<128x512xf32>
    %cst_20 = arith.constant 0.000000e+00 : f32
    %21 = vector.broadcast %cst_20 : f32 to vector<128x512xf32>
    %22 = arith.maximumf %20, %21 : vector<128x512xf32>
    %c0_21 = arith.constant 0 : index
    %c0_22 = arith.constant 0 : index
    %23 = vector.load %arg7[%c0_21, %c0_22] : memref<128x384xf32, #tpu.memory_space<vmem>>, vector<128x384xf32>
    %24 = arith.truncf %22 : vector<128x512xf32> to vector<128x512xbf16>
    %c512_23 = arith.constant 512 : index
    %c0_24 = arith.constant 0 : index
    %25 = vector.load %arg4[%c512_23, %c0_24] : memref<1536x384xbf16, #tpu.memory_space<vmem>>, vector<512x384xbf16>
    %cst_25 = arith.constant dense<0.000000e+00> : vector<128x384xf32>
    %26 = tpu.matmul %24, %25, %cst_25 {dimension_numbers = #tpu.dot_dimension_numbers<[1], [0], [0], [1], [0, 0, 1, 1], [], []>} : vector<128x512xbf16>, vector<512x384xbf16>, vector<128x384xf32> -> vector<128x384xf32>
    %27 = arith.addf %23, %26 : vector<128x384xf32>
    %c0_26 = arith.constant 0 : index
    %c0_27 = arith.constant 0 : index
    %28 = vector.load %arg7[%c0_26, %c0_27] : memref<128x384xf32, #tpu.memory_space<vmem>>, vector<128x384xf32>
    tpu.vector_store %arg7[%c0_26, %c0_27], %27 {strides = array<i32>} : memref<128x384xf32, #tpu.memory_space<vmem>>, vector<128x384xf32>,
    %c0_28 = arith.constant 0 : index
    %c1024 = arith.constant 1024 : index
    %29 = vector.load %arg2[%c0_28, %c1024] : memref<384x1536xbf16, #tpu.memory_space<vmem>>, vector<384x512xbf16>
    %cst_29 = arith.constant dense<0.000000e+00> : vector<128x512xf32>
    %30 = tpu.matmul %0, %29, %cst_29 {dimension_numbers = #tpu.dot_dimension_numbers<[1], [0], [0], [1], [0, 0, 1, 1], [], []>} : vector<128x384xbf16>, vector<384x512xbf16>, vector<128x512xf32> -> vector<128x512xf32>
    %c0_30 = arith.constant 0 : index
    %c1024_31 = arith.constant 1024 : index
    %31 = vector.load %arg3[%c0_30, %c1024_31] : memref<1x1536xf32, #tpu.memory_space<vmem>>, vector<1x512xf32>
    %32 = vector.broadcast %31 : vector<1x512xf32> to vector<128x512xf32>
    %33 = arith.addf %30, %32 : vector<128x512xf32>
    %cst_32 = arith.constant 0.000000e+00 : f32
    %34 = vector.broadcast %cst_32 : f32 to vector<128x512xf32>
    %35 = arith.maximumf %33, %34 : vector<128x512xf32>
    %c0_33 = arith.constant 0 : index
    %c0_34 = arith.constant 0 : index
    %36 = vector.load %arg7[%c0_33, %c0_34] : memref<128x384xf32, #tpu.memory_space<vmem>>, vector<128x384xf32>
    %37 = arith.truncf %35 : vector<128x512xf32> to vector<128x512xbf16>
    %c1024_35 = arith.constant 1024 : index
    %c0_36 = arith.constant 0 : index
    %38 = vector.load %arg4[%c1024_35, %c0_36] : memref<1536x384xbf16, #tpu.memory_space<vmem>>, vector<512x384xbf16>
    %cst_37 = arith.constant dense<0.000000e+00> : vector<128x384xf32>
    %39 = tpu.matmul %37, %38, %cst_37 {dimension_numbers = #tpu.dot_dimension_numbers<[1], [0], [0], [1], [0, 0, 1, 1], [], []>} : vector<128x512xbf16>, vector<512x384xbf16>, vector<128x384xf32> -> vector<128x384xf32>
    %40 = arith.addf %36, %39 : vector<128x384xf32>
    %c0_38 = arith.constant 0 : index
    %c0_39 = arith.constant 0 : index
    %41 = vector.load %arg7[%c0_38, %c0_39] : memref<128x384xf32, #tpu.memory_space<vmem>>, vector<128x384xf32>
    tpu.vector_store %arg7[%c0_38, %c0_39], %40 {strides = array<i32>} : memref<128x384xf32, #tpu.memory_space<vmem>>, vector<128x384xf32>,
    %c0_40 = arith.constant 0 : index
    %c0_41 = arith.constant 0 : index
    %42 = vector.load %arg7[%c0_40, %c0_41] : memref<128x384xf32, #tpu.memory_space<vmem>>, vector<128x384xf32>
    %c0_42 = arith.constant 0 : index
    %c0_43 = arith.constant 0 : index
    %43 = vector.load %arg5[%c0_42, %c0_43] : memref<1x384xf32, #tpu.memory_space<vmem>>, vector<1x384xf32>
    %44 = vector.broadcast %43 : vector<1x384xf32> to vector<128x384xf32>
    %45 = arith.addf %42, %44 : vector<128x384xf32>
    %46 = arith.truncf %45 : vector<128x384xf32> to vector<128x384xbf16>
    %c0_44 = arith.constant 0 : index
    %c0_45 = arith.constant 0 : index
    %47 = vector.load %arg6[%c0_44, %c0_45] : memref<128x384xbf16, #tpu.memory_space<vmem>>, vector<128x384xbf16>
    tpu.vector_store %arg6[%c0_44, %c0_45], %46 {strides = array<i32>} : memref<128x384xbf16, #tpu.memory_space<vmem>>, vector<128x384xbf16>,
    return
  }
  func.func @transform_0(%arg0: i32) -> (i32, i32) {
    %c0_i32 = arith.constant 0 : i32
    %c0_i32_0 = arith.constant 0 : i32
    return %arg0, %c0_i32 : i32, i32
  }
  func.func @transform_1(%arg0: i32) -> (i32, i32) {
    %c0_i32 = arith.constant 0 : i32
    %c0_i32_0 = arith.constant 0 : i32
    %c0_i32_1 = arith.constant 0 : i32
    return %c0_i32, %c0_i32_0 : i32, i32
  }
  func.func @transform_2(%arg0: i32) -> (i32, i32) {
    %c0_i32 = arith.constant 0 : i32
    %c0_i32_0 = arith.constant 0 : i32
    %c0_i32_1 = arith.constant 0 : i32
    return %c0_i32, %c0_i32_0 : i32, i32
  }
  func.func @transform_3(%arg0: i32) -> (i32, i32) {
    %c0_i32 = arith.constant 0 : i32
    %c0_i32_0 = arith.constant 0 : i32
    %c0_i32_1 = arith.constant 0 : i32
    return %c0_i32, %c0_i32_0 : i32, i32
  }
  func.func @transform_4(%arg0: i32) -> (i32, i32) {
    %c0_i32 = arith.constant 0 : i32
    %c0_i32_0 = arith.constant 0 : i32
    %c0_i32_1 = arith.constant 0 : i32
    return %c0_i32, %c0_i32_0 : i32, i32
  }
  func.func @transform_5(%arg0: i32) -> (i32, i32) {
    %c0_i32 = arith.constant 0 : i32
    %c0_i32_0 = arith.constant 0 : i32
    return %arg0, %c0_i32 : i32, i32
  }
}

</mosaic_0001>

<llo_original>
// kernel: tpu_custom_call.1
$region0: #{tpu_custom_call.1}
  #allocation0 [shape = 'u32[]', space=smem, size = 0x4, offset = 0x4, fixed_abs, tag = 'smem constant byte address 0x4 - core index']
  #allocation1 [shape = 'u32[144,128]{1,0:T(1,128)}', space=vmem, size = 0x12000, scoped, tag = 'internal scratch']
  #allocation2 [shape = 'f32[128,384]{1,0:T(8,128)}', space=vmem, size = 0x30000, scoped, tag = 'scratch operand']
  %s0 = inlined_call_operand.hbm [shape: bf16[256,384], index: 0, kind: input, shape index: {}]
  %s1 = inlined_call_operand.hbm [shape: bf16[384,1536], index: 1, kind: input, shape index: {}]
  %s2 = inlined_call_operand.hbm [shape: f32[1,1536], index: 2, kind: input, shape index: {}]
  %s3 = inlined_call_operand.hbm [shape: bf16[1536,384], index: 3, kind: input, shape index: {}]
  %s4 = inlined_call_operand.hbm [shape: f32[1,384], index: 4, kind: input, shape index: {}]
  %s5 = inlined_call_operand.hbm [shape: bf16[256,384], index: 5, kind: output, shape index: {}]
  %s6 = sld [smem:[#allocation0]]
  $region73: #{tpu_custom_call.1} parent=0
    _
  %s8 = ssub.s32 1, %s6
  %s9 = scalar_select 0, %s8, %s6
  $region1: #{tpu_custom_call.1} parent=0
    #allocation3 [shape = 'u8[196608]{0}', space=vmem, size = 0x30000, scoped, tag = 'input window, operand 0']
    #allocation4 [shape = 's32[2]{0}', space=sflag, size = 0x8, scoped, tag = 'scoped memory for tpu_custom_call.1']
    #allocation5 [shape = 's32[2]{0}', space=sflag, size = 0x8, scoped, tag = 'scoped memory for tpu_custom_call.1']
    #allocation6 [shape = 'u8[1179648]{0}', space=vmem, size = 0x120000, scoped, tag = 'input window, operand 1, single buffered']
    #allocation7 [shape = 's32[1]{0}', space=sflag, size = 0x4, scoped, tag = 'scoped memory for tpu_custom_call.1']
    #allocation8 [shape = 'u8[6144]{0}', space=vmem, size = 0x1800, scoped, tag = 'input window, operand 2, single buffered']
    #allocation9 [shape = 'u8[1179648]{0}', space=vmem, size = 0x120000, scoped, tag = 'input window, operand 3, single buffered']
    #allocation10 [shape = 's32[1]{0}', space=sflag, size = 0x4, scoped, tag = 'scoped memory for tpu_custom_call.1']
    #allocation11 [shape = 'u8[1536]{0}', space=vmem, size = 0x800, scoped, tag = 'input window, operand 4, single buffered']
    #allocation12 [shape = 'u8[196608]{0}', space=vmem, size = 0x30000, scoped, tag = 'output window, operand 0']
    %10 = vsyncpa [#allocation4], 0
    %s11 = scalar_lea.sflag [#allocation4], 1
    %12 = vsyncpa %s11, 0
    %13 = vsyncpa [#allocation7], 0
    %14 = vsyncpa [#allocation10], 0
    %15 = vsyncpa [#allocation5], 0
    %s16 = scalar_lea.sflag [#allocation5], 1
    %17 = vsyncpa %s16, 0
    loop: start=0, step=1, limit=4
    $region2: #{tpu_custom_call.1} parent=1 // loop_pre_header
      _
    $region3: #{tpu_custom_call.1} parent=1 // loop_header
      %s19 = sphi 0, %s23
      %p20 = scmp.ge.s32.totalorder %s19, 4
      %s29 = sphi 0, %s31
      %s32 = sphi 0, %s29
      %s33 = sphi 0, %s32
      %s49 = sphi 0, %s33
      %s53 = sphi 0, %s53
      %s55 = sphi 0, %s53
      %s56 = sphi 0, %s55
      %s70 = sphi 0, %s56
      %s74 = sphi 0, %s74
      %s76 = sphi 0, %s74
      %s77 = sphi 0, %s76
      %s91 = sphi 0, %s77
      %s95 = sphi 0, %s95
      %s97 = sphi 0, %s95
      %s98 = sphi 0, %s97
      %s112 = sphi 0, %s98
      %s116 = sphi 0, %s116
      %s118 = sphi 0, %s116
      %s119 = sphi 0, %s118
      %s133 = sphi 0, %s119
      %s139 = sphi 0, %s141
      %s142 = sphi 0, %s139
      %s143 = sphi 0, %s142
      %s159 = sphi 0, %s143
    $region4: #{tpu_custom_call.1} parent=1 // loop_header_branch
      %22 = sbr.rel (%p20) target = $region8
    $region5: #{tpu_custom_call.1} parent=1 // loop_body
      %s24 = ssub.s32 %s19, 1
      %s25 = ssub.s32 %s19, 2
      %s26 = sadd.s32 %s19, 1
      %s27 = ssub.s32 %s19, %s26
      %p28 = scmp.eq.s32.totalorder %s27, 0
      %s30 = sadd.s32 %s29, 1
      %s31 = scalar_select %p28, %s29, %s30
      %p34 = pneg %p28
      %p35 = scmp.eq.s32.totalorder %s19, 1
      %p36 = por %p34, %p35
      %p37 = scmp.ne.s32.totalorder %s29, %s32
      %p38 = scmp.eq.s32.totalorder %s19, 0
      %p39 = por %p37, %p38
      %p40 = scmp.ne.s32.totalorder %s29, %s32
      %p41 = scmp.eq.s32.totalorder %s24, 1
      %p42 = por %p40, %p41
      %p43 = scmp.ne.s32.totalorder %s32, %s33
      %p44 = scmp.eq.s32.totalorder %s24, 0
      %p45 = por %p43, %p44
      %p46 = scmp.ne.s32.totalorder %s32, %s33
      %p47 = scmp.eq.s32.totalorder %s25, 1
      %p48 = por %p46, %p47
      %p50 = scmp.ne.s32.totalorder %s33, %s49
      %p51 = scmp.eq.s32.totalorder %s25, 0
      %p52 = por %p50, %p51
      %s54 = sadd.s32 %s53, 1
      %p57 = scmp.eq.s32.totalorder %s19, 1
      %p58 = scmp.ne.s32.totalorder %s53, %s55
      %p59 = scmp.eq.s32.totalorder %s19, 0
      %p60 = por %p58, %p59
      %p61 = scmp.ne.s32.totalorder %s53, %s55
      %p62 = scmp.eq.s32.totalorder %s24, 1
      %p63 = por %p61, %p62
      %p64 = scmp.ne.s32.totalorder %s55, %s56
      %p65 = scmp.eq.s32.totalorder %s24, 0
      %p66 = por %p64, %p65
      %p67 = scmp.ne.s32.totalorder %s55, %s56
      %p68 = scmp.eq.s32.totalorder %s25, 1
      %p69 = por %p67, %p68
      %p71 = scmp.ne.s32.totalorder %s56, %s70
      %p72 = scmp.eq.s32.totalorder %s25, 0
      %p73 = por %p71, %p72
      %s75 = sadd.s32 %s74, 1
      %p78 = scmp.eq.s32.totalorder %s19, 1
      %p79 = scmp.ne.s32.totalorder %s74, %s76
      %p80 = scmp.eq.s32.totalorder %s19, 0
      %p81 = por %p79, %p80
      %p82 = scmp.ne.s32.totalorder %s74, %s76
      %p83 = scmp.eq.s32.totalorder %s24, 1
      %p84 = por %p82, %p83
      %p85 = scmp.ne.s32.totalorder %s76, %s77
      %p86 = scmp.eq.s32.totalorder %s24, 0
      %p87 = por %p85, %p86
      %p88 = scmp.ne.s32.totalorder %s76, %s77
      %p89 = scmp.eq.s32.totalorder %s25, 1
      %p90 = por %p88, %p89
      %p92 = scmp.ne.s32.totalorder %s77, %s91
      %p93 = scmp.eq.s32.totalorder %s25, 0
      %p94 = por %p92, %p93
      %s96 = sadd.s32 %s95, 1
      %p99 = scmp.eq.s32.totalorder %s19, 1
      %p100 = scmp.ne.s32.totalorder %s95, %s97
      %p101 = scmp.eq.s32.totalorder %s19, 0
      %p102 = por %p100, %p101
      %p103 = scmp.ne.s32.totalorder %s95, %s97
      %p104 = scmp.eq.s32.totalorder %s24, 1
      %p105 = por %p103, %p104
      %p106 = scmp.ne.s32.totalorder %s97, %s98
      %p107 = scmp.eq.s32.totalorder %s24, 0
      %p108 = por %p106, %p107
      %p109 = scmp.ne.s32.totalorder %s97, %s98
      %p110 = scmp.eq.s32.totalorder %s25, 1
      %p111 = por %p109, %p110
      %p113 = scmp.ne.s32.totalorder %s98, %s112
      %p114 = scmp.eq.s32.totalorder %s25, 0
      %p115 = por %p113, %p114
      %s117 = sadd.s32 %s116, 1
      %p120 = scmp.eq.s32.totalorder %s19, 1
      %p121 = scmp.ne.s32.totalorder %s116, %s118
      %p122 = scmp.eq.s32.totalorder %s19, 0
      %p123 = por %p121, %p122
      %p124 = scmp.ne.s32.totalorder %s116, %s118
      %p125 = scmp.eq.s32.totalorder %s24, 1
      %p126 = por %p124, %p125
      %p127 = scmp.ne.s32.totalorder %s118, %s119
      %p128 = scmp.eq.s32.totalorder %s24, 0
      %p129 = por %p127, %p128
      %p130 = scmp.ne.s32.totalorder %s118, %s119
      %p131 = scmp.eq.s32.totalorder %s25, 1
      %p132 = por %p130, %p131
      %p134 = scmp.ne.s32.totalorder %s119, %s133
      %p135 = scmp.eq.s32.totalorder %s25, 0
      %p136 = por %p134, %p135
      %s137 = ssub.s32 %s19, %s26
      %p138 = scmp.eq.s32.totalorder %s137, 0
      %s140 = sadd.s32 %s139, 1
      %s141 = scalar_select %p138, %s139, %s140
      %p144 = pneg %p138
      %p145 = scmp.eq.s32.totalorder %s19, 1
      %p146 = por %p144, %p145
      %p147 = scmp.ne.s32.totalorder %s139, %s142
      %p148 = scmp.eq.s32.totalorder %s19, 0
      %p149 = por %p147, %p148
      %p150 = scmp.ne.s32.totalorder %s139, %s142
      %p151 = scmp.eq.s32.totalorder %s24, 1
      %p152 = por %p150, %p151
      %p153 = scmp.ne.s32.totalorder %s142, %s143
      %p154 = scmp.eq.s32.totalorder %s24, 0
      %p155 = por %p153, %p154
      %p156 = scmp.ne.s32.totalorder %s142, %s143
      %p157 = scmp.eq.s32.totalorder %s25, 1
      %p158 = por %p156, %p157
      %p160 = scmp.ne.s32.totalorder %s143, %s159
      %p161 = scmp.eq.s32.totalorder %s25, 0
      %p162 = por %p160, %p161
      %p163 = scmp.le.s32.totalorder 1, %s19
      %p164 = scmp.lt.s32.totalorder %s19, 3
      %p165 = pnand %p163, %p164
      %p166 = pneg %p165
      // Predicated region
      $region9: #{tpu_custom_call.1} parent=5 // pred_check
        _
      $region10: #{tpu_custom_call.1} parent=5 // pred_check_branch
        %168 = sbr.rel (%p165) target = $region12
      $region11: #{tpu_custom_call.1} parent=5 // pred_region
        %s169 = ssub.s32 %s19, 1
        // Predicated region
        $region13: #{tpu_custom_call.1} parent=11 // pred_check
          %p170 = pneg %p66
        $region14: #{tpu_custom_call.1} parent=11 // pred_check_branch
          %172 = sbr.rel (%p170) target = $region16
        $region15: #{tpu_custom_call.1} parent=11 // pred_region
          %s174 = ssub.s32 36864, 36864
          %175 = vsyncadd [#allocation7], %s174
          %s176 = sshll.u32 [#allocation6], 4
          %s177 = int_to_ptr.vmem [resolvable:$true] %s176
          %182 = dma.hbm_to_vmem [thread:$0]  %s1, 36864, %s177, [#allocation7], 768, 768, 48
        $region16: #{tpu_custom_call.1} parent=11 // pred_fallthru
          _
        // Predicated region
        $region17: #{tpu_custom_call.1} parent=11 // pred_check
          %p183 = pneg %p87
        $region18: #{tpu_custom_call.1} parent=11 // pred_check_branch
          %185 = sbr.rel (%p183) target = $region20
        $region19: #{tpu_custom_call.1} parent=11 // pred_region
          %s187 = ssub.s32 192, 192
          %188 = vsyncadd [#allocation7], %s187
          %s190 = sshll.u32 [#allocation8], 4
          %s191 = int_to_ptr.vmem [resolvable:$true] %s190
          %193 = dma.hbm_to_vmem [thread:$0]  %s2, 192, %s191, [#allocation7]
        $region20: #{tpu_custom_call.1} parent=11 // pred_fallthru
          _
        // Predicated region
        $region21: #{tpu_custom_call.1} parent=11 // pred_check
          %p194 = pneg %p108
        $region22: #{tpu_custom_call.1} parent=11 // pred_check_branch
          %196 = sbr.rel (%p194) target = $region24
        $region23: #{tpu_custom_call.1} parent=11 // pred_region
          %s198 = ssub.s32 36864, 36864
          %199 = vsyncadd [#allocation10], %s198
          %s200 = sshll.u32 [#allocation9], 4
          %s201 = int_to_ptr.vmem [resolvable:$true] %s200
          %206 = dma.hbm_to_vmem [thread:$0]  %s3, 36864, %s201, [#allocation10], 192, 192, 12
        $region24: #{tpu_custom_call.1} parent=11 // pred_fallthru
          _
        // Predicated region
        $region25: #{tpu_custom_call.1} parent=11 // pred_check
          %p207 = pneg %p129
        $region26: #{tpu_custom_call.1} parent=11 // pred_check_branch
          %209 = sbr.rel (%p207) target = $region28
        $region27: #{tpu_custom_call.1} parent=11 // pred_region
          %s211 = ssub.s32 48, 48
          %212 = vsyncadd [#allocation10], %s211
          %s214 = sshll.u32 [#allocation11], 4
          %s215 = int_to_ptr.vmem [resolvable:$true] %s214
          %217 = dma.hbm_to_vmem [thread:$0]  %s4, 48, %s215, [#allocation10]
        $region28: #{tpu_custom_call.1} parent=11 // pred_fallthru
          _
      $region12: #{tpu_custom_call.1} parent=5 // pred_fallthru
        _
      %p218 = scmp.lt.s32.totalorder %s19, 2
      // Predicated region
      $region29: #{tpu_custom_call.1} parent=5 // pred_check
        %p219 = pneg %p218
      $region30: #{tpu_custom_call.1} parent=5 // pred_check_branch
        %221 = sbr.rel (%p219) target = $region32
      $region31: #{tpu_custom_call.1} parent=5 // pred_region
        // Predicated region
        $region33: #{tpu_custom_call.1} parent=31 // pred_check
          %p222 = pneg %p39
        $region34: #{tpu_custom_call.1} parent=31 // pred_check_branch
          %224 = sbr.rel (%p222) target = $region36
        $region35: #{tpu_custom_call.1} parent=31 // pred_region
          %s225 = sand.u32 %s29, 1
          %s226 = scalar_lea.sflag [#allocation4], %s225
          %s227 = sand.u32 %s29, 1
          %s228 = smul.addr %s227, 192
          %s229 = scalar_lea.vmem [#allocation3], %s228
          %s230 = smul.u32 16, %s19
          %s232 = ssub.s32 3072, 3072
          %233 = vsyncadd %s226, %s232
          %s234 = smul.addr %s230, 3
          %s235 = smul.addr %s234, 64
          %s236 = scalar_lea.hbm %s0, %s235
          %s237 = sshll.u32 %s229, 4
          %s238 = int_to_ptr.vmem [resolvable:$true] %s237
          %243 = dma.hbm_to_vmem [thread:$0]  %s236, 3072, %s238, %s226, 192, 192, 12
        $region36: #{tpu_custom_call.1} parent=31 // pred_fallthru
          _
      $region32: #{tpu_custom_call.1} parent=5 // pred_fallthru
        _
      %p244 = scmp.le.s32.totalorder 1, %s19
      %p245 = scmp.lt.s32.totalorder %s19, 3
      %p246 = pnand %p244, %p245
      %p247 = pneg %p246
      // Predicated region
      $region37: #{tpu_custom_call.1} parent=5 // pred_check
        _
      $region38: #{tpu_custom_call.1} parent=5 // pred_check_branch
        %249 = sbr.rel (%p246) target = $region40
      $region39: #{tpu_custom_call.1} parent=5 // pred_region
        %s250 = ssub.s32 %s19, 1
        %s251 = sand.u32 %s32, 1
        %s252 = scalar_lea.sflag [#allocation4], %s251
        %s253 = sand.u32 %s32, 1
        %s254 = smul.addr %s253, 192
        %s255 = scalar_lea.vmem [#allocation3], %s254
        // Predicated region
        $region41: #{tpu_custom_call.1} parent=39 // pred_check
          %p256 = pneg %p45
        $region42: #{tpu_custom_call.1} parent=39 // pred_check_branch
          %258 = sbr.rel (%p256) target = $region44
        $region43: #{tpu_custom_call.1} parent=39 // pred_region
          %259 = dma.done %s252, 3072
        $region44: #{tpu_custom_call.1} parent=39 // pred_fallthru
          _
        // Predicated region
        $region45: #{tpu_custom_call.1} parent=39 // pred_check
          %p260 = pneg %p66
        $region46: #{tpu_custom_call.1} parent=39 // pred_check_branch
          %262 = sbr.rel (%p260) target = $region48
        $region47: #{tpu_custom_call.1} parent=39 // pred_region
          %263 = dma.done [#allocation7], 36864
        $region48: #{tpu_custom_call.1} parent=39 // pred_fallthru
          _
        // Predicated region
        $region49: #{tpu_custom_call.1} parent=39 // pred_check
          %p264 = pneg %p87
        $region50: #{tpu_custom_call.1} parent=39 // pred_check_branch
          %266 = sbr.rel (%p264) target = $region52
        $region51: #{tpu_custom_call.1} parent=39 // pred_region
          %267 = dma.done [#allocation7], 192
        $region52: #{tpu_custom_call.1} parent=39 // pred_fallthru
          _
        // Predicated region
        $region53: #{tpu_custom_call.1} parent=39 // pred_check
          %p268 = pneg %p108
        $region54: #{tpu_custom_call.1} parent=39 // pred_check_branch
          %270 = sbr.rel (%p268) target = $region56
        $region55: #{tpu_custom_call.1} parent=39 // pred_region
          %271 = dma.done [#allocation10], 36864
        $region56: #{tpu_custom_call.1} parent=39 // pred_fallthru
          _
        // Predicated region
        $region57: #{tpu_custom_call.1} parent=39 // pred_check
          %p272 = pneg %p129
        $region58: #{tpu_custom_call.1} parent=39 // pred_check_branch
          %274 = sbr.rel (%p272) target = $region60
        $region59: #{tpu_custom_call.1} parent=39 // pred_region
          %275 = dma.done [#allocation10], 48
        $region60: #{tpu_custom_call.1} parent=39 // pred_fallthru
          _
        %s276 = sand.u32 %s32, 1
        %s277 = scalar_lea.sflag [#allocation4], %s276
        %s278 = sand.u32 %s32, 1
        %s279 = smul.addr %s278, 192
        %s280 = scalar_lea.vmem [#allocation3], %s279
        %p281 = pneg %p45
        %p282 = pneg %p42
        %p283 = pneg %p66
        %p284 = pneg %p63
        %p285 = pneg %p87
        %p286 = pneg %p84
        %p287 = pneg %p108
        %p288 = pneg %p105
        %p289 = pneg %p129
        %p290 = pneg %p126
        %p291 = pneg %p155
        %p292 = pneg %p152
        %s293 = sand.u32 %s142, 1
        %s294 = scalar_lea.sflag [#allocation5], %s293
        %s295 = sand.u32 %s142, 1
        %s296 = smul.addr %s295, 192
        %s297 = scalar_lea.vmem [#allocation12], %s296
        %s298 = smul.u32 16, %s24
        %s299 = smul.u32 16, %s24
        %v301 = vld [vmem:[%s255] sm:$0xff]
        %v302 = vld [vmem:[%s255 + $0x8] sm:$0xf]
        %v303 = vld [vmem:[%s255 + $0xc] sm:$0xff]
        %v304 = vld [vmem:[%s255 + $0x14] sm:$0xf]
        %v305 = vld [vmem:[%s255 + $0x18] sm:$0xff]
        %v306 = vld [vmem:[%s255 + $0x20] sm:$0xf]
        %v307 = vld [vmem:[%s255 + $0x24] sm:$0xff]
        %v308 = vld [vmem:[%s255 + $0x2c] sm:$0xf]
        %v309 = vld [vmem:[%s255 + $0x30] sm:$0xff]
        %v310 = vld [vmem:[%s255 + $0x38] sm:$0xf]
        %v311 = vld [vmem:[%s255 + $0x3c] sm:$0xff]
        %v312 = vld [vmem:[%s255 + $0x44] sm:$0xf]
        %v313 = vld [vmem:[%s255 + $0x48] sm:$0xff]
        %v314 = vld [vmem:[%s255 + $0x50] sm:$0xf]
        %v315 = vld [vmem:[%s255 + $0x54] sm:$0xff]
        %v316 = vld [vmem:[%s255 + $0x5c] sm:$0xf]
        %v317 = vld [vmem:[%s255 + $0x60] sm:$0xff]
        %v318 = vld [vmem:[%s255 + $0x68] sm:$0xf]
        %v319 = vld [vmem:[%s255 + $0x6c] sm:$0xff]
        %v320 = vld [vmem:[%s255 + $0x74] sm:$0xf]
        %v321 = vld [vmem:[%s255 + $0x78] sm:$0xff]
        %v322 = vld [vmem:[%s255 + $0x80] sm:$0xf]
        %v323 = vld [vmem:[%s255 + $0x84] sm:$0xff]
        %v324 = vld [vmem:[%s255 + $0x8c] sm:$0xf]
        %v325 = vld [vmem:[%s255 + $0x90] sm:$0xff]
        %v326 = vld [vmem:[%s255 + $0x98] sm:$0xf]
        %v327 = vld [vmem:[%s255 + $0x9c] sm:$0xff]
        %v328 = vld [vmem:[%s255 + $0xa4] sm:$0xf]
        %v329 = vld [vmem:[%s255 + $0xa8] sm:$0xff]
        %v330 = vld [vmem:[%s255 + $0xb0] sm:$0xf]
        %v331 = vld [vmem:[%s255 + $0xb4] sm:$0xff]
        %v332 = vld [vmem:[%s255 + $0xbc] sm:$0xf]
        %333 = vst [vmem:[#allocation2] sm:$0xff] 0.0
        %334 = vst [vmem:[#allocation2 + $0x8] sm:$0xff] 0.0
        %335 = vst [vmem:[#allocation2 + $0x10] sm:$0xff] 0.0
        %336 = vst [vmem:[#allocation2 + $0x18] sm:$0xff] 0.0
        %337 = vst [vmem:[#allocation2 + $0x20] sm:$0xff] 0.0
        %338 = vst [vmem:[#allocation2 + $0x28] sm:$0xff] 0.0
        %339 = vst [vmem:[#allocation2 + $0x30] sm:$0xff] 0.0
        %340 = vst [vmem:[#allocation2 + $0x38] sm:$0xff] 0.0
        %341 = vst [vmem:[#allocation2 + $0x40] sm:$0xff] 0.0
        %342 = vst [vmem:[#allocation2 + $0x48] sm:$0xff] 0.0
        %343 = vst [vmem:[#allocation2 + $0x50] sm:$0xff] 0.0
        %344 = vst [vmem:[#allocation2 + $0x58] sm:$0xff] 0.0
        %345 = vst [vmem:[#allocation2 + $0x60] sm:$0xff] 0.0
        %346 = vst [vmem:[#allocation2 + $0x68] sm:$0xff] 0.0
        %347 = vst [vmem:[#allocation2 + $0x70] sm:$0xff] 0.0
        %348 = vst [vmem:[#allocation2 + $0x78] sm:$0xff] 0.0
        %349 = vst [vmem:[#allocation2 + $0x80] sm:$0xff] 0.0
        %350 = vst [vmem:[#allocation2 + $0x88] sm:$0xff] 0.0
        %351 = vst [vmem:[#allocation2 + $0x90] sm:$0xff] 0.0
        %352 = vst [vmem:[#allocation2 + $0x98] sm:$0xff] 0.0
        %353 = vst [vmem:[#allocation2 + $0xa0] sm:$0xff] 0.0
        %354 = vst [vmem:[#allocation2 + $0xa8] sm:$0xff] 0.0
        %355 = vst [vmem:[#allocation2 + $0xb0] sm:$0xff] 0.0
        %356 = vst [vmem:[#allocation2 + $0xb8] sm:$0xff] 0.0
        %357 = vst [vmem:[#allocation2 + $0xc0] sm:$0xff] 0.0
        %358 = vst [vmem:[#allocation2 + $0xc8] sm:$0xff] 0.0
        %359 = vst [vmem:[#allocation2 + $0xd0] sm:$0xff] 0.0
        %360 = vst [vmem:[#allocation2 + $0xd8] sm:$0xff] 0.0
        %361 = vst [vmem:[#allocation2 + $0xe0] sm:$0xff] 0.0
        %362 = vst [vmem:[#allocation2 + $0xe8] sm:$0xff] 0.0
        %363 = vst [vmem:[#allocation2 + $0xf0] sm:$0xff] 0.0
        %364 = vst [vmem:[#allocation2 + $0xf8] sm:$0xff] 0.0
        %365 = vst [vmem:[#allocation2 + $0x100] sm:$0xff] 0.0
        %366 = vst [vmem:[#allocation2 + $0x108] sm:$0xff] 0.0
        %367 = vst [vmem:[#allocation2 + $0x110] sm:$0xff] 0.0
        %368 = vst [vmem:[#allocation2 + $0x118] sm:$0xff] 0.0
        %369 = vst [vmem:[#allocation2 + $0x120] sm:$0xff] 0.0
        %370 = vst [vmem:[#allocation2 + $0x128] sm:$0xff] 0.0
        %371 = vst [vmem:[#allocation2 + $0x130] sm:$0xff] 0.0
        %372 = vst [vmem:[#allocation2 + $0x138] sm:$0xff] 0.0
        %373 = vst [vmem:[#allocation2 + $0x140] sm:$0xff] 0.0
        %374 = vst [vmem:[#allocation2 + $0x148] sm:$0xff] 0.0
        %375 = vst [vmem:[#allocation2 + $0x150] sm:$0xff] 0.0
        %376 = vst [vmem:[#allocation2 + $0x158] sm:$0xff] 0.0
        %377 = vst [vmem:[#allocation2 + $0x160] sm:$0xff] 0.0
        %378 = vst [vmem:[#allocation2 + $0x168] sm:$0xff] 0.0
        %379 = vst [vmem:[#allocation2 + $0x170] sm:$0xff] 0.0
        %380 = vst [vmem:[#allocation2 + $0x178] sm:$0xff] 0.0
        %v381 = vld [vmem:[#allocation6] sm:$0xff]
        %v382 = vld [vmem:[#allocation6 + $0x8] sm:$0xff]
        %v383 = vld [vmem:[#allocation6 + $0x30] sm:$0xff]
        %v384 = vld [vmem:[#allocation6 + $0x38] sm:$0xff]
        %v385 = vld [vmem:[#allocation6 + $0x60] sm:$0xff]
        %v386 = vld [vmem:[#allocation6 + $0x68] sm:$0xff]
        %v387 = vld [vmem:[#allocation6 + $0x90] sm:$0xff]
        %v388 = vld [vmem:[#allocation6 + $0x98] sm:$0xff]
        %v389 = vld [vmem:[#allocation6 + $0xc0] sm:$0xff]
        %v390 = vld [vmem:[#allocation6 + $0xc8] sm:$0xff]
        %v391 = vld [vmem:[#allocation6 + $0xf0] sm:$0xff]
        %v392 = vld [vmem:[#allocation6 + $0xf8] sm:$0xff]
        %v393 = vld [vmem:[#allocation6 + $0x120] sm:$0xff]
        %v394 = vld [vmem:[#allocation6 + $0x128] sm:$0xff]
        %v395 = vld [vmem:[#allocation6 + $0x150] sm:$0xff]
        %v396 = vld [vmem:[#allocation6 + $0x158] sm:$0xff]
        %v397 = vld [vmem:[#allocation6 + $0x180] sm:$0xff]
        %v398 = vld [vmem:[#allocation6 + $0x188] sm:$0xff]
        %v399 = vld [vmem:[#allocation6 + $0x1b0] sm:$0xff]
        %v400 = vld [vmem:[#allocation6 + $0x1b8] sm:$0xff]
        %v401 = vld [vmem:[#allocation6 + $0x1e0] sm:$0xff]
        %v402 = vld [vmem:[#allocation6 + $0x1e8] sm:$0xff]
        %v403 = vld [vmem:[#allocation6 + $0x210] sm:$0xff]
        %v404 = vld [vmem:[#allocation6 + $0x218] sm:$0xff]
        %v405 = vld [vmem:[#allocation6 + $0x240] sm:$0xff]
        %v406 = vld [vmem:[#allocation6 + $0x248] sm:$0xff]
        %v407 = vld [vmem:[#allocation6 + $0x270] sm:$0xff]
        %v408 = vld [vmem:[#allocation6 + $0x278] sm:$0xff]
        %v409 = vld [vmem:[#allocation6 + $0x2a0] sm:$0xff]
        %v410 = vld [vmem:[#allocation6 + $0x2a8] sm:$0xff]
        %v411 = vld [vmem:[#allocation6 + $0x2d0] sm:$0xff]
        %v412 = vld [vmem:[#allocation6 + $0x2d8] sm:$0xff]
        %v413 = vld [vmem:[#allocation6 + $0x300] sm:$0xff]
        %v414 = vld [vmem:[#allocation6 + $0x308] sm:$0xff]
        %v415 = vld [vmem:[#allocation6 + $0x330] sm:$0xff]
        %v416 = vld [vmem:[#allocation6 + $0x338] sm:$0xff]
        %v417 = vld [vmem:[#allocation6 + $0x360] sm:$0xff]
        %v418 = vld [vmem:[#allocation6 + $0x368] sm:$0xff]
        %v419 = vld [vmem:[#allocation6 + $0x390] sm:$0xff]
        %v420 = vld [vmem:[#allocation6 + $0x398] sm:$0xff]
        %v421 = vld [vmem:[#allocation6 + $0x3c0] sm:$0xff]
        %v422 = vld [vmem:[#allocation6 + $0x3c8] sm:$0xff]
        %v423 = vld [vmem:[#allocation6 + $0x3f0] sm:$0xff]
        %v424 = vld [vmem:[#allocation6 + $0x3f8] sm:$0xff]
        %v425 = vld [vmem:[#allocation6 + $0x420] sm:$0xff]
        %v426 = vld [vmem:[#allocation6 + $0x428] sm:$0xff]
        %v427 = vld [vmem:[#allocation6 + $0x450] sm:$0xff]
        %v428 = vld [vmem:[#allocation6 + $0x458] sm:$0xff]
        %v429 = vld [vmem:[#allocation6 + $0x480] sm:$0xff]
        %v430 = vld [vmem:[#allocation6 + $0x488] sm:$0xff]
        %v431 = vld [vmem:[#allocation6 + $0x4b0] sm:$0xff]
        %v432 = vld [vmem:[#allocation6 + $0x4b8] sm:$0xff]
        %v433 = vld [vmem:[#allocation6 + $0x4e0] sm:$0xff]
        %v434 = vld [vmem:[#allocation6 + $0x4e8] sm:$0xff]
        %v435 = vld [vmem:[#allocation6 + $0x510] sm:$0xff]
        %v436 = vld [vmem:[#allocation6 + $0x518] sm:$0xff]
        %v437 = vld [vmem:[#allocation6 + $0x540] sm:$0xff]
        %v438 = vld [vmem:[#allocation6 + $0x548] sm:$0xff]
        %v439 = vld [vmem:[#allocation6 + $0x570] sm:$0xff]
        %v440 = vld [vmem:[#allocation6 + $0x578] sm:$0xff]
        %v441 = vld [vmem:[#allocation6 + $0x5a0] sm:$0xff]
        %v442 = vld [vmem:[#allocation6 + $0x5a8] sm:$0xff]
        %v443 = vld [vmem:[#allocation6 + $0x5d0] sm:$0xff]
        %v444 = vld [vmem:[#allocation6 + $0x5d8] sm:$0xff]
        %v445 = vld [vmem:[#allocation6 + $0x600] sm:$0xff]
        %v446 = vld [vmem:[#allocation6 + $0x608] sm:$0xff]
        %v447 = vld [vmem:[#allocation6 + $0x630] sm:$0xff]
        %v448 = vld [vmem:[#allocation6 + $0x638] sm:$0xff]
        %v449 = vld [vmem:[#allocation6 + $0x660] sm:$0xff]
        %v450 = vld [vmem:[#allocation6 + $0x668] sm:$0xff]
        %v451 = vld [vmem:[#allocation6 + $0x690] sm:$0xff]
        %v452 = vld [vmem:[#allocation6 + $0x698] sm:$0xff]
        %v453 = vld [vmem:[#allocation6 + $0x6c0] sm:$0xff]
        %v454 = vld [vmem:[#allocation6 + $0x6c8] sm:$0xff]
        %v455 = vld [vmem:[#allocation6 + $0x6f0] sm:$0xff]
        %v456 = vld [vmem:[#allocation6 + $0x6f8] sm:$0xff]
        %v457 = vld [vmem:[#allocation6 + $0x720] sm:$0xff]
        %v458 = vld [vmem:[#allocation6 + $0x728] sm:$0xff]
        %v459 = vld [vmem:[#allocation6 + $0x750] sm:$0xff]
        %v460 = vld [vmem:[#allocation6 + $0x758] sm:$0xff]
        %v461 = vld [vmem:[#allocation6 + $0x780] sm:$0xff]
        %v462 = vld [vmem:[#allocation6 + $0x788] sm:$0xff]
        %v463 = vld [vmem:[#allocation6 + $0x7b0] sm:$0xff]
        %v464 = vld [vmem:[#allocation6 + $0x7b8] sm:$0xff]
        %v465 = vld [vmem:[#allocation6 + $0x7e0] sm:$0xff]
        %v466 = vld [vmem:[#allocation6 + $0x7e8] sm:$0xff]
        %v467 = vld [vmem:[#allocation6 + $0x810] sm:$0xff]
        %v468 = vld [vmem:[#allocation6 + $0x818] sm:$0xff]
        %v469 = vld [vmem:[#allocation6 + $0x840] sm:$0xff]
        %v470 = vld [vmem:[#allocation6 + $0x848] sm:$0xff]
        %v471 = vld [vmem:[#allocation6 + $0x870] sm:$0xff]
        %v472 = vld [vmem:[#allocation6 + $0x878] sm:$0xff]
        %v473 = vld [vmem:[#allocation6 + $0x8a0] sm:$0xff]
        %v474 = vld [vmem:[#allocation6 + $0x8a8] sm:$0xff]
        %v475 = vld [vmem:[#allocation6 + $0x8d0] sm:$0xff]
        %v476 = vld [vmem:[#allocation6 + $0x8d8] sm:$0xff]
        %v477 = vld [vmem:[#allocation8] sm:$0xf]
        %v479 = vlaneseq
        %v480 = vshrl.u32 %v479, 7
        %v481 = vsub.s32 0, %v480
        %v482 = vrot.slane %v477, %v481
        %v483 = vlaneseq
        %v484 = vshrl.u32 %v483, 7
        %v485 = vsub.s32 1, %v484
        %v486 = vrot.slane %v477, %v485
        %v487 = vlaneseq
        %v488 = vshrl.u32 %v487, 7
        %v489 = vsub.s32 2, %v488
        %v490 = vrot.slane %v477, %v489
        %v491 = vlaneseq
        %v492 = vshrl.u32 %v491, 7
        %v493 = vsub.s32 3, %v492
        %v494 = vrot.slane %v477, %v493
        %v531 = vunpack.c.l.b16 %v301
        %v532 = vunpack.c.h.b16 %v301
        %v533 = vunpack.c.l.b16 %v302
        %v534 = vunpack.c.l.b16 %v303
        %v535 = vunpack.c.h.b16 %v303
        %v536 = vunpack.c.l.b16 %v304
        %v537 = vunpack.c.l.b16 %v305
        %v538 = vunpack.c.h.b16 %v305
        %v539 = vunpack.c.l.b16 %v306
        %v540 = vunpack.c.l.b16 %v307
        %v541 = vunpack.c.h.b16 %v307
        %v542 = vunpack.c.l.b16 %v308
        %v543 = vunpack.c.l.b16 %v309
        %v544 = vunpack.c.h.b16 %v309
        %v545 = vunpack.c.l.b16 %v310
        %v546 = vunpack.c.l.b16 %v311
        %v547 = vunpack.c.h.b16 %v311
        %v548 = vunpack.c.l.b16 %v312
        %v549 = vunpack.c.l.b16 %v313
        %v550 = vunpack.c.h.b16 %v313
        %v551 = vunpack.c.l.b16 %v314
        %v552 = vunpack.c.l.b16 %v315
        %v553 = vunpack.c.h.b16 %v315
        %v554 = vunpack.c.l.b16 %v316
        %v555 = vunpack.c.l.b16 %v317
        %v556 = vunpack.c.h.b16 %v317
        %v557 = vunpack.c.l.b16 %v318
        %v558 = vunpack.c.l.b16 %v319
        %v559 = vunpack.c.h.b16 %v319
        %v560 = vunpack.c.l.b16 %v320
        %v561 = vunpack.c.l.b16 %v321
        %v562 = vunpack.c.h.b16 %v321
        %v563 = vunpack.c.l.b16 %v322
        %v564 = vunpack.c.l.b16 %v323
        %v565 = vunpack.c.h.b16 %v323
        %v566 = vunpack.c.l.b16 %v324
        %v567 = vunpack.c.l.b16 %v325
        %v568 = vunpack.c.h.b16 %v325
        %v569 = vunpack.c.l.b16 %v326
        %v570 = vunpack.c.l.b16 %v327
        %v571 = vunpack.c.h.b16 %v327
        %v572 = vunpack.c.l.b16 %v328
        %v573 = vunpack.c.l.b16 %v329
        %v574 = vunpack.c.h.b16 %v329
        %v575 = vunpack.c.l.b16 %v330
        %v576 = vunpack.c.l.b16 %v331
        %v577 = vunpack.c.h.b16 %v331
        %v578 = vunpack.c.l.b16 %v332
        %v579 = vpack.c.b16 %v534, %v531
        %v580 = vpack.c.b16 %v535, %v532
        %v581 = vpack.c.b16 %v536, %v533
        %v582 = vpack.c.b16 %v540, %v537
        %v583 = vpack.c.b16 %v541, %v538
        %v584 = vpack.c.b16 %v542, %v539
        %v585 = vpack.c.b16 %v546, %v543
        %v586 = vpack.c.b16 %v547, %v544
        %v587 = vpack.c.b16 %v548, %v545
        %v588 = vpack.c.b16 %v552, %v549
        %v589 = vpack.c.b16 %v553, %v550
        %v590 = vpack.c.b16 %v554, %v551
        %v591 = vpack.c.b16 %v558, %v555
        %v592 = vpack.c.b16 %v559, %v556
        %v593 = vpack.c.b16 %v560, %v557
        %v594 = vpack.c.b16 %v564, %v561
        %v595 = vpack.c.b16 %v565, %v562
        %v596 = vpack.c.b16 %v566, %v563
        %v597 = vpack.c.b16 %v570, %v567
        %v598 = vpack.c.b16 %v571, %v568
        %v599 = vpack.c.b16 %v572, %v569
        %v600 = vpack.c.b16 %v576, %v573
        %v601 = vpack.c.b16 %v577, %v574
        %v602 = vpack.c.b16 %v578, %v575
        %v723 = vunpack.c.l.b16 %v381
        %v724 = vunpack.c.h.b16 %v381
        %v725 = vunpack.c.l.b16 %v382
        %v726 = vunpack.c.h.b16 %v382
        %v727 = vunpack.c.l.b16 %v383
        %v728 = vunpack.c.h.b16 %v383
        %v729 = vunpack.c.l.b16 %v384
        %v730 = vunpack.c.h.b16 %v384
        %v731 = vunpack.c.l.b16 %v385
        %v732 = vunpack.c.h.b16 %v385
        %v733 = vunpack.c.l.b16 %v386
        %v734 = vunpack.c.h.b16 %v386
        %v735 = vunpack.c.l.b16 %v387
        %v736 = vunpack.c.h.b16 %v387
        %v737 = vunpack.c.l.b16 %v388
        %v738 = vunpack.c.h.b16 %v388
        %v739 = vunpack.c.l.b16 %v389
        %v740 = vunpack.c.h.b16 %v389
        %v741 = vunpack.c.l.b16 %v390
        %v742 = vunpack.c.h.b16 %v390
        %v743 = vunpack.c.l.b16 %v391
        %v744 = vunpack.c.h.b16 %v391
        %v745 = vunpack.c.l.b16 %v392
        %v746 = vunpack.c.h.b16 %v392
        %v747 = vunpack.c.l.b16 %v393
        %v748 = vunpack.c.h.b16 %v393
        %v749 = vunpack.c.l.b16 %v394
        %v750 = vunpack.c.h.b16 %v394
        %v751 = vunpack.c.l.b16 %v395
        %v752 = vunpack.c.h.b16 %v395
        %v753 = vunpack.c.l.b16 %v396
        %v754 = vunpack.c.h.b16 %v396
        %v755 = vunpack.c.l.b16 %v397
        %v756 = vunpack.c.h.b16 %v397
        %v757 = vunpack.c.l.b16 %v398
        %v758 = vunpack.c.h.b16 %v398
        %v759 = vunpack.c.l.b16 %v399
        %v760 = vunpack.c.h.b16 %v399
        %v761 = vunpack.c.l.b16 %v400
        %v762 = vunpack.c.h.b16 %v400
        %v763 = vunpack.c.l.b16 %v401
        %v764 = vunpack.c.h.b16 %v401
        %v765 = vunpack.c.l.b16 %v402
        %v766 = vunpack.c.h.b16 %v402
        %v767 = vunpack.c.l.b16 %v403
        %v768 = vunpack.c.h.b16 %v403
        %v769 = vunpack.c.l.b16 %v404
        %v770 = vunpack.c.h.b16 %v404
        %v771 = vunpack.c.l.b16 %v405
        %v772 = vunpack.c.h.b16 %v405
        %v773 = vunpack.c.l.b16 %v406
        %v774 = vunpack.c.h.b16 %v406
        %v775 = vunpack.c.l.b16 %v407
        %v776 = vunpack.c.h.b16 %v407
        %v777 = vunpack.c.l.b16 %v408
        %v778 = vunpack.c.h.b16 %v408
        %v779 = vunpack.c.l.b16 %v409
        %v780 = vunpack.c.h.b16 %v409
        %v781 = vunpack.c.l.b16 %v410
        %v782 = vunpack.c.h.b16 %v410
        %v783 = vunpack.c.l.b16 %v411
        %v784 = vunpack.c.h.b16 %v411
        %v785 = vunpack.c.l.b16 %v412
        %v786 = vunpack.c.h.b16 %v412
        %v787 = vunpack.c.l.b16 %v413
        %v788 = vunpack.c.h.b16 %v413
        %v789 = vunpack.c.l.b16 %v414
        %v790 = vunpack.c.h.b16 %v414
        %v791 = vunpack.c.l.b16 %v415
        %v792 = vunpack.c.h.b16 %v415
        %v793 = vunpack.c.l.b16 %v416
        %v794 = vunpack.c.h.b16 %v416
        %v795 = vunpack.c.l.b16 %v417
        %v796 = vunpack.c.h.b16 %v417
        %v797 = vunpack.c.l.b16 %v418
        %v798 = vunpack.c.h.b16 %v418
        %v799 = vunpack.c.l.b16 %v419
        %v800 = vunpack.c.h.b16 %v419
        %v801 = vunpack.c.l.b16 %v420
        %v802 = vunpack.c.h.b16 %v420
        %v803 = vunpack.c.l.b16 %v421
        %v804 = vunpack.c.h.b16 %v421
        %v805 = vunpack.c.l.b16 %v422
        %v806 = vunpack.c.h.b16 %v422
        %v807 = vunpack.c.l.b16 %v423
        %v808 = vunpack.c.h.b16 %v423
        %v809 = vunpack.c.l.b16 %v424
        %v810 = vunpack.c.h.b16 %v424
        %v811 = vunpack.c.l.b16 %v425
        %v812 = vunpack.c.h.b16 %v425
        %v813 = vunpack.c.l.b16 %v426
        %v814 = vunpack.c.h.b16 %v426
        %v815 = vunpack.c.l.b16 %v427
        %v816 = vunpack.c.h.b16 %v427
        %v817 = vunpack.c.l.b16 %v428
        %v818 = vunpack.c.h.b16 %v428
        %v819 = vunpack.c.l.b16 %v429
        %v820 = vunpack.c.h.b16 %v429
        %v821 = vunpack.c.l.b16 %v430
        %v822 = vunpack.c.h.b16 %v430
        %v823 = vunpack.c.l.b16 %v431
        %v824 = vunpack.c.h.b16 %v431
        %v825 = vunpack.c.l.b16 %v432
        %v826 = vunpack.c.h.b16 %v432
        %v827 = vunpack.c.l.b16 %v433
        %v828 = vunpack.c.h.b16 %v433
        %v829 = vunpack.c.l.b16 %v434
        %v830 = vunpack.c.h.b16 %v434
        %v831 = vunpack.c.l.b16 %v435
        %v832 = vunpack.c.h.b16 %v435
        %v833 = vunpack.c.l.b16 %v436
        %v834 = vunpack.c.h.b16 %v436
        %v835 = vunpack.c.l.b16 %v437
        %v836 = vunpack.c.h.b16 %v437
        %v837 = vunpack.c.l.b16 %v438
        %v838 = vunpack.c.h.b16 %v438
        %v839 = vunpack.c.l.b16 %v439
        %v840 = vunpack.c.h.b16 %v439
        %v841 = vunpack.c.l.b16 %v440
        %v842 = vunpack.c.h.b16 %v440
        %v843 = vunpack.c.l.b16 %v441
        %v844 = vunpack.c.h.b16 %v441
        %v845 = vunpack.c.l.b16 %v442
        %v846 = vunpack.c.h.b16 %v442
        %v847 = vunpack.c.l.b16 %v443
        %v848 = vunpack.c.h.b16 %v443
        %v849 = vunpack.c.l.b16 %v444
        %v850 = vunpack.c.h.b16 %v444
        %v851 = vunpack.c.l.b16 %v445
        %v852 = vunpack.c.h.b16 %v445
        %v853 = vunpack.c.l.b16 %v446
        %v854 = vunpack.c.h.b16 %v446
        %v855 = vunpack.c.l.b16 %v447
        %v856 = vunpack.c.h.b16 %v447
        %v857 = vunpack.c.l.b16 %v448
        %v858 = vunpack.c.h.b16 %v448
        %v859 = vunpack.c.l.b16 %v449
        %v860 = vunpack.c.h.b16 %v449
        %v861 = vunpack.c.l.b16 %v450
        %v862 = vunpack.c.h.b16 %v450
        %v863 = vunpack.c.l.b16 %v451
        %v864 = vunpack.c.h.b16 %v451
        %v865 = vunpack.c.l.b16 %v452
        %v866 = vunpack.c.h.b16 %v452
        %v867 = vunpack.c.l.b16 %v453
        %v868 = vunpack.c.h.b16 %v453
        %v869 = vunpack.c.l.b16 %v454
        %v870 = vunpack.c.h.b16 %v454
        %v871 = vunpack.c.l.b16 %v455
        %v872 = vunpack.c.h.b16 %v455
        %v873 = vunpack.c.l.b16 %v456
        %v874 = vunpack.c.h.b16 %v456
        %v875 = vunpack.c.l.b16 %v457
        %v876 = vunpack.c.h.b16 %v457
        %v877 = vunpack.c.l.b16 %v458
        %v878 = vunpack.c.h.b16 %v458
        %v879 = vunpack.c.l.b16 %v459
        %v880 = vunpack.c.h.b16 %v459
        %v881 = vunpack.c.l.b16 %v460
        %v882 = vunpack.c.h.b16 %v460
        %v883 = vunpack.c.l.b16 %v461
        %v884 = vunpack.c.h.b16 %v461
        %v885 = vunpack.c.l.b16 %v462
        %v886 = vunpack.c.h.b16 %v462
        %v887 = vunpack.c.l.b16 %v463
        %v888 = vunpack.c.h.b16 %v463
        %v889 = vunpack.c.l.b16 %v464
        %v890 = vunpack.c.h.b16 %v464
        %v891 = vunpack.c.l.b16 %v465
        %v892 = vunpack.c.h.b16 %v465
        %v893 = vunpack.c.l.b16 %v466
        %v894 = vunpack.c.h.b16 %v466
        %v895 = vunpack.c.l.b16 %v467
        %v896 = vunpack.c.h.b16 %v467
        %v897 = vunpack.c.l.b16 %v468
        %v898 = vunpack.c.h.b16 %v468
        %v899 = vunpack.c.l.b16 %v469
        %v900 = vunpack.c.h.b16 %v469
        %v901 = vunpack.c.l.b16 %v470
        %v902 = vunpack.c.h.b16 %v470
        %v903 = vunpack.c.l.b16 %v471
        %v904 = vunpack.c.h.b16 %v471
        %v905 = vunpack.c.l.b16 %v472
        %v906 = vunpack.c.h.b16 %v472
        %v907 = vunpack.c.l.b16 %v473
        %v908 = vunpack.c.h.b16 %v473
        %v909 = vunpack.c.l.b16 %v474
        %v910 = vunpack.c.h.b16 %v474
        %v911 = vunpack.c.l.b16 %v475
        %v912 = vunpack.c.h.b16 %v475
        %v913 = vunpack.c.l.b16 %v476
        %v914 = vunpack.c.h.b16 %v476
        %v915 = vpack.c.b16 %v727, %v723
        %v916 = vpack.c.b16 %v728, %v724
        %v917 = vpack.c.b16 %v729, %v725
        %v918 = vpack.c.b16 %v730, %v726
        %v919 = vpack.c.b16 %v735, %v731
        %v920 = vpack.c.b16 %v736, %v732
        %v921 = vpack.c.b16 %v737, %v733
        %v922 = vpack.c.b16 %v738, %v734
        %v923 = vpack.c.b16 %v743, %v739
        %v924 = vpack.c.b16 %v744, %v740
        %v925 = vpack.c.b16 %v745, %v741
        %v926 = vpack.c.b16 %v746, %v742
        %v927 = vpack.c.b16 %v751, %v747
        %v928 = vpack.c.b16 %v752, %v748
        %v929 = vpack.c.b16 %v753, %v749
        %v930 = vpack.c.b16 %v754, %v750
        %v931 = vpack.c.b16 %v759, %v755
        %v932 = vpack.c.b16 %v760, %v756
        %v933 = vpack.c.b16 %v761, %v757
        %v934 = vpack.c.b16 %v762, %v758
        %v935 = vpack.c.b16 %v767, %v763
        %v936 = vpack.c.b16 %v768, %v764
        %v937 = vpack.c.b16 %v769, %v765
        %v938 = vpack.c.b16 %v770, %v766
        %v939 = vpack.c.b16 %v775, %v771
        %v940 = vpack.c.b16 %v776, %v772
        %v941 = vpack.c.b16 %v777, %v773
        %v942 = vpack.c.b16 %v778, %v774
        %v943 = vpack.c.b16 %v783, %v779
        %v944 = vpack.c.b16 %v784, %v780
        %v945 = vpack.c.b16 %v785, %v781
        %v946 = vpack.c.b16 %v786, %v782
        %v947 = vpack.c.b16 %v791, %v787
        %v948 = vpack.c.b16 %v792, %v788
        %v949 = vpack.c.b16 %v793, %v789
        %v950 = vpack.c.b16 %v794, %v790
        %v951 = vpack.c.b16 %v799, %v795
        %v952 = vpack.c.b16 %v800, %v796
        %v953 = vpack.c.b16 %v801, %v797
        %v954 = vpack.c.b16 %v802, %v798
        %v955 = vpack.c.b16 %v807, %v803
        %v956 = vpack.c.b16 %v808, %v804
        %v957 = vpack.c.b16 %v809, %v805
        %v958 = vpack.c.b16 %v810, %v806
        %v959 = vpack.c.b16 %v815, %v811
        %v960 = vpack.c.b16 %v816, %v812
        %v961 = vpack.c.b16 %v817, %v813
        %v962 = vpack.c.b16 %v818, %v814
        %v963 = vpack.c.b16 %v823, %v819
        %v964 = vpack.c.b16 %v824, %v820
        %v965 = vpack.c.b16 %v825, %v821
        %v966 = vpack.c.b16 %v826, %v822
        %v967 = vpack.c.b16 %v831, %v827
        %v968 = vpack.c.b16 %v832, %v828
        %v969 = vpack.c.b16 %v833, %v829
        %v970 = vpack.c.b16 %v834, %v830
        %v971 = vpack.c.b16 %v839, %v835
        %v972 = vpack.c.b16 %v840, %v836
        %v973 = vpack.c.b16 %v841, %v837
        %v974 = vpack.c.b16 %v842, %v838
        %v975 = vpack.c.b16 %v847, %v843
        %v976 = vpack.c.b16 %v848, %v844
        %v977 = vpack.c.b16 %v849, %v845
        %v978 = vpack.c.b16 %v850, %v846
        %v979 = vpack.c.b16 %v855, %v851
        %v980 = vpack.c.b16 %v856, %v852
        %v981 = vpack.c.b16 %v857, %v853
        %v982 = vpack.c.b16 %v858, %v854
        %v983 = vpack.c.b16 %v863, %v859
        %v984 = vpack.c.b16 %v864, %v860
        %v985 = vpack.c.b16 %v865, %v861
        %v986 = vpack.c.b16 %v866, %v862
        %v987 = vpack.c.b16 %v871, %v867
        %v988 = vpack.c.b16 %v872, %v868
        %v989 = vpack.c.b16 %v873, %v869
        %v990 = vpack.c.b16 %v874, %v870
        %v991 = vpack.c.b16 %v879, %v875
        %v992 = vpack.c.b16 %v880, %v876
        %v993 = vpack.c.b16 %v881, %v877
        %v994 = vpack.c.b16 %v882, %v878
        %v995 = vpack.c.b16 %v887, %v883
        %v996 = vpack.c.b16 %v888, %v884
        %v997 = vpack.c.b16 %v889, %v885
        %v998 = vpack.c.b16 %v890, %v886
        %v999 = vpack.c.b16 %v895, %v891
        %v1000 = vpack.c.b16 %v896, %v892
        %v1001 = vpack.c.b16 %v897, %v893
        %v1002 = vpack.c.b16 %v898, %v894
        %v1003 = vpack.c.b16 %v903, %v899
        %v1004 = vpack.c.b16 %v904, %v900
        %v1005 = vpack.c.b16 %v905, %v901
        %v1006 = vpack.c.b16 %v906, %v902
        %v1007 = vpack.c.b16 %v911, %v907
        %v1008 = vpack.c.b16 %v912, %v908
        %v1009 = vpack.c.b16 %v913, %v909
        %v1010 = vpack.c.b16 %v914, %v910
        %1107 = vmatprep.subr.bf16.mxu0 %v916
        %1108 = vmatpush1.bf16.msra.mxu0 %v915
        %1109 = vmatprep.subr.bf16.mxu0 %v920
        %1110 = vmatpush1.bf16.msra.mxu0 %v919
        %1111 = vmatprep.subr.bf16.mxu0 %v924
        %1112 = vmatpush1.bf16.msra.mxu0 %v923
        %1113 = vmatprep.subr.bf16.mxu0 %v928
        %1114 = vmatpush1.bf16.msra.mxu0 %v927
        %1115 = vmatprep.subr.bf16.mxu0 %v932
        %1116 = vmatpush1.bf16.msra.mxu0 %v931
        %1117 = vmatprep.subr.bf16.mxu0 %v936
        %1118 = vmatpush1.bf16.msra.mxu0 %v935
        %1119 = vmatprep.subr.bf16.mxu0 %v940
        %1120 = vmatpush1.bf16.msra.mxu0 %v939
        %1121 = vmatprep.subr.bf16.mxu0 %v944
        %1122 = vmatpush1.bf16.msra.mxu0 %v943
        %1123 = vmatprep.subr.bf16.mxu0 %v948
        %1124 = vmatpush1.bf16.msra.mxu0 %v947
        %1125 = vmatprep.subr.bf16.mxu0 %v952
        %1126 = vmatpush1.bf16.msra.mxu0 %v951
        %1127 = vmatprep.subr.bf16.mxu0 %v956
        %1128 = vmatpush1.bf16.msra.mxu0 %v955
        %1129 = vmatprep.subr.bf16.mxu0 %v960
        %1130 = vmatpush1.bf16.msra.mxu0 %v959
        %1131 = vmatprep.subr.bf16.mxu0 %v964
        %1132 = vmatpush1.bf16.msra.mxu0 %v963
        %1133 = vmatprep.subr.bf16.mxu0 %v968
        %1134 = vmatpush1.bf16.msra.mxu0 %v967
        %1135 = vmatprep.subr.bf16.mxu0 %v972
        %1136 = vmatpush1.bf16.msra.mxu0 %v971
        %1137 = vmatprep.subr.bf16.mxu0 %v976
        %1138 = vmatpush1.bf16.msra.mxu0 %v975
        %1139 = vmatprep.mubr.bf16.mxu0 %v580
        %1140 = vmatmul.mubr.bf16.gmra.mrb[0].mxu0 %v579
        %v1141 = vpop.f32.mrb[0].mxu0
        %v1142 = vadd.f32 %v482, %v1141
        %v1143 = vpop.f32.mrb[0].mxu0
        %v1144 = vadd.f32 %v486, %v1143
        %v1145 = vpop.f32.mrb[0].mxu0
        %v1146 = vadd.f32 %v482, %v1145
        %v1147 = vpop.f32.mrb[0].mxu0
        %v1148 = vadd.f32 %v486, %v1147
        %1149 = vmatprep.mubr.bf16.mxu0 %v583
        %1150 = vmatmul.mubr.bf16.gmra.mrb[0].mxu0 %v582
        %v1151 = vpop.f32.mrb[0].mxu0
        %v1152 = vadd.f32 %v482, %v1151
        %v1153 = vpop.f32.mrb[0].mxu0
        %v1154 = vadd.f32 %v486, %v1153
        %v1155 = vpop.f32.mrb[0].mxu0
        %v1156 = vadd.f32 %v482, %v1155
        %v1157 = vpop.f32.mrb[0].mxu0
        %v1158 = vadd.f32 %v486, %v1157
        %1159 = vmatprep.mubr.bf16.mxu0 %v586
        %1160 = vmatmul.mubr.bf16.gmra.mrb[0].mxu0 %v585
        %v1161 = vpop.f32.mrb[0].mxu0
        %v1162 = vadd.f32 %v482, %v1161
        %v1163 = vpop.f32.mrb[0].mxu0
        %v1164 = vadd.f32 %v486, %v1163
        %v1165 = vpop.f32.mrb[0].mxu0
        %v1166 = vadd.f32 %v482, %v1165
        %v1167 = vpop.f32.mrb[0].mxu0
        %v1168 = vadd.f32 %v486, %v1167
        %1169 = vmatprep.mubr.bf16.mxu0 %v589
        %1170 = vmatmul.mubr.bf16.gmra.mrb[0].mxu0 %v588
        %v1171 = vpop.f32.mrb[0].mxu0
        %v1172 = vadd.f32 %v482, %v1171
        %v1173 = vpop.f32.mrb[0].mxu0
        %v1174 = vadd.f32 %v486, %v1173
        %v1175 = vpop.f32.mrb[0].mxu0
        %v1176 = vadd.f32 %v482, %v1175
        %v1177 = vpop.f32.mrb[0].mxu0
        %v1178 = vadd.f32 %v486, %v1177
        %1179 = vmatprep.mubr.bf16.mxu0 %v592
        %1180 = vmatmul.mubr.bf16.gmra.mrb[0].mxu0 %v591
        %v1181 = vpop.f32.mrb[0].mxu0
        %v1182 = vadd.f32 %v482, %v1181
        %v1183 = vpop.f32.mrb[0].mxu0
        %v1184 = vadd.f32 %v486, %v1183
        %v1185 = vpop.f32.mrb[0].mxu0
        %v1186 = vadd.f32 %v482, %v1185
        %v1187 = vpop.f32.mrb[0].mxu0
        %v1188 = vadd.f32 %v486, %v1187
        %1189 = vmatprep.mubr.bf16.mxu0 %v595
        %1190 = vmatmul.mubr.bf16.gmra.mrb[0].mxu0 %v594
        %v1191 = vpop.f32.mrb[0].mxu0
        %v1192 = vadd.f32 %v482, %v1191
        %v1193 = vpop.f32.mrb[0].mxu0
        %v1194 = vadd.f32 %v486, %v1193
        %v1195 = vpop.f32.mrb[0].mxu0
        %v1196 = vadd.f32 %v482, %v1195
        %v1197 = vpop.f32.mrb[0].mxu0
        %v1198 = vadd.f32 %v486, %v1197
        %1199 = vmatprep.mubr.bf16.mxu0 %v598
        %1200 = vmatmul.mubr.bf16.gmra.mrb[0].mxu0 %v597
        %v1201 = vpop.f32.mrb[0].mxu0
        %v1202 = vadd.f32 %v482, %v1201
        %v1203 = vpop.f32.mrb[0].mxu0
        %v1204 = vadd.f32 %v486, %v1203
        %v1205 = vpop.f32.mrb[0].mxu0
        %v1206 = vadd.f32 %v482, %v1205
        %v1207 = vpop.f32.mrb[0].mxu0
        %v1208 = vadd.f32 %v486, %v1207
        %1209 = vmatprep.mubr.bf16.mxu0 %v601
        %1210 = vmatmul.mubr.bf16.gmra.mrb[0].mxu0 %v600
        %v1211 = vpop.f32.mrb[0].mxu0
        %v1212 = vadd.f32 %v482, %v1211
        %v1213 = vpop.f32.mrb[0].mxu0
        %v1214 = vadd.f32 %v486, %v1213
        %v1215 = vpop.f32.mrb[0].mxu0
        %v1216 = vadd.f32 %v482, %v1215
        %v1217 = vpop.f32.mrb[0].mxu0
        %v1218 = vadd.f32 %v486, %v1217
        %1219 = vdwg.mxu0
        %1220 = vmatprep.subr.bf16.mxu0 %v980
        %1221 = vmatpush1.bf16.msra.mxu0 %v979
        %1222 = vmatprep.subr.bf16.mxu0 %v984
        %1223 = vmatpush1.bf16.msra.mxu0 %v983
        %1224 = vmatprep.subr.bf16.mxu0 %v988
        %1225 = vmatpush1.bf16.msra.mxu0 %v987
        %1226 = vmatprep.subr.bf16.mxu0 %v992
        %1227 = vmatpush1.bf16.msra.mxu0 %v991
        %1228 = vmatprep.subr.bf16.mxu0 %v996
        %1229 = vmatpush1.bf16.msra.mxu0 %v995
        %1230 = vmatprep.subr.bf16.mxu0 %v1000
        %1231 = vmatpush1.bf16.msra.mxu0 %v999
        %1232 = vmatprep.subr.bf16.mxu0 %v1004
        %1233 = vmatpush1.bf16.msra.mxu0 %v1003
        %1234 = vmatprep.subr.bf16.mxu0 %v1008
        %1235 = vmatpush1.bf16.msra.mxu0 %v1007
        %1236 = vmatprep.subr.bf16.mxu0 0
        %1237 = vmatpush1.bf16.msra.mxu0 0
        %1238 = vmatprep.subr.bf16.mxu0 0
        %1239 = vmatpush1.bf16.msra.mxu0 0
        %1240 = vmatprep.subr.bf16.mxu0 0
        %1241 = vmatpush1.bf16.msra.mxu0 0
        %1242 = vmatprep.subr.bf16.mxu0 0
        %1243 = vmatpush1.bf16.msra.mxu0 0
        %1244 = vmatprep.subr.bf16.mxu0 0
        %1245 = vmatpush1.bf16.msra.mxu0 0
        %1246 = vmatprep.subr.bf16.mxu0 0
        %1247 = vmatpush1.bf16.msra.mxu0 0
        %1248 = vmatprep.subr.bf16.mxu0 0
        %1249 = vmatpush1.bf16.msra.mxu0 0
        %1250 = vmatprep.subr.bf16.mxu0 0
        %1251 = vmatpush1.bf16.msra.mxu0 0
        %1252 = vmatprep.mubr.bf16.mxu0 0
        %1253 = vmatmul.mubr.bf16.gmra.mrb[0].mxu0 %v581
        %v1254 = vpop.f32.mrb[0].mxu0
        %v1255 = vadd.f32 %v1142, %v1254
        %v1256 = vpop.f32.mrb[0].mxu0
        %v1257 = vadd.f32 %v1144, %v1256
        %v1258 = vpop.f32.mrb[0].mxu0
        %v1259 = vadd.f32 %v1146, %v1258
        %v1260 = vpop.f32.mrb[0].mxu0
        %v1261 = vadd.f32 %v1148, %v1260
        %1262 = vmatprep.mubr.bf16.mxu0 0
        %1263 = vmatmul.mubr.bf16.gmra.mrb[0].mxu0 %v584
        %v1264 = vpop.f32.mrb[0].mxu0
        %v1265 = vadd.f32 %v1152, %v1264
        %v1266 = vpop.f32.mrb[0].mxu0
        %v1267 = vadd.f32 %v1154, %v1266
        %v1268 = vpop.f32.mrb[0].mxu0
        %v1269 = vadd.f32 %v1156, %v1268
        %v1270 = vpop.f32.mrb[0].mxu0
        %v1271 = vadd.f32 %v1158, %v1270
        %1272 = vmatprep.mubr.bf16.mxu0 0
        %1273 = vmatmul.mubr.bf16.gmra.mrb[0].mxu0 %v587
        %v1274 = vpop.f32.mrb[0].mxu0
        %v1275 = vadd.f32 %v1162, %v1274
        %v1276 = vpop.f32.mrb[0].mxu0
        %v1277 = vadd.f32 %v1164, %v1276
        %v1278 = vpop.f32.mrb[0].mxu0
        %v1279 = vadd.f32 %v1166, %v1278
        %v1280 = vpop.f32.mrb[0].mxu0
        %v1281 = vadd.f32 %v1168, %v1280
        %1282 = vmatprep.mubr.bf16.mxu0 0
        %1283 = vmatmul.mubr.bf16.gmra.mrb[0].mxu0 %v590
        %v1284 = vpop.f32.mrb[0].mxu0
        %v1285 = vadd.f32 %v1172, %v1284
        %v1286 = vpop.f32.mrb[0].mxu0
        %v1287 = vadd.f32 %v1174, %v1286
        %v1288 = vpop.f32.mrb[0].mxu0
        %v1289 = vadd.f32 %v1176, %v1288
        %v1290 = vpop.f32.mrb[0].mxu0
        %v1291 = vadd.f32 %v1178, %v1290
        %1292 = vmatprep.mubr.bf16.mxu0 0
        %1293 = vmatmul.mubr.bf16.gmra.mrb[0].mxu0 %v593
        %v1294 = vpop.f32.mrb[0].mxu0
        %v1295 = vadd.f32 %v1182, %v1294
        %v1296 = vpop.f32.mrb[0].mxu0
        %v1297 = vadd.f32 %v1184, %v1296
        %v1298 = vpop.f32.mrb[0].mxu0
        %v1299 = vadd.f32 %v1186, %v1298
        %v1300 = vpop.f32.mrb[0].mxu0
        %v1301 = vadd.f32 %v1188, %v1300
        %1302 = vmatprep.mubr.bf16.mxu0 0
        %1303 = vmatmul.mubr.bf16.gmra.mrb[0].mxu0 %v596
        %v1304 = vpop.f32.mrb[0].mxu0
        %v1305 = vadd.f32 %v1192, %v1304
        %v1306 = vpop.f32.mrb[0].mxu0
        %v1307 = vadd.f32 %v1194, %v1306
        %v1308 = vpop.f32.mrb[0].mxu0
        %v1309 = vadd.f32 %v1196, %v1308
        %v1310 = vpop.f32.mrb[0].mxu0
        %v1311 = vadd.f32 %v1198, %v1310
        %1312 = vmatprep.mubr.bf16.mxu0 0
        %1313 = vmatmul.mubr.bf16.gmra.mrb[0].mxu0 %v599
        %v1314 = vpop.f32.mrb[0].mxu0
        %v1315 = vadd.f32 %v1202, %v1314
        %v1316 = vpop.f32.mrb[0].mxu0
        %v1317 = vadd.f32 %v1204, %v1316
        %v1318 = vpop.f32.mrb[0].mxu0
        %v1319 = vadd.f32 %v1206, %v1318
        %v1320 = vpop.f32.mrb[0].mxu0
        %v1321 = vadd.f32 %v1208, %v1320
        %1322 = vmatprep.mubr.bf16.mxu0 0
        %1323 = vmatmul.mubr.bf16.gmra.mrb[0].mxu0 %v602
        %v1324 = vpop.f32.mrb[0].mxu0
        %v1325 = vadd.f32 %v1212, %v1324
        %v1326 = vpop.f32.mrb[0].mxu0
        %v1327 = vadd.f32 %v1214, %v1326
        %v1328 = vpop.f32.mrb[0].mxu0
        %v1329 = vadd.f32 %v1216, %v1328
        %v1330 = vpop.f32.mrb[0].mxu0
        %v1331 = vadd.f32 %v1218, %v1330
        %1332 = vdwg.mxu0
        %1333 = vmatprep.subr.bf16.mxu0 %v918
        %1334 = vmatpush1.bf16.msra.mxu0 %v917
        %1335 = vmatprep.subr.bf16.mxu0 %v922
        %1336 = vmatpush1.bf16.msra.mxu0 %v921
        %1337 = vmatprep.subr.bf16.mxu0 %v926
        %1338 = vmatpush1.bf16.msra.mxu0 %v925
        %1339 = vmatprep.subr.bf16.mxu0 %v930
        %1340 = vmatpush1.bf16.msra.mxu0 %v929
        %1341 = vmatprep.subr.bf16.mxu0 %v934
        %1342 = vmatpush1.bf16.msra.mxu0 %v933
        %1343 = vmatprep.subr.bf16.mxu0 %v938
        %1344 = vmatpush1.bf16.msra.mxu0 %v937
        %1345 = vmatprep.subr.bf16.mxu0 %v942
        %1346 = vmatpush1.bf16.msra.mxu0 %v941
        %1347 = vmatprep.subr.bf16.mxu0 %v946
        %1348 = vmatpush1.bf16.msra.mxu0 %v945
        %1349 = vmatprep.subr.bf16.mxu0 %v950
        %1350 = vmatpush1.bf16.msra.mxu0 %v949
        %1351 = vmatprep.subr.bf16.mxu0 %v954
        %1352 = vmatpush1.bf16.msra.mxu0 %v953
        %1353 = vmatprep.subr.bf16.mxu0 %v958
        %1354 = vmatpush1.bf16.msra.mxu0 %v957
        %1355 = vmatprep.subr.bf16.mxu0 %v962
        %1356 = vmatpush1.bf16.msra.mxu0 %v961
        %1357 = vmatprep.subr.bf16.mxu0 %v966
        %1358 = vmatpush1.bf16.msra.mxu0 %v965
        %1359 = vmatprep.subr.bf16.mxu0 %v970
        %1360 = vmatpush1.bf16.msra.mxu0 %v969
        %1361 = vmatprep.subr.bf16.mxu0 %v974
        %1362 = vmatpush1.bf16.msra.mxu0 %v973
        %1363 = vmatprep.subr.bf16.mxu0 %v978
        %1364 = vmatpush1.bf16.msra.mxu0 %v977
        %1365 = vmatprep.mubr.bf16.mxu0 %v580
        %1366 = vmatmul.mubr.bf16.gmra.mrb[0].mxu0 %v579
        %v1367 = vpop.f32.mrb[0].mxu0
        %v1368 = vadd.f32 %v490, %v1367
        %v1369 = vpop.f32.mrb[0].mxu0
        %v1370 = vadd.f32 %v494, %v1369
        %v1371 = vpop.f32.mrb[0].mxu0
        %v1372 = vadd.f32 %v490, %v1371
        %v1373 = vpop.f32.mrb[0].mxu0
        %v1374 = vadd.f32 %v494, %v1373
        %1375 = vmatprep.mubr.bf16.mxu0 %v583
        %1376 = vmatmul.mubr.bf16.gmra.mrb[0].mxu0 %v582
        %v1377 = vpop.f32.mrb[0].mxu0
        %v1378 = vadd.f32 %v490, %v1377
        %v1379 = vpop.f32.mrb[0].mxu0
        %v1380 = vadd.f32 %v494, %v1379
        %v1381 = vpop.f32.mrb[0].mxu0
        %v1382 = vadd.f32 %v490, %v1381
        %v1383 = vpop.f32.mrb[0].mxu0
        %v1384 = vadd.f32 %v494, %v1383
        %1385 = vmatprep.mubr.bf16.mxu0 %v586
        %1386 = vmatmul.mubr.bf16.gmra.mrb[0].mxu0 %v585
        %v1387 = vpop.f32.mrb[0].mxu0
        %v1388 = vadd.f32 %v490, %v1387
        %v1389 = vpop.f32.mrb[0].mxu0
        %v1390 = vadd.f32 %v494, %v1389
        %v1391 = vpop.f32.mrb[0].mxu0
        %v1392 = vadd.f32 %v490, %v1391
        %v1393 = vpop.f32.mrb[0].mxu0
        %v1394 = vadd.f32 %v494, %v1393
        %1395 = vmatprep.mubr.bf16.mxu0 %v589
        %1396 = vmatmul.mubr.bf16.gmra.mrb[0].mxu0 %v588
        %v1397 = vpop.f32.mrb[0].mxu0
        %v1398 = vadd.f32 %v490, %v1397
        %v1399 = vpop.f32.mrb[0].mxu0
        %v1400 = vadd.f32 %v494, %v1399
        %v1401 = vpop.f32.mrb[0].mxu0
        %v1402 = vadd.f32 %v490, %v1401
        %v1403 = vpop.f32.mrb[0].mxu0
        %v1404 = vadd.f32 %v494, %v1403
        %1405 = vmatprep.mubr.bf16.mxu0 %v592
        %1406 = vmatmul.mubr.bf16.gmra.mrb[0].mxu0 %v591
        %v1407 = vpop.f32.mrb[0].mxu0
        %v1408 = vadd.f32 %v490, %v1407
        %v1409 = vpop.f32.mrb[0].mxu0
        %v1410 = vadd.f32 %v494, %v1409
        %v1411 = vpop.f32.mrb[0].mxu0
        %v1412 = vadd.f32 %v490, %v1411
        %v1413 = vpop.f32.mrb[0].mxu0
        %v1414 = vadd.f32 %v494, %v1413
        %1415 = vmatprep.mubr.bf16.mxu0 %v595
        %1416 = vmatmul.mubr.bf16.gmra.mrb[0].mxu0 %v594
        %v1417 = vpop.f32.mrb[0].mxu0
        %v1418 = vadd.f32 %v490, %v1417
        %v1419 = vpop.f32.mrb[0].mxu0
        %v1420 = vadd.f32 %v494, %v1419
        %v1421 = vpop.f32.mrb[0].mxu0
        %v1422 = vadd.f32 %v490, %v1421
        %v1423 = vpop.f32.mrb[0].mxu0
        %v1424 = vadd.f32 %v494, %v1423
        %1425 = vmatprep.mubr.bf16.mxu0 %v598
        %1426 = vmatmul.mubr.bf16.gmra.mrb[0].mxu0 %v597
        %v1427 = vpop.f32.mrb[0].mxu0
        %v1428 = vadd.f32 %v490, %v1427
        %v1429 = vpop.f32.mrb[0].mxu0
        %v1430 = vadd.f32 %v494, %v1429
        %v1431 = vpop.f32.mrb[0].mxu0
        %v1432 = vadd.f32 %v490, %v1431
        %v1433 = vpop.f32.mrb[0].mxu0
        %v1434 = vadd.f32 %v494, %v1433
        %1435 = vmatprep.mubr.bf16.mxu0 %v601
        %1436 = vmatmul.mubr.bf16.gmra.mrb[0].mxu0 %v600
        %v1437 = vpop.f32.mrb[0].mxu0
        %v1438 = vadd.f32 %v490, %v1437
        %v1439 = vpop.f32.mrb[0].mxu0
        %v1440 = vadd.f32 %v494, %v1439
        %v1441 = vpop.f32.mrb[0].mxu0
        %v1442 = vadd.f32 %v490, %v1441
        %v1443 = vpop.f32.mrb[0].mxu0
        %v1444 = vadd.f32 %v494, %v1443
        %1445 = vdwg.mxu0
        %1446 = vmatprep.subr.bf16.mxu0 %v982
        %1447 = vmatpush1.bf16.msra.mxu0 %v981
        %1448 = vmatprep.subr.bf16.mxu0 %v986
        %1449 = vmatpush1.bf16.msra.mxu0 %v985
        %1450 = vmatprep.subr.bf16.mxu0 %v990
        %1451 = vmatpush1.bf16.msra.mxu0 %v989
        %1452 = vmatprep.subr.bf16.mxu0 %v994
        %1453 = vmatpush1.bf16.msra.mxu0 %v993
        %1454 = vmatprep.subr.bf16.mxu0 %v998
        %1455 = vmatpush1.bf16.msra.mxu0 %v997
        %1456 = vmatprep.subr.bf16.mxu0 %v1002
        %1457 = vmatpush1.bf16.msra.mxu0 %v1001
        %1458 = vmatprep.subr.bf16.mxu0 %v1006
        %1459 = vmatpush1.bf16.msra.mxu0 %v1005
        %1460 = vmatprep.subr.bf16.mxu0 %v1010
        %1461 = vmatpush1.bf16.msra.mxu0 %v1009
        %1462 = vmatprep.subr.bf16.mxu0 0
        %1463 = vmatpush1.bf16.msra.mxu0 0
        %1464 = vmatprep.subr.bf16.mxu0 0
        %1465 = vmatpush1.bf16.msra.mxu0 0
        %1466 = vmatprep.subr.bf16.mxu0 0
        %1467 = vmatpush1.bf16.msra.mxu0 0
        %1468 = vmatprep.subr.bf16.mxu0 0
        %1469 = vmatpush1.bf16.msra.mxu0 0
        %1470 = vmatprep.subr.bf16.mxu0 0
        %1471 = vmatpush1.bf16.msra.mxu0 0
        %1472 = vmatprep.subr.bf16.mxu0 0
        %1473 = vmatpush1.bf16.msra.mxu0 0
        %1474 = vmatprep.subr.bf16.mxu0 0
        %1475 = vmatpush1.bf16.msra.mxu0 0
        %1476 = vmatprep.subr.bf16.mxu0 0
        %1477 = vmatpush1.bf16.msra.mxu0 0
        %1478 = vmatprep.mubr.bf16.mxu0 0
        %1479 = vmatmul.mubr.bf16.gmra.mrb[0].mxu0 %v581
        %v1480 = vpop.f32.mrb[0].mxu0
        %v1481 = vadd.f32 %v1368, %v1480
        %v1482 = vpop.f32.mrb[0].mxu0
        %v1483 = vadd.f32 %v1370, %v1482
        %v1484 = vpop.f32.mrb[0].mxu0
        %v1485 = vadd.f32 %v1372, %v1484
        %v1486 = vpop.f32.mrb[0].mxu0
        %v1487 = vadd.f32 %v1374, %v1486
        %1488 = vmatprep.mubr.bf16.mxu0 0
        %1489 = vmatmul.mubr.bf16.gmra.mrb[0].mxu0 %v584
        %v1490 = vpop.f32.mrb[0].mxu0
        %v1491 = vadd.f32 %v1378, %v1490
        %v1492 = vpop.f32.mrb[0].mxu0
        %v1493 = vadd.f32 %v1380, %v1492
        %v1494 = vpop.f32.mrb[0].mxu0
        %v1495 = vadd.f32 %v1382, %v1494
        %v1496 = vpop.f32.mrb[0].mxu0
        %v1497 = vadd.f32 %v1384, %v1496
        %1498 = vmatprep.mubr.bf16.mxu0 0
        %1499 = vmatmul.mubr.bf16.gmra.mrb[0].mxu0 %v587
        %v1500 = vpop.f32.mrb[0].mxu0
        %v1501 = vadd.f32 %v1388, %v1500
        %v1502 = vpop.f32.mrb[0].mxu0
        %v1503 = vadd.f32 %v1390, %v1502
        %v1504 = vpop.f32.mrb[0].mxu0
        %v1505 = vadd.f32 %v1392, %v1504
        %v1506 = vpop.f32.mrb[0].mxu0
        %v1507 = vadd.f32 %v1394, %v1506
        %1508 = vmatprep.mubr.bf16.mxu0 0
        %1509 = vmatmul.mubr.bf16.gmra.mrb[0].mxu0 %v590
        %v1510 = vpop.f32.mrb[0].mxu0
        %v1511 = vadd.f32 %v1398, %v1510
        %v1512 = vpop.f32.mrb[0].mxu0
        %v1513 = vadd.f32 %v1400, %v1512
        %v1514 = vpop.f32.mrb[0].mxu0
        %v1515 = vadd.f32 %v1402, %v1514
        %v1516 = vpop.f32.mrb[0].mxu0
        %v1517 = vadd.f32 %v1404, %v1516
        %1518 = vmatprep.mubr.bf16.mxu0 0
        %1519 = vmatmul.mubr.bf16.gmra.mrb[0].mxu0 %v593
        %v1520 = vpop.f32.mrb[0].mxu0
        %v1521 = vadd.f32 %v1408, %v1520
        %v1522 = vpop.f32.mrb[0].mxu0
        %v1523 = vadd.f32 %v1410, %v1522
        %v1524 = vpop.f32.mrb[0].mxu0
        %v1525 = vadd.f32 %v1412, %v1524
        %v1526 = vpop.f32.mrb[0].mxu0
        %v1527 = vadd.f32 %v1414, %v1526
        %1528 = vmatprep.mubr.bf16.mxu0 0
        %1529 = vmatmul.mubr.bf16.gmra.mrb[0].mxu0 %v596
        %v1530 = vpop.f32.mrb[0].mxu0
        %v1531 = vadd.f32 %v1418, %v1530
        %v1532 = vpop.f32.mrb[0].mxu0
        %v1533 = vadd.f32 %v1420, %v1532
        %v1534 = vpop.f32.mrb[0].mxu0
        %v1535 = vadd.f32 %v1422, %v1534
        %v1536 = vpop.f32.mrb[0].mxu0
        %v1537 = vadd.f32 %v1424, %v1536
        %1538 = vmatprep.mubr.bf16.mxu0 0
        %1539 = vmatmul.mubr.bf16.gmra.mrb[0].mxu0 %v599
        %v1540 = vpop.f32.mrb[0].mxu0
        %v1541 = vadd.f32 %v1428, %v1540
        %v1542 = vpop.f32.mrb[0].mxu0
        %v1543 = vadd.f32 %v1430, %v1542
        %v1544 = vpop.f32.mrb[0].mxu0
        %v1545 = vadd.f32 %v1432, %v1544
        %v1546 = vpop.f32.mrb[0].mxu0
        %v1547 = vadd.f32 %v1434, %v1546
        %1548 = vmatprep.mubr.bf16.mxu0 0
        %1549 = vmatmul.mubr.bf16.gmra.mrb[0].mxu0 %v602
        %v1550 = vpop.f32.mrb[0].mxu0
        %v1551 = vadd.f32 %v1438, %v1550
        %v1552 = vpop.f32.mrb[0].mxu0
        %v1553 = vadd.f32 %v1440, %v1552
        %v1554 = vpop.f32.mrb[0].mxu0
        %v1555 = vadd.f32 %v1442, %v1554
        %v1556 = vpop.f32.mrb[0].mxu0
        %v1557 = vadd.f32 %v1444, %v1556
        %1558 = vdwg.mxu0
        %v1559 = vmax.f32 %v1255, 0.0
        %v1560 = vmax.f32 %v1257, 0.0
        %v1561 = vmax.f32 %v1481, 0.0
        %v1562 = vmax.f32 %v1483, 0.0
        %v1563 = vmax.f32 %v1259, 0.0
        %v1564 = vmax.f32 %v1261, 0.0
        %v1565 = vmax.f32 %v1485, 0.0
        %v1566 = vmax.f32 %v1487, 0.0
        %v1567 = vmax.f32 %v1265, 0.0
        %v1568 = vmax.f32 %v1267, 0.0
        %v1569 = vmax.f32 %v1491, 0.0
        %v1570 = vmax.f32 %v1493, 0.0
        %v1571 = vmax.f32 %v1269, 0.0
        %v1572 = vmax.f32 %v1271, 0.0
        %v1573 = vmax.f32 %v1495, 0.0
        %v1574 = vmax.f32 %v1497, 0.0
        %v1575 = vmax.f32 %v1275, 0.0
        %v1576 = vmax.f32 %v1277, 0.0
        %v1577 = vmax.f32 %v1501, 0.0
        %v1578 = vmax.f32 %v1503, 0.0
        %v1579 = vmax.f32 %v1279, 0.0
        %v1580 = vmax.f32 %v1281, 0.0
        %v1581 = vmax.f32 %v1505, 0.0
        %v1582 = vmax.f32 %v1507, 0.0
        %v1583 = vmax.f32 %v1285, 0.0
        %v1584 = vmax.f32 %v1287, 0.0
        %v1585 = vmax.f32 %v1511, 0.0
        %v1586 = vmax.f32 %v1513, 0.0
        %v1587 = vmax.f32 %v1289, 0.0
        %v1588 = vmax.f32 %v1291, 0.0
        %v1589 = vmax.f32 %v1515, 0.0
        %v1590 = vmax.f32 %v1517, 0.0
        %v1591 = vmax.f32 %v1295, 0.0
        %v1592 = vmax.f32 %v1297, 0.0
        %v1593 = vmax.f32 %v1521, 0.0
        %v1594 = vmax.f32 %v1523, 0.0
        %v1595 = vmax.f32 %v1299, 0.0
        %v1596 = vmax.f32 %v1301, 0.0
        %v1597 = vmax.f32 %v1525, 0.0
        %v1598 = vmax.f32 %v1527, 0.0
        %v1599 = vmax.f32 %v1305, 0.0
        %v1600 = vmax.f32 %v1307, 0.0
        %v1601 = vmax.f32 %v1531, 0.0
        %v1602 = vmax.f32 %v1533, 0.0
        %v1603 = vmax.f32 %v1309, 0.0
        %v1604 = vmax.f32 %v1311, 0.0
        %v1605 = vmax.f32 %v1535, 0.0
        %v1606 = vmax.f32 %v1537, 0.0
        %v1607 = vmax.f32 %v1315, 0.0
        %v1608 = vmax.f32 %v1317, 0.0
        %v1609 = vmax.f32 %v1541, 0.0
        %v1610 = vmax.f32 %v1543, 0.0
        %v1611 = vmax.f32 %v1319, 0.0
        %v1612 = vmax.f32 %v1321, 0.0
        %v1613 = vmax.f32 %v1545, 0.0
        %v1614 = vmax.f32 %v1547, 0.0
        %v1615 = vmax.f32 %v1325, 0.0
        %v1616 = vmax.f32 %v1327, 0.0
        %v1617 = vmax.f32 %v1551, 0.0
        %v1618 = vmax.f32 %v1553, 0.0
        %v1619 = vmax.f32 %v1329, 0.0
        %v1620 = vmax.f32 %v1331, 0.0
        %v1621 = vmax.f32 %v1555, 0.0
        %v1622 = vmax.f32 %v1557, 0.0
        %v1623 = vld [vmem:[#allocation2] sm:$0xff]
        %v1624 = vld [vmem:[#allocation2 + $0x8] sm:$0xff]
        %v1625 = vld [vmem:[#allocation2 + $0x10] sm:$0xff]
        %v1626 = vld [vmem:[#allocation2 + $0x18] sm:$0xff]
        %v1627 = vld [vmem:[#allocation2 + $0x20] sm:$0xff]
        %v1628 = vld [vmem:[#allocation2 + $0x28] sm:$0xff]
        %v1629 = vld [vmem:[#allocation2 + $0x30] sm:$0xff]
        %v1630 = vld [vmem:[#allocation2 + $0x38] sm:$0xff]
        %v1631 = vld [vmem:[#allocation2 + $0x40] sm:$0xff]
        %v1632 = vld [vmem:[#allocation2 + $0x48] sm:$0xff]
        %v1633 = vld [vmem:[#allocation2 + $0x50] sm:$0xff]
        %v1634 = vld [vmem:[#allocation2 + $0x58] sm:$0xff]
        %v1635 = vld [vmem:[#allocation2 + $0x60] sm:$0xff]
        %v1636 = vld [vmem:[#allocation2 + $0x68] sm:$0xff]
        %v1637 = vld [vmem:[#allocation2 + $0x70] sm:$0xff]
        %v1638 = vld [vmem:[#allocation2 + $0x78] sm:$0xff]
        %v1639 = vld [vmem:[#allocation2 + $0x80] sm:$0xff]
        %v1640 = vld [vmem:[#allocation2 + $0x88] sm:$0xff]
        %v1641 = vld [vmem:[#allocation2 + $0x90] sm:$0xff]
        %v1642 = vld [vmem:[#allocation2 + $0x98] sm:$0xff]
        %v1643 = vld [vmem:[#allocation2 + $0xa0] sm:$0xff]
        %v1644 = vld [vmem:[#allocation2 + $0xa8] sm:$0xff]
        %v1645 = vld [vmem:[#allocation2 + $0xb0] sm:$0xff]
        %v1646 = vld [vmem:[#allocation2 + $0xb8] sm:$0xff]
        %v1647 = vld [vmem:[#allocation2 + $0xc0] sm:$0xff]
        %v1648 = vld [vmem:[#allocation2 + $0xc8] sm:$0xff]
        %v1649 = vld [vmem:[#allocation2 + $0xd0] sm:$0xff]
        %v1650 = vld [vmem:[#allocation2 + $0xd8] sm:$0xff]
        %v1651 = vld [vmem:[#allocation2 + $0xe0] sm:$0xff]
        %v1652 = vld [vmem:[#allocation2 + $0xe8] sm:$0xff]
        %v1653 = vld [vmem:[#allocation2 + $0xf0] sm:$0xff]
        %v1654 = vld [vmem:[#allocation2 + $0xf8] sm:$0xff]
        %v1655 = vld [vmem:[#allocation2 + $0x100] sm:$0xff]
        %v1656 = vld [vmem:[#allocation2 + $0x108] sm:$0xff]
        %v1657 = vld [vmem:[#allocation2 + $0x110] sm:$0xff]
        %v1658 = vld [vmem:[#allocation2 + $0x118] sm:$0xff]
        %v1659 = vld [vmem:[#allocation2 + $0x120] sm:$0xff]
        %v1660 = vld [vmem:[#allocation2 + $0x128] sm:$0xff]
        %v1661 = vld [vmem:[#allocation2 + $0x130] sm:$0xff]
        %v1662 = vld [vmem:[#allocation2 + $0x138] sm:$0xff]
        %v1663 = vld [vmem:[#allocation2 + $0x140] sm:$0xff]
        %v1664 = vld [vmem:[#allocation2 + $0x148] sm:$0xff]
        %v1665 = vld [vmem:[#allocation2 + $0x150] sm:$0xff]
        %v1666 = vld [vmem:[#allocation2 + $0x158] sm:$0xff]
        %v1667 = vld [vmem:[#allocation2 + $0x160] sm:$0xff]
        %v1668 = vld [vmem:[#allocation2 + $0x168] sm:$0xff]
        %v1669 = vld [vmem:[#allocation2 + $0x170] sm:$0xff]
        %v1670 = vld [vmem:[#allocation2 + $0x178] sm:$0xff]
        %v1671 = vpack.c.bf16 %v1563, %v1559
        %v1672 = vpack.c.bf16 %v1564, %v1560
        %v1673 = vpack.c.bf16 %v1565, %v1561
        %v1674 = vpack.c.bf16 %v1566, %v1562
        %v1675 = vpack.c.bf16 %v1571, %v1567
        %v1676 = vpack.c.bf16 %v1572, %v1568
        %v1677 = vpack.c.bf16 %v1573, %v1569
        %v1678 = vpack.c.bf16 %v1574, %v1570
        %v1679 = vpack.c.bf16 %v1579, %v1575
        %v1680 = vpack.c.bf16 %v1580, %v1576
        %v1681 = vpack.c.bf16 %v1581, %v1577
        %v1682 = vpack.c.bf16 %v1582, %v1578
        %v1683 = vpack.c.bf16 %v1587, %v1583
        %v1684 = vpack.c.bf16 %v1588, %v1584
        %v1685 = vpack.c.bf16 %v1589, %v1585
        %v1686 = vpack.c.bf16 %v1590, %v1586
        %v1687 = vpack.c.bf16 %v1595, %v1591
        %v1688 = vpack.c.bf16 %v1596, %v1592
        %v1689 = vpack.c.bf16 %v1597, %v1593
        %v1690 = vpack.c.bf16 %v1598, %v1594
        %v1691 = vpack.c.bf16 %v1603, %v1599
        %v1692 = vpack.c.bf16 %v1604, %v1600
        %v1693 = vpack.c.bf16 %v1605, %v1601
        %v1694 = vpack.c.bf16 %v1606, %v1602
        %v1695 = vpack.c.bf16 %v1611, %v1607
        %v1696 = vpack.c.bf16 %v1612, %v1608
        %v1697 = vpack.c.bf16 %v1613, %v1609
        %v1698 = vpack.c.bf16 %v1614, %v1610
        %v1699 = vpack.c.bf16 %v1619, %v1615
        %v1700 = vpack.c.bf16 %v1620, %v1616
        %v1701 = vpack.c.bf16 %v1621, %v1617
        %v1702 = vpack.c.bf16 %v1622, %v1618
        %v1703 = vld [vmem:[#allocation9] sm:$0xff]
        %v1704 = vld [vmem:[#allocation9 + $0x8] sm:$0xf]
        %v1705 = vld [vmem:[#allocation9 + $0xc] sm:$0xff]
        %v1706 = vld [vmem:[#allocation9 + $0x14] sm:$0xf]
        %v1707 = vld [vmem:[#allocation9 + $0x18] sm:$0xff]
        %v1708 = vld [vmem:[#allocation9 + $0x20] sm:$0xf]
        %v1709 = vld [vmem:[#allocation9 + $0x24] sm:$0xff]
        %v1710 = vld [vmem:[#allocation9 + $0x2c] sm:$0xf]
        %v1711 = vld [vmem:[#allocation9 + $0x30] sm:$0xff]
        %v1712 = vld [vmem:[#allocation9 + $0x38] sm:$0xf]
        %v1713 = vld [vmem:[#allocation9 + $0x3c] sm:$0xff]
        %v1714 = vld [vmem:[#allocation9 + $0x44] sm:$0xf]
        %v1715 = vld [vmem:[#allocation9 + $0x48] sm:$0xff]
        %v1716 = vld [vmem:[#allocation9 + $0x50] sm:$0xf]
        %v1717 = vld [vmem:[#allocation9 + $0x54] sm:$0xff]
        %v1718 = vld [vmem:[#allocation9 + $0x5c] sm:$0xf]
        %v1719 = vld [vmem:[#allocation9 + $0x60] sm:$0xff]
        %v1720 = vld [vmem:[#allocation9 + $0x68] sm:$0xf]
        %v1721 = vld [vmem:[#allocation9 + $0x6c] sm:$0xff]
        %v1722 = vld [vmem:[#allocation9 + $0x74] sm:$0xf]
        %v1723 = vld [vmem:[#allocation9 + $0x78] sm:$0xff]
        %v1724 = vld [vmem:[#allocation9 + $0x80] sm:$0xf]
        %v1725 = vld [vmem:[#allocation9 + $0x84] sm:$0xff]
        %v1726 = vld [vmem:[#allocation9 + $0x8c] sm:$0xf]
        %v1727 = vld [vmem:[#allocation9 + $0x90] sm:$0xff]
        %v1728 = vld [vmem:[#allocation9 + $0x98] sm:$0xf]
        %v1729 = vld [vmem:[#allocation9 + $0x9c] sm:$0xff]
        %v1730 = vld [vmem:[#allocation9 + $0xa4] sm:$0xf]
        %v1731 = vld [vmem:[#allocation9 + $0xa8] sm:$0xff]
        %v1732 = vld [vmem:[#allocation9 + $0xb0] sm:$0xf]
        %v1733 = vld [vmem:[#allocation9 + $0xb4] sm:$0xff]
        %v1734 = vld [vmem:[#allocation9 + $0xbc] sm:$0xf]
        %v1735 = vld [vmem:[#allocation9 + $0xc0] sm:$0xff]
        %v1736 = vld [vmem:[#allocation9 + $0xc8] sm:$0xf]
        %v1737 = vld [vmem:[#allocation9 + $0xcc] sm:$0xff]
        %v1738 = vld [vmem:[#allocation9 + $0xd4] sm:$0xf]
        %v1739 = vld [vmem:[#allocation9 + $0xd8] sm:$0xff]
        %v1740 = vld [vmem:[#allocation9 + $0xe0] sm:$0xf]
        %v1741 = vld [vmem:[#allocation9 + $0xe4] sm:$0xff]
        %v1742 = vld [vmem:[#allocation9 + $0xec] sm:$0xf]
        %v1743 = vld [vmem:[#allocation9 + $0xf0] sm:$0xff]
        %v1744 = vld [vmem:[#allocation9 + $0xf8] sm:$0xf]
        %v1745 = vld [vmem:[#allocation9 + $0xfc] sm:$0xff]
        %v1746 = vld [vmem:[#allocation9 + $0x104] sm:$0xf]
        %v1747 = vld [vmem:[#allocation9 + $0x108] sm:$0xff]
        %v1748 = vld [vmem:[#allocation9 + $0x110] sm:$0xf]
        %v1749 = vld [vmem:[#allocation9 + $0x114] sm:$0xff]
        %v1750 = vld [vmem:[#allocation9 + $0x11c] sm:$0xf]
        %v1751 = vld [vmem:[#allocation9 + $0x120] sm:$0xff]
        %v1752 = vld [vmem:[#allocation9 + $0x128] sm:$0xf]
        %v1753 = vld [vmem:[#allocation9 + $0x12c] sm:$0xff]
        %v1754 = vld [vmem:[#allocation9 + $0x134] sm:$0xf]
        %v1755 = vld [vmem:[#allocation9 + $0x138] sm:$0xff]
        %v1756 = vld [vmem:[#allocation9 + $0x140] sm:$0xf]
        %v1757 = vld [vmem:[#allocation9 + $0x144] sm:$0xff]
        %v1758 = vld [vmem:[#allocation9 + $0x14c] sm:$0xf]
        %v1759 = vld [vmem:[#allocation9 + $0x150] sm:$0xff]
        %v1760 = vld [vmem:[#allocation9 + $0x158] sm:$0xf]
        %v1761 = vld [vmem:[#allocation9 + $0x15c] sm:$0xff]
        %v1762 = vld [vmem:[#allocation9 + $0x164] sm:$0xf]
        %v1763 = vld [vmem:[#allocation9 + $0x168] sm:$0xff]
        %v1764 = vld [vmem:[#allocation9 + $0x170] sm:$0xf]
        %v1765 = vld [vmem:[#allocation9 + $0x174] sm:$0xff]
        %v1766 = vld [vmem:[#allocation9 + $0x17c] sm:$0xf]
        %v1767 = vld [vmem:[#allocation9 + $0x180] sm:$0xff]
        %v1768 = vld [vmem:[#allocation9 + $0x188] sm:$0xf]
        %v1769 = vld [vmem:[#allocation9 + $0x18c] sm:$0xff]
        %v1770 = vld [vmem:[#allocation9 + $0x194] sm:$0xf]
        %v1771 = vld [vmem:[#allocation9 + $0x198] sm:$0xff]
        %v1772 = vld [vmem:[#allocation9 + $0x1a0] sm:$0xf]
        %v1773 = vld [vmem:[#allocation9 + $0x1a4] sm:$0xff]
        %v1774 = vld [vmem:[#allocation9 + $0x1ac] sm:$0xf]
        %v1775 = vld [vmem:[#allocation9 + $0x1b0] sm:$0xff]
        %v1776 = vld [vmem:[#allocation9 + $0x1b8] sm:$0xf]
        %v1777 = vld [vmem:[#allocation9 + $0x1bc] sm:$0xff]
        %v1778 = vld [vmem:[#allocation9 + $0x1c4] sm:$0xf]
        %v1779 = vld [vmem:[#allocation9 + $0x1c8] sm:$0xff]
        %v1780 = vld [vmem:[#allocation9 + $0x1d0] sm:$0xf]
        %v1781 = vld [vmem:[#allocation9 + $0x1d4] sm:$0xff]
        %v1782 = vld [vmem:[#allocation9 + $0x1dc] sm:$0xf]
        %v1783 = vld [vmem:[#allocation9 + $0x1e0] sm:$0xff]
        %v1784 = vld [vmem:[#allocation9 + $0x1e8] sm:$0xf]
        %v1785 = vld [vmem:[#allocation9 + $0x1ec] sm:$0xff]
        %v1786 = vld [vmem:[#allocation9 + $0x1f4] sm:$0xf]
        %v1787 = vld [vmem:[#allocation9 + $0x1f8] sm:$0xff]
        %v1788 = vld [vmem:[#allocation9 + $0x200] sm:$0xf]
        %v1789 = vld [vmem:[#allocation9 + $0x204] sm:$0xff]
        %v1790 = vld [vmem:[#allocation9 + $0x20c] sm:$0xf]
        %v1791 = vld [vmem:[#allocation9 + $0x210] sm:$0xff]
        %v1792 = vld [vmem:[#allocation9 + $0x218] sm:$0xf]
        %v1793 = vld [vmem:[#allocation9 + $0x21c] sm:$0xff]
        %v1794 = vld [vmem:[#allocation9 + $0x224] sm:$0xf]
        %v1795 = vld [vmem:[#allocation9 + $0x228] sm:$0xff]
        %v1796 = vld [vmem:[#allocation9 + $0x230] sm:$0xf]
        %v1797 = vld [vmem:[#allocation9 + $0x234] sm:$0xff]
        %v1798 = vld [vmem:[#allocation9 + $0x23c] sm:$0xf]
        %v1799 = vld [vmem:[#allocation9 + $0x240] sm:$0xff]
        %v1800 = vld [vmem:[#allocation9 + $0x248] sm:$0xf]
        %v1801 = vld [vmem:[#allocation9 + $0x24c] sm:$0xff]
        %v1802 = vld [vmem:[#allocation9 + $0x254] sm:$0xf]
        %v1803 = vld [vmem:[#allocation9 + $0x258] sm:$0xff]
        %v1804 = vld [vmem:[#allocation9 + $0x260] sm:$0xf]
        %v1805 = vld [vmem:[#allocation9 + $0x264] sm:$0xff]
        %v1806 = vld [vmem:[#allocation9 + $0x26c] sm:$0xf]
        %v1807 = vld [vmem:[#allocation9 + $0x270] sm:$0xff]
        %v1808 = vld [vmem:[#allocation9 + $0x278] sm:$0xf]
        %v1809 = vld [vmem:[#allocation9 + $0x27c] sm:$0xff]
        %v1810 = vld [vmem:[#allocation9 + $0x284] sm:$0xf]
        %v1811 = vld [vmem:[#allocation9 + $0x288] sm:$0xff]
        %v1812 = vld [vmem:[#allocation9 + $0x290] sm:$0xf]
        %v1813 = vld [vmem:[#allocation9 + $0x294] sm:$0xff]
        %v1814 = vld [vmem:[#allocation9 + $0x29c] sm:$0xf]
        %v1815 = vld [vmem:[#allocation9 + $0x2a0] sm:$0xff]
        %v1816 = vld [vmem:[#allocation9 + $0x2a8] sm:$0xf]
        %v1817 = vld [vmem:[#allocation9 + $0x2ac] sm:$0xff]
        %v1818 = vld [vmem:[#allocation9 + $0x2b4] sm:$0xf]
        %v1819 = vld [vmem:[#allocation9 + $0x2b8] sm:$0xff]
        %v1820 = vld [vmem:[#allocation9 + $0x2c0] sm:$0xf]
        %v1821 = vld [vmem:[#allocation9 + $0x2c4] sm:$0xff]
        %v1822 = vld [vmem:[#allocation9 + $0x2cc] sm:$0xf]
        %v1823 = vld [vmem:[#allocation9 + $0x2d0] sm:$0xff]
        %v1824 = vld [vmem:[#allocation9 + $0x2d8] sm:$0xf]
        %v1825 = vld [vmem:[#allocation9 + $0x2dc] sm:$0xff]
        %v1826 = vld [vmem:[#allocation9 + $0x2e4] sm:$0xf]
        %v1827 = vld [vmem:[#allocation9 + $0x2e8] sm:$0xff]
        %v1828 = vld [vmem:[#allocation9 + $0x2f0] sm:$0xf]
        %v1829 = vld [vmem:[#allocation9 + $0x2f4] sm:$0xff]
        %v1830 = vld [vmem:[#allocation9 + $0x2fc] sm:$0xf]
        %v1959 = vunpack.c.l.b16 %v1703
        %v1960 = vunpack.c.h.b16 %v1703
        %v1961 = vunpack.c.l.b16 %v1704
        %v1962 = vunpack.c.l.b16 %v1705
        %v1963 = vunpack.c.h.b16 %v1705
        %v1964 = vunpack.c.l.b16 %v1706
        %v1965 = vunpack.c.l.b16 %v1707
        %v1966 = vunpack.c.h.b16 %v1707
        %v1967 = vunpack.c.l.b16 %v1708
        %v1968 = vunpack.c.l.b16 %v1709
        %v1969 = vunpack.c.h.b16 %v1709
        %v1970 = vunpack.c.l.b16 %v1710
        %v1971 = vunpack.c.l.b16 %v1711
        %v1972 = vunpack.c.h.b16 %v1711
        %v1973 = vunpack.c.l.b16 %v1712
        %v1974 = vunpack.c.l.b16 %v1713
        %v1975 = vunpack.c.h.b16 %v1713
        %v1976 = vunpack.c.l.b16 %v1714
        %v1977 = vunpack.c.l.b16 %v1715
        %v1978 = vunpack.c.h.b16 %v1715
        %v1979 = vunpack.c.l.b16 %v1716
        %v1980 = vunpack.c.l.b16 %v1717
        %v1981 = vunpack.c.h.b16 %v1717
        %v1982 = vunpack.c.l.b16 %v1718
        %v1983 = vunpack.c.l.b16 %v1719
        %v1984 = vunpack.c.h.b16 %v1719
        %v1985 = vunpack.c.l.b16 %v1720
        %v1986 = vunpack.c.l.b16 %v1721
        %v1987 = vunpack.c.h.b16 %v1721
        %v1988 = vunpack.c.l.b16 %v1722
        %v1989 = vunpack.c.l.b16 %v1723
        %v1990 = vunpack.c.h.b16 %v1723
        %v1991 = vunpack.c.l.b16 %v1724
        %v1992 = vunpack.c.l.b16 %v1725
        %v1993 = vunpack.c.h.b16 %v1725
        %v1994 = vunpack.c.l.b16 %v1726
        %v1995 = vunpack.c.l.b16 %v1727
        %v1996 = vunpack.c.h.b16 %v1727
        %v1997 = vunpack.c.l.b16 %v1728
        %v1998 = vunpack.c.l.b16 %v1729
        %v1999 = vunpack.c.h.b16 %v1729
        %v2000 = vunpack.c.l.b16 %v1730
        %v2001 = vunpack.c.l.b16 %v1731
        %v2002 = vunpack.c.h.b16 %v1731
        %v2003 = vunpack.c.l.b16 %v1732
        %v2004 = vunpack.c.l.b16 %v1733
        %v2005 = vunpack.c.h.b16 %v1733
        %v2006 = vunpack.c.l.b16 %v1734
        %v2007 = vunpack.c.l.b16 %v1735
        %v2008 = vunpack.c.h.b16 %v1735
        %v2009 = vunpack.c.l.b16 %v1736
        %v2010 = vunpack.c.l.b16 %v1737
        %v2011 = vunpack.c.h.b16 %v1737
        %v2012 = vunpack.c.l.b16 %v1738
        %v2013 = vunpack.c.l.b16 %v1739
        %v2014 = vunpack.c.h.b16 %v1739
        %v2015 = vunpack.c.l.b16 %v1740
        %v2016 = vunpack.c.l.b16 %v1741
        %v2017 = vunpack.c.h.b16 %v1741
        %v2018 = vunpack.c.l.b16 %v1742
        %v2019 = vunpack.c.l.b16 %v1743
        %v2020 = vunpack.c.h.b16 %v1743
        %v2021 = vunpack.c.l.b16 %v1744
        %v2022 = vunpack.c.l.b16 %v1745
        %v2023 = vunpack.c.h.b16 %v1745
        %v2024 = vunpack.c.l.b16 %v1746
        %v2025 = vunpack.c.l.b16 %v1747
        %v2026 = vunpack.c.h.b16 %v1747
        %v2027 = vunpack.c.l.b16 %v1748
        %v2028 = vunpack.c.l.b16 %v1749
        %v2029 = vunpack.c.h.b16 %v1749
        %v2030 = vunpack.c.l.b16 %v1750
        %v2031 = vunpack.c.l.b16 %v1751
        %v2032 = vunpack.c.h.b16 %v1751
        %v2033 = vunpack.c.l.b16 %v1752
        %v2034 = vunpack.c.l.b16 %v1753
        %v2035 = vunpack.c.h.b16 %v1753
        %v2036 = vunpack.c.l.b16 %v1754
        %v2037 = vunpack.c.l.b16 %v1755
        %v2038 = vunpack.c.h.b16 %v1755
        %v2039 = vunpack.c.l.b16 %v1756
        %v2040 = vunpack.c.l.b16 %v1757
        %v2041 = vunpack.c.h.b16 %v1757
        %v2042 = vunpack.c.l.b16 %v1758
        %v2043 = vunpack.c.l.b16 %v1759
        %v2044 = vunpack.c.h.b16 %v1759
        %v2045 = vunpack.c.l.b16 %v1760
        %v2046 = vunpack.c.l.b16 %v1761
        %v2047 = vunpack.c.h.b16 %v1761
        %v2048 = vunpack.c.l.b16 %v1762
        %v2049 = vunpack.c.l.b16 %v1763
        %v2050 = vunpack.c.h.b16 %v1763
        %v2051 = vunpack.c.l.b16 %v1764
        %v2052 = vunpack.c.l.b16 %v1765
        %v2053 = vunpack.c.h.b16 %v1765
        %v2054 = vunpack.c.l.b16 %v1766
        %v2055 = vunpack.c.l.b16 %v1767
        %v2056 = vunpack.c.h.b16 %v1767
        %v2057 = vunpack.c.l.b16 %v1768
        %v2058 = vunpack.c.l.b16 %v1769
        %v2059 = vunpack.c.h.b16 %v1769
        %v2060 = vunpack.c.l.b16 %v1770
        %v2061 = vunpack.c.l.b16 %v1771
        %v2062 = vunpack.c.h.b16 %v1771
        %v2063 = vunpack.c.l.b16 %v1772
        %v2064 = vunpack.c.l.b16 %v1773
        %v2065 = vunpack.c.h.b16 %v1773
        %v2066 = vunpack.c.l.b16 %v1774
        %v2067 = vunpack.c.l.b16 %v1775
        %v2068 = vunpack.c.h.b16 %v1775
        %v2069 = vunpack.c.l.b16 %v1776
        %v2070 = vunpack.c.l.b16 %v1777
        %v2071 = vunpack.c.h.b16 %v1777
        %v2072 = vunpack.c.l.b16 %v1778
        %v2073 = vunpack.c.l.b16 %v1779
        %v2074 = vunpack.c.h.b16 %v1779
        %v2075 = vunpack.c.l.b16 %v1780
        %v2076 = vunpack.c.l.b16 %v1781
        %v2077 = vunpack.c.h.b16 %v1781
        %v2078 = vunpack.c.l.b16 %v1782
        %v2079 = vunpack.c.l.b16 %v1783
        %v2080 = vunpack.c.h.b16 %v1783
        %v2081 = vunpack.c.l.b16 %v1784
        %v2082 = vunpack.c.l.b16 %v1785
        %v2083 = vunpack.c.h.b16 %v1785
        %v2084 = vunpack.c.l.b16 %v1786
        %v2085 = vunpack.c.l.b16 %v1787
        %v2086 = vunpack.c.h.b16 %v1787
        %v2087 = vunpack.c.l.b16 %v1788
        %v2088 = vunpack.c.l.b16 %v1789
        %v2089 = vunpack.c.h.b16 %v1789
        %v2090 = vunpack.c.l.b16 %v1790
        %v2091 = vunpack.c.l.b16 %v1791
        %v2092 = vunpack.c.h.b16 %v1791
        %v2093 = vunpack.c.l.b16 %v1792
        %v2094 = vunpack.c.l.b16 %v1793
        %v2095 = vunpack.c.h.b16 %v1793
        %v2096 = vunpack.c.l.b16 %v1794
        %v2097 = vunpack.c.l.b16 %v1795
        %v2098 = vunpack.c.h.b16 %v1795
        %v2099 = vunpack.c.l.b16 %v1796
        %v2100 = vunpack.c.l.b16 %v1797
        %v2101 = vunpack.c.h.b16 %v1797
        %v2102 = vunpack.c.l.b16 %v1798
        %v2103 = vunpack.c.l.b16 %v1799
        %v2104 = vunpack.c.h.b16 %v1799
        %v2105 = vunpack.c.l.b16 %v1800
        %v2106 = vunpack.c.l.b16 %v1801
        %v2107 = vunpack.c.h.b16 %v1801
        %v2108 = vunpack.c.l.b16 %v1802
        %v2109 = vunpack.c.l.b16 %v1803
        %v2110 = vunpack.c.h.b16 %v1803
        %v2111 = vunpack.c.l.b16 %v1804
        %v2112 = vunpack.c.l.b16 %v1805
        %v2113 = vunpack.c.h.b16 %v1805
        %v2114 = vunpack.c.l.b16 %v1806
        %v2115 = vunpack.c.l.b16 %v1807
        %v2116 = vunpack.c.h.b16 %v1807
        %v2117 = vunpack.c.l.b16 %v1808
        %v2118 = vunpack.c.l.b16 %v1809
        %v2119 = vunpack.c.h.b16 %v1809
        %v2120 = vunpack.c.l.b16 %v1810
        %v2121 = vunpack.c.l.b16 %v1811
        %v2122 = vunpack.c.h.b16 %v1811
        %v2123 = vunpack.c.l.b16 %v1812
        %v2124 = vunpack.c.l.b16 %v1813
        %v2125 = vunpack.c.h.b16 %v1813
        %v2126 = vunpack.c.l.b16 %v1814
        %v2127 = vunpack.c.l.b16 %v1815
        %v2128 = vunpack.c.h.b16 %v1815
        %v2129 = vunpack.c.l.b16 %v1816
        %v2130 = vunpack.c.l.b16 %v1817
        %v2131 = vunpack.c.h.b16 %v1817
        %v2132 = vunpack.c.l.b16 %v1818
        %v2133 = vunpack.c.l.b16 %v1819
        %v2134 = vunpack.c.h.b16 %v1819
        %v2135 = vunpack.c.l.b16 %v1820
        %v2136 = vunpack.c.l.b16 %v1821
        %v2137 = vunpack.c.h.b16 %v1821
        %v2138 = vunpack.c.l.b16 %v1822
        %v2139 = vunpack.c.l.b16 %v1823
        %v2140 = vunpack.c.h.b16 %v1823
        %v2141 = vunpack.c.l.b16 %v1824
        %v2142 = vunpack.c.l.b16 %v1825
        %v2143 = vunpack.c.h.b16 %v1825
        %v2144 = vunpack.c.l.b16 %v1826
        %v2145 = vunpack.c.l.b16 %v1827
        %v2146 = vunpack.c.h.b16 %v1827
        %v2147 = vunpack.c.l.b16 %v1828
        %v2148 = vunpack.c.l.b16 %v1829
        %v2149 = vunpack.c.h.b16 %v1829
        %v2150 = vunpack.c.l.b16 %v1830
        %v2151 = vpack.c.b16 %v1962, %v1959
        %v2152 = vpack.c.b16 %v1963, %v1960
        %v2153 = vpack.c.b16 %v1964, %v1961
        %v2154 = vpack.c.b16 %v1968, %v1965
        %v2155 = vpack.c.b16 %v1969, %v1966
        %v2156 = vpack.c.b16 %v1970, %v1967
        %v2157 = vpack.c.b16 %v1974, %v1971
        %v2158 = vpack.c.b16 %v1975, %v1972
        %v2159 = vpack.c.b16 %v1976, %v1973
        %v2160 = vpack.c.b16 %v1980, %v1977
        %v2161 = vpack.c.b16 %v1981, %v1978
        %v2162 = vpack.c.b16 %v1982, %v1979
        %v2163 = vpack.c.b16 %v1986, %v1983
        %v2164 = vpack.c.b16 %v1987, %v1984
        %v2165 = vpack.c.b16 %v1988, %v1985
        %v2166 = vpack.c.b16 %v1992, %v1989
        %v2167 = vpack.c.b16 %v1993, %v1990
        %v2168 = vpack.c.b16 %v1994, %v1991
        %v2169 = vpack.c.b16 %v1998, %v1995
        %v2170 = vpack.c.b16 %v1999, %v1996
        %v2171 = vpack.c.b16 %v2000, %v1997
        %v2172 = vpack.c.b16 %v2004, %v2001
        %v2173 = vpack.c.b16 %v2005, %v2002
        %v2174 = vpack.c.b16 %v2006, %v2003
        %v2175 = vpack.c.b16 %v2010, %v2007
        %v2176 = vpack.c.b16 %v2011, %v2008
        %v2177 = vpack.c.b16 %v2012, %v2009
        %v2178 = vpack.c.b16 %v2016, %v2013
        %v2179 = vpack.c.b16 %v2017, %v2014
        %v2180 = vpack.c.b16 %v2018, %v2015
        %v2181 = vpack.c.b16 %v2022, %v2019
        %v2182 = vpack.c.b16 %v2023, %v2020
        %v2183 = vpack.c.b16 %v2024, %v2021
        %v2184 = vpack.c.b16 %v2028, %v2025
        %v2185 = vpack.c.b16 %v2029, %v2026
        %v2186 = vpack.c.b16 %v2030, %v2027
        %v2187 = vpack.c.b16 %v2034, %v2031
        %v2188 = vpack.c.b16 %v2035, %v2032
        %v2189 = vpack.c.b16 %v2036, %v2033
        %v2190 = vpack.c.b16 %v2040, %v2037
        %v2191 = vpack.c.b16 %v2041, %v2038
        %v2192 = vpack.c.b16 %v2042, %v2039
        %v2193 = vpack.c.b16 %v2046, %v2043
        %v2194 = vpack.c.b16 %v2047, %v2044
        %v2195 = vpack.c.b16 %v2048, %v2045
        %v2196 = vpack.c.b16 %v2052, %v2049
        %v2197 = vpack.c.b16 %v2053, %v2050
        %v2198 = vpack.c.b16 %v2054, %v2051
        %v2199 = vpack.c.b16 %v2058, %v2055
        %v2200 = vpack.c.b16 %v2059, %v2056
        %v2201 = vpack.c.b16 %v2060, %v2057
        %v2202 = vpack.c.b16 %v2064, %v2061
        %v2203 = vpack.c.b16 %v2065, %v2062
        %v2204 = vpack.c.b16 %v2066, %v2063
        %v2205 = vpack.c.b16 %v2070, %v2067
        %v2206 = vpack.c.b16 %v2071, %v2068
        %v2207 = vpack.c.b16 %v2072, %v2069
        %v2208 = vpack.c.b16 %v2076, %v2073
        %v2209 = vpack.c.b16 %v2077, %v2074
        %v2210 = vpack.c.b16 %v2078, %v2075
        %v2211 = vpack.c.b16 %v2082, %v2079
        %v2212 = vpack.c.b16 %v2083, %v2080
        %v2213 = vpack.c.b16 %v2084, %v2081
        %v2214 = vpack.c.b16 %v2088, %v2085
        %v2215 = vpack.c.b16 %v2089, %v2086
        %v2216 = vpack.c.b16 %v2090, %v2087
        %v2217 = vpack.c.b16 %v2094, %v2091
        %v2218 = vpack.c.b16 %v2095, %v2092
        %v2219 = vpack.c.b16 %v2096, %v2093
        %v2220 = vpack.c.b16 %v2100, %v2097
        %v2221 = vpack.c.b16 %v2101, %v2098
        %v2222 = vpack.c.b16 %v2102, %v2099
        %v2223 = vpack.c.b16 %v2106, %v2103
        %v2224 = vpack.c.b16 %v2107, %v2104
        %v2225 = vpack.c.b16 %v2108, %v2105
        %v2226 = vpack.c.b16 %v2112, %v2109
        %v2227 = vpack.c.b16 %v2113, %v2110
        %v2228 = vpack.c.b16 %v2114, %v2111
        %v2229 = vpack.c.b16 %v2118, %v2115
        %v2230 = vpack.c.b16 %v2119, %v2116
        %v2231 = vpack.c.b16 %v2120, %v2117
        %v2232 = vpack.c.b16 %v2124, %v2121
        %v2233 = vpack.c.b16 %v2125, %v2122
        %v2234 = vpack.c.b16 %v2126, %v2123
        %v2235 = vpack.c.b16 %v2130, %v2127
        %v2236 = vpack.c.b16 %v2131, %v2128
        %v2237 = vpack.c.b16 %v2132, %v2129
        %v2238 = vpack.c.b16 %v2136, %v2133
        %v2239 = vpack.c.b16 %v2137, %v2134
        %v2240 = vpack.c.b16 %v2138, %v2135
        %v2241 = vpack.c.b16 %v2142, %v2139
        %v2242 = vpack.c.b16 %v2143, %v2140
        %v2243 = vpack.c.b16 %v2144, %v2141
        %v2244 = vpack.c.b16 %v2148, %v2145
        %v2245 = vpack.c.b16 %v2149, %v2146
        %v2246 = vpack.c.b16 %v2150, %v2147
        %2343 = vmatprep.subr.bf16.mxu0 %v2152
        %2344 = vmatpush1.bf16.msra.mxu0 %v2151
        %2345 = vmatprep.subr.bf16.mxu0 %v2155
        %2346 = vmatpush1.bf16.msra.mxu0 %v2154
        %2347 = vmatprep.subr.bf16.mxu0 %v2158
        %2348 = vmatpush1.bf16.msra.mxu0 %v2157
        %2349 = vmatprep.subr.bf16.mxu0 %v2161
        %2350 = vmatpush1.bf16.msra.mxu0 %v2160
        %2351 = vmatprep.subr.bf16.mxu0 %v2164
        %2352 = vmatpush1.bf16.msra.mxu0 %v2163
        %2353 = vmatprep.subr.bf16.mxu0 %v2167
        %2354 = vmatpush1.bf16.msra.mxu0 %v2166
        %2355 = vmatprep.subr.bf16.mxu0 %v2170
        %2356 = vmatpush1.bf16.msra.mxu0 %v2169
        %2357 = vmatprep.subr.bf16.mxu0 %v2173
        %2358 = vmatpush1.bf16.msra.mxu0 %v2172
        %2359 = vmatprep.subr.bf16.mxu0 %v2176
        %2360 = vmatpush1.bf16.msra.mxu0 %v2175
        %2361 = vmatprep.subr.bf16.mxu0 %v2179
        %2362 = vmatpush1.bf16.msra.mxu0 %v2178
        %2363 = vmatprep.subr.bf16.mxu0 %v2182
        %2364 = vmatpush1.bf16.msra.mxu0 %v2181
        %2365 = vmatprep.subr.bf16.mxu0 %v2185
        %2366 = vmatpush1.bf16.msra.mxu0 %v2184
        %2367 = vmatprep.subr.bf16.mxu0 %v2188
        %2368 = vmatpush1.bf16.msra.mxu0 %v2187
        %2369 = vmatprep.subr.bf16.mxu0 %v2191
        %2370 = vmatpush1.bf16.msra.mxu0 %v2190
        %2371 = vmatprep.subr.bf16.mxu0 %v2194
        %2372 = vmatpush1.bf16.msra.mxu0 %v2193
        %2373 = vmatprep.subr.bf16.mxu0 %v2197
        %2374 = vmatpush1.bf16.msra.mxu0 %v2196
        %2375 = vmatprep.mubr.bf16.mxu0 %v1672
        %2376 = vmatmul.mubr.bf16.gmra.mrb[0].mxu0 %v1671
        %v2377 = vpop.f32.mrb[0].mxu0
        %v2378 = vadd.f32 0.0, %v2377
        %v2379 = vpop.f32.mrb[0].mxu0
        %v2380 = vadd.f32 0.0, %v2379
        %v2381 = vpop.f32.mrb[0].mxu0
        %v2382 = vadd.f32 0.0, %v2381
        %v2383 = vpop.f32.mrb[0].mxu0
        %v2384 = vadd.f32 0.0, %v2383
        %2385 = vmatprep.mubr.bf16.mxu0 %v1676
        %2386 = vmatmul.mubr.bf16.gmra.mrb[0].mxu0 %v1675
        %v2387 = vpop.f32.mrb[0].mxu0
        %v2388 = vadd.f32 0.0, %v2387
        %v2389 = vpop.f32.mrb[0].mxu0
        %v2390 = vadd.f32 0.0, %v2389
        %v2391 = vpop.f32.mrb[0].mxu0
        %v2392 = vadd.f32 0.0, %v2391
        %v2393 = vpop.f32.mrb[0].mxu0
        %v2394 = vadd.f32 0.0, %v2393
        %2395 = vmatprep.mubr.bf16.mxu0 %v1680
        %2396 = vmatmul.mubr.bf16.gmra.mrb[0].mxu0 %v1679
        %v2397 = vpop.f32.mrb[0].mxu0
        %v2398 = vadd.f32 0.0, %v2397
        %v2399 = vpop.f32.mrb[0].mxu0
        %v2400 = vadd.f32 0.0, %v2399
        %v2401 = vpop.f32.mrb[0].mxu0
        %v2402 = vadd.f32 0.0, %v2401
        %v2403 = vpop.f32.mrb[0].mxu0
        %v2404 = vadd.f32 0.0, %v2403
        %2405 = vmatprep.mubr.bf16.mxu0 %v1684
        %2406 = vmatmul.mubr.bf16.gmra.mrb[0].mxu0 %v1683
        %v2407 = vpop.f32.mrb[0].mxu0
        %v2408 = vadd.f32 0.0, %v2407
        %v2409 = vpop.f32.mrb[0].mxu0
        %v2410 = vadd.f32 0.0, %v2409
        %v2411 = vpop.f32.mrb[0].mxu0
        %v2412 = vadd.f32 0.0, %v2411
        %v2413 = vpop.f32.mrb[0].mxu0
        %v2414 = vadd.f32 0.0, %v2413
        %2415 = vmatprep.mubr.bf16.mxu0 %v1688
        %2416 = vmatmul.mubr.bf16.gmra.mrb[0].mxu0 %v1687
        %v2417 = vpop.f32.mrb[0].mxu0
        %v2418 = vadd.f32 0.0, %v2417
        %v2419 = vpop.f32.mrb[0].mxu0
        %v2420 = vadd.f32 0.0, %v2419
        %v2421 = vpop.f32.mrb[0].mxu0
        %v2422 = vadd.f32 0.0, %v2421
        %v2423 = vpop.f32.mrb[0].mxu0
        %v2424 = vadd.f32 0.0, %v2423
        %2425 = vmatprep.mubr.bf16.mxu0 %v1692
        %2426 = vmatmul.mubr.bf16.gmra.mrb[0].mxu0 %v1691
        %v2427 = vpop.f32.mrb[0].mxu0
        %v2428 = vadd.f32 0.0, %v2427
        %v2429 = vpop.f32.mrb[0].mxu0
        %v2430 = vadd.f32 0.0, %v2429
        %v2431 = vpop.f32.mrb[0].mxu0
        %v2432 = vadd.f32 0.0, %v2431
        %v2433 = vpop.f32.mrb[0].mxu0
        %v2434 = vadd.f32 0.0, %v2433
        %2435 = vmatprep.mubr.bf16.mxu0 %v1696
        %2436 = vmatmul.mubr.bf16.gmra.mrb[0].mxu0 %v1695
        %v2437 = vpop.f32.mrb[0].mxu0
        %v2438 = vadd.f32 0.0, %v2437
        %v2439 = vpop.f32.mrb[0].mxu0
        %v2440 = vadd.f32 0.0, %v2439
        %v2441 = vpop.f32.mrb[0].mxu0
        %v2442 = vadd.f32 0.0, %v2441
        %v2443 = vpop.f32.mrb[0].mxu0
        %v2444 = vadd.f32 0.0, %v2443
        %2445 = vmatprep.mubr.bf16.mxu0 %v1700
        %2446 = vmatmul.mubr.bf16.gmra.mrb[0].mxu0 %v1699
        %v2447 = vpop.f32.mrb[0].mxu0
        %v2448 = vadd.f32 0.0, %v2447
        %v2449 = vpop.f32.mrb[0].mxu0
        %v2450 = vadd.f32 0.0, %v2449
        %v2451 = vpop.f32.mrb[0].mxu0
        %v2452 = vadd.f32 0.0, %v2451
        %v2453 = vpop.f32.mrb[0].mxu0
        %v2454 = vadd.f32 0.0, %v2453
        %2455 = vdwg.mxu0
        %2456 = vmatprep.subr.bf16.mxu0 %v2200
        %2457 = vmatpush1.bf16.msra.mxu0 %v2199
        %2458 = vmatprep.subr.bf16.mxu0 %v2203
        %2459 = vmatpush1.bf16.msra.mxu0 %v2202
        %2460 = vmatprep.subr.bf16.mxu0 %v2206
        %2461 = vmatpush1.bf16.msra.mxu0 %v2205
        %2462 = vmatprep.subr.bf16.mxu0 %v2209
        %2463 = vmatpush1.bf16.msra.mxu0 %v2208
        %2464 = vmatprep.subr.bf16.mxu0 %v2212
        %2465 = vmatpush1.bf16.msra.mxu0 %v2211
        %2466 = vmatprep.subr.bf16.mxu0 %v2215
        %2467 = vmatpush1.bf16.msra.mxu0 %v2214
        %2468 = vmatprep.subr.bf16.mxu0 %v2218
        %2469 = vmatpush1.bf16.msra.mxu0 %v2217
        %2470 = vmatprep.subr.bf16.mxu0 %v2221
        %2471 = vmatpush1.bf16.msra.mxu0 %v2220
        %2472 = vmatprep.subr.bf16.mxu0 %v2224
        %2473 = vmatpush1.bf16.msra.mxu0 %v2223
        %2474 = vmatprep.subr.bf16.mxu0 %v2227
        %2475 = vmatpush1.bf16.msra.mxu0 %v2226
        %2476 = vmatprep.subr.bf16.mxu0 %v2230
        %2477 = vmatpush1.bf16.msra.mxu0 %v2229
        %2478 = vmatprep.subr.bf16.mxu0 %v2233
        %2479 = vmatpush1.bf16.msra.mxu0 %v2232
        %2480 = vmatprep.subr.bf16.mxu0 %v2236
        %2481 = vmatpush1.bf16.msra.mxu0 %v2235
        %2482 = vmatprep.subr.bf16.mxu0 %v2239
        %2483 = vmatpush1.bf16.msra.mxu0 %v2238
        %2484 = vmatprep.subr.bf16.mxu0 %v2242
        %2485 = vmatpush1.bf16.msra.mxu0 %v2241
        %2486 = vmatprep.subr.bf16.mxu0 %v2245
        %2487 = vmatpush1.bf16.msra.mxu0 %v2244
        %2488 = vmatprep.mubr.bf16.mxu0 %v1674
        %2489 = vmatmul.mubr.bf16.gmra.mrb[0].mxu0 %v1673
        %v2490 = vpop.f32.mrb[0].mxu0
        %v2491 = vadd.f32 %v2378, %v2490
        %v2492 = vpop.f32.mrb[0].mxu0
        %v2493 = vadd.f32 %v2380, %v2492
        %v2494 = vpop.f32.mrb[0].mxu0
        %v2495 = vadd.f32 %v2382, %v2494
        %v2496 = vpop.f32.mrb[0].mxu0
        %v2497 = vadd.f32 %v2384, %v2496
        %2498 = vmatprep.mubr.bf16.mxu0 %v1678
        %2499 = vmatmul.mubr.bf16.gmra.mrb[0].mxu0 %v1677
        %v2500 = vpop.f32.mrb[0].mxu0
        %v2501 = vadd.f32 %v2388, %v2500
        %v2502 = vpop.f32.mrb[0].mxu0
        %v2503 = vadd.f32 %v2390, %v2502
        %v2504 = vpop.f32.mrb[0].mxu0
        %v2505 = vadd.f32 %v2392, %v2504
        %v2506 = vpop.f32.mrb[0].mxu0
        %v2507 = vadd.f32 %v2394, %v2506
        %2508 = vmatprep.mubr.bf16.mxu0 %v1682
        %2509 = vmatmul.mubr.bf16.gmra.mrb[0].mxu0 %v1681
        %v2510 = vpop.f32.mrb[0].mxu0
        %v2511 = vadd.f32 %v2398, %v2510
        %v2512 = vpop.f32.mrb[0].mxu0
        %v2513 = vadd.f32 %v2400, %v2512
        %v2514 = vpop.f32.mrb[0].mxu0
        %v2515 = vadd.f32 %v2402, %v2514
        %v2516 = vpop.f32.mrb[0].mxu0
        %v2517 = vadd.f32 %v2404, %v2516
        %2518 = vmatprep.mubr.bf16.mxu0 %v1686
        %2519 = vmatmul.mubr.bf16.gmra.mrb[0].mxu0 %v1685
        %v2520 = vpop.f32.mrb[0].mxu0
        %v2521 = vadd.f32 %v2408, %v2520
        %v2522 = vpop.f32.mrb[0].mxu0
        %v2523 = vadd.f32 %v2410, %v2522
        %v2524 = vpop.f32.mrb[0].mxu0
        %v2525 = vadd.f32 %v2412, %v2524
        %v2526 = vpop.f32.mrb[0].mxu0
        %v2527 = vadd.f32 %v2414, %v2526
        %2528 = vmatprep.mubr.bf16.mxu0 %v1690
        %2529 = vmatmul.mubr.bf16.gmra.mrb[0].mxu0 %v1689
        %v2530 = vpop.f32.mrb[0].mxu0
        %v2531 = vadd.f32 %v2418, %v2530
        %v2532 = vpop.f32.mrb[0].mxu0
        %v2533 = vadd.f32 %v2420, %v2532
        %v2534 = vpop.f32.mrb[0].mxu0
        %v2535 = vadd.f32 %v2422, %v2534
        %v2536 = vpop.f32.mrb[0].mxu0
        %v2537 = vadd.f32 %v2424, %v2536
        %2538 = vmatprep.mubr.bf16.mxu0 %v1694
        %2539 = vmatmul.mubr.bf16.gmra.mrb[0].mxu0 %v1693
        %v2540 = vpop.f32.mrb[0].mxu0
        %v2541 = vadd.f32 %v2428, %v2540
        %v2542 = vpop.f32.mrb[0].mxu0
        %v2543 = vadd.f32 %v2430, %v2542
        %v2544 = vpop.f32.mrb[0].mxu0
        %v2545 = vadd.f32 %v2432, %v2544
        %v2546 = vpop.f32.mrb[0].mxu0
        %v2547 = vadd.f32 %v2434, %v2546
        %2548 = vmatprep.mubr.bf16.mxu0 %v1698
        %2549 = vmatmul.mubr.bf16.gmra.mrb[0].mxu0 %v1697
        %v2550 = vpop.f32.mrb[0].mxu0
        %v2551 = vadd.f32 %v2438, %v2550
        %v2552 = vpop.f32.mrb[0].mxu0
        %v2553 = vadd.f32 %v2440, %v2552
        %v2554 = vpop.f32.mrb[0].mxu0
        %v2555 = vadd.f32 %v2442, %v2554
        %v2556 = vpop.f32.mrb[0].mxu0
        %v2557 = vadd.f32 %v2444, %v2556
        %2558 = vmatprep.mubr.bf16.mxu0 %v1702
        %2559 = vmatmul.mubr.bf16.gmra.mrb[0].mxu0 %v1701
        %v2560 = vpop.f32.mrb[0].mxu0
        %v2561 = vadd.f32 %v2448, %v2560
        %v2562 = vpop.f32.mrb[0].mxu0
        %v2563 = vadd.f32 %v2450, %v2562
        %v2564 = vpop.f32.mrb[0].mxu0
        %v2565 = vadd.f32 %v2452, %v2564
        %v2566 = vpop.f32.mrb[0].mxu0
        %v2567 = vadd.f32 %v2454, %v2566
        %2568 = vdwg.mxu0
        %2569 = vmatprep.subr.bf16.mxu0 0
        %2570 = vmatpush1.bf16.msra.mxu0 %v2153
        %2571 = vmatprep.subr.bf16.mxu0 0
        %2572 = vmatpush1.bf16.msra.mxu0 %v2156
        %2573 = vmatprep.subr.bf16.mxu0 0
        %2574 = vmatpush1.bf16.msra.mxu0 %v2159
        %2575 = vmatprep.subr.bf16.mxu0 0
        %2576 = vmatpush1.bf16.msra.mxu0 %v2162
        %2577 = vmatprep.subr.bf16.mxu0 0
        %2578 = vmatpush1.bf16.msra.mxu0 %v2165
        %2579 = vmatprep.subr.bf16.mxu0 0
        %2580 = vmatpush1.bf16.msra.mxu0 %v2168
        %2581 = vmatprep.subr.bf16.mxu0 0
        %2582 = vmatpush1.bf16.msra.mxu0 %v2171
        %2583 = vmatprep.subr.bf16.mxu0 0
        %2584 = vmatpush1.bf16.msra.mxu0 %v2174
        %2585 = vmatprep.subr.bf16.mxu0 0
        %2586 = vmatpush1.bf16.msra.mxu0 %v2177
        %2587 = vmatprep.subr.bf16.mxu0 0
        %2588 = vmatpush1.bf16.msra.mxu0 %v2180
        %2589 = vmatprep.subr.bf16.mxu0 0
        %2590 = vmatpush1.bf16.msra.mxu0 %v2183
        %2591 = vmatprep.subr.bf16.mxu0 0
        %2592 = vmatpush1.bf16.msra.mxu0 %v2186
        %2593 = vmatprep.subr.bf16.mxu0 0
        %2594 = vmatpush1.bf16.msra.mxu0 %v2189
        %2595 = vmatprep.subr.bf16.mxu0 0
        %2596 = vmatpush1.bf16.msra.mxu0 %v2192
        %2597 = vmatprep.subr.bf16.mxu0 0
        %2598 = vmatpush1.bf16.msra.mxu0 %v2195
        %2599 = vmatprep.subr.bf16.mxu0 0
        %2600 = vmatpush1.bf16.msra.mxu0 %v2198
        %2601 = vmatprep.mubr.bf16.mxu0 %v1672
        %2602 = vmatmul.mubr.bf16.gmra.mrb[0].mxu0 %v1671
        %v2603 = vpop.f32.mrb[0].mxu0
        %v2604 = vadd.f32 0.0, %v2603
        %v2605 = vpop.f32.mrb[0].mxu0
        %v2606 = vpop.f32.mrb[0].mxu0
        %v2607 = vadd.f32 0.0, %v2606
        %v2608 = vpop.f32.mrb[0].mxu0
        %2609 = vmatprep.mubr.bf16.mxu0 %v1676
        %2610 = vmatmul.mubr.bf16.gmra.mrb[0].mxu0 %v1675
        %v2611 = vpop.f32.mrb[0].mxu0
        %v2612 = vadd.f32 0.0, %v2611
        %v2613 = vpop.f32.mrb[0].mxu0
        %v2614 = vpop.f32.mrb[0].mxu0
        %v2615 = vadd.f32 0.0, %v2614
        %v2616 = vpop.f32.mrb[0].mxu0
        %2617 = vmatprep.mubr.bf16.mxu0 %v1680
        %2618 = vmatmul.mubr.bf16.gmra.mrb[0].mxu0 %v1679
        %v2619 = vpop.f32.mrb[0].mxu0
        %v2620 = vadd.f32 0.0, %v2619
        %v2621 = vpop.f32.mrb[0].mxu0
        %v2622 = vpop.f32.mrb[0].mxu0
        %v2623 = vadd.f32 0.0, %v2622
        %v2624 = vpop.f32.mrb[0].mxu0
        %2625 = vmatprep.mubr.bf16.mxu0 %v1684
        %2626 = vmatmul.mubr.bf16.gmra.mrb[0].mxu0 %v1683
        %v2627 = vpop.f32.mrb[0].mxu0
        %v2628 = vadd.f32 0.0, %v2627
        %v2629 = vpop.f32.mrb[0].mxu0
        %v2630 = vpop.f32.mrb[0].mxu0
        %v2631 = vadd.f32 0.0, %v2630
        %v2632 = vpop.f32.mrb[0].mxu0
        %2633 = vmatprep.mubr.bf16.mxu0 %v1688
        %2634 = vmatmul.mubr.bf16.gmra.mrb[0].mxu0 %v1687
        %v2635 = vpop.f32.mrb[0].mxu0
        %v2636 = vadd.f32 0.0, %v2635
        %v2637 = vpop.f32.mrb[0].mxu0
        %v2638 = vpop.f32.mrb[0].mxu0
        %v2639 = vadd.f32 0.0, %v2638
        %v2640 = vpop.f32.mrb[0].mxu0
        %2641 = vmatprep.mubr.bf16.mxu0 %v1692
        %2642 = vmatmul.mubr.bf16.gmra.mrb[0].mxu0 %v1691
        %v2643 = vpop.f32.mrb[0].mxu0
        %v2644 = vadd.f32 0.0, %v2643
        %v2645 = vpop.f32.mrb[0].mxu0
        %v2646 = vpop.f32.mrb[0].mxu0
        %v2647 = vadd.f32 0.0, %v2646
        %v2648 = vpop.f32.mrb[0].mxu0
        %2649 = vmatprep.mubr.bf16.mxu0 %v1696
        %2650 = vmatmul.mubr.bf16.gmra.mrb[0].mxu0 %v1695
        %v2651 = vpop.f32.mrb[0].mxu0
        %v2652 = vadd.f32 0.0, %v2651
        %v2653 = vpop.f32.mrb[0].mxu0
        %v2654 = vpop.f32.mrb[0].mxu0
        %v2655 = vadd.f32 0.0, %v2654
        %v2656 = vpop.f32.mrb[0].mxu0
        %2657 = vmatprep.mubr.bf16.mxu0 %v1700
        %2658 = vmatmul.mubr.bf16.gmra.mrb[0].mxu0 %v1699
        %v2659 = vpop.f32.mrb[0].mxu0
        %v2660 = vadd.f32 0.0, %v2659
        %v2661 = vpop.f32.mrb[0].mxu0
        %v2662 = vpop.f32.mrb[0].mxu0
        %v2663 = vadd.f32 0.0, %v2662
        %v2664 = vpop.f32.mrb[0].mxu0
        %2665 = vdwg.mxu0
        %2666 = vmatprep.subr.bf16.mxu0 0
        %2667 = vmatpush1.bf16.msra.mxu0 %v2201
        %2668 = vmatprep.subr.bf16.mxu0 0
        %2669 = vmatpush1.bf16.msra.mxu0 %v2204
        %2670 = vmatprep.subr.bf16.mxu0 0
        %2671 = vmatpush1.bf16.msra.mxu0 %v2207
        %2672 = vmatprep.subr.bf16.mxu0 0
        %2673 = vmatpush1.bf16.msra.mxu0 %v2210
        %2674 = vmatprep.subr.bf16.mxu0 0
        %2675 = vmatpush1.bf16.msra.mxu0 %v2213
        %2676 = vmatprep.subr.bf16.mxu0 0
        %2677 = vmatpush1.bf16.msra.mxu0 %v2216
        %2678 = vmatprep.subr.bf16.mxu0 0
        %2679 = vmatpush1.bf16.msra.mxu0 %v2219
        %2680 = vmatprep.subr.bf16.mxu0 0
        %2681 = vmatpush1.bf16.msra.mxu0 %v2222
        %2682 = vmatprep.subr.bf16.mxu0 0
        %2683 = vmatpush1.bf16.msra.mxu0 %v2225
        %2684 = vmatprep.subr.bf16.mxu0 0
        %2685 = vmatpush1.bf16.msra.mxu0 %v2228
        %2686 = vmatprep.subr.bf16.mxu0 0
        %2687 = vmatpush1.bf16.msra.mxu0 %v2231
        %2688 = vmatprep.subr.bf16.mxu0 0
        %2689 = vmatpush1.bf16.msra.mxu0 %v2234
        %2690 = vmatprep.subr.bf16.mxu0 0
        %2691 = vmatpush1.bf16.msra.mxu0 %v2237
        %2692 = vmatprep.subr.bf16.mxu0 0
        %2693 = vmatpush1.bf16.msra.mxu0 %v2240
        %2694 = vmatprep.subr.bf16.mxu0 0
        %2695 = vmatpush1.bf16.msra.mxu0 %v2243
        %2696 = vmatprep.subr.bf16.mxu0 0
        %2697 = vmatpush1.bf16.msra.mxu0 %v2246
        %2698 = vmatprep.mubr.bf16.mxu0 %v1674
        %2699 = vmatmul.mubr.bf16.gmra.mrb[0].mxu0 %v1673
        %v2700 = vpop.f32.mrb[0].mxu0
        %v2701 = vadd.f32 %v2604, %v2700
        %v2702 = vpop.f32.mrb[0].mxu0
        %v2703 = vpop.f32.mrb[0].mxu0
        %v2704 = vadd.f32 %v2607, %v2703
        %v2705 = vpop.f32.mrb[0].mxu0
        %2706 = vmatprep.mubr.bf16.mxu0 %v1678
        %2707 = vmatmul.mubr.bf16.gmra.mrb[0].mxu0 %v1677
        %v2708 = vpop.f32.mrb[0].mxu0
        %v2709 = vadd.f32 %v2612, %v2708
        %v2710 = vpop.f32.mrb[0].mxu0
        %v2711 = vpop.f32.mrb[0].mxu0
        %v2712 = vadd.f32 %v2615, %v2711
        %v2713 = vpop.f32.mrb[0].mxu0
        %2714 = vmatprep.mubr.bf16.mxu0 %v1682
        %2715 = vmatmul.mubr.bf16.gmra.mrb[0].mxu0 %v1681
        %v2716 = vpop.f32.mrb[0].mxu0
        %v2717 = vadd.f32 %v2620, %v2716
        %v2718 = vpop.f32.mrb[0].mxu0
        %v2719 = vpop.f32.mrb[0].mxu0
        %v2720 = vadd.f32 %v2623, %v2719
        %v2721 = vpop.f32.mrb[0].mxu0
        %2722 = vmatprep.mubr.bf16.mxu0 %v1686
        %2723 = vmatmul.mubr.bf16.gmra.mrb[0].mxu0 %v1685
        %v2724 = vpop.f32.mrb[0].mxu0
        %v2725 = vadd.f32 %v2628, %v2724
        %v2726 = vpop.f32.mrb[0].mxu0
        %v2727 = vpop.f32.mrb[0].mxu0
        %v2728 = vadd.f32 %v2631, %v2727
        %v2729 = vpop.f32.mrb[0].mxu0
        %2730 = vmatprep.mubr.bf16.mxu0 %v1690
        %2731 = vmatmul.mubr.bf16.gmra.mrb[0].mxu0 %v1689
        %v2732 = vpop.f32.mrb[0].mxu0
        %v2733 = vadd.f32 %v2636, %v2732
        %v2734 = vpop.f32.mrb[0].mxu0
        %v2735 = vpop.f32.mrb[0].mxu0
        %v2736 = vadd.f32 %v2639, %v2735
        %v2737 = vpop.f32.mrb[0].mxu0
        %2738 = vmatprep.mubr.bf16.mxu0 %v1694
        %2739 = vmatmul.mubr.bf16.gmra.mrb[0].mxu0 %v1693
        %v2740 = vpop.f32.mrb[0].mxu0
        %v2741 = vadd.f32 %v2644, %v2740
        %v2742 = vpop.f32.mrb[0].mxu0
        %v2743 = vpop.f32.mrb[0].mxu0
        %v2744 = vadd.f32 %v2647, %v2743
        %v2745 = vpop.f32.mrb[0].mxu0
        %2746 = vmatprep.mubr.bf16.mxu0 %v1698
        %2747 = vmatmul.mubr.bf16.gmra.mrb[0].mxu0 %v1697
        %v2748 = vpop.f32.mrb[0].mxu0
        %v2749 = vadd.f32 %v2652, %v2748
        %v2750 = vpop.f32.mrb[0].mxu0
        %v2751 = vpop.f32.mrb[0].mxu0
        %v2752 = vadd.f32 %v2655, %v2751
        %v2753 = vpop.f32.mrb[0].mxu0
        %2754 = vmatprep.mubr.bf16.mxu0 %v1702
        %2755 = vmatmul.mubr.bf16.gmra.mrb[0].mxu0 %v1701
        %v2756 = vpop.f32.mrb[0].mxu0
        %v2757 = vadd.f32 %v2660, %v2756
        %v2758 = vpop.f32.mrb[0].mxu0
        %v2759 = vpop.f32.mrb[0].mxu0
        %v2760 = vadd.f32 %v2663, %v2759
        %v2761 = vpop.f32.mrb[0].mxu0
        %2762 = vdwg.mxu0
        %v2763 = vadd.f32 %v1623, %v2491
        %v2764 = vadd.f32 %v1624, %v2493
        %v2765 = vadd.f32 %v1625, %v2701
        %v2766 = vadd.f32 %v1626, %v2495
        %v2767 = vadd.f32 %v1627, %v2497
        %v2768 = vadd.f32 %v1628, %v2704
        %v2769 = vadd.f32 %v1629, %v2501
        %v2770 = vadd.f32 %v1630, %v2503
        %v2771 = vadd.f32 %v1631, %v2709
        %v2772 = vadd.f32 %v1632, %v2505
        %v2773 = vadd.f32 %v1633, %v2507
        %v2774 = vadd.f32 %v1634, %v2712
        %v2775 = vadd.f32 %v1635, %v2511
        %v2776 = vadd.f32 %v1636, %v2513
        %v2777 = vadd.f32 %v1637, %v2717
        %v2778 = vadd.f32 %v1638, %v2515
        %v2779 = vadd.f32 %v1639, %v2517
        %v2780 = vadd.f32 %v1640, %v2720
        %v2781 = vadd.f32 %v1641, %v2521
        %v2782 = vadd.f32 %v1642, %v2523
        %v2783 = vadd.f32 %v1643, %v2725
        %v2784 = vadd.f32 %v1644, %v2525
        %v2785 = vadd.f32 %v1645, %v2527
        %v2786 = vadd.f32 %v1646, %v2728
        %v2787 = vadd.f32 %v1647, %v2531
        %v2788 = vadd.f32 %v1648, %v2533
        %v2789 = vadd.f32 %v1649, %v2733
        %v2790 = vadd.f32 %v1650, %v2535
        %v2791 = vadd.f32 %v1651, %v2537
        %v2792 = vadd.f32 %v1652, %v2736
        %v2793 = vadd.f32 %v1653, %v2541
        %v2794 = vadd.f32 %v1654, %v2543
        %v2795 = vadd.f32 %v1655, %v2741
        %v2796 = vadd.f32 %v1656, %v2545
        %v2797 = vadd.f32 %v1657, %v2547
        %v2798 = vadd.f32 %v1658, %v2744
        %v2799 = vadd.f32 %v1659, %v2551
        %v2800 = vadd.f32 %v1660, %v2553
        %v2801 = vadd.f32 %v1661, %v2749
        %v2802 = vadd.f32 %v1662, %v2555
        %v2803 = vadd.f32 %v1663, %v2557
        %v2804 = vadd.f32 %v1664, %v2752
        %v2805 = vadd.f32 %v1665, %v2561
        %v2806 = vadd.f32 %v1666, %v2563
        %v2807 = vadd.f32 %v1667, %v2757
        %v2808 = vadd.f32 %v1668, %v2565
        %v2809 = vadd.f32 %v1669, %v2567
        %v2810 = vadd.f32 %v1670, %v2760
        %2811 = vst [vmem:[#allocation2] sm:$0xff] %v2763
        %2812 = vst [vmem:[#allocation2 + $0x8] sm:$0xff] %v2764
        %2813 = vst [vmem:[#allocation2 + $0x10] sm:$0xff] %v2765
        %2814 = vst [vmem:[#allocation2 + $0x18] sm:$0xff] %v2766
        %2815 = vst [vmem:[#allocation2 + $0x20] sm:$0xff] %v2767
        %2816 = vst [vmem:[#allocation2 + $0x28] sm:$0xff] %v2768
        %2817 = vst [vmem:[#allocation2 + $0x30] sm:$0xff] %v2769
        %2818 = vst [vmem:[#allocation2 + $0x38] sm:$0xff] %v2770
        %2819 = vst [vmem:[#allocation2 + $0x40] sm:$0xff] %v2771
        %2820 = vst [vmem:[#allocation2 + $0x48] sm:$0xff] %v2772
        %2821 = vst [vmem:[#allocation2 + $0x50] sm:$0xff] %v2773
        %2822 = vst [vmem:[#allocation2 + $0x58] sm:$0xff] %v2774
        %2823 = vst [vmem:[#allocation2 + $0x60] sm:$0xff] %v2775
        %2824 = vst [vmem:[#allocation2 + $0x68] sm:$0xff] %v2776
        %2825 = vst [vmem:[#allocation2 + $0x70] sm:$0xff] %v2777
        %2826 = vst [vmem:[#allocation2 + $0x78] sm:$0xff] %v2778
        %2827 = vst [vmem:[#allocation2 + $0x80] sm:$0xff] %v2779
        %2828 = vst [vmem:[#allocation2 + $0x88] sm:$0xff] %v2780
        %2829 = vst [vmem:[#allocation2 + $0x90] sm:$0xff] %v2781
        %2830 = vst [vmem:[#allocation2 + $0x98] sm:$0xff] %v2782
        %2831 = vst [vmem:[#allocation2 + $0xa0] sm:$0xff] %v2783
        %2832 = vst [vmem:[#allocation2 + $0xa8] sm:$0xff] %v2784
        %2833 = vst [vmem:[#allocation2 + $0xb0] sm:$0xff] %v2785
        %2834 = vst [vmem:[#allocation2 + $0xb8] sm:$0xff] %v2786
        %2835 = vst [vmem:[#allocation2 + $0xc0] sm:$0xff] %v2787
        %2836 = vst [vmem:[#allocation2 + $0xc8] sm:$0xff] %v2788
        %2837 = vst [vmem:[#allocation2 + $0xd0] sm:$0xff] %v2789
        %2838 = vst [vmem:[#allocation2 + $0xd8] sm:$0xff] %v2790
        %2839 = vst [vmem:[#allocation2 + $0xe0] sm:$0xff] %v2791
        %2840 = vst [vmem:[#allocation2 + $0xe8] sm:$0xff] %v2792
        %2841 = vst [vmem:[#allocation2 + $0xf0] sm:$0xff] %v2793
        %2842 = vst [vmem:[#allocation2 + $0xf8] sm:$0xff] %v2794
        %2843 = vst [vmem:[#allocation2 + $0x100] sm:$0xff] %v2795
        %2844 = vst [vmem:[#allocation2 + $0x108] sm:$0xff] %v2796
        %2845 = vst [vmem:[#allocation2 + $0x110] sm:$0xff] %v2797
        %2846 = vst [vmem:[#allocation2 + $0x118] sm:$0xff] %v2798
        %2847 = vst [vmem:[#allocation2 + $0x120] sm:$0xff] %v2799
        %2848 = vst [vmem:[#allocation2 + $0x128] sm:$0xff] %v2800
        %2849 = vst [vmem:[#allocation2 + $0x130] sm:$0xff] %v2801
        %2850 = vst [vmem:[#allocation2 + $0x138] sm:$0xff] %v2802
        %2851 = vst [vmem:[#allocation2 + $0x140] sm:$0xff] %v2803
        %2852 = vst [vmem:[#allocation2 + $0x148] sm:$0xff] %v2804
        %2853 = vst [vmem:[#allocation2 + $0x150] sm:$0xff] %v2805
        %2854 = vst [vmem:[#allocation2 + $0x158] sm:$0xff] %v2806
        %2855 = vst [vmem:[#allocation2 + $0x160] sm:$0xff] %v2807
        %2856 = vst [vmem:[#allocation2 + $0x168] sm:$0xff] %v2808
        %2857 = vst [vmem:[#allocation2 + $0x170] sm:$0xff] %v2809
        %2858 = vst [vmem:[#allocation2 + $0x178] sm:$0xff] %v2810
        %v2859 = vld [vmem:[#allocation6 + $0x10] sm:$0xff]
        %v2860 = vld [vmem:[#allocation6 + $0x18] sm:$0xff]
        %v2861 = vld [vmem:[#allocation6 + $0x40] sm:$0xff]
        %v2862 = vld [vmem:[#allocation6 + $0x48] sm:$0xff]
        %v2863 = vld [vmem:[#allocation6 + $0x70] sm:$0xff]
        %v2864 = vld [vmem:[#allocation6 + $0x78] sm:$0xff]
        %v2865 = vld [vmem:[#allocation6 + $0xa0] sm:$0xff]
        %v2866 = vld [vmem:[#allocation6 + $0xa8] sm:$0xff]
        %v2867 = vld [vmem:[#allocation6 + $0xd0] sm:$0xff]
        %v2868 = vld [vmem:[#allocation6 + $0xd8] sm:$0xff]
        %v2869 = vld [vmem:[#allocation6 + $0x100] sm:$0xff]
        %v2870 = vld [vmem:[#allocation6 + $0x108] sm:$0xff]
        %v2871 = vld [vmem:[#allocation6 + $0x130] sm:$0xff]
        %v2872 = vld [vmem:[#allocation6 + $0x138] sm:$0xff]
        %v2873 = vld [vmem:[#allocation6 + $0x160] sm:$0xff]
        %v2874 = vld [vmem:[#allocation6 + $0x168] sm:$0xff]
        %v2875 = vld [vmem:[#allocation6 + $0x190] sm:$0xff]
        %v2876 = vld [vmem:[#allocation6 + $0x198] sm:$0xff]
        %v2877 = vld [vmem:[#allocation6 + $0x1c0] sm:$0xff]
        %v2878 = vld [vmem:[#allocation6 + $0x1c8] sm:$0xff]
        %v2879 = vld [vmem:[#allocation6 + $0x1f0] sm:$0xff]
        %v2880 = vld [vmem:[#allocation6 + $0x1f8] sm:$0xff]
        %v2881 = vld [vmem:[#allocation6 + $0x220] sm:$0xff]
        %v2882 = vld [vmem:[#allocation6 + $0x228] sm:$0xff]
        %v2883 = vld [vmem:[#allocation6 + $0x250] sm:$0xff]
        %v2884 = vld [vmem:[#allocation6 + $0x258] sm:$0xff]
        %v2885 = vld [vmem:[#allocation6 + $0x280] sm:$0xff]
        %v2886 = vld [vmem:[#allocation6 + $0x288] sm:$0xff]
        %v2887 = vld [vmem:[#allocation6 + $0x2b0] sm:$0xff]
        %v2888 = vld [vmem:[#allocation6 + $0x2b8] sm:$0xff]
        %v2889 = vld [vmem:[#allocation6 + $0x2e0] sm:$0xff]
        %v2890 = vld [vmem:[#allocation6 + $0x2e8] sm:$0xff]
        %v2891 = vld [vmem:[#allocation6 + $0x310] sm:$0xff]
        %v2892 = vld [vmem:[#allocation6 + $0x318] sm:$0xff]
        %v2893 = vld [vmem:[#allocation6 + $0x340] sm:$0xff]
        %v2894 = vld [vmem:[#allocation6 + $0x348] sm:$0xff]
        %v2895 = vld [vmem:[#allocation6 + $0x370] sm:$0xff]
        %v2896 = vld [vmem:[#allocation6 + $0x378] sm:$0xff]
        %v2897 = vld [vmem:[#allocation6 + $0x3a0] sm:$0xff]
        %v2898 = vld [vmem:[#allocation6 + $0x3a8] sm:$0xff]
        %v2899 = vld [vmem:[#allocation6 + $0x3d0] sm:$0xff]
        %v2900 = vld [vmem:[#allocation6 + $0x3d8] sm:$0xff]
        %v2901 = vld [vmem:[#allocation6 + $0x400] sm:$0xff]
        %v2902 = vld [vmem:[#allocation6 + $0x408] sm:$0xff]
        %v2903 = vld [vmem:[#allocation6 + $0x430] sm:$0xff]
        %v2904 = vld [vmem:[#allocation6 + $0x438] sm:$0xff]
        %v2905 = vld [vmem:[#allocation6 + $0x460] sm:$0xff]
        %v2906 = vld [vmem:[#allocation6 + $0x468] sm:$0xff]
        %v2907 = vld [vmem:[#allocation6 + $0x490] sm:$0xff]
        %v2908 = vld [vmem:[#allocation6 + $0x498] sm:$0xff]
        %v2909 = vld [vmem:[#allocation6 + $0x4c0] sm:$0xff]
        %v2910 = vld [vmem:[#allocation6 + $0x4c8] sm:$0xff]
        %v2911 = vld [vmem:[#allocation6 + $0x4f0] sm:$0xff]
        %v2912 = vld [vmem:[#allocation6 + $0x4f8] sm:$0xff]
        %v2913 = vld [vmem:[#allocation6 + $0x520] sm:$0xff]
        %v2914 = vld [vmem:[#allocation6 + $0x528] sm:$0xff]
        %v2915 = vld [vmem:[#allocation6 + $0x550] sm:$0xff]
        %v2916 = vld [vmem:[#allocation6 + $0x558] sm:$0xff]
        %v2917 = vld [vmem:[#allocation6 + $0x580] sm:$0xff]
        %v2918 = vld [vmem:[#allocation6 + $0x588] sm:$0xff]
        %v2919 = vld [vmem:[#allocation6 + $0x5b0] sm:$0xff]
        %v2920 = vld [vmem:[#allocation6 + $0x5b8] sm:$0xff]
        %v2921 = vld [vmem:[#allocation6 + $0x5e0] sm:$0xff]
        %v2922 = vld [vmem:[#allocation6 + $0x5e8] sm:$0xff]
        %v2923 = vld [vmem:[#allocation6 + $0x610] sm:$0xff]
        %v2924 = vld [vmem:[#allocation6 + $0x618] sm:$0xff]
        %v2925 = vld [vmem:[#allocation6 + $0x640] sm:$0xff]
        %v2926 = vld [vmem:[#allocation6 + $0x648] sm:$0xff]
        %v2927 = vld [vmem:[#allocation6 + $0x670] sm:$0xff]
        %v2928 = vld [vmem:[#allocation6 + $0x678] sm:$0xff]
        %v2929 = vld [vmem:[#allocation6 + $0x6a0] sm:$0xff]
        %v2930 = vld [vmem:[#allocation6 + $0x6a8] sm:$0xff]
        %v2931 = vld [vmem:[#allocation6 + $0x6d0] sm:$0xff]
        %v2932 = vld [vmem:[#allocation6 + $0x6d8] sm:$0xff]
        %v2933 = vld [vmem:[#allocation6 + $0x700] sm:$0xff]
        %v2934 = vld [vmem:[#allocation6 + $0x708] sm:$0xff]
        %v2935 = vld [vmem:[#allocation6 + $0x730] sm:$0xff]
        %v2936 = vld [vmem:[#allocation6 + $0x738] sm:$0xff]
        %v2937 = vld [vmem:[#allocation6 + $0x760] sm:$0xff]
        %v2938 = vld [vmem:[#allocation6 + $0x768] sm:$0xff]
        %v2939 = vld [vmem:[#allocation6 + $0x790] sm:$0xff]
        %v2940 = vld [vmem:[#allocation6 + $0x798] sm:$0xff]
        %v2941 = vld [vmem:[#allocation6 + $0x7c0] sm:$0xff]
        %v2942 = vld [vmem:[#allocation6 + $0x7c8] sm:$0xff]
        %v2943 = vld [vmem:[#allocation6 + $0x7f0] sm:$0xff]
        %v2944 = vld [vmem:[#allocation6 + $0x7f8] sm:$0xff]
        %v2945 = vld [vmem:[#allocation6 + $0x820] sm:$0xff]
        %v2946 = vld [vmem:[#allocation6 + $0x828] sm:$0xff]
        %v2947 = vld [vmem:[#allocation6 + $0x850] sm:$0xff]
        %v2948 = vld [vmem:[#allocation6 + $0x858] sm:$0xff]
        %v2949 = vld [vmem:[#allocation6 + $0x880] sm:$0xff]
        %v2950 = vld [vmem:[#allocation6 + $0x888] sm:$0xff]
        %v2951 = vld [vmem:[#allocation6 + $0x8b0] sm:$0xff]
        %v2952 = vld [vmem:[#allocation6 + $0x8b8] sm:$0xff]
        %v2953 = vld [vmem:[#allocation6 + $0x8e0] sm:$0xff]
        %v2954 = vld [vmem:[#allocation6 + $0x8e8] sm:$0xff]
        %v2955 = vld [vmem:[#allocation8 + $0x4] sm:$0xf]
        %v2957 = vlaneseq
        %v2958 = vshrl.u32 %v2957, 7
        %v2959 = vsub.s32 0, %v2958
        %v2960 = vrot.slane %v2955, %v2959
        %v2961 = vlaneseq
        %v2962 = vshrl.u32 %v2961, 7
        %v2963 = vsub.s32 1, %v2962
        %v2964 = vrot.slane %v2955, %v2963
        %v2965 = vlaneseq
        %v2966 = vshrl.u32 %v2965, 7
        %v2967 = vsub.s32 2, %v2966
        %v2968 = vrot.slane %v2955, %v2967
        %v2969 = vlaneseq
        %v2970 = vshrl.u32 %v2969, 7
        %v2971 = vsub.s32 3, %v2970
        %v2972 = vrot.slane %v2955, %v2971
        %v3073 = vunpack.c.l.b16 %v2859
        %v3074 = vunpack.c.h.b16 %v2859
        %v3075 = vunpack.c.l.b16 %v2860
        %v3076 = vunpack.c.h.b16 %v2860
        %v3077 = vunpack.c.l.b16 %v2861
        %v3078 = vunpack.c.h.b16 %v2861
        %v3079 = vunpack.c.l.b16 %v2862
        %v3080 = vunpack.c.h.b16 %v2862
        %v3081 = vunpack.c.l.b16 %v2863
        %v3082 = vunpack.c.h.b16 %v2863
        %v3083 = vunpack.c.l.b16 %v2864
        %v3084 = vunpack.c.h.b16 %v2864
        %v3085 = vunpack.c.l.b16 %v2865
        %v3086 = vunpack.c.h.b16 %v2865
        %v3087 = vunpack.c.l.b16 %v2866
        %v3088 = vunpack.c.h.b16 %v2866
        %v3089 = vunpack.c.l.b16 %v2867
        %v3090 = vunpack.c.h.b16 %v2867
        %v3091 = vunpack.c.l.b16 %v2868
        %v3092 = vunpack.c.h.b16 %v2868
        %v3093 = vunpack.c.l.b16 %v2869
        %v3094 = vunpack.c.h.b16 %v2869
        %v3095 = vunpack.c.l.b16 %v2870
        %v3096 = vunpack.c.h.b16 %v2870
        %v3097 = vunpack.c.l.b16 %v2871
        %v3098 = vunpack.c.h.b16 %v2871
        %v3099 = vunpack.c.l.b16 %v2872
        %v3100 = vunpack.c.h.b16 %v2872
        %v3101 = vunpack.c.l.b16 %v2873
        %v3102 = vunpack.c.h.b16 %v2873
        %v3103 = vunpack.c.l.b16 %v2874
        %v3104 = vunpack.c.h.b16 %v2874
        %v3105 = vunpack.c.l.b16 %v2875
        %v3106 = vunpack.c.h.b16 %v2875
        %v3107 = vunpack.c.l.b16 %v2876
        %v3108 = vunpack.c.h.b16 %v2876
        %v3109 = vunpack.c.l.b16 %v2877
        %v3110 = vunpack.c.h.b16 %v2877
        %v3111 = vunpack.c.l.b16 %v2878
        %v3112 = vunpack.c.h.b16 %v2878
        %v3113 = vunpack.c.l.b16 %v2879
        %v3114 = vunpack.c.h.b16 %v2879
        %v3115 = vunpack.c.l.b16 %v2880
        %v3116 = vunpack.c.h.b16 %v2880
        %v3117 = vunpack.c.l.b16 %v2881
        %v3118 = vunpack.c.h.b16 %v2881
        %v3119 = vunpack.c.l.b16 %v2882
        %v3120 = vunpack.c.h.b16 %v2882
        %v3121 = vunpack.c.l.b16 %v2883
        %v3122 = vunpack.c.h.b16 %v2883
        %v3123 = vunpack.c.l.b16 %v2884
        %v3124 = vunpack.c.h.b16 %v2884
        %v3125 = vunpack.c.l.b16 %v2885
        %v3126 = vunpack.c.h.b16 %v2885
        %v3127 = vunpack.c.l.b16 %v2886
        %v3128 = vunpack.c.h.b16 %v2886
        %v3129 = vunpack.c.l.b16 %v2887
        %v3130 = vunpack.c.h.b16 %v2887
        %v3131 = vunpack.c.l.b16 %v2888
        %v3132 = vunpack.c.h.b16 %v2888
        %v3133 = vunpack.c.l.b16 %v2889
        %v3134 = vunpack.c.h.b16 %v2889
        %v3135 = vunpack.c.l.b16 %v2890
        %v3136 = vunpack.c.h.b16 %v2890
        %v3137 = vunpack.c.l.b16 %v2891
        %v3138 = vunpack.c.h.b16 %v2891
        %v3139 = vunpack.c.l.b16 %v2892
        %v3140 = vunpack.c.h.b16 %v2892
        %v3141 = vunpack.c.l.b16 %v2893
        %v3142 = vunpack.c.h.b16 %v2893
        %v3143 = vunpack.c.l.b16 %v2894
        %v3144 = vunpack.c.h.b16 %v2894
        %v3145 = vunpack.c.l.b16 %v2895
        %v3146 = vunpack.c.h.b16 %v2895
        %v3147 = vunpack.c.l.b16 %v2896
        %v3148 = vunpack.c.h.b16 %v2896
        %v3149 = vunpack.c.l.b16 %v2897
        %v3150 = vunpack.c.h.b16 %v2897
        %v3151 = vunpack.c.l.b16 %v2898
        %v3152 = vunpack.c.h.b16 %v2898
        %v3153 = vunpack.c.l.b16 %v2899
        %v3154 = vunpack.c.h.b16 %v2899
        %v3155 = vunpack.c.l.b16 %v2900
        %v3156 = vunpack.c.h.b16 %v2900
        %v3157 = vunpack.c.l.b16 %v2901
        %v3158 = vunpack.c.h.b16 %v2901
        %v3159 = vunpack.c.l.b16 %v2902
        %v3160 = vunpack.c.h.b16 %v2902
        %v3161 = vunpack.c.l.b16 %v2903
        %v3162 = vunpack.c.h.b16 %v2903
        %v3163 = vunpack.c.l.b16 %v2904
        %v3164 = vunpack.c.h.b16 %v2904
        %v3165 = vunpack.c.l.b16 %v2905
        %v3166 = vunpack.c.h.b16 %v2905
        %v3167 = vunpack.c.l.b16 %v2906
        %v3168 = vunpack.c.h.b16 %v2906
        %v3169 = vunpack.c.l.b16 %v2907
        %v3170 = vunpack.c.h.b16 %v2907
        %v3171 = vunpack.c.l.b16 %v2908
        %v3172 = vunpack.c.h.b16 %v2908
        %v3173 = vunpack.c.l.b16 %v2909
        %v3174 = vunpack.c.h.b16 %v2909
        %v3175 = vunpack.c.l.b16 %v2910
        %v3176 = vunpack.c.h.b16 %v2910
        %v3177 = vunpack.c.l.b16 %v2911
        %v3178 = vunpack.c.h.b16 %v2911
        %v3179 = vunpack.c.l.b16 %v2912
        %v3180 = vunpack.c.h.b16 %v2912
        %v3181 = vunpack.c.l.b16 %v2913
        %v3182 = vunpack.c.h.b16 %v2913
        %v3183 = vunpack.c.l.b16 %v2914
        %v3184 = vunpack.c.h.b16 %v2914
        %v3185 = vunpack.c.l.b16 %v2915
        %v3186 = vunpack.c.h.b16 %v2915
        %v3187 = vunpack.c.l.b16 %v2916
        %v3188 = vunpack.c.h.b16 %v2916
        %v3189 = vunpack.c.l.b16 %v2917
        %v3190 = vunpack.c.h.b16 %v2917
        %v3191 = vunpack.c.l.b16 %v2918
        %v3192 = vunpack.c.h.b16 %v2918
        %v3193 = vunpack.c.l.b16 %v2919
        %v3194 = vunpack.c.h.b16 %v2919
        %v3195 = vunpack.c.l.b16 %v2920
        %v3196 = vunpack.c.h.b16 %v2920
        %v3197 = vunpack.c.l.b16 %v2921
        %v3198 = vunpack.c.h.b16 %v2921
        %v3199 = vunpack.c.l.b16 %v2922
        %v3200 = vunpack.c.h.b16 %v2922
        %v3201 = vunpack.c.l.b16 %v2923
        %v3202 = vunpack.c.h.b16 %v2923
        %v3203 = vunpack.c.l.b16 %v2924
        %v3204 = vunpack.c.h.b16 %v2924
        %v3205 = vunpack.c.l.b16 %v2925
        %v3206 = vunpack.c.h.b16 %v2925
        %v3207 = vunpack.c.l.b16 %v2926
        %v3208 = vunpack.c.h.b16 %v2926
        %v3209 = vunpack.c.l.b16 %v2927
        %v3210 = vunpack.c.h.b16 %v2927
        %v3211 = vunpack.c.l.b16 %v2928
        %v3212 = vunpack.c.h.b16 %v2928
        %v3213 = vunpack.c.l.b16 %v2929
        %v3214 = vunpack.c.h.b16 %v2929
        %v3215 = vunpack.c.l.b16 %v2930
        %v3216 = vunpack.c.h.b16 %v2930
        %v3217 = vunpack.c.l.b16 %v2931
        %v3218 = vunpack.c.h.b16 %v2931
        %v3219 = vunpack.c.l.b16 %v2932
        %v3220 = vunpack.c.h.b16 %v2932
        %v3221 = vunpack.c.l.b16 %v2933
        %v3222 = vunpack.c.h.b16 %v2933
        %v3223 = vunpack.c.l.b16 %v2934
        %v3224 = vunpack.c.h.b16 %v2934
        %v3225 = vunpack.c.l.b16 %v2935
        %v3226 = vunpack.c.h.b16 %v2935
        %v3227 = vunpack.c.l.b16 %v2936
        %v3228 = vunpack.c.h.b16 %v2936
        %v3229 = vunpack.c.l.b16 %v2937
        %v3230 = vunpack.c.h.b16 %v2937
        %v3231 = vunpack.c.l.b16 %v2938
        %v3232 = vunpack.c.h.b16 %v2938
        %v3233 = vunpack.c.l.b16 %v2939
        %v3234 = vunpack.c.h.b16 %v2939
        %v3235 = vunpack.c.l.b16 %v2940
        %v3236 = vunpack.c.h.b16 %v2940
        %v3237 = vunpack.c.l.b16 %v2941
        %v3238 = vunpack.c.h.b16 %v2941
        %v3239 = vunpack.c.l.b16 %v2942
        %v3240 = vunpack.c.h.b16 %v2942
        %v3241 = vunpack.c.l.b16 %v2943
        %v3242 = vunpack.c.h.b16 %v2943
        %v3243 = vunpack.c.l.b16 %v2944
        %v3244 = vunpack.c.h.b16 %v2944
        %v3245 = vunpack.c.l.b16 %v2945
        %v3246 = vunpack.c.h.b16 %v2945
        %v3247 = vunpack.c.l.b16 %v2946
        %v3248 = vunpack.c.h.b16 %v2946
        %v3249 = vunpack.c.l.b16 %v2947
        %v3250 = vunpack.c.h.b16 %v2947
        %v3251 = vunpack.c.l.b16 %v2948
        %v3252 = vunpack.c.h.b16 %v2948
        %v3253 = vunpack.c.l.b16 %v2949
        %v3254 = vunpack.c.h.b16 %v2949
        %v3255 = vunpack.c.l.b16 %v2950
        %v3256 = vunpack.c.h.b16 %v2950
        %v3257 = vunpack.c.l.b16 %v2951
        %v3258 = vunpack.c.h.b16 %v2951
        %v3259 = vunpack.c.l.b16 %v2952
        %v3260 = vunpack.c.h.b16 %v2952
        %v3261 = vunpack.c.l.b16 %v2953
        %v3262 = vunpack.c.h.b16 %v2953
        %v3263 = vunpack.c.l.b16 %v2954
        %v3264 = vunpack.c.h.b16 %v2954
        %v3265 = vpack.c.b16 %v3077, %v3073
        %v3266 = vpack.c.b16 %v3078, %v3074
        %v3267 = vpack.c.b16 %v3079, %v3075
        %v3268 = vpack.c.b16 %v3080, %v3076
        %v3269 = vpack.c.b16 %v3085, %v3081
        %v3270 = vpack.c.b16 %v3086, %v3082
        %v3271 = vpack.c.b16 %v3087, %v3083
        %v3272 = vpack.c.b16 %v3088, %v3084
        %v3273 = vpack.c.b16 %v3093, %v3089
        %v3274 = vpack.c.b16 %v3094, %v3090
        %v3275 = vpack.c.b16 %v3095, %v3091
        %v3276 = vpack.c.b16 %v3096, %v3092
        %v3277 = vpack.c.b16 %v3101, %v3097
        %v3278 = vpack.c.b16 %v3102, %v3098
        %v3279 = vpack.c.b16 %v3103, %v3099
        %v3280 = vpack.c.b16 %v3104, %v3100
        %v3281 = vpack.c.b16 %v3109, %v3105
        %v3282 = vpack.c.b16 %v3110, %v3106
        %v3283 = vpack.c.b16 %v3111, %v3107
        %v3284 = vpack.c.b16 %v3112, %v3108
        %v3285 = vpack.c.b16 %v3117, %v3113
        %v3286 = vpack.c.b16 %v3118, %v3114
        %v3287 = vpack.c.b16 %v3119, %v3115
        %v3288 = vpack.c.b16 %v3120, %v3116
        %v3289 = vpack.c.b16 %v3125, %v3121
        %v3290 = vpack.c.b16 %v3126, %v3122
        %v3291 = vpack.c.b16 %v3127, %v3123
        %v3292 = vpack.c.b16 %v3128, %v3124
        %v3293 = vpack.c.b16 %v3133, %v3129
        %v3294 = vpack.c.b16 %v3134, %v3130
        %v3295 = vpack.c.b16 %v3135, %v3131
        %v3296 = vpack.c.b16 %v3136, %v3132
        %v3297 = vpack.c.b16 %v3141, %v3137
        %v3298 = vpack.c.b16 %v3142, %v3138
        %v3299 = vpack.c.b16 %v3143, %v3139
        %v3300 = vpack.c.b16 %v3144, %v3140
        %v3301 = vpack.c.b16 %v3149, %v3145
        %v3302 = vpack.c.b16 %v3150, %v3146
        %v3303 = vpack.c.b16 %v3151, %v3147
        %v3304 = vpack.c.b16 %v3152, %v3148
        %v3305 = vpack.c.b16 %v3157, %v3153
        %v3306 = vpack.c.b16 %v3158, %v3154
        %v3307 = vpack.c.b16 %v3159, %v3155
        %v3308 = vpack.c.b16 %v3160, %v3156
        %v3309 = vpack.c.b16 %v3165, %v3161
        %v3310 = vpack.c.b16 %v3166, %v3162
        %v3311 = vpack.c.b16 %v3167, %v3163
        %v3312 = vpack.c.b16 %v3168, %v3164
        %v3313 = vpack.c.b16 %v3173, %v3169
        %v3314 = vpack.c.b16 %v3174, %v3170
        %v3315 = vpack.c.b16 %v3175, %v3171
        %v3316 = vpack.c.b16 %v3176, %v3172
        %v3317 = vpack.c.b16 %v3181, %v3177
        %v3318 = vpack.c.b16 %v3182, %v3178
        %v3319 = vpack.c.b16 %v3183, %v3179
        %v3320 = vpack.c.b16 %v3184, %v3180
        %v3321 = vpack.c.b16 %v3189, %v3185
        %v3322 = vpack.c.b16 %v3190, %v3186
        %v3323 = vpack.c.b16 %v3191, %v3187
        %v3324 = vpack.c.b16 %v3192, %v3188
        %v3325 = vpack.c.b16 %v3197, %v3193
        %v3326 = vpack.c.b16 %v3198, %v3194
        %v3327 = vpack.c.b16 %v3199, %v3195
        %v3328 = vpack.c.b16 %v3200, %v3196
        %v3329 = vpack.c.b16 %v3205, %v3201
        %v3330 = vpack.c.b16 %v3206, %v3202
        %v3331 = vpack.c.b16 %v3207, %v3203
        %v3332 = vpack.c.b16 %v3208, %v3204
        %v3333 = vpack.c.b16 %v3213, %v3209
        %v3334 = vpack.c.b16 %v3214, %v3210
        %v3335 = vpack.c.b16 %v3215, %v3211
        %v3336 = vpack.c.b16 %v3216, %v3212
        %v3337 = vpack.c.b16 %v3221, %v3217
        %v3338 = vpack.c.b16 %v3222, %v3218
        %v3339 = vpack.c.b16 %v3223, %v3219
        %v3340 = vpack.c.b16 %v3224, %v3220
        %v3341 = vpack.c.b16 %v3229, %v3225
        %v3342 = vpack.c.b16 %v3230, %v3226
        %v3343 = vpack.c.b16 %v3231, %v3227
        %v3344 = vpack.c.b16 %v3232, %v3228
        %v3345 = vpack.c.b16 %v3237, %v3233
        %v3346 = vpack.c.b16 %v3238, %v3234
        %v3347 = vpack.c.b16 %v3239, %v3235
        %v3348 = vpack.c.b16 %v3240, %v3236
        %v3349 = vpack.c.b16 %v3245, %v3241
        %v3350 = vpack.c.b16 %v3246, %v3242
        %v3351 = vpack.c.b16 %v3247, %v3243
        %v3352 = vpack.c.b16 %v3248, %v3244
        %v3353 = vpack.c.b16 %v3253, %v3249
        %v3354 = vpack.c.b16 %v3254, %v3250
        %v3355 = vpack.c.b16 %v3255, %v3251
        %v3356 = vpack.c.b16 %v3256, %v3252
        %v3357 = vpack.c.b16 %v3261, %v3257
        %v3358 = vpack.c.b16 %v3262, %v3258
        %v3359 = vpack.c.b16 %v3263, %v3259
        %v3360 = vpack.c.b16 %v3264, %v3260
        %3457 = vmatprep.subr.bf16.mxu0 %v3266
        %3458 = vmatpush1.bf16.msra.mxu0 %v3265
        %3459 = vmatprep.subr.bf16.mxu0 %v3270
        %3460 = vmatpush1.bf16.msra.mxu0 %v3269
        %3461 = vmatprep.subr.bf16.mxu0 %v3274
        %3462 = vmatpush1.bf16.msra.mxu0 %v3273
        %3463 = vmatprep.subr.bf16.mxu0 %v3278
        %3464 = vmatpush1.bf16.msra.mxu0 %v3277
        %3465 = vmatprep.subr.bf16.mxu0 %v3282
        %3466 = vmatpush1.bf16.msra.mxu0 %v3281
        %3467 = vmatprep.subr.bf16.mxu0 %v3286
        %3468 = vmatpush1.bf16.msra.mxu0 %v3285
        %3469 = vmatprep.subr.bf16.mxu0 %v3290
        %3470 = vmatpush1.bf16.msra.mxu0 %v3289
        %3471 = vmatprep.subr.bf16.mxu0 %v3294
        %3472 = vmatpush1.bf16.msra.mxu0 %v3293
        %3473 = vmatprep.subr.bf16.mxu0 %v3298
        %3474 = vmatpush1.bf16.msra.mxu0 %v3297
        %3475 = vmatprep.subr.bf16.mxu0 %v3302
        %3476 = vmatpush1.bf16.msra.mxu0 %v3301
        %3477 = vmatprep.subr.bf16.mxu0 %v3306
        %3478 = vmatpush1.bf16.msra.mxu0 %v3305
        %3479 = vmatprep.subr.bf16.mxu0 %v3310
        %3480 = vmatpush1.bf16.msra.mxu0 %v3309
        %3481 = vmatprep.subr.bf16.mxu0 %v3314
        %3482 = vmatpush1.bf16.msra.mxu0 %v3313
        %3483 = vmatprep.subr.bf16.mxu0 %v3318
        %3484 = vmatpush1.bf16.msra.mxu0 %v3317
        %3485 = vmatprep.subr.bf16.mxu0 %v3322
        %3486 = vmatpush1.bf16.msra.mxu0 %v3321
        %3487 = vmatprep.subr.bf16.mxu0 %v3326
        %3488 = vmatpush1.bf16.msra.mxu0 %v3325
        %3489 = vmatprep.mubr.bf16.mxu0 %v580
        %3490 = vmatmul.mubr.bf16.gmra.mrb[0].mxu0 %v579
        %v3491 = vpop.f32.mrb[0].mxu0
        %v3492 = vadd.f32 %v2960, %v3491
        %v3493 = vpop.f32.mrb[0].mxu0
        %v3494 = vadd.f32 %v2964, %v3493
        %v3495 = vpop.f32.mrb[0].mxu0
        %v3496 = vadd.f32 %v2960, %v3495
        %v3497 = vpop.f32.mrb[0].mxu0
        %v3498 = vadd.f32 %v2964, %v3497
        %3499 = vmatprep.mubr.bf16.mxu0 %v583
        %3500 = vmatmul.mubr.bf16.gmra.mrb[0].mxu0 %v582
        %v3501 = vpop.f32.mrb[0].mxu0
        %v3502 = vadd.f32 %v2960, %v3501
        %v3503 = vpop.f32.mrb[0].mxu0
        %v3504 = vadd.f32 %v2964, %v3503
        %v3505 = vpop.f32.mrb[0].mxu0
        %v3506 = vadd.f32 %v2960, %v3505
        %v3507 = vpop.f32.mrb[0].mxu0
        %v3508 = vadd.f32 %v2964, %v3507
        %3509 = vmatprep.mubr.bf16.mxu0 %v586
        %3510 = vmatmul.mubr.bf16.gmra.mrb[0].mxu0 %v585
        %v3511 = vpop.f32.mrb[0].mxu0
        %v3512 = vadd.f32 %v2960, %v3511
        %v3513 = vpop.f32.mrb[0].mxu0
        %v3514 = vadd.f32 %v2964, %v3513
        %v3515 = vpop.f32.mrb[0].mxu0
        %v3516 = vadd.f32 %v2960, %v3515
        %v3517 = vpop.f32.mrb[0].mxu0
        %v3518 = vadd.f32 %v2964, %v3517
        %3519 = vmatprep.mubr.bf16.mxu0 %v589
        %3520 = vmatmul.mubr.bf16.gmra.mrb[0].mxu0 %v588
        %v3521 = vpop.f32.mrb[0].mxu0
        %v3522 = vadd.f32 %v2960, %v3521
        %v3523 = vpop.f32.mrb[0].mxu0
        %v3524 = vadd.f32 %v2964, %v3523
        %v3525 = vpop.f32.mrb[0].mxu0
        %v3526 = vadd.f32 %v2960, %v3525
        %v3527 = vpop.f32.mrb[0].mxu0
        %v3528 = vadd.f32 %v2964, %v3527
        %3529 = vmatprep.mubr.bf16.mxu0 %v592
        %3530 = vmatmul.mubr.bf16.gmra.mrb[0].mxu0 %v591
        %v3531 = vpop.f32.mrb[0].mxu0
        %v3532 = vadd.f32 %v2960, %v3531
        %v3533 = vpop.f32.mrb[0].mxu0
        %v3534 = vadd.f32 %v2964, %v3533
        %v3535 = vpop.f32.mrb[0].mxu0
        %v3536 = vadd.f32 %v2960, %v3535
        %v3537 = vpop.f32.mrb[0].mxu0
        %v3538 = vadd.f32 %v2964, %v3537
        %3539 = vmatprep.mubr.bf16.mxu0 %v595
        %3540 = vmatmul.mubr.bf16.gmra.mrb[0].mxu0 %v594
        %v3541 = vpop.f32.mrb[0].mxu0
        %v3542 = vadd.f32 %v2960, %v3541
        %v3543 = vpop.f32.mrb[0].mxu0
        %v3544 = vadd.f32 %v2964, %v3543
        %v3545 = vpop.f32.mrb[0].mxu0
        %v3546 = vadd.f32 %v2960, %v3545
        %v3547 = vpop.f32.mrb[0].mxu0
        %v3548 = vadd.f32 %v2964, %v3547
        %3549 = vmatprep.mubr.bf16.mxu0 %v598
        %3550 = vmatmul.mubr.bf16.gmra.mrb[0].mxu0 %v597
        %v3551 = vpop.f32.mrb[0].mxu0
        %v3552 = vadd.f32 %v2960, %v3551
        %v3553 = vpop.f32.mrb[0].mxu0
        %v3554 = vadd.f32 %v2964, %v3553
        %v3555 = vpop.f32.mrb[0].mxu0
        %v3556 = vadd.f32 %v2960, %v3555
        %v3557 = vpop.f32.mrb[0].mxu0
        %v3558 = vadd.f32 %v2964, %v3557
        %3559 = vmatprep.mubr.bf16.mxu0 %v601
        %3560 = vmatmul.mubr.bf16.gmra.mrb[0].mxu0 %v600
        %v3561 = vpop.f32.mrb[0].mxu0
        %v3562 = vadd.f32 %v2960, %v3561
        %v3563 = vpop.f32.mrb[0].mxu0
        %v3564 = vadd.f32 %v2964, %v3563
        %v3565 = vpop.f32.mrb[0].mxu0
        %v3566 = vadd.f32 %v2960, %v3565
        %v3567 = vpop.f32.mrb[0].mxu0
        %v3568 = vadd.f32 %v2964, %v3567
        %3569 = vdwg.mxu0
        %3570 = vmatprep.subr.bf16.mxu0 %v3330
        %3571 = vmatpush1.bf16.msra.mxu0 %v3329
        %3572 = vmatprep.subr.bf16.mxu0 %v3334
        %3573 = vmatpush1.bf16.msra.mxu0 %v3333
        %3574 = vmatprep.subr.bf16.mxu0 %v3338
        %3575 = vmatpush1.bf16.msra.mxu0 %v3337
        %3576 = vmatprep.subr.bf16.mxu0 %v3342
        %3577 = vmatpush1.bf16.msra.mxu0 %v3341
        %3578 = vmatprep.subr.bf16.mxu0 %v3346
        %3579 = vmatpush1.bf16.msra.mxu0 %v3345
        %3580 = vmatprep.subr.bf16.mxu0 %v3350
        %3581 = vmatpush1.bf16.msra.mxu0 %v3349
        %3582 = vmatprep.subr.bf16.mxu0 %v3354
        %3583 = vmatpush1.bf16.msra.mxu0 %v3353
        %3584 = vmatprep.subr.bf16.mxu0 %v3358
        %3585 = vmatpush1.bf16.msra.mxu0 %v3357
        %3586 = vmatprep.subr.bf16.mxu0 0
        %3587 = vmatpush1.bf16.msra.mxu0 0
        %3588 = vmatprep.subr.bf16.mxu0 0
        %3589 = vmatpush1.bf16.msra.mxu0 0
        %3590 = vmatprep.subr.bf16.mxu0 0
        %3591 = vmatpush1.bf16.msra.mxu0 0
        %3592 = vmatprep.subr.bf16.mxu0 0
        %3593 = vmatpush1.bf16.msra.mxu0 0
        %3594 = vmatprep.subr.bf16.mxu0 0
        %3595 = vmatpush1.bf16.msra.mxu0 0
        %3596 = vmatprep.subr.bf16.mxu0 0
        %3597 = vmatpush1.bf16.msra.mxu0 0
        %3598 = vmatprep.subr.bf16.mxu0 0
        %3599 = vmatpush1.bf16.msra.mxu0 0
        %3600 = vmatprep.subr.bf16.mxu0 0
        %3601 = vmatpush1.bf16.msra.mxu0 0
        %3602 = vmatprep.mubr.bf16.mxu0 0
        %3603 = vmatmul.mubr.bf16.gmra.mrb[0].mxu0 %v581
        %v3604 = vpop.f32.mrb[0].mxu0
        %v3605 = vadd.f32 %v3492, %v3604
        %v3606 = vpop.f32.mrb[0].mxu0
        %v3607 = vadd.f32 %v3494, %v3606
        %v3608 = vpop.f32.mrb[0].mxu0
        %v3609 = vadd.f32 %v3496, %v3608
        %v3610 = vpop.f32.mrb[0].mxu0
        %v3611 = vadd.f32 %v3498, %v3610
        %3612 = vmatprep.mubr.bf16.mxu0 0
        %3613 = vmatmul.mubr.bf16.gmra.mrb[0].mxu0 %v584
        %v3614 = vpop.f32.mrb[0].mxu0
        %v3615 = vadd.f32 %v3502, %v3614
        %v3616 = vpop.f32.mrb[0].mxu0
        %v3617 = vadd.f32 %v3504, %v3616
        %v3618 = vpop.f32.mrb[0].mxu0
        %v3619 = vadd.f32 %v3506, %v3618
        %v3620 = vpop.f32.mrb[0].mxu0
        %v3621 = vadd.f32 %v3508, %v3620
        %3622 = vmatprep.mubr.bf16.mxu0 0
        %3623 = vmatmul.mubr.bf16.gmra.mrb[0].mxu0 %v587
        %v3624 = vpop.f32.mrb[0].mxu0
        %v3625 = vadd.f32 %v3512, %v3624
        %v3626 = vpop.f32.mrb[0].mxu0
        %v3627 = vadd.f32 %v3514, %v3626
        %v3628 = vpop.f32.mrb[0].mxu0
        %v3629 = vadd.f32 %v3516, %v3628
        %v3630 = vpop.f32.mrb[0].mxu0
        %v3631 = vadd.f32 %v3518, %v3630
        %3632 = vmatprep.mubr.bf16.mxu0 0
        %3633 = vmatmul.mubr.bf16.gmra.mrb[0].mxu0 %v590
        %v3634 = vpop.f32.mrb[0].mxu0
        %v3635 = vadd.f32 %v3522, %v3634
        %v3636 = vpop.f32.mrb[0].mxu0
        %v3637 = vadd.f32 %v3524, %v3636
        %v3638 = vpop.f32.mrb[0].mxu0
        %v3639 = vadd.f32 %v3526, %v3638
        %v3640 = vpop.f32.mrb[0].mxu0
        %v3641 = vadd.f32 %v3528, %v3640
        %3642 = vmatprep.mubr.bf16.mxu0 0
        %3643 = vmatmul.mubr.bf16.gmra.mrb[0].mxu0 %v593
        %v3644 = vpop.f32.mrb[0].mxu0
        %v3645 = vadd.f32 %v3532, %v3644
        %v3646 = vpop.f32.mrb[0].mxu0
        %v3647 = vadd.f32 %v3534, %v3646
        %v3648 = vpop.f32.mrb[0].mxu0
        %v3649 = vadd.f32 %v3536, %v3648
        %v3650 = vpop.f32.mrb[0].mxu0
        %v3651 = vadd.f32 %v3538, %v3650
        %3652 = vmatprep.mubr.bf16.mxu0 0
        %3653 = vmatmul.mubr.bf16.gmra.mrb[0].mxu0 %v596
        %v3654 = vpop.f32.mrb[0].mxu0
        %v3655 = vadd.f32 %v3542, %v3654
        %v3656 = vpop.f32.mrb[0].mxu0
        %v3657 = vadd.f32 %v3544, %v3656
        %v3658 = vpop.f32.mrb[0].mxu0
        %v3659 = vadd.f32 %v3546, %v3658
        %v3660 = vpop.f32.mrb[0].mxu0
        %v3661 = vadd.f32 %v3548, %v3660
        %3662 = vmatprep.mubr.bf16.mxu0 0
        %3663 = vmatmul.mubr.bf16.gmra.mrb[0].mxu0 %v599
        %v3664 = vpop.f32.mrb[0].mxu0
        %v3665 = vadd.f32 %v3552, %v3664
        %v3666 = vpop.f32.mrb[0].mxu0
        %v3667 = vadd.f32 %v3554, %v3666
        %v3668 = vpop.f32.mrb[0].mxu0
        %v3669 = vadd.f32 %v3556, %v3668
        %v3670 = vpop.f32.mrb[0].mxu0
        %v3671 = vadd.f32 %v3558, %v3670
        %3672 = vmatprep.mubr.bf16.mxu0 0
        %3673 = vmatmul.mubr.bf16.gmra.mrb[0].mxu0 %v602
        %v3674 = vpop.f32.mrb[0].mxu0
        %v3675 = vadd.f32 %v3562, %v3674
        %v3676 = vpop.f32.mrb[0].mxu0
        %v3677 = vadd.f32 %v3564, %v3676
        %v3678 = vpop.f32.mrb[0].mxu0
        %v3679 = vadd.f32 %v3566, %v3678
        %v3680 = vpop.f32.mrb[0].mxu0
        %v3681 = vadd.f32 %v3568, %v3680
        %3682 = vdwg.mxu0
        %3683 = vmatprep.subr.bf16.mxu0 %v3268
        %3684 = vmatpush1.bf16.msra.mxu0 %v3267
        %3685 = vmatprep.subr.bf16.mxu0 %v3272
        %3686 = vmatpush1.bf16.msra.mxu0 %v3271
        %3687 = vmatprep.subr.bf16.mxu0 %v3276
        %3688 = vmatpush1.bf16.msra.mxu0 %v3275
        %3689 = vmatprep.subr.bf16.mxu0 %v3280
        %3690 = vmatpush1.bf16.msra.mxu0 %v3279
        %3691 = vmatprep.subr.bf16.mxu0 %v3284
        %3692 = vmatpush1.bf16.msra.mxu0 %v3283
        %3693 = vmatprep.subr.bf16.mxu0 %v3288
        %3694 = vmatpush1.bf16.msra.mxu0 %v3287
        %3695 = vmatprep.subr.bf16.mxu0 %v3292
        %3696 = vmatpush1.bf16.msra.mxu0 %v3291
        %3697 = vmatprep.subr.bf16.mxu0 %v3296
        %3698 = vmatpush1.bf16.msra.mxu0 %v3295
        %3699 = vmatprep.subr.bf16.mxu0 %v3300
        %3700 = vmatpush1.bf16.msra.mxu0 %v3299
        %3701 = vmatprep.subr.bf16.mxu0 %v3304
        %3702 = vmatpush1.bf16.msra.mxu0 %v3303
        %3703 = vmatprep.subr.bf16.mxu0 %v3308
        %3704 = vmatpush1.bf16.msra.mxu0 %v3307
        %3705 = vmatprep.subr.bf16.mxu0 %v3312
        %3706 = vmatpush1.bf16.msra.mxu0 %v3311
        %3707 = vmatprep.subr.bf16.mxu0 %v3316
        %3708 = vmatpush1.bf16.msra.mxu0 %v3315
        %3709 = vmatprep.subr.bf16.mxu0 %v3320
        %3710 = vmatpush1.bf16.msra.mxu0 %v3319
        %3711 = vmatprep.subr.bf16.mxu0 %v3324
        %3712 = vmatpush1.bf16.msra.mxu0 %v3323
        %3713 = vmatprep.subr.bf16.mxu0 %v3328
        %3714 = vmatpush1.bf16.msra.mxu0 %v3327
        %3715 = vmatprep.mubr.bf16.mxu0 %v580
        %3716 = vmatmul.mubr.bf16.gmra.mrb[0].mxu0 %v579
        %v3717 = vpop.f32.mrb[0].mxu0
        %v3718 = vadd.f32 %v2968, %v3717
        %v3719 = vpop.f32.mrb[0].mxu0
        %v3720 = vadd.f32 %v2972, %v3719
        %v3721 = vpop.f32.mrb[0].mxu0
        %v3722 = vadd.f32 %v2968, %v3721
        %v3723 = vpop.f32.mrb[0].mxu0
        %v3724 = vadd.f32 %v2972, %v3723
        %3725 = vmatprep.mubr.bf16.mxu0 %v583
        %3726 = vmatmul.mubr.bf16.gmra.mrb[0].mxu0 %v582
        %v3727 = vpop.f32.mrb[0].mxu0
        %v3728 = vadd.f32 %v2968, %v3727
        %v3729 = vpop.f32.mrb[0].mxu0
        %v3730 = vadd.f32 %v2972, %v3729
        %v3731 = vpop.f32.mrb[0].mxu0
        %v3732 = vadd.f32 %v2968, %v3731
        %v3733 = vpop.f32.mrb[0].mxu0
        %v3734 = vadd.f32 %v2972, %v3733
        %3735 = vmatprep.mubr.bf16.mxu0 %v586
        %3736 = vmatmul.mubr.bf16.gmra.mrb[0].mxu0 %v585
        %v3737 = vpop.f32.mrb[0].mxu0
        %v3738 = vadd.f32 %v2968, %v3737
        %v3739 = vpop.f32.mrb[0].mxu0
        %v3740 = vadd.f32 %v2972, %v3739
        %v3741 = vpop.f32.mrb[0].mxu0
        %v3742 = vadd.f32 %v2968, %v3741
        %v3743 = vpop.f32.mrb[0].mxu0
        %v3744 = vadd.f32 %v2972, %v3743
        %3745 = vmatprep.mubr.bf16.mxu0 %v589
        %3746 = vmatmul.mubr.bf16.gmra.mrb[0].mxu0 %v588
        %v3747 = vpop.f32.mrb[0].mxu0
        %v3748 = vadd.f32 %v2968, %v3747
        %v3749 = vpop.f32.mrb[0].mxu0
        %v3750 = vadd.f32 %v2972, %v3749
        %v3751 = vpop.f32.mrb[0].mxu0
        %v3752 = vadd.f32 %v2968, %v3751
        %v3753 = vpop.f32.mrb[0].mxu0
        %v3754 = vadd.f32 %v2972, %v3753
        %3755 = vmatprep.mubr.bf16.mxu0 %v592
        %3756 = vmatmul.mubr.bf16.gmra.mrb[0].mxu0 %v591
        %v3757 = vpop.f32.mrb[0].mxu0
        %v3758 = vadd.f32 %v2968, %v3757
        %v3759 = vpop.f32.mrb[0].mxu0
        %v3760 = vadd.f32 %v2972, %v3759
        %v3761 = vpop.f32.mrb[0].mxu0
        %v3762 = vadd.f32 %v2968, %v3761
        %v3763 = vpop.f32.mrb[0].mxu0
        %v3764 = vadd.f32 %v2972, %v3763
        %3765 = vmatprep.mubr.bf16.mxu0 %v595
        %3766 = vmatmul.mubr.bf16.gmra.mrb[0].mxu0 %v594
        %v3767 = vpop.f32.mrb[0].mxu0
        %v3768 = vadd.f32 %v2968, %v3767
        %v3769 = vpop.f32.mrb[0].mxu0
        %v3770 = vadd.f32 %v2972, %v3769
        %v3771 = vpop.f32.mrb[0].mxu0
        %v3772 = vadd.f32 %v2968, %v3771
        %v3773 = vpop.f32.mrb[0].mxu0
        %v3774 = vadd.f32 %v2972, %v3773
        %3775 = vmatprep.mubr.bf16.mxu0 %v598
        %3776 = vmatmul.mubr.bf16.gmra.mrb[0].mxu0 %v597
        %v3777 = vpop.f32.mrb[0].mxu0
        %v3778 = vadd.f32 %v2968, %v3777
        %v3779 = vpop.f32.mrb[0].mxu0
        %v3780 = vadd.f32 %v2972, %v3779
        %v3781 = vpop.f32.mrb[0].mxu0
        %v3782 = vadd.f32 %v2968, %v3781
        %v3783 = vpop.f32.mrb[0].mxu0
        %v3784 = vadd.f32 %v2972, %v3783
        %3785 = vmatprep.mubr.bf16.mxu0 %v601
        %3786 = vmatmul.mubr.bf16.gmra.mrb[0].mxu0 %v600
        %v3787 = vpop.f32.mrb[0].mxu0
        %v3788 = vadd.f32 %v2968, %v3787
        %v3789 = vpop.f32.mrb[0].mxu0
        %v3790 = vadd.f32 %v2972, %v3789
        %v3791 = vpop.f32.mrb[0].mxu0
        %v3792 = vadd.f32 %v2968, %v3791
        %v3793 = vpop.f32.mrb[0].mxu0
        %v3794 = vadd.f32 %v2972, %v3793
        %3795 = vdwg.mxu0
        %3796 = vmatprep.subr.bf16.mxu0 %v3332
        %3797 = vmatpush1.bf16.msra.mxu0 %v3331
        %3798 = vmatprep.subr.bf16.mxu0 %v3336
        %3799 = vmatpush1.bf16.msra.mxu0 %v3335
        %3800 = vmatprep.subr.bf16.mxu0 %v3340
        %3801 = vmatpush1.bf16.msra.mxu0 %v3339
        %3802 = vmatprep.subr.bf16.mxu0 %v3344
        %3803 = vmatpush1.bf16.msra.mxu0 %v3343
        %3804 = vmatprep.subr.bf16.mxu0 %v3348
        %3805 = vmatpush1.bf16.msra.mxu0 %v3347
        %3806 = vmatprep.subr.bf16.mxu0 %v3352
        %3807 = vmatpush1.bf16.msra.mxu0 %v3351
        %3808 = vmatprep.subr.bf16.mxu0 %v3356
        %3809 = vmatpush1.bf16.msra.mxu0 %v3355
        %3810 = vmatprep.subr.bf16.mxu0 %v3360
        %3811 = vmatpush1.bf16.msra.mxu0 %v3359
        %3812 = vmatprep.subr.bf16.mxu0 0
        %3813 = vmatpush1.bf16.msra.mxu0 0
        %3814 = vmatprep.subr.bf16.mxu0 0
        %3815 = vmatpush1.bf16.msra.mxu0 0
        %3816 = vmatprep.subr.bf16.mxu0 0
        %3817 = vmatpush1.bf16.msra.mxu0 0
        %3818 = vmatprep.subr.bf16.mxu0 0
        %3819 = vmatpush1.bf16.msra.mxu0 0
        %3820 = vmatprep.subr.bf16.mxu0 0
        %3821 = vmatpush1.bf16.msra.mxu0 0
        %3822 = vmatprep.subr.bf16.mxu0 0
        %3823 = vmatpush1.bf16.msra.mxu0 0
        %3824 = vmatprep.subr.bf16.mxu0 0
        %3825 = vmatpush1.bf16.msra.mxu0 0
        %3826 = vmatprep.subr.bf16.mxu0 0
        %3827 = vmatpush1.bf16.msra.mxu0 0
        %3828 = vmatprep.mubr.bf16.mxu0 0
        %3829 = vmatmul.mubr.bf16.gmra.mrb[0].mxu0 %v581
        %v3830 = vpop.f32.mrb[0].mxu0
        %v3831 = vadd.f32 %v3718, %v3830
        %v3832 = vpop.f32.mrb[0].mxu0
        %v3833 = vadd.f32 %v3720, %v3832
        %v3834 = vpop.f32.mrb[0].mxu0
        %v3835 = vadd.f32 %v3722, %v3834
        %v3836 = vpop.f32.mrb[0].mxu0
        %v3837 = vadd.f32 %v3724, %v3836
        %3838 = vmatprep.mubr.bf16.mxu0 0
        %3839 = vmatmul.mubr.bf16.gmra.mrb[0].mxu0 %v584
        %v3840 = vpop.f32.mrb[0].mxu0
        %v3841 = vadd.f32 %v3728, %v3840
        %v3842 = vpop.f32.mrb[0].mxu0
        %v3843 = vadd.f32 %v3730, %v3842
        %v3844 = vpop.f32.mrb[0].mxu0
        %v3845 = vadd.f32 %v3732, %v3844
        %v3846 = vpop.f32.mrb[0].mxu0
        %v3847 = vadd.f32 %v3734, %v3846
        %3848 = vmatprep.mubr.bf16.mxu0 0
        %3849 = vmatmul.mubr.bf16.gmra.mrb[0].mxu0 %v587
        %v3850 = vpop.f32.mrb[0].mxu0
        %v3851 = vadd.f32 %v3738, %v3850
        %v3852 = vpop.f32.mrb[0].mxu0
        %v3853 = vadd.f32 %v3740, %v3852
        %v3854 = vpop.f32.mrb[0].mxu0
        %v3855 = vadd.f32 %v3742, %v3854
        %v3856 = vpop.f32.mrb[0].mxu0
        %v3857 = vadd.f32 %v3744, %v3856
        %3858 = vmatprep.mubr.bf16.mxu0 0
        %3859 = vmatmul.mubr.bf16.gmra.mrb[0].mxu0 %v590
        %v3860 = vpop.f32.mrb[0].mxu0
        %v3861 = vadd.f32 %v3748, %v3860
        %v3862 = vpop.f32.mrb[0].mxu0
        %v3863 = vadd.f32 %v3750, %v3862
        %v3864 = vpop.f32.mrb[0].mxu0
        %v3865 = vadd.f32 %v3752, %v3864
        %v3866 = vpop.f32.mrb[0].mxu0
        %v3867 = vadd.f32 %v3754, %v3866
        %3868 = vmatprep.mubr.bf16.mxu0 0
        %3869 = vmatmul.mubr.bf16.gmra.mrb[0].mxu0 %v593
        %v3870 = vpop.f32.mrb[0].mxu0
        %v3871 = vadd.f32 %v3758, %v3870
        %v3872 = vpop.f32.mrb[0].mxu0
        %v3873 = vadd.f32 %v3760, %v3872
        %v3874 = vpop.f32.mrb[0].mxu0
        %v3875 = vadd.f32 %v3762, %v3874
        %v3876 = vpop.f32.mrb[0].mxu0
        %v3877 = vadd.f32 %v3764, %v3876
        %3878 = vmatprep.mubr.bf16.mxu0 0
        %3879 = vmatmul.mubr.bf16.gmra.mrb[0].mxu0 %v596
        %v3880 = vpop.f32.mrb[0].mxu0
        %v3881 = vadd.f32 %v3768, %v3880
        %v3882 = vpop.f32.mrb[0].mxu0
        %v3883 = vadd.f32 %v3770, %v3882
        %v3884 = vpop.f32.mrb[0].mxu0
        %v3885 = vadd.f32 %v3772, %v3884
        %v3886 = vpop.f32.mrb[0].mxu0
        %v3887 = vadd.f32 %v3774, %v3886
        %3888 = vmatprep.mubr.bf16.mxu0 0
        %3889 = vmatmul.mubr.bf16.gmra.mrb[0].mxu0 %v599
        %v3890 = vpop.f32.mrb[0].mxu0
        %v3891 = vadd.f32 %v3778, %v3890
        %v3892 = vpop.f32.mrb[0].mxu0
        %v3893 = vadd.f32 %v3780, %v3892
        %v3894 = vpop.f32.mrb[0].mxu0
        %v3895 = vadd.f32 %v3782, %v3894
        %v3896 = vpop.f32.mrb[0].mxu0
        %v3897 = vadd.f32 %v3784, %v3896
        %3898 = vmatprep.mubr.bf16.mxu0 0
        %3899 = vmatmul.mubr.bf16.gmra.mrb[0].mxu0 %v602
        %v3900 = vpop.f32.mrb[0].mxu0
        %v3901 = vadd.f32 %v3788, %v3900
        %v3902 = vpop.f32.mrb[0].mxu0
        %v3903 = vadd.f32 %v3790, %v3902
        %v3904 = vpop.f32.mrb[0].mxu0
        %v3905 = vadd.f32 %v3792, %v3904
        %v3906 = vpop.f32.mrb[0].mxu0
        %v3907 = vadd.f32 %v3794, %v3906
        %3908 = vdwg.mxu0
        %v3909 = vmax.f32 %v3605, 0.0
        %v3910 = vmax.f32 %v3607, 0.0
        %v3911 = vmax.f32 %v3831, 0.0
        %v3912 = vmax.f32 %v3833, 0.0
        %v3913 = vmax.f32 %v3609, 0.0
        %v3914 = vmax.f32 %v3611, 0.0
        %v3915 = vmax.f32 %v3835, 0.0
        %v3916 = vmax.f32 %v3837, 0.0
        %v3917 = vmax.f32 %v3615, 0.0
        %v3918 = vmax.f32 %v3617, 0.0
        %v3919 = vmax.f32 %v3841, 0.0
        %v3920 = vmax.f32 %v3843, 0.0
        %v3921 = vmax.f32 %v3619, 0.0
        %v3922 = vmax.f32 %v3621, 0.0
        %v3923 = vmax.f32 %v3845, 0.0
        %v3924 = vmax.f32 %v3847, 0.0
        %v3925 = vmax.f32 %v3625, 0.0
        %v3926 = vmax.f32 %v3627, 0.0
        %v3927 = vmax.f32 %v3851, 0.0
        %v3928 = vmax.f32 %v3853, 0.0
        %v3929 = vmax.f32 %v3629, 0.0
        %v3930 = vmax.f32 %v3631, 0.0
        %v3931 = vmax.f32 %v3855, 0.0
        %v3932 = vmax.f32 %v3857, 0.0
        %v3933 = vmax.f32 %v3635, 0.0
        %v3934 = vmax.f32 %v3637, 0.0
        %v3935 = vmax.f32 %v3861, 0.0
        %v3936 = vmax.f32 %v3863, 0.0
        %v3937 = vmax.f32 %v3639, 0.0
        %v3938 = vmax.f32 %v3641, 0.0
        %v3939 = vmax.f32 %v3865, 0.0
        %v3940 = vmax.f32 %v3867, 0.0
        %v3941 = vmax.f32 %v3645, 0.0
        %v3942 = vmax.f32 %v3647, 0.0
        %v3943 = vmax.f32 %v3871, 0.0
        %v3944 = vmax.f32 %v3873, 0.0
        %v3945 = vmax.f32 %v3649, 0.0
        %v3946 = vmax.f32 %v3651, 0.0
        %v3947 = vmax.f32 %v3875, 0.0
        %v3948 = vmax.f32 %v3877, 0.0
        %v3949 = vmax.f32 %v3655, 0.0
        %v3950 = vmax.f32 %v3657, 0.0
        %v3951 = vmax.f32 %v3881, 0.0
        %v3952 = vmax.f32 %v3883, 0.0
        %v3953 = vmax.f32 %v3659, 0.0
        %v3954 = vmax.f32 %v3661, 0.0
        %v3955 = vmax.f32 %v3885, 0.0
        %v3956 = vmax.f32 %v3887, 0.0
        %v3957 = vmax.f32 %v3665, 0.0
        %v3958 = vmax.f32 %v3667, 0.0
        %v3959 = vmax.f32 %v3891, 0.0
        %v3960 = vmax.f32 %v3893, 0.0
        %v3961 = vmax.f32 %v3669, 0.0
        %v3962 = vmax.f32 %v3671, 0.0
        %v3963 = vmax.f32 %v3895, 0.0
        %v3964 = vmax.f32 %v3897, 0.0
        %v3965 = vmax.f32 %v3675, 0.0
        %v3966 = vmax.f32 %v3677, 0.0
        %v3967 = vmax.f32 %v3901, 0.0
        %v3968 = vmax.f32 %v3903, 0.0
        %v3969 = vmax.f32 %v3679, 0.0
        %v3970 = vmax.f32 %v3681, 0.0
        %v3971 = vmax.f32 %v3905, 0.0
        %v3972 = vmax.f32 %v3907, 0.0
        %v3973 = vld [vmem:[#allocation2] sm:$0xff]
        %v3974 = vld [vmem:[#allocation2 + $0x8] sm:$0xff]
        %v3975 = vld [vmem:[#allocation2 + $0x10] sm:$0xff]
        %v3976 = vld [vmem:[#allocation2 + $0x18] sm:$0xff]
        %v3977 = vld [vmem:[#allocation2 + $0x20] sm:$0xff]
        %v3978 = vld [vmem:[#allocation2 + $0x28] sm:$0xff]
        %v3979 = vld [vmem:[#allocation2 + $0x30] sm:$0xff]
        %v3980 = vld [vmem:[#allocation2 + $0x38] sm:$0xff]
        %v3981 = vld [vmem:[#allocation2 + $0x40] sm:$0xff]
        %v3982 = vld [vmem:[#allocation2 + $0x48] sm:$0xff]
        %v3983 = vld [vmem:[#allocation2 + $0x50] sm:$0xff]
        %v3984 = vld [vmem:[#allocation2 + $0x58] sm:$0xff]
        %v3985 = vld [vmem:[#allocation2 + $0x60] sm:$0xff]
        %v3986 = vld [vmem:[#allocation2 + $0x68] sm:$0xff]
        %v3987 = vld [vmem:[#allocation2 + $0x70] sm:$0xff]
        %v3988 = vld [vmem:[#allocation2 + $0x78] sm:$0xff]
        %v3989 = vld [vmem:[#allocation2 + $0x80] sm:$0xff]
        %v3990 = vld [vmem:[#allocation2 + $0x88] sm:$0xff]
        %v3991 = vld [vmem:[#allocation2 + $0x90] sm:$0xff]
        %v3992 = vld [vmem:[#allocation2 + $0x98] sm:$0xff]
        %v3993 = vld [vmem:[#allocation2 + $0xa0] sm:$0xff]
        %v3994 = vld [vmem:[#allocation2 + $0xa8] sm:$0xff]
        %v3995 = vld [vmem:[#allocation2 + $0xb0] sm:$0xff]
        %v3996 = vld [vmem:[#allocation2 + $0xb8] sm:$0xff]
        %v3997 = vld [vmem:[#allocation2 + $0xc0] sm:$0xff]
        %v3998 = vld [vmem:[#allocation2 + $0xc8] sm:$0xff]
        %v3999 = vld [vmem:[#allocation2 + $0xd0] sm:$0xff]
        %v4000 = vld [vmem:[#allocation2 + $0xd8] sm:$0xff]
        %v4001 = vld [vmem:[#allocation2 + $0xe0] sm:$0xff]
        %v4002 = vld [vmem:[#allocation2 + $0xe8] sm:$0xff]
        %v4003 = vld [vmem:[#allocation2 + $0xf0] sm:$0xff]
        %v4004 = vld [vmem:[#allocation2 + $0xf8] sm:$0xff]
        %v4005 = vld [vmem:[#allocation2 + $0x100] sm:$0xff]
        %v4006 = vld [vmem:[#allocation2 + $0x108] sm:$0xff]
        %v4007 = vld [vmem:[#allocation2 + $0x110] sm:$0xff]
        %v4008 = vld [vmem:[#allocation2 + $0x118] sm:$0xff]
        %v4009 = vld [vmem:[#allocation2 + $0x120] sm:$0xff]
        %v4010 = vld [vmem:[#allocation2 + $0x128] sm:$0xff]
        %v4011 = vld [vmem:[#allocation2 + $0x130] sm:$0xff]
        %v4012 = vld [vmem:[#allocation2 + $0x138] sm:$0xff]
        %v4013 = vld [vmem:[#allocation2 + $0x140] sm:$0xff]
        %v4014 = vld [vmem:[#allocation2 + $0x148] sm:$0xff]
        %v4015 = vld [vmem:[#allocation2 + $0x150] sm:$0xff]
        %v4016 = vld [vmem:[#allocation2 + $0x158] sm:$0xff]
        %v4017 = vld [vmem:[#allocation2 + $0x160] sm:$0xff]
        %v4018 = vld [vmem:[#allocation2 + $0x168] sm:$0xff]
        %v4019 = vld [vmem:[#allocation2 + $0x170] sm:$0xff]
        %v4020 = vld [vmem:[#allocation2 + $0x178] sm:$0xff]
        %v4021 = vpack.c.bf16 %v3913, %v3909
        %v4022 = vpack.c.bf16 %v3914, %v3910
        %v4023 = vpack.c.bf16 %v3915, %v3911
        %v4024 = vpack.c.bf16 %v3916, %v3912
        %v4025 = vpack.c.bf16 %v3921, %v3917
        %v4026 = vpack.c.bf16 %v3922, %v3918
        %v4027 = vpack.c.bf16 %v3923, %v3919
        %v4028 = vpack.c.bf16 %v3924, %v3920
        %v4029 = vpack.c.bf16 %v3929, %v3925
        %v4030 = vpack.c.bf16 %v3930, %v3926
        %v4031 = vpack.c.bf16 %v3931, %v3927
        %v4032 = vpack.c.bf16 %v3932, %v3928
        %v4033 = vpack.c.bf16 %v3937, %v3933
        %v4034 = vpack.c.bf16 %v3938, %v3934
        %v4035 = vpack.c.bf16 %v3939, %v3935
        %v4036 = vpack.c.bf16 %v3940, %v3936
        %v4037 = vpack.c.bf16 %v3945, %v3941
        %v4038 = vpack.c.bf16 %v3946, %v3942
        %v4039 = vpack.c.bf16 %v3947, %v3943
        %v4040 = vpack.c.bf16 %v3948, %v3944
        %v4041 = vpack.c.bf16 %v3953, %v3949
        %v4042 = vpack.c.bf16 %v3954, %v3950
        %v4043 = vpack.c.bf16 %v3955, %v3951
        %v4044 = vpack.c.bf16 %v3956, %v3952
        %v4045 = vpack.c.bf16 %v3961, %v3957
        %v4046 = vpack.c.bf16 %v3962, %v3958
        %v4047 = vpack.c.bf16 %v3963, %v3959
        %v4048 = vpack.c.bf16 %v3964, %v3960
        %v4049 = vpack.c.bf16 %v3969, %v3965
        %v4050 = vpack.c.bf16 %v3970, %v3966
        %v4051 = vpack.c.bf16 %v3971, %v3967
        %v4052 = vpack.c.bf16 %v3972, %v3968
        %v4053 = vld [vmem:[#allocation9 + $0x300] sm:$0xff]
        %v4054 = vld [vmem:[#allocation9 + $0x308] sm:$0xf]
        %v4055 = vld [vmem:[#allocation9 + $0x30c] sm:$0xff]
        %v4056 = vld [vmem:[#allocation9 + $0x314] sm:$0xf]
        %v4057 = vld [vmem:[#allocation9 + $0x318] sm:$0xff]
        %v4058 = vld [vmem:[#allocation9 + $0x320] sm:$0xf]
        %v4059 = vld [vmem:[#allocation9 + $0x324] sm:$0xff]
        %v4060 = vld [vmem:[#allocation9 + $0x32c] sm:$0xf]
        %v4061 = vld [vmem:[#allocation9 + $0x330] sm:$0xff]
        %v4062 = vld [vmem:[#allocation9 + $0x338] sm:$0xf]
        %v4063 = vld [vmem:[#allocation9 + $0x33c] sm:$0xff]
        %v4064 = vld [vmem:[#allocation9 + $0x344] sm:$0xf]
        %v4065 = vld [vmem:[#allocation9 + $0x348] sm:$0xff]
        %v4066 = vld [vmem:[#allocation9 + $0x350] sm:$0xf]
        %v4067 = vld [vmem:[#allocation9 + $0x354] sm:$0xff]
        %v4068 = vld [vmem:[#allocation9 + $0x35c] sm:$0xf]
        %v4069 = vld [vmem:[#allocation9 + $0x360] sm:$0xff]
        %v4070 = vld [vmem:[#allocation9 + $0x368] sm:$0xf]
        %v4071 = vld [vmem:[#allocation9 + $0x36c] sm:$0xff]
        %v4072 = vld [vmem:[#allocation9 + $0x374] sm:$0xf]
        %v4073 = vld [vmem:[#allocation9 + $0x378] sm:$0xff]
        %v4074 = vld [vmem:[#allocation9 + $0x380] sm:$0xf]
        %v4075 = vld [vmem:[#allocation9 + $0x384] sm:$0xff]
        %v4076 = vld [vmem:[#allocation9 + $0x38c] sm:$0xf]
        %v4077 = vld [vmem:[#allocation9 + $0x390] sm:$0xff]
        %v4078 = vld [vmem:[#allocation9 + $0x398] sm:$0xf]
        %v4079 = vld [vmem:[#allocation9 + $0x39c] sm:$0xff]
        %v4080 = vld [vmem:[#allocation9 + $0x3a4] sm:$0xf]
        %v4081 = vld [vmem:[#allocation9 + $0x3a8] sm:$0xff]
        %v4082 = vld [vmem:[#allocation9 + $0x3b0] sm:$0xf]
        %v4083 = vld [vmem:[#allocation9 + $0x3b4] sm:$0xff]
        %v4084 = vld [vmem:[#allocation9 + $0x3bc] sm:$0xf]
        %v4085 = vld [vmem:[#allocation9 + $0x3c0] sm:$0xff]
        %v4086 = vld [vmem:[#allocation9 + $0x3c8] sm:$0xf]
        %v4087 = vld [vmem:[#allocation9 + $0x3cc] sm:$0xff]
        %v4088 = vld [vmem:[#allocation9 + $0x3d4] sm:$0xf]
        %v4089 = vld [vmem:[#allocation9 + $0x3d8] sm:$0xff]
        %v4090 = vld [vmem:[#allocation9 + $0x3e0] sm:$0xf]
        %v4091 = vld [vmem:[#allocation9 + $0x3e4] sm:$0xff]
        %v4092 = vld [vmem:[#allocation9 + $0x3ec] sm:$0xf]
        %v4093 = vld [vmem:[#allocation9 + $0x3f0] sm:$0xff]
        %v4094 = vld [vmem:[#allocation9 + $0x3f8] sm:$0xf]
        %v4095 = vld [vmem:[#allocation9 + $0x3fc] sm:$0xff]
        %v4096 = vld [vmem:[#allocation9 + $0x404] sm:$0xf]
        %v4097 = vld [vmem:[#allocation9 + $0x408] sm:$0xff]
        %v4098 = vld [vmem:[#allocation9 + $0x410] sm:$0xf]
        %v4099 = vld [vmem:[#allocation9 + $0x414] sm:$0xff]
        %v4100 = vld [vmem:[#allocation9 + $0x41c] sm:$0xf]
        %v4101 = vld [vmem:[#allocation9 + $0x420] sm:$0xff]
        %v4102 = vld [vmem:[#allocation9 + $0x428] sm:$0xf]
        %v4103 = vld [vmem:[#allocation9 + $0x42c] sm:$0xff]
        %v4104 = vld [vmem:[#allocation9 + $0x434] sm:$0xf]
        %v4105 = vld [vmem:[#allocation9 + $0x438] sm:$0xff]
        %v4106 = vld [vmem:[#allocation9 + $0x440] sm:$0xf]
        %v4107 = vld [vmem:[#allocation9 + $0x444] sm:$0xff]
        %v4108 = vld [vmem:[#allocation9 + $0x44c] sm:$0xf]
        %v4109 = vld [vmem:[#allocation9 + $0x450] sm:$0xff]
        %v4110 = vld [vmem:[#allocation9 + $0x458] sm:$0xf]
        %v4111 = vld [vmem:[#allocation9 + $0x45c] sm:$0xff]
        %v4112 = vld [vmem:[#allocation9 + $0x464] sm:$0xf]
        %v4113 = vld [vmem:[#allocation9 + $0x468] sm:$0xff]
        %v4114 = vld [vmem:[#allocation9 + $0x470] sm:$0xf]
        %v4115 = vld [vmem:[#allocation9 + $0x474] sm:$0xff]
        %v4116 = vld [vmem:[#allocation9 + $0x47c] sm:$0xf]
        %v4117 = vld [vmem:[#allocation9 + $0x480] sm:$0xff]
        %v4118 = vld [vmem:[#allocation9 + $0x488] sm:$0xf]
        %v4119 = vld [vmem:[#allocation9 + $0x48c] sm:$0xff]
        %v4120 = vld [vmem:[#allocation9 + $0x494] sm:$0xf]
        %v4121 = vld [vmem:[#allocation9 + $0x498] sm:$0xff]
        %v4122 = vld [vmem:[#allocation9 + $0x4a0] sm:$0xf]
        %v4123 = vld [vmem:[#allocation9 + $0x4a4] sm:$0xff]
        %v4124 = vld [vmem:[#allocation9 + $0x4ac] sm:$0xf]
        %v4125 = vld [vmem:[#allocation9 + $0x4b0] sm:$0xff]
        %v4126 = vld [vmem:[#allocation9 + $0x4b8] sm:$0xf]
        %v4127 = vld [vmem:[#allocation9 + $0x4bc] sm:$0xff]
        %v4128 = vld [vmem:[#allocation9 + $0x4c4] sm:$0xf]
        %v4129 = vld [vmem:[#allocation9 + $0x4c8] sm:$0xff]
        %v4130 = vld [vmem:[#allocation9 + $0x4d0] sm:$0xf]
        %v4131 = vld [vmem:[#allocation9 + $0x4d4] sm:$0xff]
        %v4132 = vld [vmem:[#allocation9 + $0x4dc] sm:$0xf]
        %v4133 = vld [vmem:[#allocation9 + $0x4e0] sm:$0xff]
        %v4134 = vld [vmem:[#allocation9 + $0x4e8] sm:$0xf]
        %v4135 = vld [vmem:[#allocation9 + $0x4ec] sm:$0xff]
        %v4136 = vld [vmem:[#allocation9 + $0x4f4] sm:$0xf]
        %v4137 = vld [vmem:[#allocation9 + $0x4f8] sm:$0xff]
        %v4138 = vld [vmem:[#allocation9 + $0x500] sm:$0xf]
        %v4139 = vld [vmem:[#allocation9 + $0x504] sm:$0xff]
        %v4140 = vld [vmem:[#allocation9 + $0x50c] sm:$0xf]
        %v4141 = vld [vmem:[#allocation9 + $0x510] sm:$0xff]
        %v4142 = vld [vmem:[#allocation9 + $0x518] sm:$0xf]
        %v4143 = vld [vmem:[#allocation9 + $0x51c] sm:$0xff]
        %v4144 = vld [vmem:[#allocation9 + $0x524] sm:$0xf]
        %v4145 = vld [vmem:[#allocation9 + $0x528] sm:$0xff]
        %v4146 = vld [vmem:[#allocation9 + $0x530] sm:$0xf]
        %v4147 = vld [vmem:[#allocation9 + $0x534] sm:$0xff]
        %v4148 = vld [vmem:[#allocation9 + $0x53c] sm:$0xf]
        %v4149 = vld [vmem:[#allocation9 + $0x540] sm:$0xff]
        %v4150 = vld [vmem:[#allocation9 + $0x548] sm:$0xf]
        %v4151 = vld [vmem:[#allocation9 + $0x54c] sm:$0xff]
        %v4152 = vld [vmem:[#allocation9 + $0x554] sm:$0xf]
        %v4153 = vld [vmem:[#allocation9 + $0x558] sm:$0xff]
        %v4154 = vld [vmem:[#allocation9 + $0x560] sm:$0xf]
        %v4155 = vld [vmem:[#allocation9 + $0x564] sm:$0xff]
        %v4156 = vld [vmem:[#allocation9 + $0x56c] sm:$0xf]
        %v4157 = vld [vmem:[#allocation9 + $0x570] sm:$0xff]
        %v4158 = vld [vmem:[#allocation9 + $0x578] sm:$0xf]
        %v4159 = vld [vmem:[#allocation9 + $0x57c] sm:$0xff]
        %v4160 = vld [vmem:[#allocation9 + $0x584] sm:$0xf]
        %v4161 = vld [vmem:[#allocation9 + $0x588] sm:$0xff]
        %v4162 = vld [vmem:[#allocation9 + $0x590] sm:$0xf]
        %v4163 = vld [vmem:[#allocation9 + $0x594] sm:$0xff]
        %v4164 = vld [vmem:[#allocation9 + $0x59c] sm:$0xf]
        %v4165 = vld [vmem:[#allocation9 + $0x5a0] sm:$0xff]
        %v4166 = vld [vmem:[#allocation9 + $0x5a8] sm:$0xf]
        %v4167 = vld [vmem:[#allocation9 + $0x5ac] sm:$0xff]
        %v4168 = vld [vmem:[#allocation9 + $0x5b4] sm:$0xf]
        %v4169 = vld [vmem:[#allocation9 + $0x5b8] sm:$0xff]
        %v4170 = vld [vmem:[#allocation9 + $0x5c0] sm:$0xf]
        %v4171 = vld [vmem:[#allocation9 + $0x5c4] sm:$0xff]
        %v4172 = vld [vmem:[#allocation9 + $0x5cc] sm:$0xf]
        %v4173 = vld [vmem:[#allocation9 + $0x5d0] sm:$0xff]
        %v4174 = vld [vmem:[#allocation9 + $0x5d8] sm:$0xf]
        %v4175 = vld [vmem:[#allocation9 + $0x5dc] sm:$0xff]
        %v4176 = vld [vmem:[#allocation9 + $0x5e4] sm:$0xf]
        %v4177 = vld [vmem:[#allocation9 + $0x5e8] sm:$0xff]
        %v4178 = vld [vmem:[#allocation9 + $0x5f0] sm:$0xf]
        %v4179 = vld [vmem:[#allocation9 + $0x5f4] sm:$0xff]
        %v4180 = vld [vmem:[#allocation9 + $0x5fc] sm:$0xf]
        %v4309 = vunpack.c.l.b16 %v4053
        %v4310 = vunpack.c.h.b16 %v4053
        %v4311 = vunpack.c.l.b16 %v4054
        %v4312 = vunpack.c.l.b16 %v4055
        %v4313 = vunpack.c.h.b16 %v4055
        %v4314 = vunpack.c.l.b16 %v4056
        %v4315 = vunpack.c.l.b16 %v4057
        %v4316 = vunpack.c.h.b16 %v4057
        %v4317 = vunpack.c.l.b16 %v4058
        %v4318 = vunpack.c.l.b16 %v4059
        %v4319 = vunpack.c.h.b16 %v4059
        %v4320 = vunpack.c.l.b16 %v4060
        %v4321 = vunpack.c.l.b16 %v4061
        %v4322 = vunpack.c.h.b16 %v4061
        %v4323 = vunpack.c.l.b16 %v4062
        %v4324 = vunpack.c.l.b16 %v4063
        %v4325 = vunpack.c.h.b16 %v4063
        %v4326 = vunpack.c.l.b16 %v4064
        %v4327 = vunpack.c.l.b16 %v4065
        %v4328 = vunpack.c.h.b16 %v4065
        %v4329 = vunpack.c.l.b16 %v4066
        %v4330 = vunpack.c.l.b16 %v4067
        %v4331 = vunpack.c.h.b16 %v4067
        %v4332 = vunpack.c.l.b16 %v4068
        %v4333 = vunpack.c.l.b16 %v4069
        %v4334 = vunpack.c.h.b16 %v4069
        %v4335 = vunpack.c.l.b16 %v4070
        %v4336 = vunpack.c.l.b16 %v4071
        %v4337 = vunpack.c.h.b16 %v4071
        %v4338 = vunpack.c.l.b16 %v4072
        %v4339 = vunpack.c.l.b16 %v4073
        %v4340 = vunpack.c.h.b16 %v4073
        %v4341 = vunpack.c.l.b16 %v4074
        %v4342 = vunpack.c.l.b16 %v4075
        %v4343 = vunpack.c.h.b16 %v4075
        %v4344 = vunpack.c.l.b16 %v4076
        %v4345 = vunpack.c.l.b16 %v4077
        %v4346 = vunpack.c.h.b16 %v4077
        %v4347 = vunpack.c.l.b16 %v4078
        %v4348 = vunpack.c.l.b16 %v4079
        %v4349 = vunpack.c.h.b16 %v4079
        %v4350 = vunpack.c.l.b16 %v4080
        %v4351 = vunpack.c.l.b16 %v4081
        %v4352 = vunpack.c.h.b16 %v4081
        %v4353 = vunpack.c.l.b16 %v4082
        %v4354 = vunpack.c.l.b16 %v4083
        %v4355 = vunpack.c.h.b16 %v4083
        %v4356 = vunpack.c.l.b16 %v4084
        %v4357 = vunpack.c.l.b16 %v4085
        %v4358 = vunpack.c.h.b16 %v4085
        %v4359 = vunpack.c.l.b16 %v4086
        %v4360 = vunpack.c.l.b16 %v4087
        %v4361 = vunpack.c.h.b16 %v4087
        %v4362 = vunpack.c.l.b16 %v4088
        %v4363 = vunpack.c.l.b16 %v4089
        %v4364 = vunpack.c.h.b16 %v4089
        %v4365 = vunpack.c.l.b16 %v4090
        %v4366 = vunpack.c.l.b16 %v4091
        %v4367 = vunpack.c.h.b16 %v4091
        %v4368 = vunpack.c.l.b16 %v4092
        %v4369 = vunpack.c.l.b16 %v4093
        %v4370 = vunpack.c.h.b16 %v4093
        %v4371 = vunpack.c.l.b16 %v4094
        %v4372 = vunpack.c.l.b16 %v4095
        %v4373 = vunpack.c.h.b16 %v4095
        %v4374 = vunpack.c.l.b16 %v4096
        %v4375 = vunpack.c.l.b16 %v4097
        %v4376 = vunpack.c.h.b16 %v4097
        %v4377 = vunpack.c.l.b16 %v4098
        %v4378 = vunpack.c.l.b16 %v4099
        %v4379 = vunpack.c.h.b16 %v4099
        %v4380 = vunpack.c.l.b16 %v4100
        %v4381 = vunpack.c.l.b16 %v4101
        %v4382 = vunpack.c.h.b16 %v4101
        %v4383 = vunpack.c.l.b16 %v4102
        %v4384 = vunpack.c.l.b16 %v4103
        %v4385 = vunpack.c.h.b16 %v4103
        %v4386 = vunpack.c.l.b16 %v4104
        %v4387 = vunpack.c.l.b16 %v4105
        %v4388 = vunpack.c.h.b16 %v4105
        %v4389 = vunpack.c.l.b16 %v4106
        %v4390 = vunpack.c.l.b16 %v4107
        %v4391 = vunpack.c.h.b16 %v4107
        %v4392 = vunpack.c.l.b16 %v4108
        %v4393 = vunpack.c.l.b16 %v4109
        %v4394 = vunpack.c.h.b16 %v4109
        %v4395 = vunpack.c.l.b16 %v4110
        %v4396 = vunpack.c.l.b16 %v4111
        %v4397 = vunpack.c.h.b16 %v4111
        %v4398 = vunpack.c.l.b16 %v4112
        %v4399 = vunpack.c.l.b16 %v4113
        %v4400 = vunpack.c.h.b16 %v4113
        %v4401 = vunpack.c.l.b16 %v4114
        %v4402 = vunpack.c.l.b16 %v4115
        %v4403 = vunpack.c.h.b16 %v4115
        %v4404 = vunpack.c.l.b16 %v4116
        %v4405 = vunpack.c.l.b16 %v4117
        %v4406 = vunpack.c.h.b16 %v4117
        %v4407 = vunpack.c.l.b16 %v4118
        %v4408 = vunpack.c.l.b16 %v4119
        %v4409 = vunpack.c.h.b16 %v4119
        %v4410 = vunpack.c.l.b16 %v4120
        %v4411 = vunpack.c.l.b16 %v4121
        %v4412 = vunpack.c.h.b16 %v4121
        %v4413 = vunpack.c.l.b16 %v4122
        %v4414 = vunpack.c.l.b16 %v4123
        %v4415 = vunpack.c.h.b16 %v4123
        %v4416 = vunpack.c.l.b16 %v4124
        %v4417 = vunpack.c.l.b16 %v4125
        %v4418 = vunpack.c.h.b16 %v4125
        %v4419 = vunpack.c.l.b16 %v4126
        %v4420 = vunpack.c.l.b16 %v4127
        %v4421 = vunpack.c.h.b16 %v4127
        %v4422 = vunpack.c.l.b16 %v4128
        %v4423 = vunpack.c.l.b16 %v4129
        %v4424 = vunpack.c.h.b16 %v4129
        %v4425 = vunpack.c.l.b16 %v4130
        %v4426 = vunpack.c.l.b16 %v4131
        %v4427 = vunpack.c.h.b16 %v4131
        %v4428 = vunpack.c.l.b16 %v4132
        %v4429 = vunpack.c.l.b16 %v4133
        %v4430 = vunpack.c.h.b16 %v4133
        %v4431 = vunpack.c.l.b16 %v4134
        %v4432 = vunpack.c.l.b16 %v4135
        %v4433 = vunpack.c.h.b16 %v4135
        %v4434 = vunpack.c.l.b16 %v4136
        %v4435 = vunpack.c.l.b16 %v4137
        %v4436 = vunpack.c.h.b16 %v4137
        %v4437 = vunpack.c.l.b16 %v4138
        %v4438 = vunpack.c.l.b16 %v4139
        %v4439 = vunpack.c.h.b16 %v4139
        %v4440 = vunpack.c.l.b16 %v4140
        %v4441 = vunpack.c.l.b16 %v4141
        %v4442 = vunpack.c.h.b16 %v4141
        %v4443 = vunpack.c.l.b16 %v4142
        %v4444 = vunpack.c.l.b16 %v4143
        %v4445 = vunpack.c.h.b16 %v4143
        %v4446 = vunpack.c.l.b16 %v4144
        %v4447 = vunpack.c.l.b16 %v4145
        %v4448 = vunpack.c.h.b16 %v4145
        %v4449 = vunpack.c.l.b16 %v4146
        %v4450 = vunpack.c.l.b16 %v4147
        %v4451 = vunpack.c.h.b16 %v4147
        %v4452 = vunpack.c.l.b16 %v4148
        %v4453 = vunpack.c.l.b16 %v4149
        %v4454 = vunpack.c.h.b16 %v4149
        %v4455 = vunpack.c.l.b16 %v4150
        %v4456 = vunpack.c.l.b16 %v4151
        %v4457 = vunpack.c.h.b16 %v4151
        %v4458 = vunpack.c.l.b16 %v4152
        %v4459 = vunpack.c.l.b16 %v4153
        %v4460 = vunpack.c.h.b16 %v4153
        %v4461 = vunpack.c.l.b16 %v4154
        %v4462 = vunpack.c.l.b16 %v4155
        %v4463 = vunpack.c.h.b16 %v4155
        %v4464 = vunpack.c.l.b16 %v4156
        %v4465 = vunpack.c.l.b16 %v4157
        %v4466 = vunpack.c.h.b16 %v4157
        %v4467 = vunpack.c.l.b16 %v4158
        %v4468 = vunpack.c.l.b16 %v4159
        %v4469 = vunpack.c.h.b16 %v4159
        %v4470 = vunpack.c.l.b16 %v4160
        %v4471 = vunpack.c.l.b16 %v4161
        %v4472 = vunpack.c.h.b16 %v4161
        %v4473 = vunpack.c.l.b16 %v4162
        %v4474 = vunpack.c.l.b16 %v4163
        %v4475 = vunpack.c.h.b16 %v4163
        %v4476 = vunpack.c.l.b16 %v4164
        %v4477 = vunpack.c.l.b16 %v4165
        %v4478 = vunpack.c.h.b16 %v4165
        %v4479 = vunpack.c.l.b16 %v4166
        %v4480 = vunpack.c.l.b16 %v4167
        %v4481 = vunpack.c.h.b16 %v4167
        %v4482 = vunpack.c.l.b16 %v4168
        %v4483 = vunpack.c.l.b16 %v4169
        %v4484 = vunpack.c.h.b16 %v4169
        %v4485 = vunpack.c.l.b16 %v4170
        %v4486 = vunpack.c.l.b16 %v4171
        %v4487 = vunpack.c.h.b16 %v4171
        %v4488 = vunpack.c.l.b16 %v4172
        %v4489 = vunpack.c.l.b16 %v4173
        %v4490 = vunpack.c.h.b16 %v4173
        %v4491 = vunpack.c.l.b16 %v4174
        %v4492 = vunpack.c.l.b16 %v4175
        %v4493 = vunpack.c.h.b16 %v4175
        %v4494 = vunpack.c.l.b16 %v4176
        %v4495 = vunpack.c.l.b16 %v4177
        %v4496 = vunpack.c.h.b16 %v4177
        %v4497 = vunpack.c.l.b16 %v4178
        %v4498 = vunpack.c.l.b16 %v4179
        %v4499 = vunpack.c.h.b16 %v4179
        %v4500 = vunpack.c.l.b16 %v4180
        %v4501 = vpack.c.b16 %v4312, %v4309
        %v4502 = vpack.c.b16 %v4313, %v4310
        %v4503 = vpack.c.b16 %v4314, %v4311
        %v4504 = vpack.c.b16 %v4318, %v4315
        %v4505 = vpack.c.b16 %v4319, %v4316
        %v4506 = vpack.c.b16 %v4320, %v4317
        %v4507 = vpack.c.b16 %v4324, %v4321
        %v4508 = vpack.c.b16 %v4325, %v4322
        %v4509 = vpack.c.b16 %v4326, %v4323
        %v4510 = vpack.c.b16 %v4330, %v4327
        %v4511 = vpack.c.b16 %v4331, %v4328
        %v4512 = vpack.c.b16 %v4332, %v4329
        %v4513 = vpack.c.b16 %v4336, %v4333
        %v4514 = vpack.c.b16 %v4337, %v4334
        %v4515 = vpack.c.b16 %v4338, %v4335
        %v4516 = vpack.c.b16 %v4342, %v4339
        %v4517 = vpack.c.b16 %v4343, %v4340
        %v4518 = vpack.c.b16 %v4344, %v4341
        %v4519 = vpack.c.b16 %v4348, %v4345
        %v4520 = vpack.c.b16 %v4349, %v4346
        %v4521 = vpack.c.b16 %v4350, %v4347
        %v4522 = vpack.c.b16 %v4354, %v4351
        %v4523 = vpack.c.b16 %v4355, %v4352
        %v4524 = vpack.c.b16 %v4356, %v4353
        %v4525 = vpack.c.b16 %v4360, %v4357
        %v4526 = vpack.c.b16 %v4361, %v4358
        %v4527 = vpack.c.b16 %v4362, %v4359
        %v4528 = vpack.c.b16 %v4366, %v4363
        %v4529 = vpack.c.b16 %v4367, %v4364
        %v4530 = vpack.c.b16 %v4368, %v4365
        %v4531 = vpack.c.b16 %v4372, %v4369
        %v4532 = vpack.c.b16 %v4373, %v4370
        %v4533 = vpack.c.b16 %v4374, %v4371
        %v4534 = vpack.c.b16 %v4378, %v4375
        %v4535 = vpack.c.b16 %v4379, %v4376
        %v4536 = vpack.c.b16 %v4380, %v4377
        %v4537 = vpack.c.b16 %v4384, %v4381
        %v4538 = vpack.c.b16 %v4385, %v4382
        %v4539 = vpack.c.b16 %v4386, %v4383
        %v4540 = vpack.c.b16 %v4390, %v4387
        %v4541 = vpack.c.b16 %v4391, %v4388
        %v4542 = vpack.c.b16 %v4392, %v4389
        %v4543 = vpack.c.b16 %v4396, %v4393
        %v4544 = vpack.c.b16 %v4397, %v4394
        %v4545 = vpack.c.b16 %v4398, %v4395
        %v4546 = vpack.c.b16 %v4402, %v4399
        %v4547 = vpack.c.b16 %v4403, %v4400
        %v4548 = vpack.c.b16 %v4404, %v4401
        %v4549 = vpack.c.b16 %v4408, %v4405
        %v4550 = vpack.c.b16 %v4409, %v4406
        %v4551 = vpack.c.b16 %v4410, %v4407
        %v4552 = vpack.c.b16 %v4414, %v4411
        %v4553 = vpack.c.b16 %v4415, %v4412
        %v4554 = vpack.c.b16 %v4416, %v4413
        %v4555 = vpack.c.b16 %v4420, %v4417
        %v4556 = vpack.c.b16 %v4421, %v4418
        %v4557 = vpack.c.b16 %v4422, %v4419
        %v4558 = vpack.c.b16 %v4426, %v4423
        %v4559 = vpack.c.b16 %v4427, %v4424
        %v4560 = vpack.c.b16 %v4428, %v4425
        %v4561 = vpack.c.b16 %v4432, %v4429
        %v4562 = vpack.c.b16 %v4433, %v4430
        %v4563 = vpack.c.b16 %v4434, %v4431
        %v4564 = vpack.c.b16 %v4438, %v4435
        %v4565 = vpack.c.b16 %v4439, %v4436
        %v4566 = vpack.c.b16 %v4440, %v4437
        %v4567 = vpack.c.b16 %v4444, %v4441
        %v4568 = vpack.c.b16 %v4445, %v4442
        %v4569 = vpack.c.b16 %v4446, %v4443
        %v4570 = vpack.c.b16 %v4450, %v4447
        %v4571 = vpack.c.b16 %v4451, %v4448
        %v4572 = vpack.c.b16 %v4452, %v4449
        %v4573 = vpack.c.b16 %v4456, %v4453
        %v4574 = vpack.c.b16 %v4457, %v4454
        %v4575 = vpack.c.b16 %v4458, %v4455
        %v4576 = vpack.c.b16 %v4462, %v4459
        %v4577 = vpack.c.b16 %v4463, %v4460
        %v4578 = vpack.c.b16 %v4464, %v4461
        %v4579 = vpack.c.b16 %v4468, %v4465
        %v4580 = vpack.c.b16 %v4469, %v4466
        %v4581 = vpack.c.b16 %v4470, %v4467
        %v4582 = vpack.c.b16 %v4474, %v4471
        %v4583 = vpack.c.b16 %v4475, %v4472
        %v4584 = vpack.c.b16 %v4476, %v4473
        %v4585 = vpack.c.b16 %v4480, %v4477
        %v4586 = vpack.c.b16 %v4481, %v4478
        %v4587 = vpack.c.b16 %v4482, %v4479
        %v4588 = vpack.c.b16 %v4486, %v4483
        %v4589 = vpack.c.b16 %v4487, %v4484
        %v4590 = vpack.c.b16 %v4488, %v4485
        %v4591 = vpack.c.b16 %v4492, %v4489
        %v4592 = vpack.c.b16 %v4493, %v4490
        %v4593 = vpack.c.b16 %v4494, %v4491
        %v4594 = vpack.c.b16 %v4498, %v4495
        %v4595 = vpack.c.b16 %v4499, %v4496
        %v4596 = vpack.c.b16 %v4500, %v4497
        %4693 = vmatprep.subr.bf16.mxu0 %v4502
        %4694 = vmatpush1.bf16.msra.mxu0 %v4501
        %4695 = vmatprep.subr.bf16.mxu0 %v4505
        %4696 = vmatpush1.bf16.msra.mxu0 %v4504
        %4697 = vmatprep.subr.bf16.mxu0 %v4508
        %4698 = vmatpush1.bf16.msra.mxu0 %v4507
        %4699 = vmatprep.subr.bf16.mxu0 %v4511
        %4700 = vmatpush1.bf16.msra.mxu0 %v4510
        %4701 = vmatprep.subr.bf16.mxu0 %v4514
        %4702 = vmatpush1.bf16.msra.mxu0 %v4513
        %4703 = vmatprep.subr.bf16.mxu0 %v4517
        %4704 = vmatpush1.bf16.msra.mxu0 %v4516
        %4705 = vmatprep.subr.bf16.mxu0 %v4520
        %4706 = vmatpush1.bf16.msra.mxu0 %v4519
        %4707 = vmatprep.subr.bf16.mxu0 %v4523
        %4708 = vmatpush1.bf16.msra.mxu0 %v4522
        %4709 = vmatprep.subr.bf16.mxu0 %v4526
        %4710 = vmatpush1.bf16.msra.mxu0 %v4525
        %4711 = vmatprep.subr.bf16.mxu0 %v4529
        %4712 = vmatpush1.bf16.msra.mxu0 %v4528
        %4713 = vmatprep.subr.bf16.mxu0 %v4532
        %4714 = vmatpush1.bf16.msra.mxu0 %v4531
        %4715 = vmatprep.subr.bf16.mxu0 %v4535
        %4716 = vmatpush1.bf16.msra.mxu0 %v4534
        %4717 = vmatprep.subr.bf16.mxu0 %v4538
        %4718 = vmatpush1.bf16.msra.mxu0 %v4537
        %4719 = vmatprep.subr.bf16.mxu0 %v4541
        %4720 = vmatpush1.bf16.msra.mxu0 %v4540
        %4721 = vmatprep.subr.bf16.mxu0 %v4544
        %4722 = vmatpush1.bf16.msra.mxu0 %v4543
        %4723 = vmatprep.subr.bf16.mxu0 %v4547
        %4724 = vmatpush1.bf16.msra.mxu0 %v4546
        %4725 = vmatprep.mubr.bf16.mxu0 %v4022
        %4726 = vmatmul.mubr.bf16.gmra.mrb[0].mxu0 %v4021
        %v4727 = vpop.f32.mrb[0].mxu0
        %v4728 = vadd.f32 0.0, %v4727
        %v4729 = vpop.f32.mrb[0].mxu0
        %v4730 = vadd.f32 0.0, %v4729
        %v4731 = vpop.f32.mrb[0].mxu0
        %v4732 = vadd.f32 0.0, %v4731
        %v4733 = vpop.f32.mrb[0].mxu0
        %v4734 = vadd.f32 0.0, %v4733
        %4735 = vmatprep.mubr.bf16.mxu0 %v4026
        %4736 = vmatmul.mubr.bf16.gmra.mrb[0].mxu0 %v4025
        %v4737 = vpop.f32.mrb[0].mxu0
        %v4738 = vadd.f32 0.0, %v4737
        %v4739 = vpop.f32.mrb[0].mxu0
        %v4740 = vadd.f32 0.0, %v4739
        %v4741 = vpop.f32.mrb[0].mxu0
        %v4742 = vadd.f32 0.0, %v4741
        %v4743 = vpop.f32.mrb[0].mxu0
        %v4744 = vadd.f32 0.0, %v4743
        %4745 = vmatprep.mubr.bf16.mxu0 %v4030
        %4746 = vmatmul.mubr.bf16.gmra.mrb[0].mxu0 %v4029
        %v4747 = vpop.f32.mrb[0].mxu0
        %v4748 = vadd.f32 0.0, %v4747
        %v4749 = vpop.f32.mrb[0].mxu0
        %v4750 = vadd.f32 0.0, %v4749
        %v4751 = vpop.f32.mrb[0].mxu0
        %v4752 = vadd.f32 0.0, %v4751
        %v4753 = vpop.f32.mrb[0].mxu0
        %v4754 = vadd.f32 0.0, %v4753
        %4755 = vmatprep.mubr.bf16.mxu0 %v4034
        %4756 = vmatmul.mubr.bf16.gmra.mrb[0].mxu0 %v4033
        %v4757 = vpop.f32.mrb[0].mxu0
        %v4758 = vadd.f32 0.0, %v4757
        %v4759 = vpop.f32.mrb[0].mxu0
        %v4760 = vadd.f32 0.0, %v4759
        %v4761 = vpop.f32.mrb[0].mxu0
        %v4762 = vadd.f32 0.0, %v4761
        %v4763 = vpop.f32.mrb[0].mxu0
        %v4764 = vadd.f32 0.0, %v4763
        %4765 = vmatprep.mubr.bf16.mxu0 %v4038
        %4766 = vmatmul.mubr.bf16.gmra.mrb[0].mxu0 %v4037
        %v4767 = vpop.f32.mrb[0].mxu0
        %v4768 = vadd.f32 0.0, %v4767
        %v4769 = vpop.f32.mrb[0].mxu0
        %v4770 = vadd.f32 0.0, %v4769
        %v4771 = vpop.f32.mrb[0].mxu0
        %v4772 = vadd.f32 0.0, %v4771
        %v4773 = vpop.f32.mrb[0].mxu0
        %v4774 = vadd.f32 0.0, %v4773
        %4775 = vmatprep.mubr.bf16.mxu0 %v4042
        %4776 = vmatmul.mubr.bf16.gmra.mrb[0].mxu0 %v4041
        %v4777 = vpop.f32.mrb[0].mxu0
        %v4778 = vadd.f32 0.0, %v4777
        %v4779 = vpop.f32.mrb[0].mxu0
        %v4780 = vadd.f32 0.0, %v4779
        %v4781 = vpop.f32.mrb[0].mxu0
        %v4782 = vadd.f32 0.0, %v4781
        %v4783 = vpop.f32.mrb[0].mxu0
        %v4784 = vadd.f32 0.0, %v4783
        %4785 = vmatprep.mubr.bf16.mxu0 %v4046
        %4786 = vmatmul.mubr.bf16.gmra.mrb[0].mxu0 %v4045
        %v4787 = vpop.f32.mrb[0].mxu0
        %v4788 = vadd.f32 0.0, %v4787
        %v4789 = vpop.f32.mrb[0].mxu0
        %v4790 = vadd.f32 0.0, %v4789
        %v4791 = vpop.f32.mrb[0].mxu0
        %v4792 = vadd.f32 0.0, %v4791
        %v4793 = vpop.f32.mrb[0].mxu0
        %v4794 = vadd.f32 0.0, %v4793
        %4795 = vmatprep.mubr.bf16.mxu0 %v4050
        %4796 = vmatmul.mubr.bf16.gmra.mrb[0].mxu0 %v4049
        %v4797 = vpop.f32.mrb[0].mxu0
        %v4798 = vadd.f32 0.0, %v4797
        %v4799 = vpop.f32.mrb[0].mxu0
        %v4800 = vadd.f32 0.0, %v4799
        %v4801 = vpop.f32.mrb[0].mxu0
        %v4802 = vadd.f32 0.0, %v4801
        %v4803 = vpop.f32.mrb[0].mxu0
        %v4804 = vadd.f32 0.0, %v4803
        %4805 = vdwg.mxu0
        %4806 = vmatprep.subr.bf16.mxu0 %v4550
        %4807 = vmatpush1.bf16.msra.mxu0 %v4549
        %4808 = vmatprep.subr.bf16.mxu0 %v4553
        %4809 = vmatpush1.bf16.msra.mxu0 %v4552
        %4810 = vmatprep.subr.bf16.mxu0 %v4556
        %4811 = vmatpush1.bf16.msra.mxu0 %v4555
        %4812 = vmatprep.subr.bf16.mxu0 %v4559
        %4813 = vmatpush1.bf16.msra.mxu0 %v4558
        %4814 = vmatprep.subr.bf16.mxu0 %v4562
        %4815 = vmatpush1.bf16.msra.mxu0 %v4561
        %4816 = vmatprep.subr.bf16.mxu0 %v4565
        %4817 = vmatpush1.bf16.msra.mxu0 %v4564
        %4818 = vmatprep.subr.bf16.mxu0 %v4568
        %4819 = vmatpush1.bf16.msra.mxu0 %v4567
        %4820 = vmatprep.subr.bf16.mxu0 %v4571
        %4821 = vmatpush1.bf16.msra.mxu0 %v4570
        %4822 = vmatprep.subr.bf16.mxu0 %v4574
        %4823 = vmatpush1.bf16.msra.mxu0 %v4573
        %4824 = vmatprep.subr.bf16.mxu0 %v4577
        %4825 = vmatpush1.bf16.msra.mxu0 %v4576
        %4826 = vmatprep.subr.bf16.mxu0 %v4580
        %4827 = vmatpush1.bf16.msra.mxu0 %v4579
        %4828 = vmatprep.subr.bf16.mxu0 %v4583
        %4829 = vmatpush1.bf16.msra.mxu0 %v4582
        %4830 = vmatprep.subr.bf16.mxu0 %v4586
        %4831 = vmatpush1.bf16.msra.mxu0 %v4585
        %4832 = vmatprep.subr.bf16.mxu0 %v4589
        %4833 = vmatpush1.bf16.msra.mxu0 %v4588
        %4834 = vmatprep.subr.bf16.mxu0 %v4592
        %4835 = vmatpush1.bf16.msra.mxu0 %v4591
        %4836 = vmatprep.subr.bf16.mxu0 %v4595
        %4837 = vmatpush1.bf16.msra.mxu0 %v4594
        %4838 = vmatprep.mubr.bf16.mxu0 %v4024
        %4839 = vmatmul.mubr.bf16.gmra.mrb[0].mxu0 %v4023
        %v4840 = vpop.f32.mrb[0].mxu0
        %v4841 = vadd.f32 %v4728, %v4840
        %v4842 = vpop.f32.mrb[0].mxu0
        %v4843 = vadd.f32 %v4730, %v4842
        %v4844 = vpop.f32.mrb[0].mxu0
        %v4845 = vadd.f32 %v4732, %v4844
        %v4846 = vpop.f32.mrb[0].mxu0
        %v4847 = vadd.f32 %v4734, %v4846
        %4848 = vmatprep.mubr.bf16.mxu0 %v4028
        %4849 = vmatmul.mubr.bf16.gmra.mrb[0].mxu0 %v4027
        %v4850 = vpop.f32.mrb[0].mxu0
        %v4851 = vadd.f32 %v4738, %v4850
        %v4852 = vpop.f32.mrb[0].mxu0
        %v4853 = vadd.f32 %v4740, %v4852
        %v4854 = vpop.f32.mrb[0].mxu0
        %v4855 = vadd.f32 %v4742, %v4854
        %v4856 = vpop.f32.mrb[0].mxu0
        %v4857 = vadd.f32 %v4744, %v4856
        %4858 = vmatprep.mubr.bf16.mxu0 %v4032
        %4859 = vmatmul.mubr.bf16.gmra.mrb[0].mxu0 %v4031
        %v4860 = vpop.f32.mrb[0].mxu0
        %v4861 = vadd.f32 %v4748, %v4860
        %v4862 = vpop.f32.mrb[0].mxu0
        %v4863 = vadd.f32 %v4750, %v4862
        %v4864 = vpop.f32.mrb[0].mxu0
        %v4865 = vadd.f32 %v4752, %v4864
        %v4866 = vpop.f32.mrb[0].mxu0
        %v4867 = vadd.f32 %v4754, %v4866
        %4868 = vmatprep.mubr.bf16.mxu0 %v4036
        %4869 = vmatmul.mubr.bf16.gmra.mrb[0].mxu0 %v4035
        %v4870 = vpop.f32.mrb[0].mxu0
        %v4871 = vadd.f32 %v4758, %v4870
        %v4872 = vpop.f32.mrb[0].mxu0
        %v4873 = vadd.f32 %v4760, %v4872
        %v4874 = vpop.f32.mrb[0].mxu0
        %v4875 = vadd.f32 %v4762, %v4874
        %v4876 = vpop.f32.mrb[0].mxu0
        %v4877 = vadd.f32 %v4764, %v4876
        %4878 = vmatprep.mubr.bf16.mxu0 %v4040
        %4879 = vmatmul.mubr.bf16.gmra.mrb[0].mxu0 %v4039
        %v4880 = vpop.f32.mrb[0].mxu0
        %v4881 = vadd.f32 %v4768, %v4880
        %v4882 = vpop.f32.mrb[0].mxu0
        %v4883 = vadd.f32 %v4770, %v4882
        %v4884 = vpop.f32.mrb[0].mxu0
        %v4885 = vadd.f32 %v4772, %v4884
        %v4886 = vpop.f32.mrb[0].mxu0
        %v4887 = vadd.f32 %v4774, %v4886
        %4888 = vmatprep.mubr.bf16.mxu0 %v4044
        %4889 = vmatmul.mubr.bf16.gmra.mrb[0].mxu0 %v4043
        %v4890 = vpop.f32.mrb[0].mxu0
        %v4891 = vadd.f32 %v4778, %v4890
        %v4892 = vpop.f32.mrb[0].mxu0
        %v4893 = vadd.f32 %v4780, %v4892
        %v4894 = vpop.f32.mrb[0].mxu0
        %v4895 = vadd.f32 %v4782, %v4894
        %v4896 = vpop.f32.mrb[0].mxu0
        %v4897 = vadd.f32 %v4784, %v4896
        %4898 = vmatprep.mubr.bf16.mxu0 %v4048
        %4899 = vmatmul.mubr.bf16.gmra.mrb[0].mxu0 %v4047
        %v4900 = vpop.f32.mrb[0].mxu0
        %v4901 = vadd.f32 %v4788, %v4900
        %v4902 = vpop.f32.mrb[0].mxu0
        %v4903 = vadd.f32 %v4790, %v4902
        %v4904 = vpop.f32.mrb[0].mxu0
        %v4905 = vadd.f32 %v4792, %v4904
        %v4906 = vpop.f32.mrb[0].mxu0
        %v4907 = vadd.f32 %v4794, %v4906
        %4908 = vmatprep.mubr.bf16.mxu0 %v4052
        %4909 = vmatmul.mubr.bf16.gmra.mrb[0].mxu0 %v4051
        %v4910 = vpop.f32.mrb[0].mxu0
        %v4911 = vadd.f32 %v4798, %v4910
        %v4912 = vpop.f32.mrb[0].mxu0
        %v4913 = vadd.f32 %v4800, %v4912
        %v4914 = vpop.f32.mrb[0].mxu0
        %v4915 = vadd.f32 %v4802, %v4914
        %v4916 = vpop.f32.mrb[0].mxu0
        %v4917 = vadd.f32 %v4804, %v4916
        %4918 = vdwg.mxu0
        %4919 = vmatprep.subr.bf16.mxu0 0
        %4920 = vmatpush1.bf16.msra.mxu0 %v4503
        %4921 = vmatprep.subr.bf16.mxu0 0
        %4922 = vmatpush1.bf16.msra.mxu0 %v4506
        %4923 = vmatprep.subr.bf16.mxu0 0
        %4924 = vmatpush1.bf16.msra.mxu0 %v4509
        %4925 = vmatprep.subr.bf16.mxu0 0
        %4926 = vmatpush1.bf16.msra.mxu0 %v4512
        %4927 = vmatprep.subr.bf16.mxu0 0
        %4928 = vmatpush1.bf16.msra.mxu0 %v4515
        %4929 = vmatprep.subr.bf16.mxu0 0
        %4930 = vmatpush1.bf16.msra.mxu0 %v4518
        %4931 = vmatprep.subr.bf16.mxu0 0
        %4932 = vmatpush1.bf16.msra.mxu0 %v4521
        %4933 = vmatprep.subr.bf16.mxu0 0
        %4934 = vmatpush1.bf16.msra.mxu0 %v4524
        %4935 = vmatprep.subr.bf16.mxu0 0
        %4936 = vmatpush1.bf16.msra.mxu0 %v4527
        %4937 = vmatprep.subr.bf16.mxu0 0
        %4938 = vmatpush1.bf16.msra.mxu0 %v4530
        %4939 = vmatprep.subr.bf16.mxu0 0
        %4940 = vmatpush1.bf16.msra.mxu0 %v4533
        %4941 = vmatprep.subr.bf16.mxu0 0
        %4942 = vmatpush1.bf16.msra.mxu0 %v4536
        %4943 = vmatprep.subr.bf16.mxu0 0
        %4944 = vmatpush1.bf16.msra.mxu0 %v4539
        %4945 = vmatprep.subr.bf16.mxu0 0
        %4946 = vmatpush1.bf16.msra.mxu0 %v4542
        %4947 = vmatprep.subr.bf16.mxu0 0
        %4948 = vmatpush1.bf16.msra.mxu0 %v4545
        %4949 = vmatprep.subr.bf16.mxu0 0
        %4950 = vmatpush1.bf16.msra.mxu0 %v4548
        %4951 = vmatprep.mubr.bf16.mxu0 %v4022
        %4952 = vmatmul.mubr.bf16.gmra.mrb[0].mxu0 %v4021
        %v4953 = vpop.f32.mrb[0].mxu0
        %v4954 = vadd.f32 0.0, %v4953
        %v4955 = vpop.f32.mrb[0].mxu0
        %v4956 = vpop.f32.mrb[0].mxu0
        %v4957 = vadd.f32 0.0, %v4956
        %v4958 = vpop.f32.mrb[0].mxu0
        %4959 = vmatprep.mubr.bf16.mxu0 %v4026
        %4960 = vmatmul.mubr.bf16.gmra.mrb[0].mxu0 %v4025
        %v4961 = vpop.f32.mrb[0].mxu0
        %v4962 = vadd.f32 0.0, %v4961
        %v4963 = vpop.f32.mrb[0].mxu0
        %v4964 = vpop.f32.mrb[0].mxu0
        %v4965 = vadd.f32 0.0, %v4964
        %v4966 = vpop.f32.mrb[0].mxu0
        %4967 = vmatprep.mubr.bf16.mxu0 %v4030
        %4968 = vmatmul.mubr.bf16.gmra.mrb[0].mxu0 %v4029
        %v4969 = vpop.f32.mrb[0].mxu0
        %v4970 = vadd.f32 0.0, %v4969
        %v4971 = vpop.f32.mrb[0].mxu0
        %v4972 = vpop.f32.mrb[0].mxu0
        %v4973 = vadd.f32 0.0, %v4972
        %v4974 = vpop.f32.mrb[0].mxu0
        %4975 = vmatprep.mubr.bf16.mxu0 %v4034
        %4976 = vmatmul.mubr.bf16.gmra.mrb[0].mxu0 %v4033
        %v4977 = vpop.f32.mrb[0].mxu0
        %v4978 = vadd.f32 0.0, %v4977
        %v4979 = vpop.f32.mrb[0].mxu0
        %v4980 = vpop.f32.mrb[0].mxu0
        %v4981 = vadd.f32 0.0, %v4980
        %v4982 = vpop.f32.mrb[0].mxu0
        %4983 = vmatprep.mubr.bf16.mxu0 %v4038
        %4984 = vmatmul.mubr.bf16.gmra.mrb[0].mxu0 %v4037
        %v4985 = vpop.f32.mrb[0].mxu0
        %v4986 = vadd.f32 0.0, %v4985
        %v4987 = vpop.f32.mrb[0].mxu0
        %v4988 = vpop.f32.mrb[0].mxu0
        %v4989 = vadd.f32 0.0, %v4988
        %v4990 = vpop.f32.mrb[0].mxu0
        %4991 = vmatprep.mubr.bf16.mxu0 %v4042
        %4992 = vmatmul.mubr.bf16.gmra.mrb[0].mxu0 %v4041
        %v4993 = vpop.f32.mrb[0].mxu0
        %v4994 = vadd.f32 0.0, %v4993
        %v4995 = vpop.f32.mrb[0].mxu0
        %v4996 = vpop.f32.mrb[0].mxu0
        %v4997 = vadd.f32 0.0, %v4996
        %v4998 = vpop.f32.mrb[0].mxu0
        %4999 = vmatprep.mubr.bf16.mxu0 %v4046
        %5000 = vmatmul.mubr.bf16.gmra.mrb[0].mxu0 %v4045
        %v5001 = vpop.f32.mrb[0].mxu0
        %v5002 = vadd.f32 0.0, %v5001
        %v5003 = vpop.f32.mrb[0].mxu0
        %v5004 = vpop.f32.mrb[0].mxu0
        %v5005 = vadd.f32 0.0, %v5004
        %v5006 = vpop.f32.mrb[0].mxu0
        %5007 = vmatprep.mubr.bf16.mxu0 %v4050
        %5008 = vmatmul.mubr.bf16.gmra.mrb[0].mxu0 %v4049
        %v5009 = vpop.f32.mrb[0].mxu0
        %v5010 = vadd.f32 0.0, %v5009
        %v5011 = vpop.f32.mrb[0].mxu0
        %v5012 = vpop.f32.mrb[0].mxu0
        %v5013 = vadd.f32 0.0, %v5012
        %v5014 = vpop.f32.mrb[0].mxu0
        %5015 = vdwg.mxu0
        %5016 = vmatprep.subr.bf16.mxu0 0
        %5017 = vmatpush1.bf16.msra.mxu0 %v4551
        %5018 = vmatprep.subr.bf16.mxu0 0
        %5019 = vmatpush1.bf16.msra.mxu0 %v4554
        %5020 = vmatprep.subr.bf16.mxu0 0
        %5021 = vmatpush1.bf16.msra.mxu0 %v4557
        %5022 = vmatprep.subr.bf16.mxu0 0
        %5023 = vmatpush1.bf16.msra.mxu0 %v4560
        %5024 = vmatprep.subr.bf16.mxu0 0
        %5025 = vmatpush1.bf16.msra.mxu0 %v4563
        %5026 = vmatprep.subr.bf16.mxu0 0
        %5027 = vmatpush1.bf16.msra.mxu0 %v4566
        %5028 = vmatprep.subr.bf16.mxu0 0
        %5029 = vmatpush1.bf16.msra.mxu0 %v4569
        %5030 = vmatprep.subr.bf16.mxu0 0
        %5031 = vmatpush1.bf16.msra.mxu0 %v4572
        %5032 = vmatprep.subr.bf16.mxu0 0
        %5033 = vmatpush1.bf16.msra.mxu0 %v4575
        %5034 = vmatprep.subr.bf16.mxu0 0
        %5035 = vmatpush1.bf16.msra.mxu0 %v4578
        %5036 = vmatprep.subr.bf16.mxu0 0
        %5037 = vmatpush1.bf16.msra.mxu0 %v4581
        %5038 = vmatprep.subr.bf16.mxu0 0
        %5039 = vmatpush1.bf16.msra.mxu0 %v4584
        %5040 = vmatprep.subr.bf16.mxu0 0
        %5041 = vmatpush1.bf16.msra.mxu0 %v4587
        %5042 = vmatprep.subr.bf16.mxu0 0
        %5043 = vmatpush1.bf16.msra.mxu0 %v4590
        %5044 = vmatprep.subr.bf16.mxu0 0
        %5045 = vmatpush1.bf16.msra.mxu0 %v4593
        %5046 = vmatprep.subr.bf16.mxu0 0
        %5047 = vmatpush1.bf16.msra.mxu0 %v4596
        %5048 = vmatprep.mubr.bf16.mxu0 %v4024
        %5049 = vmatmul.mubr.bf16.gmra.mrb[0].mxu0 %v4023
        %v5050 = vpop.f32.mrb[0].mxu0
        %v5051 = vadd.f32 %v4954, %v5050
        %v5052 = vpop.f32.mrb[0].mxu0
        %v5053 = vpop.f32.mrb[0].mxu0
        %v5054 = vadd.f32 %v4957, %v5053
        %v5055 = vpop.f32.mrb[0].mxu0
        %5056 = vmatprep.mubr.bf16.mxu0 %v4028
        %5057 = vmatmul.mubr.bf16.gmra.mrb[0].mxu0 %v4027
        %v5058 = vpop.f32.mrb[0].mxu0
        %v5059 = vadd.f32 %v4962, %v5058
        %v5060 = vpop.f32.mrb[0].mxu0
        %v5061 = vpop.f32.mrb[0].mxu0
        %v5062 = vadd.f32 %v4965, %v5061
        %v5063 = vpop.f32.mrb[0].mxu0
        %5064 = vmatprep.mubr.bf16.mxu0 %v4032
        %5065 = vmatmul.mubr.bf16.gmra.mrb[0].mxu0 %v4031
        %v5066 = vpop.f32.mrb[0].mxu0
        %v5067 = vadd.f32 %v4970, %v5066
        %v5068 = vpop.f32.mrb[0].mxu0
        %v5069 = vpop.f32.mrb[0].mxu0
        %v5070 = vadd.f32 %v4973, %v5069
        %v5071 = vpop.f32.mrb[0].mxu0
        %5072 = vmatprep.mubr.bf16.mxu0 %v4036
        %5073 = vmatmul.mubr.bf16.gmra.mrb[0].mxu0 %v4035
        %v5074 = vpop.f32.mrb[0].mxu0
        %v5075 = vadd.f32 %v4978, %v5074
        %v5076 = vpop.f32.mrb[0].mxu0
        %v5077 = vpop.f32.mrb[0].mxu0
        %v5078 = vadd.f32 %v4981, %v5077
        %v5079 = vpop.f32.mrb[0].mxu0
        %5080 = vmatprep.mubr.bf16.mxu0 %v4040
        %5081 = vmatmul.mubr.bf16.gmra.mrb[0].mxu0 %v4039
        %v5082 = vpop.f32.mrb[0].mxu0
        %v5083 = vadd.f32 %v4986, %v5082
        %v5084 = vpop.f32.mrb[0].mxu0
        %v5085 = vpop.f32.mrb[0].mxu0
        %v5086 = vadd.f32 %v4989, %v5085
        %v5087 = vpop.f32.mrb[0].mxu0
        %5088 = vmatprep.mubr.bf16.mxu0 %v4044
        %5089 = vmatmul.mubr.bf16.gmra.mrb[0].mxu0 %v4043
        %v5090 = vpop.f32.mrb[0].mxu0
        %v5091 = vadd.f32 %v4994, %v5090
        %v5092 = vpop.f32.mrb[0].mxu0
        %v5093 = vpop.f32.mrb[0].mxu0
        %v5094 = vadd.f32 %v4997, %v5093
        %v5095 = vpop.f32.mrb[0].mxu0
        %5096 = vmatprep.mubr.bf16.mxu0 %v4048
        %5097 = vmatmul.mubr.bf16.gmra.mrb[0].mxu0 %v4047
        %v5098 = vpop.f32.mrb[0].mxu0
        %v5099 = vadd.f32 %v5002, %v5098
        %v5100 = vpop.f32.mrb[0].mxu0
        %v5101 = vpop.f32.mrb[0].mxu0
        %v5102 = vadd.f32 %v5005, %v5101
        %v5103 = vpop.f32.mrb[0].mxu0
        %5104 = vmatprep.mubr.bf16.mxu0 %v4052
        %5105 = vmatmul.mubr.bf16.gmra.mrb[0].mxu0 %v4051
        %v5106 = vpop.f32.mrb[0].mxu0
        %v5107 = vadd.f32 %v5010, %v5106
        %v5108 = vpop.f32.mrb[0].mxu0
        %v5109 = vpop.f32.mrb[0].mxu0
        %v5110 = vadd.f32 %v5013, %v5109
        %v5111 = vpop.f32.mrb[0].mxu0
        %5112 = vdwg.mxu0
        %v5113 = vadd.f32 %v3973, %v4841
        %v5114 = vadd.f32 %v3974, %v4843
        %v5115 = vadd.f32 %v3975, %v5051
        %v5116 = vadd.f32 %v3976, %v4845
        %v5117 = vadd.f32 %v3977, %v4847
        %v5118 = vadd.f32 %v3978, %v5054
        %v5119 = vadd.f32 %v3979, %v4851
        %v5120 = vadd.f32 %v3980, %v4853
        %v5121 = vadd.f32 %v3981, %v5059
        %v5122 = vadd.f32 %v3982, %v4855
        %v5123 = vadd.f32 %v3983, %v4857
        %v5124 = vadd.f32 %v3984, %v5062
        %v5125 = vadd.f32 %v3985, %v4861
        %v5126 = vadd.f32 %v3986, %v4863
        %v5127 = vadd.f32 %v3987, %v5067
        %v5128 = vadd.f32 %v3988, %v4865
        %v5129 = vadd.f32 %v3989, %v4867
        %v5130 = vadd.f32 %v3990, %v5070
        %v5131 = vadd.f32 %v3991, %v4871
        %v5132 = vadd.f32 %v3992, %v4873
        %v5133 = vadd.f32 %v3993, %v5075
        %v5134 = vadd.f32 %v3994, %v4875
        %v5135 = vadd.f32 %v3995, %v4877
        %v5136 = vadd.f32 %v3996, %v5078
        %v5137 = vadd.f32 %v3997, %v4881
        %v5138 = vadd.f32 %v3998, %v4883
        %v5139 = vadd.f32 %v3999, %v5083
        %v5140 = vadd.f32 %v4000, %v4885
        %v5141 = vadd.f32 %v4001, %v4887
        %v5142 = vadd.f32 %v4002, %v5086
        %v5143 = vadd.f32 %v4003, %v4891
        %v5144 = vadd.f32 %v4004, %v4893
        %v5145 = vadd.f32 %v4005, %v5091
        %v5146 = vadd.f32 %v4006, %v4895
        %v5147 = vadd.f32 %v4007, %v4897
        %v5148 = vadd.f32 %v4008, %v5094
        %v5149 = vadd.f32 %v4009, %v4901
        %v5150 = vadd.f32 %v4010, %v4903
        %v5151 = vadd.f32 %v4011, %v5099
        %v5152 = vadd.f32 %v4012, %v4905
        %v5153 = vadd.f32 %v4013, %v4907
        %v5154 = vadd.f32 %v4014, %v5102
        %v5155 = vadd.f32 %v4015, %v4911
        %v5156 = vadd.f32 %v4016, %v4913
        %v5157 = vadd.f32 %v4017, %v5107
        %v5158 = vadd.f32 %v4018, %v4915
        %v5159 = vadd.f32 %v4019, %v4917
        %v5160 = vadd.f32 %v4020, %v5110
        %5161 = vst [vmem:[#allocation2] sm:$0xff] %v5113
        %5162 = vst [vmem:[#allocation2 + $0x8] sm:$0xff] %v5114
        %5163 = vst [vmem:[#allocation2 + $0x10] sm:$0xff] %v5115
        %5164 = vst [vmem:[#allocation2 + $0x18] sm:$0xff] %v5116
        %5165 = vst [vmem:[#allocation2 + $0x20] sm:$0xff] %v5117
        %5166 = vst [vmem:[#allocation2 + $0x28] sm:$0xff] %v5118
        %5167 = vst [vmem:[#allocation2 + $0x30] sm:$0xff] %v5119
        %5168 = vst [vmem:[#allocation2 + $0x38] sm:$0xff] %v5120
        %5169 = vst [vmem:[#allocation2 + $0x40] sm:$0xff] %v5121
        %5170 = vst [vmem:[#allocation2 + $0x48] sm:$0xff] %v5122
        %5171 = vst [vmem:[#allocation2 + $0x50] sm:$0xff] %v5123
        %5172 = vst [vmem:[#allocation2 + $0x58] sm:$0xff] %v5124
        %5173 = vst [vmem:[#allocation2 + $0x60] sm:$0xff] %v5125
        %5174 = vst [vmem:[#allocation2 + $0x68] sm:$0xff] %v5126
        %5175 = vst [vmem:[#allocation2 + $0x70] sm:$0xff] %v5127
        %5176 = vst [vmem:[#allocation2 + $0x78] sm:$0xff] %v5128
        %5177 = vst [vmem:[#allocation2 + $0x80] sm:$0xff] %v5129
        %5178 = vst [vmem:[#allocation2 + $0x88] sm:$0xff] %v5130
        %5179 = vst [vmem:[#allocation2 + $0x90] sm:$0xff] %v5131
        %5180 = vst [vmem:[#allocation2 + $0x98] sm:$0xff] %v5132
        %5181 = vst [vmem:[#allocation2 + $0xa0] sm:$0xff] %v5133
        %5182 = vst [vmem:[#allocation2 + $0xa8] sm:$0xff] %v5134
        %5183 = vst [vmem:[#allocation2 + $0xb0] sm:$0xff] %v5135
        %5184 = vst [vmem:[#allocation2 + $0xb8] sm:$0xff] %v5136
        %5185 = vst [vmem:[#allocation2 + $0xc0] sm:$0xff] %v5137
        %5186 = vst [vmem:[#allocation2 + $0xc8] sm:$0xff] %v5138
        %5187 = vst [vmem:[#allocation2 + $0xd0] sm:$0xff] %v5139
        %5188 = vst [vmem:[#allocation2 + $0xd8] sm:$0xff] %v5140
        %5189 = vst [vmem:[#allocation2 + $0xe0] sm:$0xff] %v5141
        %5190 = vst [vmem:[#allocation2 + $0xe8] sm:$0xff] %v5142
        %5191 = vst [vmem:[#allocation2 + $0xf0] sm:$0xff] %v5143
        %5192 = vst [vmem:[#allocation2 + $0xf8] sm:$0xff] %v5144
        %5193 = vst [vmem:[#allocation2 + $0x100] sm:$0xff] %v5145
        %5194 = vst [vmem:[#allocation2 + $0x108] sm:$0xff] %v5146
        %5195 = vst [vmem:[#allocation2 + $0x110] sm:$0xff] %v5147
        %5196 = vst [vmem:[#allocation2 + $0x118] sm:$0xff] %v5148
        %5197 = vst [vmem:[#allocation2 + $0x120] sm:$0xff] %v5149
        %5198 = vst [vmem:[#allocation2 + $0x128] sm:$0xff] %v5150
        %5199 = vst [vmem:[#allocation2 + $0x130] sm:$0xff] %v5151
        %5200 = vst [vmem:[#allocation2 + $0x138] sm:$0xff] %v5152
        %5201 = vst [vmem:[#allocation2 + $0x140] sm:$0xff] %v5153
        %5202 = vst [vmem:[#allocation2 + $0x148] sm:$0xff] %v5154
        %5203 = vst [vmem:[#allocation2 + $0x150] sm:$0xff] %v5155
        %5204 = vst [vmem:[#allocation2 + $0x158] sm:$0xff] %v5156
        %5205 = vst [vmem:[#allocation2 + $0x160] sm:$0xff] %v5157
        %5206 = vst [vmem:[#allocation2 + $0x168] sm:$0xff] %v5158
        %5207 = vst [vmem:[#allocation2 + $0x170] sm:$0xff] %v5159
        %5208 = vst [vmem:[#allocation2 + $0x178] sm:$0xff] %v5160
        %v5209 = vld [vmem:[#allocation6 + $0x20] sm:$0xff]
        %v5210 = vld [vmem:[#allocation6 + $0x28] sm:$0xff]
        %v5211 = vld [vmem:[#allocation6 + $0x50] sm:$0xff]
        %v5212 = vld [vmem:[#allocation6 + $0x58] sm:$0xff]
        %v5213 = vld [vmem:[#allocation6 + $0x80] sm:$0xff]
        %v5214 = vld [vmem:[#allocation6 + $0x88] sm:$0xff]
        %v5215 = vld [vmem:[#allocation6 + $0xb0] sm:$0xff]
        %v5216 = vld [vmem:[#allocation6 + $0xb8] sm:$0xff]
        %v5217 = vld [vmem:[#allocation6 + $0xe0] sm:$0xff]
        %v5218 = vld [vmem:[#allocation6 + $0xe8] sm:$0xff]
        %v5219 = vld [vmem:[#allocation6 + $0x110] sm:$0xff]
        %v5220 = vld [vmem:[#allocation6 + $0x118] sm:$0xff]
        %v5221 = vld [vmem:[#allocation6 + $0x140] sm:$0xff]
        %v5222 = vld [vmem:[#allocation6 + $0x148] sm:$0xff]
        %v5223 = vld [vmem:[#allocation6 + $0x170] sm:$0xff]
        %v5224 = vld [vmem:[#allocation6 + $0x178] sm:$0xff]
        %v5225 = vld [vmem:[#allocation6 + $0x1a0] sm:$0xff]
        %v5226 = vld [vmem:[#allocation6 + $0x1a8] sm:$0xff]
        %v5227 = vld [vmem:[#allocation6 + $0x1d0] sm:$0xff]
        %v5228 = vld [vmem:[#allocation6 + $0x1d8] sm:$0xff]
        %v5229 = vld [vmem:[#allocation6 + $0x200] sm:$0xff]
        %v5230 = vld [vmem:[#allocation6 + $0x208] sm:$0xff]
        %v5231 = vld [vmem:[#allocation6 + $0x230] sm:$0xff]
        %v5232 = vld [vmem:[#allocation6 + $0x238] sm:$0xff]
        %v5233 = vld [vmem:[#allocation6 + $0x260] sm:$0xff]
        %v5234 = vld [vmem:[#allocation6 + $0x268] sm:$0xff]
        %v5235 = vld [vmem:[#allocation6 + $0x290] sm:$0xff]
        %v5236 = vld [vmem:[#allocation6 + $0x298] sm:$0xff]
        %v5237 = vld [vmem:[#allocation6 + $0x2c0] sm:$0xff]
        %v5238 = vld [vmem:[#allocation6 + $0x2c8] sm:$0xff]
        %v5239 = vld [vmem:[#allocation6 + $0x2f0] sm:$0xff]
        %v5240 = vld [vmem:[#allocation6 + $0x2f8] sm:$0xff]
        %v5241 = vld [vmem:[#allocation6 + $0x320] sm:$0xff]
        %v5242 = vld [vmem:[#allocation6 + $0x328] sm:$0xff]
        %v5243 = vld [vmem:[#allocation6 + $0x350] sm:$0xff]
        %v5244 = vld [vmem:[#allocation6 + $0x358] sm:$0xff]
        %v5245 = vld [vmem:[#allocation6 + $0x380] sm:$0xff]
        %v5246 = vld [vmem:[#allocation6 + $0x388] sm:$0xff]
        %v5247 = vld [vmem:[#allocation6 + $0x3b0] sm:$0xff]
        %v5248 = vld [vmem:[#allocation6 + $0x3b8] sm:$0xff]
        %v5249 = vld [vmem:[#allocation6 + $0x3e0] sm:$0xff]
        %v5250 = vld [vmem:[#allocation6 + $0x3e8] sm:$0xff]
        %v5251 = vld [vmem:[#allocation6 + $0x410] sm:$0xff]
        %v5252 = vld [vmem:[#allocation6 + $0x418] sm:$0xff]
        %v5253 = vld [vmem:[#allocation6 + $0x440] sm:$0xff]
        %v5254 = vld [vmem:[#allocation6 + $0x448] sm:$0xff]
        %v5255 = vld [vmem:[#allocation6 + $0x470] sm:$0xff]
        %v5256 = vld [vmem:[#allocation6 + $0x478] sm:$0xff]
        %v5257 = vld [vmem:[#allocation6 + $0x4a0] sm:$0xff]
        %v5258 = vld [vmem:[#allocation6 + $0x4a8] sm:$0xff]
        %v5259 = vld [vmem:[#allocation6 + $0x4d0] sm:$0xff]
        %v5260 = vld [vmem:[#allocation6 + $0x4d8] sm:$0xff]
        %v5261 = vld [vmem:[#allocation6 + $0x500] sm:$0xff]
        %v5262 = vld [vmem:[#allocation6 + $0x508] sm:$0xff]
        %v5263 = vld [vmem:[#allocation6 + $0x530] sm:$0xff]
        %v5264 = vld [vmem:[#allocation6 + $0x538] sm:$0xff]
        %v5265 = vld [vmem:[#allocation6 + $0x560] sm:$0xff]
        %v5266 = vld [vmem:[#allocation6 + $0x568] sm:$0xff]
        %v5267 = vld [vmem:[#allocation6 + $0x590] sm:$0xff]
        %v5268 = vld [vmem:[#allocation6 + $0x598] sm:$0xff]
        %v5269 = vld [vmem:[#allocation6 + $0x5c0] sm:$0xff]
        %v5270 = vld [vmem:[#allocation6 + $0x5c8] sm:$0xff]
        %v5271 = vld [vmem:[#allocation6 + $0x5f0] sm:$0xff]
        %v5272 = vld [vmem:[#allocation6 + $0x5f8] sm:$0xff]
        %v5273 = vld [vmem:[#allocation6 + $0x620] sm:$0xff]
        %v5274 = vld [vmem:[#allocation6 + $0x628] sm:$0xff]
        %v5275 = vld [vmem:[#allocation6 + $0x650] sm:$0xff]
        %v5276 = vld [vmem:[#allocation6 + $0x658] sm:$0xff]
        %v5277 = vld [vmem:[#allocation6 + $0x680] sm:$0xff]
        %v5278 = vld [vmem:[#allocation6 + $0x688] sm:$0xff]
        %v5279 = vld [vmem:[#allocation6 + $0x6b0] sm:$0xff]
        %v5280 = vld [vmem:[#allocation6 + $0x6b8] sm:$0xff]
        %v5281 = vld [vmem:[#allocation6 + $0x6e0] sm:$0xff]
        %v5282 = vld [vmem:[#allocation6 + $0x6e8] sm:$0xff]
        %v5283 = vld [vmem:[#allocation6 + $0x710] sm:$0xff]
        %v5284 = vld [vmem:[#allocation6 + $0x718] sm:$0xff]
        %v5285 = vld [vmem:[#allocation6 + $0x740] sm:$0xff]
        %v5286 = vld [vmem:[#allocation6 + $0x748] sm:$0xff]
        %v5287 = vld [vmem:[#allocation6 + $0x770] sm:$0xff]
        %v5288 = vld [vmem:[#allocation6 + $0x778] sm:$0xff]
        %v5289 = vld [vmem:[#allocation6 + $0x7a0] sm:$0xff]
        %v5290 = vld [vmem:[#allocation6 + $0x7a8] sm:$0xff]
        %v5291 = vld [vmem:[#allocation6 + $0x7d0] sm:$0xff]
        %v5292 = vld [vmem:[#allocation6 + $0x7d8] sm:$0xff]
        %v5293 = vld [vmem:[#allocation6 + $0x800] sm:$0xff]
        %v5294 = vld [vmem:[#allocation6 + $0x808] sm:$0xff]
        %v5295 = vld [vmem:[#allocation6 + $0x830] sm:$0xff]
        %v5296 = vld [vmem:[#allocation6 + $0x838] sm:$0xff]
        %v5297 = vld [vmem:[#allocation6 + $0x860] sm:$0xff]
        %v5298 = vld [vmem:[#allocation6 + $0x868] sm:$0xff]
        %v5299 = vld [vmem:[#allocation6 + $0x890] sm:$0xff]
        %v5300 = vld [vmem:[#allocation6 + $0x898] sm:$0xff]
        %v5301 = vld [vmem:[#allocation6 + $0x8c0] sm:$0xff]
        %v5302 = vld [vmem:[#allocation6 + $0x8c8] sm:$0xff]
        %v5303 = vld [vmem:[#allocation6 + $0x8f0] sm:$0xff]
        %v5304 = vld [vmem:[#allocation6 + $0x8f8] sm:$0xff]
        %v5305 = vld [vmem:[#allocation8 + $0x8] sm:$0xf]
        %v5307 = vlaneseq
        %v5308 = vshrl.u32 %v5307, 7
        %v5309 = vsub.s32 0, %v5308
        %v5310 = vrot.slane %v5305, %v5309
        %v5311 = vlaneseq
        %v5312 = vshrl.u32 %v5311, 7
        %v5313 = vsub.s32 1, %v5312
        %v5314 = vrot.slane %v5305, %v5313
        %v5315 = vlaneseq
        %v5316 = vshrl.u32 %v5315, 7
        %v5317 = vsub.s32 2, %v5316
        %v5318 = vrot.slane %v5305, %v5317
        %v5319 = vlaneseq
        %v5320 = vshrl.u32 %v5319, 7
        %v5321 = vsub.s32 3, %v5320
        %v5322 = vrot.slane %v5305, %v5321
        %v5423 = vunpack.c.l.b16 %v5209
        %v5424 = vunpack.c.h.b16 %v5209
        %v5425 = vunpack.c.l.b16 %v5210
        %v5426 = vunpack.c.h.b16 %v5210
        %v5427 = vunpack.c.l.b16 %v5211
        %v5428 = vunpack.c.h.b16 %v5211
        %v5429 = vunpack.c.l.b16 %v5212
        %v5430 = vunpack.c.h.b16 %v5212
        %v5431 = vunpack.c.l.b16 %v5213
        %v5432 = vunpack.c.h.b16 %v5213
        %v5433 = vunpack.c.l.b16 %v5214
        %v5434 = vunpack.c.h.b16 %v5214
        %v5435 = vunpack.c.l.b16 %v5215
        %v5436 = vunpack.c.h.b16 %v5215
        %v5437 = vunpack.c.l.b16 %v5216
        %v5438 = vunpack.c.h.b16 %v5216
        %v5439 = vunpack.c.l.b16 %v5217
        %v5440 = vunpack.c.h.b16 %v5217
        %v5441 = vunpack.c.l.b16 %v5218
        %v5442 = vunpack.c.h.b16 %v5218
        %v5443 = vunpack.c.l.b16 %v5219
        %v5444 = vunpack.c.h.b16 %v5219
        %v5445 = vunpack.c.l.b16 %v5220
        %v5446 = vunpack.c.h.b16 %v5220
        %v5447 = vunpack.c.l.b16 %v5221
        %v5448 = vunpack.c.h.b16 %v5221
        %v5449 = vunpack.c.l.b16 %v5222
        %v5450 = vunpack.c.h.b16 %v5222
        %v5451 = vunpack.c.l.b16 %v5223
        %v5452 = vunpack.c.h.b16 %v5223
        %v5453 = vunpack.c.l.b16 %v5224
        %v5454 = vunpack.c.h.b16 %v5224
        %v5455 = vunpack.c.l.b16 %v5225
        %v5456 = vunpack.c.h.b16 %v5225
        %v5457 = vunpack.c.l.b16 %v5226
        %v5458 = vunpack.c.h.b16 %v5226
        %v5459 = vunpack.c.l.b16 %v5227
        %v5460 = vunpack.c.h.b16 %v5227
        %v5461 = vunpack.c.l.b16 %v5228
        %v5462 = vunpack.c.h.b16 %v5228
        %v5463 = vunpack.c.l.b16 %v5229
        %v5464 = vunpack.c.h.b16 %v5229
        %v5465 = vunpack.c.l.b16 %v5230
        %v5466 = vunpack.c.h.b16 %v5230
        %v5467 = vunpack.c.l.b16 %v5231
        %v5468 = vunpack.c.h.b16 %v5231
        %v5469 = vunpack.c.l.b16 %v5232
        %v5470 = vunpack.c.h.b16 %v5232
        %v5471 = vunpack.c.l.b16 %v5233
        %v5472 = vunpack.c.h.b16 %v5233
        %v5473 = vunpack.c.l.b16 %v5234
        %v5474 = vunpack.c.h.b16 %v5234
        %v5475 = vunpack.c.l.b16 %v5235
        %v5476 = vunpack.c.h.b16 %v5235
        %v5477 = vunpack.c.l.b16 %v5236
        %v5478 = vunpack.c.h.b16 %v5236
        %v5479 = vunpack.c.l.b16 %v5237
        %v5480 = vunpack.c.h.b16 %v5237
        %v5481 = vunpack.c.l.b16 %v5238
        %v5482 = vunpack.c.h.b16 %v5238
        %v5483 = vunpack.c.l.b16 %v5239
        %v5484 = vunpack.c.h.b16 %v5239
        %v5485 = vunpack.c.l.b16 %v5240
        %v5486 = vunpack.c.h.b16 %v5240
        %v5487 = vunpack.c.l.b16 %v5241
        %v5488 = vunpack.c.h.b16 %v5241
        %v5489 = vunpack.c.l.b16 %v5242
        %v5490 = vunpack.c.h.b16 %v5242
        %v5491 = vunpack.c.l.b16 %v5243
        %v5492 = vunpack.c.h.b16 %v5243
        %v5493 = vunpack.c.l.b16 %v5244
        %v5494 = vunpack.c.h.b16 %v5244
        %v5495 = vunpack.c.l.b16 %v5245
        %v5496 = vunpack.c.h.b16 %v5245
        %v5497 = vunpack.c.l.b16 %v5246
        %v5498 = vunpack.c.h.b16 %v5246
        %v5499 = vunpack.c.l.b16 %v5247
        %v5500 = vunpack.c.h.b16 %v5247
        %v5501 = vunpack.c.l.b16 %v5248
        %v5502 = vunpack.c.h.b16 %v5248
        %v5503 = vunpack.c.l.b16 %v5249
        %v5504 = vunpack.c.h.b16 %v5249
        %v5505 = vunpack.c.l.b16 %v5250
        %v5506 = vunpack.c.h.b16 %v5250
        %v5507 = vunpack.c.l.b16 %v5251
        %v5508 = vunpack.c.h.b16 %v5251
        %v5509 = vunpack.c.l.b16 %v5252
        %v5510 = vunpack.c.h.b16 %v5252
        %v5511 = vunpack.c.l.b16 %v5253
        %v5512 = vunpack.c.h.b16 %v5253
        %v5513 = vunpack.c.l.b16 %v5254
        %v5514 = vunpack.c.h.b16 %v5254
        %v5515 = vunpack.c.l.b16 %v5255
        %v5516 = vunpack.c.h.b16 %v5255
        %v5517 = vunpack.c.l.b16 %v5256
        %v5518 = vunpack.c.h.b16 %v5256
        %v5519 = vunpack.c.l.b16 %v5257
        %v5520 = vunpack.c.h.b16 %v5257
        %v5521 = vunpack.c.l.b16 %v5258
        %v5522 = vunpack.c.h.b16 %v5258
        %v5523 = vunpack.c.l.b16 %v5259
        %v5524 = vunpack.c.h.b16 %v5259
        %v5525 = vunpack.c.l.b16 %v5260
        %v5526 = vunpack.c.h.b16 %v5260
        %v5527 = vunpack.c.l.b16 %v5261
        %v5528 = vunpack.c.h.b16 %v5261
        %v5529 = vunpack.c.l.b16 %v5262
        %v5530 = vunpack.c.h.b16 %v5262
        %v5531 = vunpack.c.l.b16 %v5263
        %v5532 = vunpack.c.h.b16 %v5263
        %v5533 = vunpack.c.l.b16 %v5264
        %v5534 = vunpack.c.h.b16 %v5264
        %v5535 = vunpack.c.l.b16 %v5265
        %v5536 = vunpack.c.h.b16 %v5265
        %v5537 = vunpack.c.l.b16 %v5266
        %v5538 = vunpack.c.h.b16 %v5266
        %v5539 = vunpack.c.l.b16 %v5267
        %v5540 = vunpack.c.h.b16 %v5267
        %v5541 = vunpack.c.l.b16 %v5268
        %v5542 = vunpack.c.h.b16 %v5268
        %v5543 = vunpack.c.l.b16 %v5269
        %v5544 = vunpack.c.h.b16 %v5269
        %v5545 = vunpack.c.l.b16 %v5270
        %v5546 = vunpack.c.h.b16 %v5270
        %v5547 = vunpack.c.l.b16 %v5271
        %v5548 = vunpack.c.h.b16 %v5271
        %v5549 = vunpack.c.l.b16 %v5272
        %v5550 = vunpack.c.h.b16 %v5272
        %v5551 = vunpack.c.l.b16 %v5273
        %v5552 = vunpack.c.h.b16 %v5273
        %v5553 = vunpack.c.l.b16 %v5274
        %v5554 = vunpack.c.h.b16 %v5274
        %v5555 = vunpack.c.l.b16 %v5275
        %v5556 = vunpack.c.h.b16 %v5275
        %v5557 = vunpack.c.l.b16 %v5276
        %v5558 = vunpack.c.h.b16 %v5276
        %v5559 = vunpack.c.l.b16 %v5277
        %v5560 = vunpack.c.h.b16 %v5277
        %v5561 = vunpack.c.l.b16 %v5278
        %v5562 = vunpack.c.h.b16 %v5278
        %v5563 = vunpack.c.l.b16 %v5279
        %v5564 = vunpack.c.h.b16 %v5279
        %v5565 = vunpack.c.l.b16 %v5280
        %v5566 = vunpack.c.h.b16 %v5280
        %v5567 = vunpack.c.l.b16 %v5281
        %v5568 = vunpack.c.h.b16 %v5281
        %v5569 = vunpack.c.l.b16 %v5282
        %v5570 = vunpack.c.h.b16 %v5282
        %v5571 = vunpack.c.l.b16 %v5283
        %v5572 = vunpack.c.h.b16 %v5283
        %v5573 = vunpack.c.l.b16 %v5284
        %v5574 = vunpack.c.h.b16 %v5284
        %v5575 = vunpack.c.l.b16 %v5285
        %v5576 = vunpack.c.h.b16 %v5285
        %v5577 = vunpack.c.l.b16 %v5286
        %v5578 = vunpack.c.h.b16 %v5286
        %v5579 = vunpack.c.l.b16 %v5287
        %v5580 = vunpack.c.h.b16 %v5287
        %v5581 = vunpack.c.l.b16 %v5288
        %v5582 = vunpack.c.h.b16 %v5288
        %v5583 = vunpack.c.l.b16 %v5289
        %v5584 = vunpack.c.h.b16 %v5289
        %v5585 = vunpack.c.l.b16 %v5290
        %v5586 = vunpack.c.h.b16 %v5290
        %v5587 = vunpack.c.l.b16 %v5291
        %v5588 = vunpack.c.h.b16 %v5291
        %v5589 = vunpack.c.l.b16 %v5292
        %v5590 = vunpack.c.h.b16 %v5292
        %v5591 = vunpack.c.l.b16 %v5293
        %v5592 = vunpack.c.h.b16 %v5293
        %v5593 = vunpack.c.l.b16 %v5294
        %v5594 = vunpack.c.h.b16 %v5294
        %v5595 = vunpack.c.l.b16 %v5295
        %v5596 = vunpack.c.h.b16 %v5295
        %v5597 = vunpack.c.l.b16 %v5296
        %v5598 = vunpack.c.h.b16 %v5296
        %v5599 = vunpack.c.l.b16 %v5297
        %v5600 = vunpack.c.h.b16 %v5297
        %v5601 = vunpack.c.l.b16 %v5298
        %v5602 = vunpack.c.h.b16 %v5298
        %v5603 = vunpack.c.l.b16 %v5299
        %v5604 = vunpack.c.h.b16 %v5299
        %v5605 = vunpack.c.l.b16 %v5300
        %v5606 = vunpack.c.h.b16 %v5300
        %v5607 = vunpack.c.l.b16 %v5301
        %v5608 = vunpack.c.h.b16 %v5301
        %v5609 = vunpack.c.l.b16 %v5302
        %v5610 = vunpack.c.h.b16 %v5302
        %v5611 = vunpack.c.l.b16 %v5303
        %v5612 = vunpack.c.h.b16 %v5303
        %v5613 = vunpack.c.l.b16 %v5304
        %v5614 = vunpack.c.h.b16 %v5304
        %v5615 = vpack.c.b16 %v5427, %v5423
        %v5616 = vpack.c.b16 %v5428, %v5424
        %v5617 = vpack.c.b16 %v5429, %v5425
        %v5618 = vpack.c.b16 %v5430, %v5426
        %v5619 = vpack.c.b16 %v5435, %v5431
        %v5620 = vpack.c.b16 %v5436, %v5432
        %v5621 = vpack.c.b16 %v5437, %v5433
        %v5622 = vpack.c.b16 %v5438, %v5434
        %v5623 = vpack.c.b16 %v5443, %v5439
        %v5624 = vpack.c.b16 %v5444, %v5440
        %v5625 = vpack.c.b16 %v5445, %v5441
        %v5626 = vpack.c.b16 %v5446, %v5442
        %v5627 = vpack.c.b16 %v5451, %v5447
        %v5628 = vpack.c.b16 %v5452, %v5448
        %v5629 = vpack.c.b16 %v5453, %v5449
        %v5630 = vpack.c.b16 %v5454, %v5450
        %v5631 = vpack.c.b16 %v5459, %v5455
        %v5632 = vpack.c.b16 %v5460, %v5456
        %v5633 = vpack.c.b16 %v5461, %v5457
        %v5634 = vpack.c.b16 %v5462, %v5458
        %v5635 = vpack.c.b16 %v5467, %v5463
        %v5636 = vpack.c.b16 %v5468, %v5464
        %v5637 = vpack.c.b16 %v5469, %v5465
        %v5638 = vpack.c.b16 %v5470, %v5466
        %v5639 = vpack.c.b16 %v5475, %v5471
        %v5640 = vpack.c.b16 %v5476, %v5472
        %v5641 = vpack.c.b16 %v5477, %v5473
        %v5642 = vpack.c.b16 %v5478, %v5474
        %v5643 = vpack.c.b16 %v5483, %v5479
        %v5644 = vpack.c.b16 %v5484, %v5480
        %v5645 = vpack.c.b16 %v5485, %v5481
        %v5646 = vpack.c.b16 %v5486, %v5482
        %v5647 = vpack.c.b16 %v5491, %v5487
        %v5648 = vpack.c.b16 %v5492, %v5488
        %v5649 = vpack.c.b16 %v5493, %v5489
        %v5650 = vpack.c.b16 %v5494, %v5490
        %v5651 = vpack.c.b16 %v5499, %v5495
        %v5652 = vpack.c.b16 %v5500, %v5496
        %v5653 = vpack.c.b16 %v5501, %v5497
        %v5654 = vpack.c.b16 %v5502, %v5498
        %v5655 = vpack.c.b16 %v5507, %v5503
        %v5656 = vpack.c.b16 %v5508, %v5504
        %v5657 = vpack.c.b16 %v5509, %v5505
        %v5658 = vpack.c.b16 %v5510, %v5506
        %v5659 = vpack.c.b16 %v5515, %v5511
        %v5660 = vpack.c.b16 %v5516, %v5512
        %v5661 = vpack.c.b16 %v5517, %v5513
        %v5662 = vpack.c.b16 %v5518, %v5514
        %v5663 = vpack.c.b16 %v5523, %v5519
        %v5664 = vpack.c.b16 %v5524, %v5520
        %v5665 = vpack.c.b16 %v5525, %v5521
        %v5666 = vpack.c.b16 %v5526, %v5522
        %v5667 = vpack.c.b16 %v5531, %v5527
        %v5668 = vpack.c.b16 %v5532, %v5528
        %v5669 = vpack.c.b16 %v5533, %v5529
        %v5670 = vpack.c.b16 %v5534, %v5530
        %v5671 = vpack.c.b16 %v5539, %v5535
        %v5672 = vpack.c.b16 %v5540, %v5536
        %v5673 = vpack.c.b16 %v5541, %v5537
        %v5674 = vpack.c.b16 %v5542, %v5538
        %v5675 = vpack.c.b16 %v5547, %v5543
        %v5676 = vpack.c.b16 %v5548, %v5544
        %v5677 = vpack.c.b16 %v5549, %v5545
        %v5678 = vpack.c.b16 %v5550, %v5546
        %v5679 = vpack.c.b16 %v5555, %v5551
        %v5680 = vpack.c.b16 %v5556, %v5552
        %v5681 = vpack.c.b16 %v5557, %v5553
        %v5682 = vpack.c.b16 %v5558, %v5554
        %v5683 = vpack.c.b16 %v5563, %v5559
        %v5684 = vpack.c.b16 %v5564, %v5560
        %v5685 = vpack.c.b16 %v5565, %v5561
        %v5686 = vpack.c.b16 %v5566, %v5562
        %v5687 = vpack.c.b16 %v5571, %v5567
        %v5688 = vpack.c.b16 %v5572, %v5568
        %v5689 = vpack.c.b16 %v5573, %v5569
        %v5690 = vpack.c.b16 %v5574, %v5570
        %v5691 = vpack.c.b16 %v5579, %v5575
        %v5692 = vpack.c.b16 %v5580, %v5576
        %v5693 = vpack.c.b16 %v5581, %v5577
        %v5694 = vpack.c.b16 %v5582, %v5578
        %v5695 = vpack.c.b16 %v5587, %v5583
        %v5696 = vpack.c.b16 %v5588, %v5584
        %v5697 = vpack.c.b16 %v5589, %v5585
        %v5698 = vpack.c.b16 %v5590, %v5586
        %v5699 = vpack.c.b16 %v5595, %v5591
        %v5700 = vpack.c.b16 %v5596, %v5592
        %v5701 = vpack.c.b16 %v5597, %v5593
        %v5702 = vpack.c.b16 %v5598, %v5594
        %v5703 = vpack.c.b16 %v5603, %v5599
        %v5704 = vpack.c.b16 %v5604, %v5600
        %v5705 = vpack.c.b16 %v5605, %v5601
        %v5706 = vpack.c.b16 %v5606, %v5602
        %v5707 = vpack.c.b16 %v5611, %v5607
        %v5708 = vpack.c.b16 %v5612, %v5608
        %v5709 = vpack.c.b16 %v5613, %v5609
        %v5710 = vpack.c.b16 %v5614, %v5610
        %5807 = vmatprep.subr.bf16.mxu0 %v5616
        %5808 = vmatpush1.bf16.msra.mxu0 %v5615
        %5809 = vmatprep.subr.bf16.mxu0 %v5620
        %5810 = vmatpush1.bf16.msra.mxu0 %v5619
        %5811 = vmatprep.subr.bf16.mxu0 %v5624
        %5812 = vmatpush1.bf16.msra.mxu0 %v5623
        %5813 = vmatprep.subr.bf16.mxu0 %v5628
        %5814 = vmatpush1.bf16.msra.mxu0 %v5627
        %5815 = vmatprep.subr.bf16.mxu0 %v5632
        %5816 = vmatpush1.bf16.msra.mxu0 %v5631
        %5817 = vmatprep.subr.bf16.mxu0 %v5636
        %5818 = vmatpush1.bf16.msra.mxu0 %v5635
        %5819 = vmatprep.subr.bf16.mxu0 %v5640
        %5820 = vmatpush1.bf16.msra.mxu0 %v5639
        %5821 = vmatprep.subr.bf16.mxu0 %v5644
        %5822 = vmatpush1.bf16.msra.mxu0 %v5643
        %5823 = vmatprep.subr.bf16.mxu0 %v5648
        %5824 = vmatpush1.bf16.msra.mxu0 %v5647
        %5825 = vmatprep.subr.bf16.mxu0 %v5652
        %5826 = vmatpush1.bf16.msra.mxu0 %v5651
        %5827 = vmatprep.subr.bf16.mxu0 %v5656
        %5828 = vmatpush1.bf16.msra.mxu0 %v5655
        %5829 = vmatprep.subr.bf16.mxu0 %v5660
        %5830 = vmatpush1.bf16.msra.mxu0 %v5659
        %5831 = vmatprep.subr.bf16.mxu0 %v5664
        %5832 = vmatpush1.bf16.msra.mxu0 %v5663
        %5833 = vmatprep.subr.bf16.mxu0 %v5668
        %5834 = vmatpush1.bf16.msra.mxu0 %v5667
        %5835 = vmatprep.subr.bf16.mxu0 %v5672
        %5836 = vmatpush1.bf16.msra.mxu0 %v5671
        %5837 = vmatprep.subr.bf16.mxu0 %v5676
        %5838 = vmatpush1.bf16.msra.mxu0 %v5675
        %5839 = vmatprep.mubr.bf16.mxu0 %v580
        %5840 = vmatmul.mubr.bf16.gmra.mrb[0].mxu0 %v579
        %v5841 = vpop.f32.mrb[0].mxu0
        %v5842 = vadd.f32 %v5310, %v5841
        %v5843 = vpop.f32.mrb[0].mxu0
        %v5844 = vadd.f32 %v5314, %v5843
        %v5845 = vpop.f32.mrb[0].mxu0
        %v5846 = vadd.f32 %v5310, %v5845
        %v5847 = vpop.f32.mrb[0].mxu0
        %v5848 = vadd.f32 %v5314, %v5847
        %5849 = vmatprep.mubr.bf16.mxu0 %v583
        %5850 = vmatmul.mubr.bf16.gmra.mrb[0].mxu0 %v582
        %v5851 = vpop.f32.mrb[0].mxu0
        %v5852 = vadd.f32 %v5310, %v5851
        %v5853 = vpop.f32.mrb[0].mxu0
        %v5854 = vadd.f32 %v5314, %v5853
        %v5855 = vpop.f32.mrb[0].mxu0
        %v5856 = vadd.f32 %v5310, %v5855
        %v5857 = vpop.f32.mrb[0].mxu0
        %v5858 = vadd.f32 %v5314, %v5857
        %5859 = vmatprep.mubr.bf16.mxu0 %v586
        %5860 = vmatmul.mubr.bf16.gmra.mrb[0].mxu0 %v585
        %v5861 = vpop.f32.mrb[0].mxu0
        %v5862 = vadd.f32 %v5310, %v5861
        %v5863 = vpop.f32.mrb[0].mxu0
        %v5864 = vadd.f32 %v5314, %v5863
        %v5865 = vpop.f32.mrb[0].mxu0
        %v5866 = vadd.f32 %v5310, %v5865
        %v5867 = vpop.f32.mrb[0].mxu0
        %v5868 = vadd.f32 %v5314, %v5867
        %5869 = vmatprep.mubr.bf16.mxu0 %v589
        %5870 = vmatmul.mubr.bf16.gmra.mrb[0].mxu0 %v588
        %v5871 = vpop.f32.mrb[0].mxu0
        %v5872 = vadd.f32 %v5310, %v5871
        %v5873 = vpop.f32.mrb[0].mxu0
        %v5874 = vadd.f32 %v5314, %v5873
        %v5875 = vpop.f32.mrb[0].mxu0
        %v5876 = vadd.f32 %v5310, %v5875
        %v5877 = vpop.f32.mrb[0].mxu0
        %v5878 = vadd.f32 %v5314, %v5877
        %5879 = vmatprep.mubr.bf16.mxu0 %v592
        %5880 = vmatmul.mubr.bf16.gmra.mrb[0].mxu0 %v591
        %v5881 = vpop.f32.mrb[0].mxu0
        %v5882 = vadd.f32 %v5310, %v5881
        %v5883 = vpop.f32.mrb[0].mxu0
        %v5884 = vadd.f32 %v5314, %v5883
        %v5885 = vpop.f32.mrb[0].mxu0
        %v5886 = vadd.f32 %v5310, %v5885
        %v5887 = vpop.f32.mrb[0].mxu0
        %v5888 = vadd.f32 %v5314, %v5887
        %5889 = vmatprep.mubr.bf16.mxu0 %v595
        %5890 = vmatmul.mubr.bf16.gmra.mrb[0].mxu0 %v594
        %v5891 = vpop.f32.mrb[0].mxu0
        %v5892 = vadd.f32 %v5310, %v5891
        %v5893 = vpop.f32.mrb[0].mxu0
        %v5894 = vadd.f32 %v5314, %v5893
        %v5895 = vpop.f32.mrb[0].mxu0
        %v5896 = vadd.f32 %v5310, %v5895
        %v5897 = vpop.f32.mrb[0].mxu0
        %v5898 = vadd.f32 %v5314, %v5897
        %5899 = vmatprep.mubr.bf16.mxu0 %v598
        %5900 = vmatmul.mubr.bf16.gmra.mrb[0].mxu0 %v597
        %v5901 = vpop.f32.mrb[0].mxu0
        %v5902 = vadd.f32 %v5310, %v5901
        %v5903 = vpop.f32.mrb[0].mxu0
        %v5904 = vadd.f32 %v5314, %v5903
        %v5905 = vpop.f32.mrb[0].mxu0
        %v5906 = vadd.f32 %v5310, %v5905
        %v5907 = vpop.f32.mrb[0].mxu0
        %v5908 = vadd.f32 %v5314, %v5907
        %5909 = vmatprep.mubr.bf16.mxu0 %v601
        %5910 = vmatmul.mubr.bf16.gmra.mrb[0].mxu0 %v600
        %v5911 = vpop.f32.mrb[0].mxu0
        %v5912 = vadd.f32 %v5310, %v5911
        %v5913 = vpop.f32.mrb[0].mxu0
        %v5914 = vadd.f32 %v5314, %v5913
        %v5915 = vpop.f32.mrb[0].mxu0
        %v5916 = vadd.f32 %v5310, %v5915
        %v5917 = vpop.f32.mrb[0].mxu0
        %v5918 = vadd.f32 %v5314, %v5917
        %5919 = vdwg.mxu0
        %5920 = vmatprep.subr.bf16.mxu0 %v5680
        %5921 = vmatpush1.bf16.msra.mxu0 %v5679
        %5922 = vmatprep.subr.bf16.mxu0 %v5684
        %5923 = vmatpush1.bf16.msra.mxu0 %v5683
        %5924 = vmatprep.subr.bf16.mxu0 %v5688
        %5925 = vmatpush1.bf16.msra.mxu0 %v5687
        %5926 = vmatprep.subr.bf16.mxu0 %v5692
        %5927 = vmatpush1.bf16.msra.mxu0 %v5691
        %5928 = vmatprep.subr.bf16.mxu0 %v5696
        %5929 = vmatpush1.bf16.msra.mxu0 %v5695
        %5930 = vmatprep.subr.bf16.mxu0 %v5700
        %5931 = vmatpush1.bf16.msra.mxu0 %v5699
        %5932 = vmatprep.subr.bf16.mxu0 %v5704
        %5933 = vmatpush1.bf16.msra.mxu0 %v5703
        %5934 = vmatprep.subr.bf16.mxu0 %v5708
        %5935 = vmatpush1.bf16.msra.mxu0 %v5707
        %5936 = vmatprep.subr.bf16.mxu0 0
        %5937 = vmatpush1.bf16.msra.mxu0 0
        %5938 = vmatprep.subr.bf16.mxu0 0
        %5939 = vmatpush1.bf16.msra.mxu0 0
        %5940 = vmatprep.subr.bf16.mxu0 0
        %5941 = vmatpush1.bf16.msra.mxu0 0
        %5942 = vmatprep.subr.bf16.mxu0 0
        %5943 = vmatpush1.bf16.msra.mxu0 0
        %5944 = vmatprep.subr.bf16.mxu0 0
        %5945 = vmatpush1.bf16.msra.mxu0 0
        %5946 = vmatprep.subr.bf16.mxu0 0
        %5947 = vmatpush1.bf16.msra.mxu0 0
        %5948 = vmatprep.subr.bf16.mxu0 0
        %5949 = vmatpush1.bf16.msra.mxu0 0
        %5950 = vmatprep.subr.bf16.mxu0 0
        %5951 = vmatpush1.bf16.msra.mxu0 0
        %5952 = vmatprep.mubr.bf16.mxu0 0
        %5953 = vmatmul.mubr.bf16.gmra.mrb[0].mxu0 %v581
        %v5954 = vpop.f32.mrb[0].mxu0
        %v5955 = vadd.f32 %v5842, %v5954
        %v5956 = vpop.f32.mrb[0].mxu0
        %v5957 = vadd.f32 %v5844, %v5956
        %v5958 = vpop.f32.mrb[0].mxu0
        %v5959 = vadd.f32 %v5846, %v5958
        %v5960 = vpop.f32.mrb[0].mxu0
        %v5961 = vadd.f32 %v5848, %v5960
        %5962 = vmatprep.mubr.bf16.mxu0 0
        %5963 = vmatmul.mubr.bf16.gmra.mrb[0].mxu0 %v584
        %v5964 = vpop.f32.mrb[0].mxu0
        %v5965 = vadd.f32 %v5852, %v5964
        %v5966 = vpop.f32.mrb[0].mxu0
        %v5967 = vadd.f32 %v5854, %v5966
        %v5968 = vpop.f32.mrb[0].mxu0
        %v5969 = vadd.f32 %v5856, %v5968
        %v5970 = vpop.f32.mrb[0].mxu0
        %v5971 = vadd.f32 %v5858, %v5970
        %5972 = vmatprep.mubr.bf16.mxu0 0
        %5973 = vmatmul.mubr.bf16.gmra.mrb[0].mxu0 %v587
        %v5974 = vpop.f32.mrb[0].mxu0
        %v5975 = vadd.f32 %v5862, %v5974
        %v5976 = vpop.f32.mrb[0].mxu0
        %v5977 = vadd.f32 %v5864, %v5976
        %v5978 = vpop.f32.mrb[0].mxu0
        %v5979 = vadd.f32 %v5866, %v5978
        %v5980 = vpop.f32.mrb[0].mxu0
        %v5981 = vadd.f32 %v5868, %v5980
        %5982 = vmatprep.mubr.bf16.mxu0 0
        %5983 = vmatmul.mubr.bf16.gmra.mrb[0].mxu0 %v590
        %v5984 = vpop.f32.mrb[0].mxu0
        %v5985 = vadd.f32 %v5872, %v5984
        %v5986 = vpop.f32.mrb[0].mxu0
        %v5987 = vadd.f32 %v5874, %v5986
        %v5988 = vpop.f32.mrb[0].mxu0
        %v5989 = vadd.f32 %v5876, %v5988
        %v5990 = vpop.f32.mrb[0].mxu0
        %v5991 = vadd.f32 %v5878, %v5990
        %5992 = vmatprep.mubr.bf16.mxu0 0
        %5993 = vmatmul.mubr.bf16.gmra.mrb[0].mxu0 %v593
        %v5994 = vpop.f32.mrb[0].mxu0
        %v5995 = vadd.f32 %v5882, %v5994
        %v5996 = vpop.f32.mrb[0].mxu0
        %v5997 = vadd.f32 %v5884, %v5996
        %v5998 = vpop.f32.mrb[0].mxu0
        %v5999 = vadd.f32 %v5886, %v5998
        %v6000 = vpop.f32.mrb[0].mxu0
        %v6001 = vadd.f32 %v5888, %v6000
        %6002 = vmatprep.mubr.bf16.mxu0 0
        %6003 = vmatmul.mubr.bf16.gmra.mrb[0].mxu0 %v596
        %v6004 = vpop.f32.mrb[0].mxu0
        %v6005 = vadd.f32 %v5892, %v6004
        %v6006 = vpop.f32.mrb[0].mxu0
        %v6007 = vadd.f32 %v5894, %v6006
        %v6008 = vpop.f32.mrb[0].mxu0
        %v6009 = vadd.f32 %v5896, %v6008
        %v6010 = vpop.f32.mrb[0].mxu0
        %v6011 = vadd.f32 %v5898, %v6010
        %6012 = vmatprep.mubr.bf16.mxu0 0
        %6013 = vmatmul.mubr.bf16.gmra.mrb[0].mxu0 %v599
        %v6014 = vpop.f32.mrb[0].mxu0
        %v6015 = vadd.f32 %v5902, %v6014
        %v6016 = vpop.f32.mrb[0].mxu0
        %v6017 = vadd.f32 %v5904, %v6016
        %v6018 = vpop.f32.mrb[0].mxu0
        %v6019 = vadd.f32 %v5906, %v6018
        %v6020 = vpop.f32.mrb[0].mxu0
        %v6021 = vadd.f32 %v5908, %v6020
        %6022 = vmatprep.mubr.bf16.mxu0 0
        %6023 = vmatmul.mubr.bf16.gmra.mrb[0].mxu0 %v602
        %v6024 = vpop.f32.mrb[0].mxu0
        %v6025 = vadd.f32 %v5912, %v6024
        %v6026 = vpop.f32.mrb[0].mxu0
        %v6027 = vadd.f32 %v5914, %v6026
        %v6028 = vpop.f32.mrb[0].mxu0
        %v6029 = vadd.f32 %v5916, %v6028
        %v6030 = vpop.f32.mrb[0].mxu0
        %v6031 = vadd.f32 %v5918, %v6030
        %6032 = vdwg.mxu0
        %6033 = vmatprep.subr.bf16.mxu0 %v5618
        %6034 = vmatpush1.bf16.msra.mxu0 %v5617
        %6035 = vmatprep.subr.bf16.mxu0 %v5622
        %6036 = vmatpush1.bf16.msra.mxu0 %v5621
        %6037 = vmatprep.subr.bf16.mxu0 %v5626
        %6038 = vmatpush1.bf16.msra.mxu0 %v5625
        %6039 = vmatprep.subr.bf16.mxu0 %v5630
        %6040 = vmatpush1.bf16.msra.mxu0 %v5629
        %6041 = vmatprep.subr.bf16.mxu0 %v5634
        %6042 = vmatpush1.bf16.msra.mxu0 %v5633
        %6043 = vmatprep.subr.bf16.mxu0 %v5638
        %6044 = vmatpush1.bf16.msra.mxu0 %v5637
        %6045 = vmatprep.subr.bf16.mxu0 %v5642
        %6046 = vmatpush1.bf16.msra.mxu0 %v5641
        %6047 = vmatprep.subr.bf16.mxu0 %v5646
        %6048 = vmatpush1.bf16.msra.mxu0 %v5645
        %6049 = vmatprep.subr.bf16.mxu0 %v5650
        %6050 = vmatpush1.bf16.msra.mxu0 %v5649
        %6051 = vmatprep.subr.bf16.mxu0 %v5654
        %6052 = vmatpush1.bf16.msra.mxu0 %v5653
        %6053 = vmatprep.subr.bf16.mxu0 %v5658
        %6054 = vmatpush1.bf16.msra.mxu0 %v5657
        %6055 = vmatprep.subr.bf16.mxu0 %v5662
        %6056 = vmatpush1.bf16.msra.mxu0 %v5661
        %6057 = vmatprep.subr.bf16.mxu0 %v5666
        %6058 = vmatpush1.bf16.msra.mxu0 %v5665
        %6059 = vmatprep.subr.bf16.mxu0 %v5670
        %6060 = vmatpush1.bf16.msra.mxu0 %v5669
        %6061 = vmatprep.subr.bf16.mxu0 %v5674
        %6062 = vmatpush1.bf16.msra.mxu0 %v5673
        %6063 = vmatprep.subr.bf16.mxu0 %v5678
        %6064 = vmatpush1.bf16.msra.mxu0 %v5677
        %6065 = vmatprep.mubr.bf16.mxu0 %v580
        %6066 = vmatmul.mubr.bf16.gmra.mrb[0].mxu0 %v579
        %v6067 = vpop.f32.mrb[0].mxu0
        %v6068 = vadd.f32 %v5318, %v6067
        %v6069 = vpop.f32.mrb[0].mxu0
        %v6070 = vadd.f32 %v5322, %v6069
        %v6071 = vpop.f32.mrb[0].mxu0
        %v6072 = vadd.f32 %v5318, %v6071
        %v6073 = vpop.f32.mrb[0].mxu0
        %v6074 = vadd.f32 %v5322, %v6073
        %6075 = vmatprep.mubr.bf16.mxu0 %v583
        %6076 = vmatmul.mubr.bf16.gmra.mrb[0].mxu0 %v582
        %v6077 = vpop.f32.mrb[0].mxu0
        %v6078 = vadd.f32 %v5318, %v6077
        %v6079 = vpop.f32.mrb[0].mxu0
        %v6080 = vadd.f32 %v5322, %v6079
        %v6081 = vpop.f32.mrb[0].mxu0
        %v6082 = vadd.f32 %v5318, %v6081
        %v6083 = vpop.f32.mrb[0].mxu0
        %v6084 = vadd.f32 %v5322, %v6083
        %6085 = vmatprep.mubr.bf16.mxu0 %v586
        %6086 = vmatmul.mubr.bf16.gmra.mrb[0].mxu0 %v585
        %v6087 = vpop.f32.mrb[0].mxu0
        %v6088 = vadd.f32 %v5318, %v6087
        %v6089 = vpop.f32.mrb[0].mxu0
        %v6090 = vadd.f32 %v5322, %v6089
        %v6091 = vpop.f32.mrb[0].mxu0
        %v6092 = vadd.f32 %v5318, %v6091
        %v6093 = vpop.f32.mrb[0].mxu0
        %v6094 = vadd.f32 %v5322, %v6093
        %6095 = vmatprep.mubr.bf16.mxu0 %v589
        %6096 = vmatmul.mubr.bf16.gmra.mrb[0].mxu0 %v588
        %v6097 = vpop.f32.mrb[0].mxu0
        %v6098 = vadd.f32 %v5318, %v6097
        %v6099 = vpop.f32.mrb[0].mxu0
        %v6100 = vadd.f32 %v5322, %v6099
        %v6101 = vpop.f32.mrb[0].mxu0
        %v6102 = vadd.f32 %v5318, %v6101
        %v6103 = vpop.f32.mrb[0].mxu0
        %v6104 = vadd.f32 %v5322, %v6103
        %6105 = vmatprep.mubr.bf16.mxu0 %v592
        %6106 = vmatmul.mubr.bf16.gmra.mrb[0].mxu0 %v591
        %v6107 = vpop.f32.mrb[0].mxu0
        %v6108 = vadd.f32 %v5318, %v6107
        %v6109 = vpop.f32.mrb[0].mxu0
        %v6110 = vadd.f32 %v5322, %v6109
        %v6111 = vpop.f32.mrb[0].mxu0
        %v6112 = vadd.f32 %v5318, %v6111
        %v6113 = vpop.f32.mrb[0].mxu0
        %v6114 = vadd.f32 %v5322, %v6113
        %6115 = vmatprep.mubr.bf16.mxu0 %v595
        %6116 = vmatmul.mubr.bf16.gmra.mrb[0].mxu0 %v594
        %v6117 = vpop.f32.mrb[0].mxu0
        %v6118 = vadd.f32 %v5318, %v6117
        %v6119 = vpop.f32.mrb[0].mxu0
        %v6120 = vadd.f32 %v5322, %v6119
        %v6121 = vpop.f32.mrb[0].mxu0
        %v6122 = vadd.f32 %v5318, %v6121
        %v6123 = vpop.f32.mrb[0].mxu0
        %v6124 = vadd.f32 %v5322, %v6123
        %6125 = vmatprep.mubr.bf16.mxu0 %v598
        %6126 = vmatmul.mubr.bf16.gmra.mrb[0].mxu0 %v597
        %v6127 = vpop.f32.mrb[0].mxu0
        %v6128 = vadd.f32 %v5318, %v6127
        %v6129 = vpop.f32.mrb[0].mxu0
        %v6130 = vadd.f32 %v5322, %v6129
        %v6131 = vpop.f32.mrb[0].mxu0
        %v6132 = vadd.f32 %v5318, %v6131
        %v6133 = vpop.f32.mrb[0].mxu0
        %v6134 = vadd.f32 %v5322, %v6133
        %6135 = vmatprep.mubr.bf16.mxu0 %v601
        %6136 = vmatmul.mubr.bf16.gmra.mrb[0].mxu0 %v600
        %v6137 = vpop.f32.mrb[0].mxu0
        %v6138 = vadd.f32 %v5318, %v6137
        %v6139 = vpop.f32.mrb[0].mxu0
        %v6140 = vadd.f32 %v5322, %v6139
        %v6141 = vpop.f32.mrb[0].mxu0
        %v6142 = vadd.f32 %v5318, %v6141
        %v6143 = vpop.f32.mrb[0].mxu0
        %v6144 = vadd.f32 %v5322, %v6143
        %6145 = vdwg.mxu0
        %6146 = vmatprep.subr.bf16.mxu0 %v5682
        %6147 = vmatpush1.bf16.msra.mxu0 %v5681
        %6148 = vmatprep.subr.bf16.mxu0 %v5686
        %6149 = vmatpush1.bf16.msra.mxu0 %v5685
        %6150 = vmatprep.subr.bf16.mxu0 %v5690
        %6151 = vmatpush1.bf16.msra.mxu0 %v5689
        %6152 = vmatprep.subr.bf16.mxu0 %v5694
        %6153 = vmatpush1.bf16.msra.mxu0 %v5693
        %6154 = vmatprep.subr.bf16.mxu0 %v5698
        %6155 = vmatpush1.bf16.msra.mxu0 %v5697
        %6156 = vmatprep.subr.bf16.mxu0 %v5702
        %6157 = vmatpush1.bf16.msra.mxu0 %v5701
        %6158 = vmatprep.subr.bf16.mxu0 %v5706
        %6159 = vmatpush1.bf16.msra.mxu0 %v5705
        %6160 = vmatprep.subr.bf16.mxu0 %v5710
        %6161 = vmatpush1.bf16.msra.mxu0 %v5709
        %6162 = vmatprep.subr.bf16.mxu0 0
        %6163 = vmatpush1.bf16.msra.mxu0 0
        %6164 = vmatprep.subr.bf16.mxu0 0
        %6165 = vmatpush1.bf16.msra.mxu0 0
        %6166 = vmatprep.subr.bf16.mxu0 0
        %6167 = vmatpush1.bf16.msra.mxu0 0
        %6168 = vmatprep.subr.bf16.mxu0 0
        %6169 = vmatpush1.bf16.msra.mxu0 0
        %6170 = vmatprep.subr.bf16.mxu0 0
        %6171 = vmatpush1.bf16.msra.mxu0 0
        %6172 = vmatprep.subr.bf16.mxu0 0
        %6173 = vmatpush1.bf16.msra.mxu0 0
        %6174 = vmatprep.subr.bf16.mxu0 0
        %6175 = vmatpush1.bf16.msra.mxu0 0
        %6176 = vmatprep.subr.bf16.mxu0 0
        %6177 = vmatpush1.bf16.msra.mxu0 0
        %6178 = vmatprep.mubr.bf16.mxu0 0
        %6179 = vmatmul.mubr.bf16.gmra.mrb[0].mxu0 %v581
        %v6180 = vpop.f32.mrb[0].mxu0
        %v6181 = vadd.f32 %v6068, %v6180
        %v6182 = vpop.f32.mrb[0].mxu0
        %v6183 = vadd.f32 %v6070, %v6182
        %v6184 = vpop.f32.mrb[0].mxu0
        %v6185 = vadd.f32 %v6072, %v6184
        %v6186 = vpop.f32.mrb[0].mxu0
        %v6187 = vadd.f32 %v6074, %v6186
        %6188 = vmatprep.mubr.bf16.mxu0 0
        %6189 = vmatmul.mubr.bf16.gmra.mrb[0].mxu0 %v584
        %v6190 = vpop.f32.mrb[0].mxu0
        %v6191 = vadd.f32 %v6078, %v6190
        %v6192 = vpop.f32.mrb[0].mxu0
        %v6193 = vadd.f32 %v6080, %v6192
        %v6194 = vpop.f32.mrb[0].mxu0
        %v6195 = vadd.f32 %v6082, %v6194
        %v6196 = vpop.f32.mrb[0].mxu0
        %v6197 = vadd.f32 %v6084, %v6196
        %6198 = vmatprep.mubr.bf16.mxu0 0
        %6199 = vmatmul.mubr.bf16.gmra.mrb[0].mxu0 %v587
        %v6200 = vpop.f32.mrb[0].mxu0
        %v6201 = vadd.f32 %v6088, %v6200
        %v6202 = vpop.f32.mrb[0].mxu0
        %v6203 = vadd.f32 %v6090, %v6202
        %v6204 = vpop.f32.mrb[0].mxu0
        %v6205 = vadd.f32 %v6092, %v6204
        %v6206 = vpop.f32.mrb[0].mxu0
        %v6207 = vadd.f32 %v6094, %v6206
        %6208 = vmatprep.mubr.bf16.mxu0 0
        %6209 = vmatmul.mubr.bf16.gmra.mrb[0].mxu0 %v590
        %v6210 = vpop.f32.mrb[0].mxu0
        %v6211 = vadd.f32 %v6098, %v6210
        %v6212 = vpop.f32.mrb[0].mxu0
        %v6213 = vadd.f32 %v6100, %v6212
        %v6214 = vpop.f32.mrb[0].mxu0
        %v6215 = vadd.f32 %v6102, %v6214
        %v6216 = vpop.f32.mrb[0].mxu0
        %v6217 = vadd.f32 %v6104, %v6216
        %6218 = vmatprep.mubr.bf16.mxu0 0
        %6219 = vmatmul.mubr.bf16.gmra.mrb[0].mxu0 %v593
        %v6220 = vpop.f32.mrb[0].mxu0
        %v6221 = vadd.f32 %v6108, %v6220
        %v6222 = vpop.f32.mrb[0].mxu0
        %v6223 = vadd.f32 %v6110, %v6222
        %v6224 = vpop.f32.mrb[0].mxu0
        %v6225 = vadd.f32 %v6112, %v6224
        %v6226 = vpop.f32.mrb[0].mxu0
        %v6227 = vadd.f32 %v6114, %v6226
        %6228 = vmatprep.mubr.bf16.mxu0 0
        %6229 = vmatmul.mubr.bf16.gmra.mrb[0].mxu0 %v596
        %v6230 = vpop.f32.mrb[0].mxu0
        %v6231 = vadd.f32 %v6118, %v6230
        %v6232 = vpop.f32.mrb[0].mxu0
        %v6233 = vadd.f32 %v6120, %v6232
        %v6234 = vpop.f32.mrb[0].mxu0
        %v6235 = vadd.f32 %v6122, %v6234
        %v6236 = vpop.f32.mrb[0].mxu0
        %v6237 = vadd.f32 %v6124, %v6236
        %6238 = vmatprep.mubr.bf16.mxu0 0
        %6239 = vmatmul.mubr.bf16.gmra.mrb[0].mxu0 %v599
        %v6240 = vpop.f32.mrb[0].mxu0
        %v6241 = vadd.f32 %v6128, %v6240
        %v6242 = vpop.f32.mrb[0].mxu0
        %v6243 = vadd.f32 %v6130, %v6242
        %v6244 = vpop.f32.mrb[0].mxu0
        %v6245 = vadd.f32 %v6132, %v6244
        %v6246 = vpop.f32.mrb[0].mxu0
        %v6247 = vadd.f32 %v6134, %v6246
        %6248 = vmatprep.mubr.bf16.mxu0 0
        %6249 = vmatmul.mubr.bf16.gmra.mrb[0].mxu0 %v602
        %v6250 = vpop.f32.mrb[0].mxu0
        %v6251 = vadd.f32 %v6138, %v6250
        %v6252 = vpop.f32.mrb[0].mxu0
        %v6253 = vadd.f32 %v6140, %v6252
        %v6254 = vpop.f32.mrb[0].mxu0
        %v6255 = vadd.f32 %v6142, %v6254
        %v6256 = vpop.f32.mrb[0].mxu0
        %v6257 = vadd.f32 %v6144, %v6256
        %6258 = vdwg.mxu0
        %v6259 = vmax.f32 %v5955, 0.0
        %v6260 = vmax.f32 %v5957, 0.0
        %v6261 = vmax.f32 %v6181, 0.0
        %v6262 = vmax.f32 %v6183, 0.0
        %v6263 = vmax.f32 %v5959, 0.0
        %v6264 = vmax.f32 %v5961, 0.0
        %v6265 = vmax.f32 %v6185, 0.0
        %v6266 = vmax.f32 %v6187, 0.0
        %v6267 = vmax.f32 %v5965, 0.0
        %v6268 = vmax.f32 %v5967, 0.0
        %v6269 = vmax.f32 %v6191, 0.0
        %v6270 = vmax.f32 %v6193, 0.0
        %v6271 = vmax.f32 %v5969, 0.0
        %v6272 = vmax.f32 %v5971, 0.0
        %v6273 = vmax.f32 %v6195, 0.0
        %v6274 = vmax.f32 %v6197, 0.0
        %v6275 = vmax.f32 %v5975, 0.0
        %v6276 = vmax.f32 %v5977, 0.0
        %v6277 = vmax.f32 %v6201, 0.0
        %v6278 = vmax.f32 %v6203, 0.0
        %v6279 = vmax.f32 %v5979, 0.0
        %v6280 = vmax.f32 %v5981, 0.0
        %v6281 = vmax.f32 %v6205, 0.0
        %v6282 = vmax.f32 %v6207, 0.0
        %v6283 = vmax.f32 %v5985, 0.0
        %v6284 = vmax.f32 %v5987, 0.0
        %v6285 = vmax.f32 %v6211, 0.0
        %v6286 = vmax.f32 %v6213, 0.0
        %v6287 = vmax.f32 %v5989, 0.0
        %v6288 = vmax.f32 %v5991, 0.0
        %v6289 = vmax.f32 %v6215, 0.0
        %v6290 = vmax.f32 %v6217, 0.0
        %v6291 = vmax.f32 %v5995, 0.0
        %v6292 = vmax.f32 %v5997, 0.0
        %v6293 = vmax.f32 %v6221, 0.0
        %v6294 = vmax.f32 %v6223, 0.0
        %v6295 = vmax.f32 %v5999, 0.0
        %v6296 = vmax.f32 %v6001, 0.0
        %v6297 = vmax.f32 %v6225, 0.0
        %v6298 = vmax.f32 %v6227, 0.0
        %v6299 = vmax.f32 %v6005, 0.0
        %v6300 = vmax.f32 %v6007, 0.0
        %v6301 = vmax.f32 %v6231, 0.0
        %v6302 = vmax.f32 %v6233, 0.0
        %v6303 = vmax.f32 %v6009, 0.0
        %v6304 = vmax.f32 %v6011, 0.0
        %v6305 = vmax.f32 %v6235, 0.0
        %v6306 = vmax.f32 %v6237, 0.0
        %v6307 = vmax.f32 %v6015, 0.0
        %v6308 = vmax.f32 %v6017, 0.0
        %v6309 = vmax.f32 %v6241, 0.0
        %v6310 = vmax.f32 %v6243, 0.0
        %v6311 = vmax.f32 %v6019, 0.0
        %v6312 = vmax.f32 %v6021, 0.0
        %v6313 = vmax.f32 %v6245, 0.0
        %v6314 = vmax.f32 %v6247, 0.0
        %v6315 = vmax.f32 %v6025, 0.0
        %v6316 = vmax.f32 %v6027, 0.0
        %v6317 = vmax.f32 %v6251, 0.0
        %v6318 = vmax.f32 %v6253, 0.0
        %v6319 = vmax.f32 %v6029, 0.0
        %v6320 = vmax.f32 %v6031, 0.0
        %v6321 = vmax.f32 %v6255, 0.0
        %v6322 = vmax.f32 %v6257, 0.0
        %v6323 = vld [vmem:[#allocation2] sm:$0xff]
        %v6324 = vld [vmem:[#allocation2 + $0x8] sm:$0xff]
        %v6325 = vld [vmem:[#allocation2 + $0x10] sm:$0xff]
        %v6326 = vld [vmem:[#allocation2 + $0x18] sm:$0xff]
        %v6327 = vld [vmem:[#allocation2 + $0x20] sm:$0xff]
        %v6328 = vld [vmem:[#allocation2 + $0x28] sm:$0xff]
        %v6329 = vld [vmem:[#allocation2 + $0x30] sm:$0xff]
        %v6330 = vld [vmem:[#allocation2 + $0x38] sm:$0xff]
        %v6331 = vld [vmem:[#allocation2 + $0x40] sm:$0xff]
        %v6332 = vld [vmem:[#allocation2 + $0x48] sm:$0xff]
        %v6333 = vld [vmem:[#allocation2 + $0x50] sm:$0xff]
        %v6334 = vld [vmem:[#allocation2 + $0x58] sm:$0xff]
        %v6335 = vld [vmem:[#allocation2 + $0x60] sm:$0xff]
        %v6336 = vld [vmem:[#allocation2 + $0x68] sm:$0xff]
        %v6337 = vld [vmem:[#allocation2 + $0x70] sm:$0xff]
        %v6338 = vld [vmem:[#allocation2 + $0x78] sm:$0xff]
        %v6339 = vld [vmem:[#allocation2 + $0x80] sm:$0xff]
        %v6340 = vld [vmem:[#allocation2 + $0x88] sm:$0xff]
        %v6341 = vld [vmem:[#allocation2 + $0x90] sm:$0xff]
        %v6342 = vld [vmem:[#allocation2 + $0x98] sm:$0xff]
        %v6343 = vld [vmem:[#allocation2 + $0xa0] sm:$0xff]
        %v6344 = vld [vmem:[#allocation2 + $0xa8] sm:$0xff]
        %v6345 = vld [vmem:[#allocation2 + $0xb0] sm:$0xff]
        %v6346 = vld [vmem:[#allocation2 + $0xb8] sm:$0xff]
        %v6347 = vld [vmem:[#allocation2 + $0xc0] sm:$0xff]
        %v6348 = vld [vmem:[#allocation2 + $0xc8] sm:$0xff]
        %v6349 = vld [vmem:[#allocation2 + $0xd0] sm:$0xff]
        %v6350 = vld [vmem:[#allocation2 + $0xd8] sm:$0xff]
        %v6351 = vld [vmem:[#allocation2 + $0xe0] sm:$0xff]
        %v6352 = vld [vmem:[#allocation2 + $0xe8] sm:$0xff]
        %v6353 = vld [vmem:[#allocation2 + $0xf0] sm:$0xff]
        %v6354 = vld [vmem:[#allocation2 + $0xf8] sm:$0xff]
        %v6355 = vld [vmem:[#allocation2 + $0x100] sm:$0xff]
        %v6356 = vld [vmem:[#allocation2 + $0x108] sm:$0xff]
        %v6357 = vld [vmem:[#allocation2 + $0x110] sm:$0xff]
        %v6358 = vld [vmem:[#allocation2 + $0x118] sm:$0xff]
        %v6359 = vld [vmem:[#allocation2 + $0x120] sm:$0xff]
        %v6360 = vld [vmem:[#allocation2 + $0x128] sm:$0xff]
        %v6361 = vld [vmem:[#allocation2 + $0x130] sm:$0xff]
        %v6362 = vld [vmem:[#allocation2 + $0x138] sm:$0xff]
        %v6363 = vld [vmem:[#allocation2 + $0x140] sm:$0xff]
        %v6364 = vld [vmem:[#allocation2 + $0x148] sm:$0xff]
        %v6365 = vld [vmem:[#allocation2 + $0x150] sm:$0xff]
        %v6366 = vld [vmem:[#allocation2 + $0x158] sm:$0xff]
        %v6367 = vld [vmem:[#allocation2 + $0x160] sm:$0xff]
        %v6368 = vld [vmem:[#allocation2 + $0x168] sm:$0xff]
        %v6369 = vld [vmem:[#allocation2 + $0x170] sm:$0xff]
        %v6370 = vld [vmem:[#allocation2 + $0x178] sm:$0xff]
        %v6371 = vpack.c.bf16 %v6263, %v6259
        %v6372 = vpack.c.bf16 %v6264, %v6260
        %v6373 = vpack.c.bf16 %v6265, %v6261
        %v6374 = vpack.c.bf16 %v6266, %v6262
        %v6375 = vpack.c.bf16 %v6271, %v6267
        %v6376 = vpack.c.bf16 %v6272, %v6268
        %v6377 = vpack.c.bf16 %v6273, %v6269
        %v6378 = vpack.c.bf16 %v6274, %v6270
        %v6379 = vpack.c.bf16 %v6279, %v6275
        %v6380 = vpack.c.bf16 %v6280, %v6276
        %v6381 = vpack.c.bf16 %v6281, %v6277
        %v6382 = vpack.c.bf16 %v6282, %v6278
        %v6383 = vpack.c.bf16 %v6287, %v6283
        %v6384 = vpack.c.bf16 %v6288, %v6284
        %v6385 = vpack.c.bf16 %v6289, %v6285
        %v6386 = vpack.c.bf16 %v6290, %v6286
        %v6387 = vpack.c.bf16 %v6295, %v6291
        %v6388 = vpack.c.bf16 %v6296, %v6292
        %v6389 = vpack.c.bf16 %v6297, %v6293
        %v6390 = vpack.c.bf16 %v6298, %v6294
        %v6391 = vpack.c.bf16 %v6303, %v6299
        %v6392 = vpack.c.bf16 %v6304, %v6300
        %v6393 = vpack.c.bf16 %v6305, %v6301
        %v6394 = vpack.c.bf16 %v6306, %v6302
        %v6395 = vpack.c.bf16 %v6311, %v6307
        %v6396 = vpack.c.bf16 %v6312, %v6308
        %v6397 = vpack.c.bf16 %v6313, %v6309
        %v6398 = vpack.c.bf16 %v6314, %v6310
        %v6399 = vpack.c.bf16 %v6319, %v6315
        %v6400 = vpack.c.bf16 %v6320, %v6316
        %v6401 = vpack.c.bf16 %v6321, %v6317
        %v6402 = vpack.c.bf16 %v6322, %v6318
        %v6403 = vld [vmem:[#allocation9 + $0x600] sm:$0xff]
        %v6404 = vld [vmem:[#allocation9 + $0x608] sm:$0xf]
        %v6405 = vld [vmem:[#allocation9 + $0x60c] sm:$0xff]
        %v6406 = vld [vmem:[#allocation9 + $0x614] sm:$0xf]
        %v6407 = vld [vmem:[#allocation9 + $0x618] sm:$0xff]
        %v6408 = vld [vmem:[#allocation9 + $0x620] sm:$0xf]
        %v6409 = vld [vmem:[#allocation9 + $0x624] sm:$0xff]
        %v6410 = vld [vmem:[#allocation9 + $0x62c] sm:$0xf]
        %v6411 = vld [vmem:[#allocation9 + $0x630] sm:$0xff]
        %v6412 = vld [vmem:[#allocation9 + $0x638] sm:$0xf]
        %v6413 = vld [vmem:[#allocation9 + $0x63c] sm:$0xff]
        %v6414 = vld [vmem:[#allocation9 + $0x644] sm:$0xf]
        %v6415 = vld [vmem:[#allocation9 + $0x648] sm:$0xff]
        %v6416 = vld [vmem:[#allocation9 + $0x650] sm:$0xf]
        %v6417 = vld [vmem:[#allocation9 + $0x654] sm:$0xff]
        %v6418 = vld [vmem:[#allocation9 + $0x65c] sm:$0xf]
        %v6419 = vld [vmem:[#allocation9 + $0x660] sm:$0xff]
        %v6420 = vld [vmem:[#allocation9 + $0x668] sm:$0xf]
        %v6421 = vld [vmem:[#allocation9 + $0x66c] sm:$0xff]
        %v6422 = vld [vmem:[#allocation9 + $0x674] sm:$0xf]
        %v6423 = vld [vmem:[#allocation9 + $0x678] sm:$0xff]
        %v6424 = vld [vmem:[#allocation9 + $0x680] sm:$0xf]
        %v6425 = vld [vmem:[#allocation9 + $0x684] sm:$0xff]
        %v6426 = vld [vmem:[#allocation9 + $0x68c] sm:$0xf]
        %v6427 = vld [vmem:[#allocation9 + $0x690] sm:$0xff]
        %v6428 = vld [vmem:[#allocation9 + $0x698] sm:$0xf]
        %v6429 = vld [vmem:[#allocation9 + $0x69c] sm:$0xff]
        %v6430 = vld [vmem:[#allocation9 + $0x6a4] sm:$0xf]
        %v6431 = vld [vmem:[#allocation9 + $0x6a8] sm:$0xff]
        %v6432 = vld [vmem:[#allocation9 + $0x6b0] sm:$0xf]
        %v6433 = vld [vmem:[#allocation9 + $0x6b4] sm:$0xff]
        %v6434 = vld [vmem:[#allocation9 + $0x6bc] sm:$0xf]
        %v6435 = vld [vmem:[#allocation9 + $0x6c0] sm:$0xff]
        %v6436 = vld [vmem:[#allocation9 + $0x6c8] sm:$0xf]
        %v6437 = vld [vmem:[#allocation9 + $0x6cc] sm:$0xff]
        %v6438 = vld [vmem:[#allocation9 + $0x6d4] sm:$0xf]
        %v6439 = vld [vmem:[#allocation9 + $0x6d8] sm:$0xff]
        %v6440 = vld [vmem:[#allocation9 + $0x6e0] sm:$0xf]
        %v6441 = vld [vmem:[#allocation9 + $0x6e4] sm:$0xff]
        %v6442 = vld [vmem:[#allocation9 + $0x6ec] sm:$0xf]
        %v6443 = vld [vmem:[#allocation9 + $0x6f0] sm:$0xff]
        %v6444 = vld [vmem:[#allocation9 + $0x6f8] sm:$0xf]
        %v6445 = vld [vmem:[#allocation9 + $0x6fc] sm:$0xff]
        %v6446 = vld [vmem:[#allocation9 + $0x704] sm:$0xf]
        %v6447 = vld [vmem:[#allocation9 + $0x708] sm:$0xff]
        %v6448 = vld [vmem:[#allocation9 + $0x710] sm:$0xf]
        %v6449 = vld [vmem:[#allocation9 + $0x714] sm:$0xff]
        %v6450 = vld [vmem:[#allocation9 + $0x71c] sm:$0xf]
        %v6451 = vld [vmem:[#allocation9 + $0x720] sm:$0xff]
        %v6452 = vld [vmem:[#allocation9 + $0x728] sm:$0xf]
        %v6453 = vld [vmem:[#allocation9 + $0x72c] sm:$0xff]
        %v6454 = vld [vmem:[#allocation9 + $0x734] sm:$0xf]
        %v6455 = vld [vmem:[#allocation9 + $0x738] sm:$0xff]
        %v6456 = vld [vmem:[#allocation9 + $0x740] sm:$0xf]
        %v6457 = vld [vmem:[#allocation9 + $0x744] sm:$0xff]
        %v6458 = vld [vmem:[#allocation9 + $0x74c] sm:$0xf]
        %v6459 = vld [vmem:[#allocation9 + $0x750] sm:$0xff]
        %v6460 = vld [vmem:[#allocation9 + $0x758] sm:$0xf]
        %v6461 = vld [vmem:[#allocation9 + $0x75c] sm:$0xff]
        %v6462 = vld [vmem:[#allocation9 + $0x764] sm:$0xf]
        %v6463 = vld [vmem:[#allocation9 + $0x768] sm:$0xff]
        %v6464 = vld [vmem:[#allocation9 + $0x770] sm:$0xf]
        %v6465 = vld [vmem:[#allocation9 + $0x774] sm:$0xff]
        %v6466 = vld [vmem:[#allocation9 + $0x77c] sm:$0xf]
        %v6467 = vld [vmem:[#allocation9 + $0x780] sm:$0xff]
        %v6468 = vld [vmem:[#allocation9 + $0x788] sm:$0xf]
        %v6469 = vld [vmem:[#allocation9 + $0x78c] sm:$0xff]
        %v6470 = vld [vmem:[#allocation9 + $0x794] sm:$0xf]
        %v6471 = vld [vmem:[#allocation9 + $0x798] sm:$0xff]
        %v6472 = vld [vmem:[#allocation9 + $0x7a0] sm:$0xf]
        %v6473 = vld [vmem:[#allocation9 + $0x7a4] sm:$0xff]
        %v6474 = vld [vmem:[#allocation9 + $0x7ac] sm:$0xf]
        %v6475 = vld [vmem:[#allocation9 + $0x7b0] sm:$0xff]
        %v6476 = vld [vmem:[#allocation9 + $0x7b8] sm:$0xf]
        %v6477 = vld [vmem:[#allocation9 + $0x7bc] sm:$0xff]
        %v6478 = vld [vmem:[#allocation9 + $0x7c4] sm:$0xf]
        %v6479 = vld [vmem:[#allocation9 + $0x7c8] sm:$0xff]
        %v6480 = vld [vmem:[#allocation9 + $0x7d0] sm:$0xf]
        %v6481 = vld [vmem:[#allocation9 + $0x7d4] sm:$0xff]
        %v6482 = vld [vmem:[#allocation9 + $0x7dc] sm:$0xf]
        %v6483 = vld [vmem:[#allocation9 + $0x7e0] sm:$0xff]
        %v6484 = vld [vmem:[#allocation9 + $0x7e8] sm:$0xf]
        %v6485 = vld [vmem:[#allocation9 + $0x7ec] sm:$0xff]
        %v6486 = vld [vmem:[#allocation9 + $0x7f4] sm:$0xf]
        %v6487 = vld [vmem:[#allocation9 + $0x7f8] sm:$0xff]
        %v6488 = vld [vmem:[#allocation9 + $0x800] sm:$0xf]
        %v6489 = vld [vmem:[#allocation9 + $0x804] sm:$0xff]
        %v6490 = vld [vmem:[#allocation9 + $0x80c] sm:$0xf]
        %v6491 = vld [vmem:[#allocation9 + $0x810] sm:$0xff]
        %v6492 = vld [vmem:[#allocation9 + $0x818] sm:$0xf]
        %v6493 = vld [vmem:[#allocation9 + $0x81c] sm:$0xff]
        %v6494 = vld [vmem:[#allocation9 + $0x824] sm:$0xf]
        %v6495 = vld [vmem:[#allocation9 + $0x828] sm:$0xff]
        %v6496 = vld [vmem:[#allocation9 + $0x830] sm:$0xf]
        %v6497 = vld [vmem:[#allocation9 + $0x834] sm:$0xff]
        %v6498 = vld [vmem:[#allocation9 + $0x83c] sm:$0xf]
        %v6499 = vld [vmem:[#allocation9 + $0x840] sm:$0xff]
        %v6500 = vld [vmem:[#allocation9 + $0x848] sm:$0xf]
        %v6501 = vld [vmem:[#allocation9 + $0x84c] sm:$0xff]
        %v6502 = vld [vmem:[#allocation9 + $0x854] sm:$0xf]
        %v6503 = vld [vmem:[#allocation9 + $0x858] sm:$0xff]
        %v6504 = vld [vmem:[#allocation9 + $0x860] sm:$0xf]
        %v6505 = vld [vmem:[#allocation9 + $0x864] sm:$0xff]
        %v6506 = vld [vmem:[#allocation9 + $0x86c] sm:$0xf]
        %v6507 = vld [vmem:[#allocation9 + $0x870] sm:$0xff]
        %v6508 = vld [vmem:[#allocation9 + $0x878] sm:$0xf]
        %v6509 = vld [vmem:[#allocation9 + $0x87c] sm:$0xff]
        %v6510 = vld [vmem:[#allocation9 + $0x884] sm:$0xf]
        %v6511 = vld [vmem:[#allocation9 + $0x888] sm:$0xff]
        %v6512 = vld [vmem:[#allocation9 + $0x890] sm:$0xf]
        %v6513 = vld [vmem:[#allocation9 + $0x894] sm:$0xff]
        %v6514 = vld [vmem:[#allocation9 + $0x89c] sm:$0xf]
        %v6515 = vld [vmem:[#allocation9 + $0x8a0] sm:$0xff]
        %v6516 = vld [vmem:[#allocation9 + $0x8a8] sm:$0xf]
        %v6517 = vld [vmem:[#allocation9 + $0x8ac] sm:$0xff]
        %v6518 = vld [vmem:[#allocation9 + $0x8b4] sm:$0xf]
        %v6519 = vld [vmem:[#allocation9 + $0x8b8] sm:$0xff]
        %v6520 = vld [vmem:[#allocation9 + $0x8c0] sm:$0xf]
        %v6521 = vld [vmem:[#allocation9 + $0x8c4] sm:$0xff]
        %v6522 = vld [vmem:[#allocation9 + $0x8cc] sm:$0xf]
        %v6523 = vld [vmem:[#allocation9 + $0x8d0] sm:$0xff]
        %v6524 = vld [vmem:[#allocation9 + $0x8d8] sm:$0xf]
        %v6525 = vld [vmem:[#allocation9 + $0x8dc] sm:$0xff]
        %v6526 = vld [vmem:[#allocation9 + $0x8e4] sm:$0xf]
        %v6527 = vld [vmem:[#allocation9 + $0x8e8] sm:$0xff]
        %v6528 = vld [vmem:[#allocation9 + $0x8f0] sm:$0xf]
        %v6529 = vld [vmem:[#allocation9 + $0x8f4] sm:$0xff]
        %v6530 = vld [vmem:[#allocation9 + $0x8fc] sm:$0xf]
        %v6659 = vunpack.c.l.b16 %v6403
        %v6660 = vunpack.c.h.b16 %v6403
        %v6661 = vunpack.c.l.b16 %v6404
        %v6662 = vunpack.c.l.b16 %v6405
        %v6663 = vunpack.c.h.b16 %v6405
        %v6664 = vunpack.c.l.b16 %v6406
        %v6665 = vunpack.c.l.b16 %v6407
        %v6666 = vunpack.c.h.b16 %v6407
        %v6667 = vunpack.c.l.b16 %v6408
        %v6668 = vunpack.c.l.b16 %v6409
        %v6669 = vunpack.c.h.b16 %v6409
        %v6670 = vunpack.c.l.b16 %v6410
        %v6671 = vunpack.c.l.b16 %v6411
        %v6672 = vunpack.c.h.b16 %v6411
        %v6673 = vunpack.c.l.b16 %v6412
        %v6674 = vunpack.c.l.b16 %v6413
        %v6675 = vunpack.c.h.b16 %v6413
        %v6676 = vunpack.c.l.b16 %v6414
        %v6677 = vunpack.c.l.b16 %v6415
        %v6678 = vunpack.c.h.b16 %v6415
        %v6679 = vunpack.c.l.b16 %v6416
        %v6680 = vunpack.c.l.b16 %v6417
        %v6681 = vunpack.c.h.b16 %v6417
        %v6682 = vunpack.c.l.b16 %v6418
        %v6683 = vunpack.c.l.b16 %v6419
        %v6684 = vunpack.c.h.b16 %v6419
        %v6685 = vunpack.c.l.b16 %v6420
        %v6686 = vunpack.c.l.b16 %v6421
        %v6687 = vunpack.c.h.b16 %v6421
        %v6688 = vunpack.c.l.b16 %v6422
        %v6689 = vunpack.c.l.b16 %v6423
        %v6690 = vunpack.c.h.b16 %v6423
        %v6691 = vunpack.c.l.b16 %v6424
        %v6692 = vunpack.c.l.b16 %v6425
        %v6693 = vunpack.c.h.b16 %v6425
        %v6694 = vunpack.c.l.b16 %v6426
        %v6695 = vunpack.c.l.b16 %v6427
        %v6696 = vunpack.c.h.b16 %v6427
        %v6697 = vunpack.c.l.b16 %v6428
        %v6698 = vunpack.c.l.b16 %v6429
        %v6699 = vunpack.c.h.b16 %v6429
        %v6700 = vunpack.c.l.b16 %v6430
        %v6701 = vunpack.c.l.b16 %v6431
        %v6702 = vunpack.c.h.b16 %v6431
        %v6703 = vunpack.c.l.b16 %v6432
        %v6704 = vunpack.c.l.b16 %v6433
        %v6705 = vunpack.c.h.b16 %v6433
        %v6706 = vunpack.c.l.b16 %v6434
        %v6707 = vunpack.c.l.b16 %v6435
        %v6708 = vunpack.c.h.b16 %v6435
        %v6709 = vunpack.c.l.b16 %v6436
        %v6710 = vunpack.c.l.b16 %v6437
        %v6711 = vunpack.c.h.b16 %v6437
        %v6712 = vunpack.c.l.b16 %v6438
        %v6713 = vunpack.c.l.b16 %v6439
        %v6714 = vunpack.c.h.b16 %v6439
        %v6715 = vunpack.c.l.b16 %v6440
        %v6716 = vunpack.c.l.b16 %v6441
        %v6717 = vunpack.c.h.b16 %v6441
        %v6718 = vunpack.c.l.b16 %v6442
        %v6719 = vunpack.c.l.b16 %v6443
        %v6720 = vunpack.c.h.b16 %v6443
        %v6721 = vunpack.c.l.b16 %v6444
        %v6722 = vunpack.c.l.b16 %v6445
        %v6723 = vunpack.c.h.b16 %v6445
        %v6724 = vunpack.c.l.b16 %v6446
        %v6725 = vunpack.c.l.b16 %v6447
        %v6726 = vunpack.c.h.b16 %v6447
        %v6727 = vunpack.c.l.b16 %v6448
        %v6728 = vunpack.c.l.b16 %v6449
        %v6729 = vunpack.c.h.b16 %v6449
        %v6730 = vunpack.c.l.b16 %v6450
        %v6731 = vunpack.c.l.b16 %v6451
        %v6732 = vunpack.c.h.b16 %v6451
        %v6733 = vunpack.c.l.b16 %v6452
        %v6734 = vunpack.c.l.b16 %v6453
        %v6735 = vunpack.c.h.b16 %v6453
        %v6736 = vunpack.c.l.b16 %v6454
        %v6737 = vunpack.c.l.b16 %v6455
        %v6738 = vunpack.c.h.b16 %v6455
        %v6739 = vunpack.c.l.b16 %v6456
        %v6740 = vunpack.c.l.b16 %v6457
        %v6741 = vunpack.c.h.b16 %v6457
        %v6742 = vunpack.c.l.b16 %v6458
        %v6743 = vunpack.c.l.b16 %v6459
        %v6744 = vunpack.c.h.b16 %v6459
        %v6745 = vunpack.c.l.b16 %v6460
        %v6746 = vunpack.c.l.b16 %v6461
        %v6747 = vunpack.c.h.b16 %v6461
        %v6748 = vunpack.c.l.b16 %v6462
        %v6749 = vunpack.c.l.b16 %v6463
        %v6750 = vunpack.c.h.b16 %v6463
        %v6751 = vunpack.c.l.b16 %v6464
        %v6752 = vunpack.c.l.b16 %v6465
        %v6753 = vunpack.c.h.b16 %v6465
        %v6754 = vunpack.c.l.b16 %v6466
        %v6755 = vunpack.c.l.b16 %v6467
        %v6756 = vunpack.c.h.b16 %v6467
        %v6757 = vunpack.c.l.b16 %v6468
        %v6758 = vunpack.c.l.b16 %v6469
        %v6759 = vunpack.c.h.b16 %v6469
        %v6760 = vunpack.c.l.b16 %v6470
        %v6761 = vunpack.c.l.b16 %v6471
        %v6762 = vunpack.c.h.b16 %v6471
        %v6763 = vunpack.c.l.b16 %v6472
        %v6764 = vunpack.c.l.b16 %v6473
        %v6765 = vunpack.c.h.b16 %v6473
        %v6766 = vunpack.c.l.b16 %v6474
        %v6767 = vunpack.c.l.b16 %v6475
        %v6768 = vunpack.c.h.b16 %v6475
        %v6769 = vunpack.c.l.b16 %v6476
        %v6770 = vunpack.c.l.b16 %v6477
        %v6771 = vunpack.c.h.b16 %v6477
        %v6772 = vunpack.c.l.b16 %v6478
        %v6773 = vunpack.c.l.b16 %v6479
        %v6774 = vunpack.c.h.b16 %v6479
        %v6775 = vunpack.c.l.b16 %v6480
        %v6776 = vunpack.c.l.b16 %v6481
        %v6777 = vunpack.c.h.b16 %v6481
        %v6778 = vunpack.c.l.b16 %v6482
        %v6779 = vunpack.c.l.b16 %v6483
        %v6780 = vunpack.c.h.b16 %v6483
        %v6781 = vunpack.c.l.b16 %v6484
        %v6782 = vunpack.c.l.b16 %v6485
        %v6783 = vunpack.c.h.b16 %v6485
        %v6784 = vunpack.c.l.b16 %v6486
        %v6785 = vunpack.c.l.b16 %v6487
        %v6786 = vunpack.c.h.b16 %v6487
        %v6787 = vunpack.c.l.b16 %v6488
        %v6788 = vunpack.c.l.b16 %v6489
        %v6789 = vunpack.c.h.b16 %v6489
        %v6790 = vunpack.c.l.b16 %v6490
        %v6791 = vunpack.c.l.b16 %v6491
        %v6792 = vunpack.c.h.b16 %v6491
        %v6793 = vunpack.c.l.b16 %v6492
        %v6794 = vunpack.c.l.b16 %v6493
        %v6795 = vunpack.c.h.b16 %v6493
        %v6796 = vunpack.c.l.b16 %v6494
        %v6797 = vunpack.c.l.b16 %v6495
        %v6798 = vunpack.c.h.b16 %v6495
        %v6799 = vunpack.c.l.b16 %v6496
        %v6800 = vunpack.c.l.b16 %v6497
        %v6801 = vunpack.c.h.b16 %v6497
        %v6802 = vunpack.c.l.b16 %v6498
        %v6803 = vunpack.c.l.b16 %v6499
        %v6804 = vunpack.c.h.b16 %v6499
        %v6805 = vunpack.c.l.b16 %v6500
        %v6806 = vunpack.c.l.b16 %v6501
        %v6807 = vunpack.c.h.b16 %v6501
        %v6808 = vunpack.c.l.b16 %v6502
        %v6809 = vunpack.c.l.b16 %v6503
        %v6810 = vunpack.c.h.b16 %v6503
        %v6811 = vunpack.c.l.b16 %v6504
        %v6812 = vunpack.c.l.b16 %v6505
        %v6813 = vunpack.c.h.b16 %v6505
        %v6814 = vunpack.c.l.b16 %v6506
        %v6815 = vunpack.c.l.b16 %v6507
        %v6816 = vunpack.c.h.b16 %v6507
        %v6817 = vunpack.c.l.b16 %v6508
        %v6818 = vunpack.c.l.b16 %v6509
        %v6819 = vunpack.c.h.b16 %v6509
        %v6820 = vunpack.c.l.b16 %v6510
        %v6821 = vunpack.c.l.b16 %v6511
        %v6822 = vunpack.c.h.b16 %v6511
        %v6823 = vunpack.c.l.b16 %v6512
        %v6824 = vunpack.c.l.b16 %v6513
        %v6825 = vunpack.c.h.b16 %v6513
        %v6826 = vunpack.c.l.b16 %v6514
        %v6827 = vunpack.c.l.b16 %v6515
        %v6828 = vunpack.c.h.b16 %v6515
        %v6829 = vunpack.c.l.b16 %v6516
        %v6830 = vunpack.c.l.b16 %v6517
        %v6831 = vunpack.c.h.b16 %v6517
        %v6832 = vunpack.c.l.b16 %v6518
        %v6833 = vunpack.c.l.b16 %v6519
        %v6834 = vunpack.c.h.b16 %v6519
        %v6835 = vunpack.c.l.b16 %v6520
        %v6836 = vunpack.c.l.b16 %v6521
        %v6837 = vunpack.c.h.b16 %v6521
        %v6838 = vunpack.c.l.b16 %v6522
        %v6839 = vunpack.c.l.b16 %v6523
        %v6840 = vunpack.c.h.b16 %v6523
        %v6841 = vunpack.c.l.b16 %v6524
        %v6842 = vunpack.c.l.b16 %v6525
        %v6843 = vunpack.c.h.b16 %v6525
        %v6844 = vunpack.c.l.b16 %v6526
        %v6845 = vunpack.c.l.b16 %v6527
        %v6846 = vunpack.c.h.b16 %v6527
        %v6847 = vunpack.c.l.b16 %v6528
        %v6848 = vunpack.c.l.b16 %v6529
        %v6849 = vunpack.c.h.b16 %v6529
        %v6850 = vunpack.c.l.b16 %v6530
        %v6851 = vpack.c.b16 %v6662, %v6659
        %v6852 = vpack.c.b16 %v6663, %v6660
        %v6853 = vpack.c.b16 %v6664, %v6661
        %v6854 = vpack.c.b16 %v6668, %v6665
        %v6855 = vpack.c.b16 %v6669, %v6666
        %v6856 = vpack.c.b16 %v6670, %v6667
        %v6857 = vpack.c.b16 %v6674, %v6671
        %v6858 = vpack.c.b16 %v6675, %v6672
        %v6859 = vpack.c.b16 %v6676, %v6673
        %v6860 = vpack.c.b16 %v6680, %v6677
        %v6861 = vpack.c.b16 %v6681, %v6678
        %v6862 = vpack.c.b16 %v6682, %v6679
        %v6863 = vpack.c.b16 %v6686, %v6683
        %v6864 = vpack.c.b16 %v6687, %v6684
        %v6865 = vpack.c.b16 %v6688, %v6685
        %v6866 = vpack.c.b16 %v6692, %v6689
        %v6867 = vpack.c.b16 %v6693, %v6690
        %v6868 = vpack.c.b16 %v6694, %v6691
        %v6869 = vpack.c.b16 %v6698, %v6695
        %v6870 = vpack.c.b16 %v6699, %v6696
        %v6871 = vpack.c.b16 %v6700, %v6697
        %v6872 = vpack.c.b16 %v6704, %v6701
        %v6873 = vpack.c.b16 %v6705, %v6702
        %v6874 = vpack.c.b16 %v6706, %v6703
        %v6875 = vpack.c.b16 %v6710, %v6707
        %v6876 = vpack.c.b16 %v6711, %v6708
        %v6877 = vpack.c.b16 %v6712, %v6709
        %v6878 = vpack.c.b16 %v6716, %v6713
        %v6879 = vpack.c.b16 %v6717, %v6714
        %v6880 = vpack.c.b16 %v6718, %v6715
        %v6881 = vpack.c.b16 %v6722, %v6719
        %v6882 = vpack.c.b16 %v6723, %v6720
        %v6883 = vpack.c.b16 %v6724, %v6721
        %v6884 = vpack.c.b16 %v6728, %v6725
        %v6885 = vpack.c.b16 %v6729, %v6726
        %v6886 = vpack.c.b16 %v6730, %v6727
        %v6887 = vpack.c.b16 %v6734, %v6731
        %v6888 = vpack.c.b16 %v6735, %v6732
        %v6889 = vpack.c.b16 %v6736, %v6733
        %v6890 = vpack.c.b16 %v6740, %v6737
        %v6891 = vpack.c.b16 %v6741, %v6738
        %v6892 = vpack.c.b16 %v6742, %v6739
        %v6893 = vpack.c.b16 %v6746, %v6743
        %v6894 = vpack.c.b16 %v6747, %v6744
        %v6895 = vpack.c.b16 %v6748, %v6745
        %v6896 = vpack.c.b16 %v6752, %v6749
        %v6897 = vpack.c.b16 %v6753, %v6750
        %v6898 = vpack.c.b16 %v6754, %v6751
        %v6899 = vpack.c.b16 %v6758, %v6755
        %v6900 = vpack.c.b16 %v6759, %v6756
        %v6901 = vpack.c.b16 %v6760, %v6757
        %v6902 = vpack.c.b16 %v6764, %v6761
        %v6903 = vpack.c.b16 %v6765, %v6762
        %v6904 = vpack.c.b16 %v6766, %v6763
        %v6905 = vpack.c.b16 %v6770, %v6767
        %v6906 = vpack.c.b16 %v6771, %v6768
        %v6907 = vpack.c.b16 %v6772, %v6769
        %v6908 = vpack.c.b16 %v6776, %v6773
        %v6909 = vpack.c.b16 %v6777, %v6774
        %v6910 = vpack.c.b16 %v6778, %v6775
        %v6911 = vpack.c.b16 %v6782, %v6779
        %v6912 = vpack.c.b16 %v6783, %v6780
        %v6913 = vpack.c.b16 %v6784, %v6781
        %v6914 = vpack.c.b16 %v6788, %v6785
        %v6915 = vpack.c.b16 %v6789, %v6786
        %v6916 = vpack.c.b16 %v6790, %v6787
        %v6917 = vpack.c.b16 %v6794, %v6791
        %v6918 = vpack.c.b16 %v6795, %v6792
        %v6919 = vpack.c.b16 %v6796, %v6793
        %v6920 = vpack.c.b16 %v6800, %v6797
        %v6921 = vpack.c.b16 %v6801, %v6798
        %v6922 = vpack.c.b16 %v6802, %v6799
        %v6923 = vpack.c.b16 %v6806, %v6803
        %v6924 = vpack.c.b16 %v6807, %v6804
        %v6925 = vpack.c.b16 %v6808, %v6805
        %v6926 = vpack.c.b16 %v6812, %v6809
        %v6927 = vpack.c.b16 %v6813, %v6810
        %v6928 = vpack.c.b16 %v6814, %v6811
        %v6929 = vpack.c.b16 %v6818, %v6815
        %v6930 = vpack.c.b16 %v6819, %v6816
        %v6931 = vpack.c.b16 %v6820, %v6817
        %v6932 = vpack.c.b16 %v6824, %v6821
        %v6933 = vpack.c.b16 %v6825, %v6822
        %v6934 = vpack.c.b16 %v6826, %v6823
        %v6935 = vpack.c.b16 %v6830, %v6827
        %v6936 = vpack.c.b16 %v6831, %v6828
        %v6937 = vpack.c.b16 %v6832, %v6829
        %v6938 = vpack.c.b16 %v6836, %v6833
        %v6939 = vpack.c.b16 %v6837, %v6834
        %v6940 = vpack.c.b16 %v6838, %v6835
        %v6941 = vpack.c.b16 %v6842, %v6839
        %v6942 = vpack.c.b16 %v6843, %v6840
        %v6943 = vpack.c.b16 %v6844, %v6841
        %v6944 = vpack.c.b16 %v6848, %v6845
        %v6945 = vpack.c.b16 %v6849, %v6846
        %v6946 = vpack.c.b16 %v6850, %v6847
        %7043 = vmatprep.subr.bf16.mxu0 %v6852
        %7044 = vmatpush1.bf16.msra.mxu0 %v6851
        %7045 = vmatprep.subr.bf16.mxu0 %v6855
        %7046 = vmatpush1.bf16.msra.mxu0 %v6854
        %7047 = vmatprep.subr.bf16.mxu0 %v6858
        %7048 = vmatpush1.bf16.msra.mxu0 %v6857
        %7049 = vmatprep.subr.bf16.mxu0 %v6861
        %7050 = vmatpush1.bf16.msra.mxu0 %v6860
        %7051 = vmatprep.subr.bf16.mxu0 %v6864
        %7052 = vmatpush1.bf16.msra.mxu0 %v6863
        %7053 = vmatprep.subr.bf16.mxu0 %v6867
        %7054 = vmatpush1.bf16.msra.mxu0 %v6866
        %7055 = vmatprep.subr.bf16.mxu0 %v6870
        %7056 = vmatpush1.bf16.msra.mxu0 %v6869
        %7057 = vmatprep.subr.bf16.mxu0 %v6873
        %7058 = vmatpush1.bf16.msra.mxu0 %v6872
        %7059 = vmatprep.subr.bf16.mxu0 %v6876
        %7060 = vmatpush1.bf16.msra.mxu0 %v6875
        %7061 = vmatprep.subr.bf16.mxu0 %v6879
        %7062 = vmatpush1.bf16.msra.mxu0 %v6878
        %7063 = vmatprep.subr.bf16.mxu0 %v6882
        %7064 = vmatpush1.bf16.msra.mxu0 %v6881
        %7065 = vmatprep.subr.bf16.mxu0 %v6885
        %7066 = vmatpush1.bf16.msra.mxu0 %v6884
        %7067 = vmatprep.subr.bf16.mxu0 %v6888
        %7068 = vmatpush1.bf16.msra.mxu0 %v6887
        %7069 = vmatprep.subr.bf16.mxu0 %v6891
        %7070 = vmatpush1.bf16.msra.mxu0 %v6890
        %7071 = vmatprep.subr.bf16.mxu0 %v6894
        %7072 = vmatpush1.bf16.msra.mxu0 %v6893
        %7073 = vmatprep.subr.bf16.mxu0 %v6897
        %7074 = vmatpush1.bf16.msra.mxu0 %v6896
        %7075 = vmatprep.mubr.bf16.mxu0 %v6372
        %7076 = vmatmul.mubr.bf16.gmra.mrb[0].mxu0 %v6371
        %v7077 = vpop.f32.mrb[0].mxu0
        %v7078 = vadd.f32 0.0, %v7077
        %v7079 = vpop.f32.mrb[0].mxu0
        %v7080 = vadd.f32 0.0, %v7079
        %v7081 = vpop.f32.mrb[0].mxu0
        %v7082 = vadd.f32 0.0, %v7081
        %v7083 = vpop.f32.mrb[0].mxu0
        %v7084 = vadd.f32 0.0, %v7083
        %7085 = vmatprep.mubr.bf16.mxu0 %v6376
        %7086 = vmatmul.mubr.bf16.gmra.mrb[0].mxu0 %v6375
        %v7087 = vpop.f32.mrb[0].mxu0
        %v7088 = vadd.f32 0.0, %v7087
        %v7089 = vpop.f32.mrb[0].mxu0
        %v7090 = vadd.f32 0.0, %v7089
        %v7091 = vpop.f32.mrb[0].mxu0
        %v7092 = vadd.f32 0.0, %v7091
        %v7093 = vpop.f32.mrb[0].mxu0
        %v7094 = vadd.f32 0.0, %v7093
        %7095 = vmatprep.mubr.bf16.mxu0 %v6380
        %7096 = vmatmul.mubr.bf16.gmra.mrb[0].mxu0 %v6379
        %v7097 = vpop.f32.mrb[0].mxu0
        %v7098 = vadd.f32 0.0, %v7097
        %v7099 = vpop.f32.mrb[0].mxu0
        %v7100 = vadd.f32 0.0, %v7099
        %v7101 = vpop.f32.mrb[0].mxu0
        %v7102 = vadd.f32 0.0, %v7101
        %v7103 = vpop.f32.mrb[0].mxu0
        %v7104 = vadd.f32 0.0, %v7103
        %7105 = vmatprep.mubr.bf16.mxu0 %v6384
        %7106 = vmatmul.mubr.bf16.gmra.mrb[0].mxu0 %v6383
        %v7107 = vpop.f32.mrb[0].mxu0
        %v7108 = vadd.f32 0.0, %v7107
        %v7109 = vpop.f32.mrb[0].mxu0
        %v7110 = vadd.f32 0.0, %v7109
        %v7111 = vpop.f32.mrb[0].mxu0
        %v7112 = vadd.f32 0.0, %v7111
        %v7113 = vpop.f32.mrb[0].mxu0
        %v7114 = vadd.f32 0.0, %v7113
        %7115 = vmatprep.mubr.bf16.mxu0 %v6388
        %7116 = vmatmul.mubr.bf16.gmra.mrb[0].mxu0 %v6387
        %v7117 = vpop.f32.mrb[0].mxu0
        %v7118 = vadd.f32 0.0, %v7117
        %v7119 = vpop.f32.mrb[0].mxu0
        %v7120 = vadd.f32 0.0, %v7119
        %v7121 = vpop.f32.mrb[0].mxu0
        %v7122 = vadd.f32 0.0, %v7121
        %v7123 = vpop.f32.mrb[0].mxu0
        %v7124 = vadd.f32 0.0, %v7123
        %7125 = vmatprep.mubr.bf16.mxu0 %v6392
        %7126 = vmatmul.mubr.bf16.gmra.mrb[0].mxu0 %v6391
        %v7127 = vpop.f32.mrb[0].mxu0
        %v7128 = vadd.f32 0.0, %v7127
        %v7129 = vpop.f32.mrb[0].mxu0
        %v7130 = vadd.f32 0.0, %v7129
        %v7131 = vpop.f32.mrb[0].mxu0
        %v7132 = vadd.f32 0.0, %v7131
        %v7133 = vpop.f32.mrb[0].mxu0
        %v7134 = vadd.f32 0.0, %v7133
        %7135 = vmatprep.mubr.bf16.mxu0 %v6396
        %7136 = vmatmul.mubr.bf16.gmra.mrb[0].mxu0 %v6395
        %v7137 = vpop.f32.mrb[0].mxu0
        %v7138 = vadd.f32 0.0, %v7137
        %v7139 = vpop.f32.mrb[0].mxu0
        %v7140 = vadd.f32 0.0, %v7139
        %v7141 = vpop.f32.mrb[0].mxu0
        %v7142 = vadd.f32 0.0, %v7141
        %v7143 = vpop.f32.mrb[0].mxu0
        %v7144 = vadd.f32 0.0, %v7143
        %7145 = vmatprep.mubr.bf16.mxu0 %v6400
        %7146 = vmatmul.mubr.bf16.gmra.mrb[0].mxu0 %v6399
        %v7147 = vpop.f32.mrb[0].mxu0
        %v7148 = vadd.f32 0.0, %v7147
        %v7149 = vpop.f32.mrb[0].mxu0
        %v7150 = vadd.f32 0.0, %v7149
        %v7151 = vpop.f32.mrb[0].mxu0
        %v7152 = vadd.f32 0.0, %v7151
        %v7153 = vpop.f32.mrb[0].mxu0
        %v7154 = vadd.f32 0.0, %v7153
        %7155 = vdwg.mxu0
        %7156 = vmatprep.subr.bf16.mxu0 %v6900
        %7157 = vmatpush1.bf16.msra.mxu0 %v6899
        %7158 = vmatprep.subr.bf16.mxu0 %v6903
        %7159 = vmatpush1.bf16.msra.mxu0 %v6902
        %7160 = vmatprep.subr.bf16.mxu0 %v6906
        %7161 = vmatpush1.bf16.msra.mxu0 %v6905
        %7162 = vmatprep.subr.bf16.mxu0 %v6909
        %7163 = vmatpush1.bf16.msra.mxu0 %v6908
        %7164 = vmatprep.subr.bf16.mxu0 %v6912
        %7165 = vmatpush1.bf16.msra.mxu0 %v6911
        %7166 = vmatprep.subr.bf16.mxu0 %v6915
        %7167 = vmatpush1.bf16.msra.mxu0 %v6914
        %7168 = vmatprep.subr.bf16.mxu0 %v6918
        %7169 = vmatpush1.bf16.msra.mxu0 %v6917
        %7170 = vmatprep.subr.bf16.mxu0 %v6921
        %7171 = vmatpush1.bf16.msra.mxu0 %v6920
        %7172 = vmatprep.subr.bf16.mxu0 %v6924
        %7173 = vmatpush1.bf16.msra.mxu0 %v6923
        %7174 = vmatprep.subr.bf16.mxu0 %v6927
        %7175 = vmatpush1.bf16.msra.mxu0 %v6926
        %7176 = vmatprep.subr.bf16.mxu0 %v6930
        %7177 = vmatpush1.bf16.msra.mxu0 %v6929
        %7178 = vmatprep.subr.bf16.mxu0 %v6933
        %7179 = vmatpush1.bf16.msra.mxu0 %v6932
        %7180 = vmatprep.subr.bf16.mxu0 %v6936
        %7181 = vmatpush1.bf16.msra.mxu0 %v6935
        %7182 = vmatprep.subr.bf16.mxu0 %v6939
        %7183 = vmatpush1.bf16.msra.mxu0 %v6938
        %7184 = vmatprep.subr.bf16.mxu0 %v6942
        %7185 = vmatpush1.bf16.msra.mxu0 %v6941
        %7186 = vmatprep.subr.bf16.mxu0 %v6945
        %7187 = vmatpush1.bf16.msra.mxu0 %v6944
        %7188 = vmatprep.mubr.bf16.mxu0 %v6374
        %7189 = vmatmul.mubr.bf16.gmra.mrb[0].mxu0 %v6373
        %v7190 = vpop.f32.mrb[0].mxu0
        %v7191 = vadd.f32 %v7078, %v7190
        %v7192 = vpop.f32.mrb[0].mxu0
        %v7193 = vadd.f32 %v7080, %v7192
        %v7194 = vpop.f32.mrb[0].mxu0
        %v7195 = vadd.f32 %v7082, %v7194
        %v7196 = vpop.f32.mrb[0].mxu0
        %v7197 = vadd.f32 %v7084, %v7196
        %7198 = vmatprep.mubr.bf16.mxu0 %v6378
        %7199 = vmatmul.mubr.bf16.gmra.mrb[0].mxu0 %v6377
        %v7200 = vpop.f32.mrb[0].mxu0
        %v7201 = vadd.f32 %v7088, %v7200
        %v7202 = vpop.f32.mrb[0].mxu0
        %v7203 = vadd.f32 %v7090, %v7202
        %v7204 = vpop.f32.mrb[0].mxu0
        %v7205 = vadd.f32 %v7092, %v7204
        %v7206 = vpop.f32.mrb[0].mxu0
        %v7207 = vadd.f32 %v7094, %v7206
        %7208 = vmatprep.mubr.bf16.mxu0 %v6382
        %7209 = vmatmul.mubr.bf16.gmra.mrb[0].mxu0 %v6381
        %v7210 = vpop.f32.mrb[0].mxu0
        %v7211 = vadd.f32 %v7098, %v7210
        %v7212 = vpop.f32.mrb[0].mxu0
        %v7213 = vadd.f32 %v7100, %v7212
        %v7214 = vpop.f32.mrb[0].mxu0
        %v7215 = vadd.f32 %v7102, %v7214
        %v7216 = vpop.f32.mrb[0].mxu0
        %v7217 = vadd.f32 %v7104, %v7216
        %7218 = vmatprep.mubr.bf16.mxu0 %v6386
        %7219 = vmatmul.mubr.bf16.gmra.mrb[0].mxu0 %v6385
        %v7220 = vpop.f32.mrb[0].mxu0
        %v7221 = vadd.f32 %v7108, %v7220
        %v7222 = vpop.f32.mrb[0].mxu0
        %v7223 = vadd.f32 %v7110, %v7222
        %v7224 = vpop.f32.mrb[0].mxu0
        %v7225 = vadd.f32 %v7112, %v7224
        %v7226 = vpop.f32.mrb[0].mxu0
        %v7227 = vadd.f32 %v7114, %v7226
        %7228 = vmatprep.mubr.bf16.mxu0 %v6390
        %7229 = vmatmul.mubr.bf16.gmra.mrb[0].mxu0 %v6389
        %v7230 = vpop.f32.mrb[0].mxu0
        %v7231 = vadd.f32 %v7118, %v7230
        %v7232 = vpop.f32.mrb[0].mxu0
        %v7233 = vadd.f32 %v7120, %v7232
        %v7234 = vpop.f32.mrb[0].mxu0
        %v7235 = vadd.f32 %v7122, %v7234
        %v7236 = vpop.f32.mrb[0].mxu0
        %v7237 = vadd.f32 %v7124, %v7236
        %7238 = vmatprep.mubr.bf16.mxu0 %v6394
        %7239 = vmatmul.mubr.bf16.gmra.mrb[0].mxu0 %v6393
        %v7240 = vpop.f32.mrb[0].mxu0
        %v7241 = vadd.f32 %v7128, %v7240
        %v7242 = vpop.f32.mrb[0].mxu0
        %v7243 = vadd.f32 %v7130, %v7242
        %v7244 = vpop.f32.mrb[0].mxu0
        %v7245 = vadd.f32 %v7132, %v7244
        %v7246 = vpop.f32.mrb[0].mxu0
        %v7247 = vadd.f32 %v7134, %v7246
        %7248 = vmatprep.mubr.bf16.mxu0 %v6398
        %7249 = vmatmul.mubr.bf16.gmra.mrb[0].mxu0 %v6397
        %v7250 = vpop.f32.mrb[0].mxu0
        %v7251 = vadd.f32 %v7138, %v7250
        %v7252 = vpop.f32.mrb[0].mxu0
        %v7253 = vadd.f32 %v7140, %v7252
        %v7254 = vpop.f32.mrb[0].mxu0
        %v7255 = vadd.f32 %v7142, %v7254
        %v7256 = vpop.f32.mrb[0].mxu0
        %v7257 = vadd.f32 %v7144, %v7256
        %7258 = vmatprep.mubr.bf16.mxu0 %v6402
        %7259 = vmatmul.mubr.bf16.gmra.mrb[0].mxu0 %v6401
        %v7260 = vpop.f32.mrb[0].mxu0
        %v7261 = vadd.f32 %v7148, %v7260
        %v7262 = vpop.f32.mrb[0].mxu0
        %v7263 = vadd.f32 %v7150, %v7262
        %v7264 = vpop.f32.mrb[0].mxu0
        %v7265 = vadd.f32 %v7152, %v7264
        %v7266 = vpop.f32.mrb[0].mxu0
        %v7267 = vadd.f32 %v7154, %v7266
        %7268 = vdwg.mxu0
        %7269 = vmatprep.subr.bf16.mxu0 0
        %7270 = vmatpush1.bf16.msra.mxu0 %v6853
        %7271 = vmatprep.subr.bf16.mxu0 0
        %7272 = vmatpush1.bf16.msra.mxu0 %v6856
        %7273 = vmatprep.subr.bf16.mxu0 0
        %7274 = vmatpush1.bf16.msra.mxu0 %v6859
        %7275 = vmatprep.subr.bf16.mxu0 0
        %7276 = vmatpush1.bf16.msra.mxu0 %v6862
        %7277 = vmatprep.subr.bf16.mxu0 0
        %7278 = vmatpush1.bf16.msra.mxu0 %v6865
        %7279 = vmatprep.subr.bf16.mxu0 0
        %7280 = vmatpush1.bf16.msra.mxu0 %v6868
        %7281 = vmatprep.subr.bf16.mxu0 0
        %7282 = vmatpush1.bf16.msra.mxu0 %v6871
        %7283 = vmatprep.subr.bf16.mxu0 0
        %7284 = vmatpush1.bf16.msra.mxu0 %v6874
        %7285 = vmatprep.subr.bf16.mxu0 0
        %7286 = vmatpush1.bf16.msra.mxu0 %v6877
        %7287 = vmatprep.subr.bf16.mxu0 0
        %7288 = vmatpush1.bf16.msra.mxu0 %v6880
        %7289 = vmatprep.subr.bf16.mxu0 0
        %7290 = vmatpush1.bf16.msra.mxu0 %v6883
        %7291 = vmatprep.subr.bf16.mxu0 0
        %7292 = vmatpush1.bf16.msra.mxu0 %v6886
        %7293 = vmatprep.subr.bf16.mxu0 0
        %7294 = vmatpush1.bf16.msra.mxu0 %v6889
        %7295 = vmatprep.subr.bf16.mxu0 0
        %7296 = vmatpush1.bf16.msra.mxu0 %v6892
        %7297 = vmatprep.subr.bf16.mxu0 0
        %7298 = vmatpush1.bf16.msra.mxu0 %v6895
        %7299 = vmatprep.subr.bf16.mxu0 0
        %7300 = vmatpush1.bf16.msra.mxu0 %v6898
        %7301 = vmatprep.mubr.bf16.mxu0 %v6372
        %7302 = vmatmul.mubr.bf16.gmra.mrb[0].mxu0 %v6371
        %v7303 = vpop.f32.mrb[0].mxu0
        %v7304 = vadd.f32 0.0, %v7303
        %v7305 = vpop.f32.mrb[0].mxu0
        %v7306 = vpop.f32.mrb[0].mxu0
        %v7307 = vadd.f32 0.0, %v7306
        %v7308 = vpop.f32.mrb[0].mxu0
        %7309 = vmatprep.mubr.bf16.mxu0 %v6376
        %7310 = vmatmul.mubr.bf16.gmra.mrb[0].mxu0 %v6375
        %v7311 = vpop.f32.mrb[0].mxu0
        %v7312 = vadd.f32 0.0, %v7311
        %v7313 = vpop.f32.mrb[0].mxu0
        %v7314 = vpop.f32.mrb[0].mxu0
        %v7315 = vadd.f32 0.0, %v7314
        %v7316 = vpop.f32.mrb[0].mxu0
        %7317 = vmatprep.mubr.bf16.mxu0 %v6380
        %7318 = vmatmul.mubr.bf16.gmra.mrb[0].mxu0 %v6379
        %v7319 = vpop.f32.mrb[0].mxu0
        %v7320 = vadd.f32 0.0, %v7319
        %v7321 = vpop.f32.mrb[0].mxu0
        %v7322 = vpop.f32.mrb[0].mxu0
        %v7323 = vadd.f32 0.0, %v7322
        %v7324 = vpop.f32.mrb[0].mxu0
        %7325 = vmatprep.mubr.bf16.mxu0 %v6384
        %7326 = vmatmul.mubr.bf16.gmra.mrb[0].mxu0 %v6383
        %v7327 = vpop.f32.mrb[0].mxu0
        %v7328 = vadd.f32 0.0, %v7327
        %v7329 = vpop.f32.mrb[0].mxu0
        %v7330 = vpop.f32.mrb[0].mxu0
        %v7331 = vadd.f32 0.0, %v7330
        %v7332 = vpop.f32.mrb[0].mxu0
        %7333 = vmatprep.mubr.bf16.mxu0 %v6388
        %7334 = vmatmul.mubr.bf16.gmra.mrb[0].mxu0 %v6387
        %v7335 = vpop.f32.mrb[0].mxu0
        %v7336 = vadd.f32 0.0, %v7335
        %v7337 = vpop.f32.mrb[0].mxu0
        %v7338 = vpop.f32.mrb[0].mxu0
        %v7339 = vadd.f32 0.0, %v7338
        %v7340 = vpop.f32.mrb[0].mxu0
        %7341 = vmatprep.mubr.bf16.mxu0 %v6392
        %7342 = vmatmul.mubr.bf16.gmra.mrb[0].mxu0 %v6391
        %v7343 = vpop.f32.mrb[0].mxu0
        %v7344 = vadd.f32 0.0, %v7343
        %v7345 = vpop.f32.mrb[0].mxu0
        %v7346 = vpop.f32.mrb[0].mxu0
        %v7347 = vadd.f32 0.0, %v7346
        %v7348 = vpop.f32.mrb[0].mxu0
        %7349 = vmatprep.mubr.bf16.mxu0 %v6396
        %7350 = vmatmul.mubr.bf16.gmra.mrb[0].mxu0 %v6395
        %v7351 = vpop.f32.mrb[0].mxu0
        %v7352 = vadd.f32 0.0, %v7351
        %v7353 = vpop.f32.mrb[0].mxu0
        %v7354 = vpop.f32.mrb[0].mxu0
        %v7355 = vadd.f32 0.0, %v7354
        %v7356 = vpop.f32.mrb[0].mxu0
        %7357 = vmatprep.mubr.bf16.mxu0 %v6400
        %7358 = vmatmul.mubr.bf16.gmra.mrb[0].mxu0 %v6399
        %v7359 = vpop.f32.mrb[0].mxu0
        %v7360 = vadd.f32 0.0, %v7359
        %v7361 = vpop.f32.mrb[0].mxu0
        %v7362 = vpop.f32.mrb[0].mxu0
        %v7363 = vadd.f32 0.0, %v7362
        %v7364 = vpop.f32.mrb[0].mxu0
        %7365 = vdwg.mxu0
        %7366 = vmatprep.subr.bf16.mxu0 0
        %7367 = vmatpush1.bf16.msra.mxu0 %v6901
        %7368 = vmatprep.subr.bf16.mxu0 0
        %7369 = vmatpush1.bf16.msra.mxu0 %v6904
        %7370 = vmatprep.subr.bf16.mxu0 0
        %7371 = vmatpush1.bf16.msra.mxu0 %v6907
        %7372 = vmatprep.subr.bf16.mxu0 0
        %7373 = vmatpush1.bf16.msra.mxu0 %v6910
        %7374 = vmatprep.subr.bf16.mxu0 0
        %7375 = vmatpush1.bf16.msra.mxu0 %v6913
        %7376 = vmatprep.subr.bf16.mxu0 0
        %7377 = vmatpush1.bf16.msra.mxu0 %v6916
        %7378 = vmatprep.subr.bf16.mxu0 0
        %7379 = vmatpush1.bf16.msra.mxu0 %v6919
        %7380 = vmatprep.subr.bf16.mxu0 0
        %7381 = vmatpush1.bf16.msra.mxu0 %v6922
        %7382 = vmatprep.subr.bf16.mxu0 0
        %7383 = vmatpush1.bf16.msra.mxu0 %v6925
        %7384 = vmatprep.subr.bf16.mxu0 0
        %7385 = vmatpush1.bf16.msra.mxu0 %v6928
        %7386 = vmatprep.subr.bf16.mxu0 0
        %7387 = vmatpush1.bf16.msra.mxu0 %v6931
        %7388 = vmatprep.subr.bf16.mxu0 0
        %7389 = vmatpush1.bf16.msra.mxu0 %v6934
        %7390 = vmatprep.subr.bf16.mxu0 0
        %7391 = vmatpush1.bf16.msra.mxu0 %v6937
        %7392 = vmatprep.subr.bf16.mxu0 0
        %7393 = vmatpush1.bf16.msra.mxu0 %v6940
        %7394 = vmatprep.subr.bf16.mxu0 0
        %7395 = vmatpush1.bf16.msra.mxu0 %v6943
        %7396 = vmatprep.subr.bf16.mxu0 0
        %7397 = vmatpush1.bf16.msra.mxu0 %v6946
        %7398 = vmatprep.mubr.bf16.mxu0 %v6374
        %7399 = vmatmul.mubr.bf16.gmra.mrb[0].mxu0 %v6373
        %v7400 = vpop.f32.mrb[0].mxu0
        %v7401 = vadd.f32 %v7304, %v7400
        %v7402 = vpop.f32.mrb[0].mxu0
        %v7403 = vpop.f32.mrb[0].mxu0
        %v7404 = vadd.f32 %v7307, %v7403
        %v7405 = vpop.f32.mrb[0].mxu0
        %7406 = vmatprep.mubr.bf16.mxu0 %v6378
        %7407 = vmatmul.mubr.bf16.gmra.mrb[0].mxu0 %v6377
        %v7408 = vpop.f32.mrb[0].mxu0
        %v7409 = vadd.f32 %v7312, %v7408
        %v7410 = vpop.f32.mrb[0].mxu0
        %v7411 = vpop.f32.mrb[0].mxu0
        %v7412 = vadd.f32 %v7315, %v7411
        %v7413 = vpop.f32.mrb[0].mxu0
        %7414 = vmatprep.mubr.bf16.mxu0 %v6382
        %7415 = vmatmul.mubr.bf16.gmra.mrb[0].mxu0 %v6381
        %v7416 = vpop.f32.mrb[0].mxu0
        %v7417 = vadd.f32 %v7320, %v7416
        %v7418 = vpop.f32.mrb[0].mxu0
        %v7419 = vpop.f32.mrb[0].mxu0
        %v7420 = vadd.f32 %v7323, %v7419
        %v7421 = vpop.f32.mrb[0].mxu0
        %7422 = vmatprep.mubr.bf16.mxu0 %v6386
        %7423 = vmatmul.mubr.bf16.gmra.mrb[0].mxu0 %v6385
        %v7424 = vpop.f32.mrb[0].mxu0
        %v7425 = vadd.f32 %v7328, %v7424
        %v7426 = vpop.f32.mrb[0].mxu0
        %v7427 = vpop.f32.mrb[0].mxu0
        %v7428 = vadd.f32 %v7331, %v7427
        %v7429 = vpop.f32.mrb[0].mxu0
        %7430 = vmatprep.mubr.bf16.mxu0 %v6390
        %7431 = vmatmul.mubr.bf16.gmra.mrb[0].mxu0 %v6389
        %v7432 = vpop.f32.mrb[0].mxu0
        %v7433 = vadd.f32 %v7336, %v7432
        %v7434 = vpop.f32.mrb[0].mxu0
        %v7435 = vpop.f32.mrb[0].mxu0
        %v7436 = vadd.f32 %v7339, %v7435
        %v7437 = vpop.f32.mrb[0].mxu0
        %7438 = vmatprep.mubr.bf16.mxu0 %v6394
        %7439 = vmatmul.mubr.bf16.gmra.mrb[0].mxu0 %v6393
        %v7440 = vpop.f32.mrb[0].mxu0
        %v7441 = vadd.f32 %v7344, %v7440
        %v7442 = vpop.f32.mrb[0].mxu0
        %v7443 = vpop.f32.mrb[0].mxu0
        %v7444 = vadd.f32 %v7347, %v7443
        %v7445 = vpop.f32.mrb[0].mxu0
        %7446 = vmatprep.mubr.bf16.mxu0 %v6398
        %7447 = vmatmul.mubr.bf16.gmra.mrb[0].mxu0 %v6397
        %v7448 = vpop.f32.mrb[0].mxu0
        %v7449 = vadd.f32 %v7352, %v7448
        %v7450 = vpop.f32.mrb[0].mxu0
        %v7451 = vpop.f32.mrb[0].mxu0
        %v7452 = vadd.f32 %v7355, %v7451
        %v7453 = vpop.f32.mrb[0].mxu0
        %7454 = vmatprep.mubr.bf16.mxu0 %v6402
        %7455 = vmatmul.mubr.bf16.gmra.mrb[0].mxu0 %v6401
        %v7456 = vpop.f32.mrb[0].mxu0
        %v7457 = vadd.f32 %v7360, %v7456
        %v7458 = vpop.f32.mrb[0].mxu0
        %v7459 = vpop.f32.mrb[0].mxu0
        %v7460 = vadd.f32 %v7363, %v7459
        %v7461 = vpop.f32.mrb[0].mxu0
        %7462 = vdwg.mxu0
        %v7463 = vadd.f32 %v6323, %v7191
        %v7464 = vadd.f32 %v6324, %v7193
        %v7465 = vadd.f32 %v6325, %v7401
        %v7466 = vadd.f32 %v6326, %v7195
        %v7467 = vadd.f32 %v6327, %v7197
        %v7468 = vadd.f32 %v6328, %v7404
        %v7469 = vadd.f32 %v6329, %v7201
        %v7470 = vadd.f32 %v6330, %v7203
        %v7471 = vadd.f32 %v6331, %v7409
        %v7472 = vadd.f32 %v6332, %v7205
        %v7473 = vadd.f32 %v6333, %v7207
        %v7474 = vadd.f32 %v6334, %v7412
        %v7475 = vadd.f32 %v6335, %v7211
        %v7476 = vadd.f32 %v6336, %v7213
        %v7477 = vadd.f32 %v6337, %v7417
        %v7478 = vadd.f32 %v6338, %v7215
        %v7479 = vadd.f32 %v6339, %v7217
        %v7480 = vadd.f32 %v6340, %v7420
        %v7481 = vadd.f32 %v6341, %v7221
        %v7482 = vadd.f32 %v6342, %v7223
        %v7483 = vadd.f32 %v6343, %v7425
        %v7484 = vadd.f32 %v6344, %v7225
        %v7485 = vadd.f32 %v6345, %v7227
        %v7486 = vadd.f32 %v6346, %v7428
        %v7487 = vadd.f32 %v6347, %v7231
        %v7488 = vadd.f32 %v6348, %v7233
        %v7489 = vadd.f32 %v6349, %v7433
        %v7490 = vadd.f32 %v6350, %v7235
        %v7491 = vadd.f32 %v6351, %v7237
        %v7492 = vadd.f32 %v6352, %v7436
        %v7493 = vadd.f32 %v6353, %v7241
        %v7494 = vadd.f32 %v6354, %v7243
        %v7495 = vadd.f32 %v6355, %v7441
        %v7496 = vadd.f32 %v6356, %v7245
        %v7497 = vadd.f32 %v6357, %v7247
        %v7498 = vadd.f32 %v6358, %v7444
        %v7499 = vadd.f32 %v6359, %v7251
        %v7500 = vadd.f32 %v6360, %v7253
        %v7501 = vadd.f32 %v6361, %v7449
        %v7502 = vadd.f32 %v6362, %v7255
        %v7503 = vadd.f32 %v6363, %v7257
        %v7504 = vadd.f32 %v6364, %v7452
        %v7505 = vadd.f32 %v6365, %v7261
        %v7506 = vadd.f32 %v6366, %v7263
        %v7507 = vadd.f32 %v6367, %v7457
        %v7508 = vadd.f32 %v6368, %v7265
        %v7509 = vadd.f32 %v6369, %v7267
        %v7510 = vadd.f32 %v6370, %v7460
        %7511 = vst [vmem:[#allocation2] sm:$0xff] %v7463
        %7512 = vst [vmem:[#allocation2 + $0x8] sm:$0xff] %v7464
        %7513 = vst [vmem:[#allocation2 + $0x10] sm:$0xff] %v7465
        %7514 = vst [vmem:[#allocation2 + $0x18] sm:$0xff] %v7466
        %7515 = vst [vmem:[#allocation2 + $0x20] sm:$0xff] %v7467
        %7516 = vst [vmem:[#allocation2 + $0x28] sm:$0xff] %v7468
        %7517 = vst [vmem:[#allocation2 + $0x30] sm:$0xff] %v7469
        %7518 = vst [vmem:[#allocation2 + $0x38] sm:$0xff] %v7470
        %7519 = vst [vmem:[#allocation2 + $0x40] sm:$0xff] %v7471
        %7520 = vst [vmem:[#allocation2 + $0x48] sm:$0xff] %v7472
        %7521 = vst [vmem:[#allocation2 + $0x50] sm:$0xff] %v7473
        %7522 = vst [vmem:[#allocation2 + $0x58] sm:$0xff] %v7474
        %7523 = vst [vmem:[#allocation2 + $0x60] sm:$0xff] %v7475
        %7524 = vst [vmem:[#allocation2 + $0x68] sm:$0xff] %v7476
        %7525 = vst [vmem:[#allocation2 + $0x70] sm:$0xff] %v7477
        %7526 = vst [vmem:[#allocation2 + $0x78] sm:$0xff] %v7478
        %7527 = vst [vmem:[#allocation2 + $0x80] sm:$0xff] %v7479
        %7528 = vst [vmem:[#allocation2 + $0x88] sm:$0xff] %v7480
        %7529 = vst [vmem:[#allocation2 + $0x90] sm:$0xff] %v7481
        %7530 = vst [vmem:[#allocation2 + $0x98] sm:$0xff] %v7482
        %7531 = vst [vmem:[#allocation2 + $0xa0] sm:$0xff] %v7483
        %7532 = vst [vmem:[#allocation2 + $0xa8] sm:$0xff] %v7484
        %7533 = vst [vmem:[#allocation2 + $0xb0] sm:$0xff] %v7485
        %7534 = vst [vmem:[#allocation2 + $0xb8] sm:$0xff] %v7486
        %7535 = vst [vmem:[#allocation2 + $0xc0] sm:$0xff] %v7487
        %7536 = vst [vmem:[#allocation2 + $0xc8] sm:$0xff] %v7488
        %7537 = vst [vmem:[#allocation2 + $0xd0] sm:$0xff] %v7489
        %7538 = vst [vmem:[#allocation2 + $0xd8] sm:$0xff] %v7490
        %7539 = vst [vmem:[#allocation2 + $0xe0] sm:$0xff] %v7491
        %7540 = vst [vmem:[#allocation2 + $0xe8] sm:$0xff] %v7492
        %7541 = vst [vmem:[#allocation2 + $0xf0] sm:$0xff] %v7493
        %7542 = vst [vmem:[#allocation2 + $0xf8] sm:$0xff] %v7494
        %7543 = vst [vmem:[#allocation2 + $0x100] sm:$0xff] %v7495
        %7544 = vst [vmem:[#allocation2 + $0x108] sm:$0xff] %v7496
        %7545 = vst [vmem:[#allocation2 + $0x110] sm:$0xff] %v7497
        %7546 = vst [vmem:[#allocation2 + $0x118] sm:$0xff] %v7498
        %7547 = vst [vmem:[#allocation2 + $0x120] sm:$0xff] %v7499
        %7548 = vst [vmem:[#allocation2 + $0x128] sm:$0xff] %v7500
        %7549 = vst [vmem:[#allocation2 + $0x130] sm:$0xff] %v7501
        %7550 = vst [vmem:[#allocation2 + $0x138] sm:$0xff] %v7502
        %7551 = vst [vmem:[#allocation2 + $0x140] sm:$0xff] %v7503
        %7552 = vst [vmem:[#allocation2 + $0x148] sm:$0xff] %v7504
        %7553 = vst [vmem:[#allocation2 + $0x150] sm:$0xff] %v7505
        %7554 = vst [vmem:[#allocation2 + $0x158] sm:$0xff] %v7506
        %7555 = vst [vmem:[#allocation2 + $0x160] sm:$0xff] %v7507
        %7556 = vst [vmem:[#allocation2 + $0x168] sm:$0xff] %v7508
        %7557 = vst [vmem:[#allocation2 + $0x170] sm:$0xff] %v7509
        %7558 = vst [vmem:[#allocation2 + $0x178] sm:$0xff] %v7510
        %v7559 = vld [vmem:[#allocation2] sm:$0xff]
        %v7560 = vld [vmem:[#allocation2 + $0x8] sm:$0xff]
        %v7561 = vld [vmem:[#allocation2 + $0x10] sm:$0xff]
        %v7562 = vld [vmem:[#allocation2 + $0x18] sm:$0xff]
        %v7563 = vld [vmem:[#allocation2 + $0x20] sm:$0xff]
        %v7564 = vld [vmem:[#allocation2 + $0x28] sm:$0xff]
        %v7565 = vld [vmem:[#allocation2 + $0x30] sm:$0xff]
        %v7566 = vld [vmem:[#allocation2 + $0x38] sm:$0xff]
        %v7567 = vld [vmem:[#allocation2 + $0x40] sm:$0xff]
        %v7568 = vld [vmem:[#allocation2 + $0x48] sm:$0xff]
        %v7569 = vld [vmem:[#allocation2 + $0x50] sm:$0xff]
        %v7570 = vld [vmem:[#allocation2 + $0x58] sm:$0xff]
        %v7571 = vld [vmem:[#allocation2 + $0x60] sm:$0xff]
        %v7572 = vld [vmem:[#allocation2 + $0x68] sm:$0xff]
        %v7573 = vld [vmem:[#allocation2 + $0x70] sm:$0xff]
        %v7574 = vld [vmem:[#allocation2 + $0x78] sm:$0xff]
        %v7575 = vld [vmem:[#allocation2 + $0x80] sm:$0xff]
        %v7576 = vld [vmem:[#allocation2 + $0x88] sm:$0xff]
        %v7577 = vld [vmem:[#allocation2 + $0x90] sm:$0xff]
        %v7578 = vld [vmem:[#allocation2 + $0x98] sm:$0xff]
        %v7579 = vld [vmem:[#allocation2 + $0xa0] sm:$0xff]
        %v7580 = vld [vmem:[#allocation2 + $0xa8] sm:$0xff]
        %v7581 = vld [vmem:[#allocation2 + $0xb0] sm:$0xff]
        %v7582 = vld [vmem:[#allocation2 + $0xb8] sm:$0xff]
        %v7583 = vld [vmem:[#allocation2 + $0xc0] sm:$0xff]
        %v7584 = vld [vmem:[#allocation2 + $0xc8] sm:$0xff]
        %v7585 = vld [vmem:[#allocation2 + $0xd0] sm:$0xff]
        %v7586 = vld [vmem:[#allocation2 + $0xd8] sm:$0xff]
        %v7587 = vld [vmem:[#allocation2 + $0xe0] sm:$0xff]
        %v7588 = vld [vmem:[#allocation2 + $0xe8] sm:$0xff]
        %v7589 = vld [vmem:[#allocation2 + $0xf0] sm:$0xff]
        %v7590 = vld [vmem:[#allocation2 + $0xf8] sm:$0xff]
        %v7591 = vld [vmem:[#allocation2 + $0x100] sm:$0xff]
        %v7592 = vld [vmem:[#allocation2 + $0x108] sm:$0xff]
        %v7593 = vld [vmem:[#allocation2 + $0x110] sm:$0xff]
        %v7594 = vld [vmem:[#allocation2 + $0x118] sm:$0xff]
        %v7595 = vld [vmem:[#allocation2 + $0x120] sm:$0xff]
        %v7596 = vld [vmem:[#allocation2 + $0x128] sm:$0xff]
        %v7597 = vld [vmem:[#allocation2 + $0x130] sm:$0xff]
        %v7598 = vld [vmem:[#allocation2 + $0x138] sm:$0xff]
        %v7599 = vld [vmem:[#allocation2 + $0x140] sm:$0xff]
        %v7600 = vld [vmem:[#allocation2 + $0x148] sm:$0xff]
        %v7601 = vld [vmem:[#allocation2 + $0x150] sm:$0xff]
        %v7602 = vld [vmem:[#allocation2 + $0x158] sm:$0xff]
        %v7603 = vld [vmem:[#allocation2 + $0x160] sm:$0xff]
        %v7604 = vld [vmem:[#allocation2 + $0x168] sm:$0xff]
        %v7605 = vld [vmem:[#allocation2 + $0x170] sm:$0xff]
        %v7606 = vld [vmem:[#allocation2 + $0x178] sm:$0xff]
        %v7607 = vld [vmem:[#allocation11] sm:$0x7]
        %v7609 = vlaneseq
        %v7610 = vshrl.u32 %v7609, 7
        %v7611 = vsub.s32 0, %v7610
        %v7612 = vrot.slane %v7607, %v7611
        %v7613 = vlaneseq
        %v7614 = vshrl.u32 %v7613, 7
        %v7615 = vsub.s32 1, %v7614
        %v7616 = vrot.slane %v7607, %v7615
        %v7617 = vlaneseq
        %v7618 = vshrl.u32 %v7617, 7
        %v7619 = vsub.s32 2, %v7618
        %v7620 = vrot.slane %v7607, %v7619
        %v7624 = vadd.f32 %v7559, %v7612
        %v7625 = vadd.f32 %v7560, %v7616
        %v7626 = vadd.f32 %v7561, %v7620
        %v7627 = vadd.f32 %v7562, %v7612
        %v7628 = vadd.f32 %v7563, %v7616
        %v7629 = vadd.f32 %v7564, %v7620
        %v7630 = vadd.f32 %v7565, %v7612
        %v7631 = vadd.f32 %v7566, %v7616
        %v7632 = vadd.f32 %v7567, %v7620
        %v7633 = vadd.f32 %v7568, %v7612
        %v7634 = vadd.f32 %v7569, %v7616
        %v7635 = vadd.f32 %v7570, %v7620
        %v7636 = vadd.f32 %v7571, %v7612
        %v7637 = vadd.f32 %v7572, %v7616
        %v7638 = vadd.f32 %v7573, %v7620
        %v7639 = vadd.f32 %v7574, %v7612
        %v7640 = vadd.f32 %v7575, %v7616
        %v7641 = vadd.f32 %v7576, %v7620
        %v7642 = vadd.f32 %v7577, %v7612
        %v7643 = vadd.f32 %v7578, %v7616
        %v7644 = vadd.f32 %v7579, %v7620
        %v7645 = vadd.f32 %v7580, %v7612
        %v7646 = vadd.f32 %v7581, %v7616
        %v7647 = vadd.f32 %v7582, %v7620
        %v7648 = vadd.f32 %v7583, %v7612
        %v7649 = vadd.f32 %v7584, %v7616
        %v7650 = vadd.f32 %v7585, %v7620
        %v7651 = vadd.f32 %v7586, %v7612
        %v7652 = vadd.f32 %v7587, %v7616
        %v7653 = vadd.f32 %v7588, %v7620
        %v7654 = vadd.f32 %v7589, %v7612
        %v7655 = vadd.f32 %v7590, %v7616
        %v7656 = vadd.f32 %v7591, %v7620
        %v7657 = vadd.f32 %v7592, %v7612
        %v7658 = vadd.f32 %v7593, %v7616
        %v7659 = vadd.f32 %v7594, %v7620
        %v7660 = vadd.f32 %v7595, %v7612
        %v7661 = vadd.f32 %v7596, %v7616
        %v7662 = vadd.f32 %v7597, %v7620
        %v7663 = vadd.f32 %v7598, %v7612
        %v7664 = vadd.f32 %v7599, %v7616
        %v7665 = vadd.f32 %v7600, %v7620
        %v7666 = vadd.f32 %v7601, %v7612
        %v7667 = vadd.f32 %v7602, %v7616
        %v7668 = vadd.f32 %v7603, %v7620
        %v7669 = vadd.f32 %v7604, %v7612
        %v7670 = vadd.f32 %v7605, %v7616
        %v7671 = vadd.f32 %v7606, %v7620
        %v7672 = vpack.c.bf16 %v7627, %v7624
        %v7673 = vpack.c.bf16 %v7628, %v7625
        %v7674 = vpack.c.bf16 %v7629, %v7626
        %v7675 = vpack.c.bf16 %v7633, %v7630
        %v7676 = vpack.c.bf16 %v7634, %v7631
        %v7677 = vpack.c.bf16 %v7635, %v7632
        %v7678 = vpack.c.bf16 %v7639, %v7636
        %v7679 = vpack.c.bf16 %v7640, %v7637
        %v7680 = vpack.c.bf16 %v7641, %v7638
        %v7681 = vpack.c.bf16 %v7645, %v7642
        %v7682 = vpack.c.bf16 %v7646, %v7643
        %v7683 = vpack.c.bf16 %v7647, %v7644
        %v7684 = vpack.c.bf16 %v7651, %v7648
        %v7685 = vpack.c.bf16 %v7652, %v7649
        %v7686 = vpack.c.bf16 %v7653, %v7650
        %v7687 = vpack.c.bf16 %v7657, %v7654
        %v7688 = vpack.c.bf16 %v7658, %v7655
        %v7689 = vpack.c.bf16 %v7659, %v7656
        %v7690 = vpack.c.bf16 %v7663, %v7660
        %v7691 = vpack.c.bf16 %v7664, %v7661
        %v7692 = vpack.c.bf16 %v7665, %v7662
        %v7693 = vpack.c.bf16 %v7669, %v7666
        %v7694 = vpack.c.bf16 %v7670, %v7667
        %v7695 = vpack.c.bf16 %v7671, %v7668
        %v7720 = vunpack.c.l.b16 %v7672
        %v7721 = vunpack.c.l.b16 %v7673
        %v7722 = vunpack.c.l.b16 %v7674
        %v7723 = vunpack.c.h.b16 %v7672
        %v7724 = vunpack.c.h.b16 %v7673
        %v7725 = vunpack.c.h.b16 %v7674
        %v7726 = vunpack.c.l.b16 %v7675
        %v7727 = vunpack.c.l.b16 %v7676
        %v7728 = vunpack.c.l.b16 %v7677
        %v7729 = vunpack.c.h.b16 %v7675
        %v7730 = vunpack.c.h.b16 %v7676
        %v7731 = vunpack.c.h.b16 %v7677
        %v7732 = vunpack.c.l.b16 %v7678
        %v7733 = vunpack.c.l.b16 %v7679
        %v7734 = vunpack.c.l.b16 %v7680
        %v7735 = vunpack.c.h.b16 %v7678
        %v7736 = vunpack.c.h.b16 %v7679
        %v7737 = vunpack.c.h.b16 %v7680
        %v7738 = vunpack.c.l.b16 %v7681
        %v7739 = vunpack.c.l.b16 %v7682
        %v7740 = vunpack.c.l.b16 %v7683
        %v7741 = vunpack.c.h.b16 %v7681
        %v7742 = vunpack.c.h.b16 %v7682
        %v7743 = vunpack.c.h.b16 %v7683
        %v7744 = vunpack.c.l.b16 %v7684
        %v7745 = vunpack.c.l.b16 %v7685
        %v7746 = vunpack.c.l.b16 %v7686
        %v7747 = vunpack.c.h.b16 %v7684
        %v7748 = vunpack.c.h.b16 %v7685
        %v7749 = vunpack.c.h.b16 %v7686
        %v7750 = vunpack.c.l.b16 %v7687
        %v7751 = vunpack.c.l.b16 %v7688
        %v7752 = vunpack.c.l.b16 %v7689
        %v7753 = vunpack.c.h.b16 %v7687
        %v7754 = vunpack.c.h.b16 %v7688
        %v7755 = vunpack.c.h.b16 %v7689
        %v7756 = vunpack.c.l.b16 %v7690
        %v7757 = vunpack.c.l.b16 %v7691
        %v7758 = vunpack.c.l.b16 %v7692
        %v7759 = vunpack.c.h.b16 %v7690
        %v7760 = vunpack.c.h.b16 %v7691
        %v7761 = vunpack.c.h.b16 %v7692
        %v7762 = vunpack.c.l.b16 %v7693
        %v7763 = vunpack.c.l.b16 %v7694
        %v7764 = vunpack.c.l.b16 %v7695
        %v7765 = vunpack.c.h.b16 %v7693
        %v7766 = vunpack.c.h.b16 %v7694
        %v7767 = vunpack.c.h.b16 %v7695
        %v7768 = vpack.c.b16 %v7721, %v7720
        %v7769 = vpack.c.b16 %v7722, %v7722
        %v7770 = vpack.c.b16 %v7724, %v7723
        %v7771 = vpack.c.b16 %v7725, %v7725
        %v7772 = vpack.c.b16 %v7727, %v7726
        %v7773 = vpack.c.b16 %v7728, %v7728
        %v7774 = vpack.c.b16 %v7730, %v7729
        %v7775 = vpack.c.b16 %v7731, %v7731
        %v7776 = vpack.c.b16 %v7733, %v7732
        %v7777 = vpack.c.b16 %v7734, %v7734
        %v7778 = vpack.c.b16 %v7736, %v7735
        %v7779 = vpack.c.b16 %v7737, %v7737
        %v7780 = vpack.c.b16 %v7739, %v7738
        %v7781 = vpack.c.b16 %v7740, %v7740
        %v7782 = vpack.c.b16 %v7742, %v7741
        %v7783 = vpack.c.b16 %v7743, %v7743
        %v7784 = vpack.c.b16 %v7745, %v7744
        %v7785 = vpack.c.b16 %v7746, %v7746
        %v7786 = vpack.c.b16 %v7748, %v7747
        %v7787 = vpack.c.b16 %v7749, %v7749
        %v7788 = vpack.c.b16 %v7751, %v7750
        %v7789 = vpack.c.b16 %v7752, %v7752
        %v7790 = vpack.c.b16 %v7754, %v7753
        %v7791 = vpack.c.b16 %v7755, %v7755
        %v7792 = vpack.c.b16 %v7757, %v7756
        %v7793 = vpack.c.b16 %v7758, %v7758
        %v7794 = vpack.c.b16 %v7760, %v7759
        %v7795 = vpack.c.b16 %v7761, %v7761
        %v7796 = vpack.c.b16 %v7763, %v7762
        %v7797 = vpack.c.b16 %v7764, %v7764
        %v7798 = vpack.c.b16 %v7766, %v7765
        %v7799 = vpack.c.b16 %v7767, %v7767
        %7832 = vst [vmem:[%s297] sm:$0xff] %v7768
        %7833 = vst [vmem:[%s297 + $0x8] sm:$0xf] %v7769
        %7834 = vst [vmem:[%s297 + $0xc] sm:$0xff] %v7770
        %7835 = vst [vmem:[%s297 + $0x14] sm:$0xf] %v7771
        %7836 = vst [vmem:[%s297 + $0x18] sm:$0xff] %v7772
        %7837 = vst [vmem:[%s297 + $0x20] sm:$0xf] %v7773
        %7838 = vst [vmem:[%s297 + $0x24] sm:$0xff] %v7774
        %7839 = vst [vmem:[%s297 + $0x2c] sm:$0xf] %v7775
        %7840 = vst [vmem:[%s297 + $0x30] sm:$0xff] %v7776
        %7841 = vst [vmem:[%s297 + $0x38] sm:$0xf] %v7777
        %7842 = vst [vmem:[%s297 + $0x3c] sm:$0xff] %v7778
        %7843 = vst [vmem:[%s297 + $0x44] sm:$0xf] %v7779
        %7844 = vst [vmem:[%s297 + $0x48] sm:$0xff] %v7780
        %7845 = vst [vmem:[%s297 + $0x50] sm:$0xf] %v7781
        %7846 = vst [vmem:[%s297 + $0x54] sm:$0xff] %v7782
        %7847 = vst [vmem:[%s297 + $0x5c] sm:$0xf] %v7783
        %7848 = vst [vmem:[%s297 + $0x60] sm:$0xff] %v7784
        %7849 = vst [vmem:[%s297 + $0x68] sm:$0xf] %v7785
        %7850 = vst [vmem:[%s297 + $0x6c] sm:$0xff] %v7786
        %7851 = vst [vmem:[%s297 + $0x74] sm:$0xf] %v7787
        %7852 = vst [vmem:[%s297 + $0x78] sm:$0xff] %v7788
        %7853 = vst [vmem:[%s297 + $0x80] sm:$0xf] %v7789
        %7854 = vst [vmem:[%s297 + $0x84] sm:$0xff] %v7790
        %7855 = vst [vmem:[%s297 + $0x8c] sm:$0xf] %v7791
        %7856 = vst [vmem:[%s297 + $0x90] sm:$0xff] %v7792
        %7857 = vst [vmem:[%s297 + $0x98] sm:$0xf] %v7793
        %7858 = vst [vmem:[%s297 + $0x9c] sm:$0xff] %v7794
        %7859 = vst [vmem:[%s297 + $0xa4] sm:$0xf] %v7795
        %7860 = vst [vmem:[%s297 + $0xa8] sm:$0xff] %v7796
        %7861 = vst [vmem:[%s297 + $0xb0] sm:$0xf] %v7797
        %7862 = vst [vmem:[%s297 + $0xb4] sm:$0xff] %v7798
        %7863 = vst [vmem:[%s297 + $0xbc] sm:$0xf] %v7799
        %s7864 = sand.u32 %s142, 1
        %s7865 = scalar_lea.sflag [#allocation5], %s7864
        %s7866 = sand.u32 %s142, 1
        %s7867 = smul.addr %s7866, 192
        %s7868 = scalar_lea.vmem [#allocation12], %s7867
        // Predicated region
        $region61: #{tpu_custom_call.1} parent=39 // pred_check
          %p7869 = pneg %p152
        $region62: #{tpu_custom_call.1} parent=39 // pred_check_branch
          %7871 = sbr.rel (%p7869) target = $region64
        $region63: #{tpu_custom_call.1} parent=39 // pred_region
          %s7872 = smul.u32 16, %s24
          %s7874 = ssub.s32 3072, 3072
          %7875 = vsyncadd %s7865, %s7874
          %s7876 = smul.addr %s7872, 3
          %s7877 = smul.addr %s7876, 64
          %s7878 = scalar_lea.hbm %s5, %s7877
          %s7879 = sshll.u32 %s7868, 4
          %s7880 = int_to_ptr.vmem [resolvable:$true] %s7879
          %7885 = dma.vmem_to_hbm [thread:$0]  %s7880, 3072, %s7878, %s7865, 192, 192, 12
        $region64: #{tpu_custom_call.1} parent=39 // pred_fallthru
          _
      $region40: #{tpu_custom_call.1} parent=5 // pred_fallthru
        _
      %p7886 = scmp.le.s32.totalorder 2, %s19
      // Predicated region
      $region65: #{tpu_custom_call.1} parent=5 // pred_check
        %p7887 = pneg %p7886
      $region66: #{tpu_custom_call.1} parent=5 // pred_check_branch
        %7889 = sbr.rel (%p7887) target = $region68
      $region67: #{tpu_custom_call.1} parent=5 // pred_region
        %s7890 = ssub.s32 %s19, 2
        // Predicated region
        $region69: #{tpu_custom_call.1} parent=67 // pred_check
          %p7891 = pneg %p158
        $region70: #{tpu_custom_call.1} parent=67 // pred_check_branch
          %7893 = sbr.rel (%p7891) target = $region72
        $region71: #{tpu_custom_call.1} parent=67 // pred_region
          %s7894 = sand.u32 %s143, 1
          %s7895 = scalar_lea.sflag [#allocation5], %s7894
          %s7896 = sand.u32 %s143, 1
          %s7897 = smul.addr %s7896, 192
          %s7898 = scalar_lea.vmem [#allocation12], %s7897
          %7899 = dma.done %s7895, 3072
        $region72: #{tpu_custom_call.1} parent=67 // pred_fallthru
          _
      $region68: #{tpu_custom_call.1} parent=5 // pred_fallthru
        _
    $region6: #{tpu_custom_call.1} parent=1 // loop_footer
      %s23 = sadd.s32 1, %s19
    $region7: #{tpu_custom_call.1} parent=1 // loop_footer_branch
      %18 = sbr.rel target = $region3
    $region8: #{tpu_custom_call.1} parent=1 // loop_exit
      _
    %7900 = vsyncpa [#allocation4], 1
    %s7901 = scalar_lea.sflag [#allocation4], 1
    %7902 = vsyncpa %s7901, 1
    %7903 = vsyncpa [#allocation7], 1
    %7904 = vsyncpa [#allocation10], 1
    %7905 = vsyncpa [#allocation5], 1
    %s7906 = scalar_lea.sflag [#allocation5], 1
    %7907 = vsyncpa %s7906, 1

</llo_original>
